<compile_context>
chip_gen: v7x
topology: tpu7x:2x2x1
jax: 0.10.0
libtpu: 0.0.40
codegen_flags: <defaults>
</compile_context>

<pallas_src>
import jax
import jax.numpy as jnp
import numpy as np
from jax import lax
from jax.experimental import pallas as pl
from jax.experimental.pallas import tpu as pltpu

_EPS = 1e-5


# ----------------------------- fused kernel ----------------------------------
def _triple_conv_kernel(x_ref,
                        w1_ref, b1_ref, g1_ref, be1_ref,
                        w2_ref, b2_ref, g2_ref, be2_ref,
                        w3_ref, b3_ref, g3_ref, be3_ref,
                        o_ref):
    def pad_hw(v):
        # zero 'same' padding (pad=1 on H and W), built in VMEM via concat with zeros.
        n, h, w, c = v.shape
        zrow = jnp.zeros((n, 1, w, c), v.dtype)
        v = jnp.concatenate([zrow, v, zrow], axis=1)       # (n, h+2, w,   c)
        zcol = jnp.zeros((n, h + 2, 1, c), v.dtype)
        return jnp.concatenate([zcol, v, zcol], axis=2)    # (n, h+2, w+2, c)

    def conv_bn_relu(v, w_ref, b_ref, g_ref, beta_ref):
        n, h, w, c = v.shape
        cout = w_ref.shape[-1]
        xp = pad_hw(v)
        # im2col: 9 shifted taps concatenated on the lane axis -> one K=9*c MXU matmul.
        taps = [xp[:, kh:kh + h, kw:kw + w, :]
                for kh in range(3) for kw in range(3)]
        patches = jnp.concatenate(taps, axis=-1).reshape(n * h * w, 9 * c)
        acc = jnp.dot(patches, w_ref[...], preferred_element_type=jnp.float32)
        acc = acc + b_ref[...]                             # (1, cout) broadcast
        # BatchNorm (training semantics): stats over all N*H*W rows, per channel.
        cnt = float(n * h * w)
        mean = jnp.sum(acc, axis=0, keepdims=True) / cnt
        d = acc - mean
        var = jnp.sum(d * d, axis=0, keepdims=True) / cnt  # biased variance
        y = d * lax.rsqrt(var + _EPS) * g_ref[...] + beta_ref[...]
        y = jnp.maximum(y, 0.0)                            # ReLU
        return y.reshape(n, h, w, cout)

    x = x_ref[...].astype(jnp.float32)
    y = conv_bn_relu(x, w1_ref, b1_ref, g1_ref, be1_ref)
    y = conv_bn_relu(y, w2_ref, b2_ref, g2_ref, be2_ref)
    y = conv_bn_relu(y, w3_ref, b3_ref, g3_ref, be3_ref)
    o_ref[...] = y.astype(o_ref.dtype)


def _full_spec(shape):
    index_map = {2: lambda i: (0, 0), 4: lambda i: (0, 0, 0, 0)}[len(shape)]
    return pl.BlockSpec(shape, index_map)


# ------------------------------ wrapper ---------------------------------------
def triple_conv(x_nchw, p):
    """TripleConv forward: NCHW in -> NCHW out (like PyTorch)."""
    N, Cin, H, W = x_nchw.shape
    Cout = p["w1"].shape[-1]
    x = jnp.transpose(x_nchw, (0, 2, 3, 1))                # NCHW -> NHWC (C on lanes)

    args = (
        x,
        p["w1"].reshape(9 * Cin, Cout), p["b1"].reshape(1, Cout),
        p["g1"].reshape(1, Cout), p["be1"].reshape(1, Cout),
        p["w2"].reshape(9 * Cout, Cout), p["b2"].reshape(1, Cout),
        p["g2"].reshape(1, Cout), p["be2"].reshape(1, Cout),
        p["w3"].reshape(9 * Cout, Cout), p["b3"].reshape(1, Cout),
        p["g3"].reshape(1, Cout), p["be3"].reshape(1, Cout),
    )

    out = pl.pallas_call(
        _triple_conv_kernel,
        out_shape=jax.ShapeDtypeStruct((N, H, W, Cout), jnp.float32),
        grid=(1,),
        in_specs=[_full_spec(a.shape) for a in args],
        out_specs=_full_spec((N, H, W, Cout)),
        compiler_params=pltpu.CompilerParams(dimension_semantics=("arbitrary",)),
    )(*args)

    return jnp.transpose(out, (0, 3, 1, 2))                # NHWC -> NCHW


# ------------------------------ pure-JAX ref ----------------------------------
def _ref_forward(x_nchw, p):
    x = jnp.transpose(x_nchw, (0, 2, 3, 1))

    def conv(v, w_hwio, b):
        y = lax.conv_general_dilated(
            v, w_hwio, window_strides=(1, 1), padding=((1, 1), (1, 1)),
            dimension_numbers=("NHWC", "HWIO", "NHWC"))
        return y + b.reshape(1, 1, 1, -1)

    def bn_relu(v, g, be):
        m = jnp.mean(v, axis=(0, 1, 2), keepdims=True)
        var = jnp.mean((v - m) ** 2, axis=(0, 1, 2), keepdims=True)
        return jnp.maximum((v - m) * lax.rsqrt(var + _EPS) * g.reshape(1, 1, 1, -1)
                           + be.reshape(1, 1, 1, -1), 0.0)

    v = bn_relu(conv(x, p["w1"], p["b1"]), p["g1"], p["be1"])
    v = bn_relu(conv(v, p["w2"], p["b2"]), p["g2"], p["be2"])
    v = bn_relu(conv(v, p["w3"], p["b3"]), p["g3"], p["be3"])
    return jnp.transpose(v, (0, 3, 1, 2))


# ------------------------------ param init ------------------------------------
def _init_conv(key, cin, cout):
    kw_, kb_ = jax.random.split(key)
    bound = 1.0 / np.sqrt(cin * 9)
    w = jax.random.uniform(kw_, (3, 3, cin, cout), jnp.float32, -bound, bound)
    b = jax.random.uniform(kb_, (cout,), jnp.float32, -bound, bound)
    return w, b


def make_params(key, in_ch, out_ch):
    ks = jax.random.split(key, 9)
    p = {}
    p["w1"], p["b1"] = _init_conv(ks[0], in_ch, out_ch)
    p["w2"], p["b2"] = _init_conv(ks[1], out_ch, out_ch)
    p["w3"], p["b3"] = _init_conv(ks[2], out_ch, out_ch)
    for i, s in enumerate(("1", "2", "3")):
        p["g" + s] = 1.0 + 0.1 * jax.random.normal(ks[3 + 2 * i], (out_ch,), jnp.float32)
        p["be" + s] = 0.1 * jax.random.normal(ks[4 + 2 * i], (out_ch,), jnp.float32)
    return p


if __name__ == "__main__":
    N, in_ch, H, W = 2, 4, 16, 16
    out_ch = 16

    key = jax.random.PRNGKey(0)
    kx, kp = jax.random.split(key)
    x = jax.random.normal(kx, (N, in_ch, H, W), jnp.float32)   # NCHW, like PyTorch
    params = make_params(kp, in_ch, out_ch)

    out = jax.block_until_ready(triple_conv(x, params))
    assert out.shape == (N, out_ch, H, W), out.shape

    ref = jax.block_until_ready(_ref_forward(x, params))
    np.testing.assert_allclose(np.asarray(out), np.asarray(ref), rtol=1e-2, atol=1e-2)

    print("KERNEL_OK")
</pallas_src>

<mosaic_0001>
module attributes {stable_mosaic.version = 11 : i64} {
  func.func @_triple_conv_kernel(%arg0: i32, %arg1: memref<2x16x16x4xf32, #tpu.memory_space<vmem>>, %arg2: memref<36x16xf32, #tpu.memory_space<vmem>>, %arg3: memref<1x16xf32, #tpu.memory_space<vmem>>, %arg4: memref<1x16xf32, #tpu.memory_space<vmem>>, %arg5: memref<1x16xf32, #tpu.memory_space<vmem>>, %arg6: memref<144x16xf32, #tpu.memory_space<vmem>>, %arg7: memref<1x16xf32, #tpu.memory_space<vmem>>, %arg8: memref<1x16xf32, #tpu.memory_space<vmem>>, %arg9: memref<1x16xf32, #tpu.memory_space<vmem>>, %arg10: memref<144x16xf32, #tpu.memory_space<vmem>>, %arg11: memref<1x16xf32, #tpu.memory_space<vmem>>, %arg12: memref<1x16xf32, #tpu.memory_space<vmem>>, %arg13: memref<1x16xf32, #tpu.memory_space<vmem>>, %arg14: memref<2x16x16x16xf32, #tpu.memory_space<vmem>>) attributes {dimension_semantics = [#tpu.dimension_semantics<arbitrary>], iteration_bounds = array<i64: 1>, scalar_prefetch = 0 : i64, scratch_operands = 0 : i64, tpu.core_type = #tpu.core_type<tc>, window_params = [{pipeline_mode = #tpu.pipeline_mode<synchronous>, transform_indices = @transform_0, window_bounds = array<i64: 2, 16, 16, 4>}, {pipeline_mode = #tpu.pipeline_mode<synchronous>, transform_indices = @transform_1, window_bounds = array<i64: 36, 16>}, {pipeline_mode = #tpu.pipeline_mode<synchronous>, transform_indices = @transform_2, window_bounds = array<i64: 1, 16>}, {pipeline_mode = #tpu.pipeline_mode<synchronous>, transform_indices = @transform_3, window_bounds = array<i64: 1, 16>}, {pipeline_mode = #tpu.pipeline_mode<synchronous>, transform_indices = @transform_4, window_bounds = array<i64: 1, 16>}, {pipeline_mode = #tpu.pipeline_mode<synchronous>, transform_indices = @transform_5, window_bounds = array<i64: 144, 16>}, {pipeline_mode = #tpu.pipeline_mode<synchronous>, transform_indices = @transform_6, window_bounds = array<i64: 1, 16>}, {pipeline_mode = #tpu.pipeline_mode<synchronous>, transform_indices = @transform_7, window_bounds = array<i64: 1, 16>}, {pipeline_mode = #tpu.pipeline_mode<synchronous>, transform_indices = @transform_8, window_bounds = array<i64: 1, 16>}, {pipeline_mode = #tpu.pipeline_mode<synchronous>, transform_indices = @transform_9, window_bounds = array<i64: 144, 16>}, {pipeline_mode = #tpu.pipeline_mode<synchronous>, transform_indices = @transform_10, window_bounds = array<i64: 1, 16>}, {pipeline_mode = #tpu.pipeline_mode<synchronous>, transform_indices = @transform_11, window_bounds = array<i64: 1, 16>}, {pipeline_mode = #tpu.pipeline_mode<synchronous>, transform_indices = @transform_12, window_bounds = array<i64: 1, 16>}, {pipeline_mode = #tpu.pipeline_mode<synchronous>, transform_indices = @transform_13, window_bounds = array<i64: 2, 16, 16, 16>}]} {
    %c0 = arith.constant 0 : index
    %c0_0 = arith.constant 0 : index
    %c0_1 = arith.constant 0 : index
    %c0_2 = arith.constant 0 : index
    %0 = vector.load %arg1[%c0, %c0_0, %c0_1, %c0_2] : memref<2x16x16x4xf32, #tpu.memory_space<vmem>>, vector<2x16x16x4xf32>
    %cst = arith.constant 0.000000e+00 : f32
    %1 = vector.broadcast %cst : f32 to vector<2x1x16x4xf32>
    %2 = tpu.concatenate %1, %0, %1 in 1 : vector<2x1x16x4xf32>, vector<2x16x16x4xf32>, vector<2x1x16x4xf32> -> vector<2x18x16x4xf32>
    %cst_3 = arith.constant 0.000000e+00 : f32
    %3 = vector.broadcast %cst_3 : f32 to vector<2x18x1x4xf32>
    %4 = tpu.concatenate %3, %2, %3 in 2 : vector<2x18x1x4xf32>, vector<2x18x16x4xf32>, vector<2x18x1x4xf32> -> vector<2x18x18x4xf32>
    %5 = vector.extract_strided_slice %4 {offsets = [0, 0, 0, 0], sizes = [2, 16, 16, 4], strides = [1, 1, 1, 1]} : vector<2x18x18x4xf32> to vector<2x16x16x4xf32>
    %6 = vector.extract_strided_slice %4 {offsets = [0, 0, 1, 0], sizes = [2, 16, 16, 4], strides = [1, 1, 1, 1]} : vector<2x18x18x4xf32> to vector<2x16x16x4xf32>
    %7 = vector.extract_strided_slice %4 {offsets = [0, 0, 2, 0], sizes = [2, 16, 16, 4], strides = [1, 1, 1, 1]} : vector<2x18x18x4xf32> to vector<2x16x16x4xf32>
    %8 = vector.extract_strided_slice %4 {offsets = [0, 1, 0, 0], sizes = [2, 16, 16, 4], strides = [1, 1, 1, 1]} : vector<2x18x18x4xf32> to vector<2x16x16x4xf32>
    %9 = vector.extract_strided_slice %4 {offsets = [0, 1, 1, 0], sizes = [2, 16, 16, 4], strides = [1, 1, 1, 1]} : vector<2x18x18x4xf32> to vector<2x16x16x4xf32>
    %10 = vector.extract_strided_slice %4 {offsets = [0, 1, 2, 0], sizes = [2, 16, 16, 4], strides = [1, 1, 1, 1]} : vector<2x18x18x4xf32> to vector<2x16x16x4xf32>
    %11 = vector.extract_strided_slice %4 {offsets = [0, 2, 0, 0], sizes = [2, 16, 16, 4], strides = [1, 1, 1, 1]} : vector<2x18x18x4xf32> to vector<2x16x16x4xf32>
    %12 = vector.extract_strided_slice %4 {offsets = [0, 2, 1, 0], sizes = [2, 16, 16, 4], strides = [1, 1, 1, 1]} : vector<2x18x18x4xf32> to vector<2x16x16x4xf32>
    %13 = vector.extract_strided_slice %4 {offsets = [0, 2, 2, 0], sizes = [2, 16, 16, 4], strides = [1, 1, 1, 1]} : vector<2x18x18x4xf32> to vector<2x16x16x4xf32>
    %14 = tpu.concatenate %5, %6, %7, %8, %9, %10, %11, %12, %13 in 3 : vector<2x16x16x4xf32>, vector<2x16x16x4xf32>, vector<2x16x16x4xf32>, vector<2x16x16x4xf32>, vector<2x16x16x4xf32>, vector<2x16x16x4xf32>, vector<2x16x16x4xf32>, vector<2x16x16x4xf32>, vector<2x16x16x4xf32> -> vector<2x16x16x36xf32>
    %15 = vector.shape_cast %14 : vector<2x16x16x36xf32> to vector<512x36xf32>
    %c0_4 = arith.constant 0 : index
    %c0_5 = arith.constant 0 : index
    %16 = vector.load %arg2[%c0_4, %c0_5] : memref<36x16xf32, #tpu.memory_space<vmem>>, vector<36x16xf32>
    %cst_6 = arith.constant dense<0.000000e+00> : vector<512x16xf32>
    %17 = tpu.matmul %15, %16, %cst_6 {dimension_numbers = #tpu.dot_dimension_numbers<[1], [0], [0], [1], [0, 0, 1, 1], [], []>} : vector<512x36xf32>, vector<36x16xf32>, vector<512x16xf32> -> vector<512x16xf32>
    %c0_7 = arith.constant 0 : index
    %c0_8 = arith.constant 0 : index
    %18 = vector.load %arg3[%c0_7, %c0_8] : memref<1x16xf32, #tpu.memory_space<vmem>>, vector<1x16xf32>
    %19 = vector.broadcast %18 : vector<1x16xf32> to vector<512x16xf32>
    %20 = arith.addf %17, %19 : vector<512x16xf32>
    %cst_9 = arith.constant dense<0.000000e+00> : vector<16xf32>
    %21 = vector.multi_reduction <add>, %20, %cst_9 [0] : vector<512x16xf32> to vector<16xf32>
    %22 = vector.shape_cast %21 : vector<16xf32> to vector<1x16xf32>
    %cst_10 = arith.constant 5.120000e+02 : f32
    %23 = vector.broadcast %cst_10 : f32 to vector<1x16xf32>
    %24 = arith.divf %22, %23 : vector<1x16xf32>
    %25 = vector.broadcast %24 : vector<1x16xf32> to vector<512x16xf32>
    %26 = arith.subf %20, %25 : vector<512x16xf32>
    %27 = arith.mulf %26, %26 : vector<512x16xf32>
    %cst_11 = arith.constant dense<0.000000e+00> : vector<16xf32>
    %28 = vector.multi_reduction <add>, %27, %cst_11 [0] : vector<512x16xf32> to vector<16xf32>
    %29 = vector.shape_cast %28 : vector<16xf32> to vector<1x16xf32>
    %cst_12 = arith.constant 5.120000e+02 : f32
    %30 = vector.broadcast %cst_12 : f32 to vector<1x16xf32>
    %31 = arith.divf %29, %30 : vector<1x16xf32>
    %cst_13 = arith.constant 9.99999974E-6 : f32
    %32 = vector.broadcast %cst_13 : f32 to vector<1x16xf32>
    %33 = arith.addf %31, %32 : vector<1x16xf32>
    %34 = math.rsqrt %33 : vector<1x16xf32>
    %35 = vector.broadcast %34 : vector<1x16xf32> to vector<512x16xf32>
    %36 = arith.mulf %26, %35 : vector<512x16xf32>
    %c0_14 = arith.constant 0 : index
    %c0_15 = arith.constant 0 : index
    %37 = vector.load %arg4[%c0_14, %c0_15] : memref<1x16xf32, #tpu.memory_space<vmem>>, vector<1x16xf32>
    %38 = vector.broadcast %37 : vector<1x16xf32> to vector<512x16xf32>
    %39 = arith.mulf %36, %38 : vector<512x16xf32>
    %c0_16 = arith.constant 0 : index
    %c0_17 = arith.constant 0 : index
    %40 = vector.load %arg5[%c0_16, %c0_17] : memref<1x16xf32, #tpu.memory_space<vmem>>, vector<1x16xf32>
    %41 = vector.broadcast %40 : vector<1x16xf32> to vector<512x16xf32>
    %42 = arith.addf %39, %41 : vector<512x16xf32>
    %cst_18 = arith.constant 0.000000e+00 : f32
    %43 = vector.broadcast %cst_18 : f32 to vector<512x16xf32>
    %44 = arith.maximumf %42, %43 : vector<512x16xf32>
    %45 = vector.shape_cast %44 : vector<512x16xf32> to vector<2x16x16x16xf32>
    %cst_19 = arith.constant 0.000000e+00 : f32
    %46 = vector.broadcast %cst_19 : f32 to vector<2x1x16x16xf32>
    %47 = tpu.concatenate %46, %45, %46 in 1 : vector<2x1x16x16xf32>, vector<2x16x16x16xf32>, vector<2x1x16x16xf32> -> vector<2x18x16x16xf32>
    %cst_20 = arith.constant 0.000000e+00 : f32
    %48 = vector.broadcast %cst_20 : f32 to vector<2x18x1x16xf32>
    %49 = tpu.concatenate %48, %47, %48 in 2 : vector<2x18x1x16xf32>, vector<2x18x16x16xf32>, vector<2x18x1x16xf32> -> vector<2x18x18x16xf32>
    %50 = vector.extract_strided_slice %49 {offsets = [0, 0, 0, 0], sizes = [2, 16, 16, 16], strides = [1, 1, 1, 1]} : vector<2x18x18x16xf32> to vector<2x16x16x16xf32>
    %51 = vector.extract_strided_slice %49 {offsets = [0, 0, 1, 0], sizes = [2, 16, 16, 16], strides = [1, 1, 1, 1]} : vector<2x18x18x16xf32> to vector<2x16x16x16xf32>
    %52 = vector.extract_strided_slice %49 {offsets = [0, 0, 2, 0], sizes = [2, 16, 16, 16], strides = [1, 1, 1, 1]} : vector<2x18x18x16xf32> to vector<2x16x16x16xf32>
    %53 = vector.extract_strided_slice %49 {offsets = [0, 1, 0, 0], sizes = [2, 16, 16, 16], strides = [1, 1, 1, 1]} : vector<2x18x18x16xf32> to vector<2x16x16x16xf32>
    %54 = vector.extract_strided_slice %49 {offsets = [0, 1, 1, 0], sizes = [2, 16, 16, 16], strides = [1, 1, 1, 1]} : vector<2x18x18x16xf32> to vector<2x16x16x16xf32>
    %55 = vector.extract_strided_slice %49 {offsets = [0, 1, 2, 0], sizes = [2, 16, 16, 16], strides = [1, 1, 1, 1]} : vector<2x18x18x16xf32> to vector<2x16x16x16xf32>
    %56 = vector.extract_strided_slice %49 {offsets = [0, 2, 0, 0], sizes = [2, 16, 16, 16], strides = [1, 1, 1, 1]} : vector<2x18x18x16xf32> to vector<2x16x16x16xf32>
    %57 = vector.extract_strided_slice %49 {offsets = [0, 2, 1, 0], sizes = [2, 16, 16, 16], strides = [1, 1, 1, 1]} : vector<2x18x18x16xf32> to vector<2x16x16x16xf32>
    %58 = vector.extract_strided_slice %49 {offsets = [0, 2, 2, 0], sizes = [2, 16, 16, 16], strides = [1, 1, 1, 1]} : vector<2x18x18x16xf32> to vector<2x16x16x16xf32>
    %59 = tpu.concatenate %50, %51, %52, %53, %54, %55, %56, %57, %58 in 3 : vector<2x16x16x16xf32>, vector<2x16x16x16xf32>, vector<2x16x16x16xf32>, vector<2x16x16x16xf32>, vector<2x16x16x16xf32>, vector<2x16x16x16xf32>, vector<2x16x16x16xf32>, vector<2x16x16x16xf32>, vector<2x16x16x16xf32> -> vector<2x16x16x144xf32>
    %60 = vector.shape_cast %59 : vector<2x16x16x144xf32> to vector<512x144xf32>
    %c0_21 = arith.constant 0 : index
    %c0_22 = arith.constant 0 : index
    %61 = vector.load %arg6[%c0_21, %c0_22] : memref<144x16xf32, #tpu.memory_space<vmem>>, vector<144x16xf32>
    %cst_23 = arith.constant dense<0.000000e+00> : vector<512x16xf32>
    %62 = tpu.matmul %60, %61, %cst_23 {dimension_numbers = #tpu.dot_dimension_numbers<[1], [0], [0], [1], [0, 0, 1, 1], [], []>} : vector<512x144xf32>, vector<144x16xf32>, vector<512x16xf32> -> vector<512x16xf32>
    %c0_24 = arith.constant 0 : index
    %c0_25 = arith.constant 0 : index
    %63 = vector.load %arg7[%c0_24, %c0_25] : memref<1x16xf32, #tpu.memory_space<vmem>>, vector<1x16xf32>
    %64 = vector.broadcast %63 : vector<1x16xf32> to vector<512x16xf32>
    %65 = arith.addf %62, %64 : vector<512x16xf32>
    %cst_26 = arith.constant dense<0.000000e+00> : vector<16xf32>
    %66 = vector.multi_reduction <add>, %65, %cst_26 [0] : vector<512x16xf32> to vector<16xf32>
    %67 = vector.shape_cast %66 : vector<16xf32> to vector<1x16xf32>
    %cst_27 = arith.constant 5.120000e+02 : f32
    %68 = vector.broadcast %cst_27 : f32 to vector<1x16xf32>
    %69 = arith.divf %67, %68 : vector<1x16xf32>
    %70 = vector.broadcast %69 : vector<1x16xf32> to vector<512x16xf32>
    %71 = arith.subf %65, %70 : vector<512x16xf32>
    %72 = arith.mulf %71, %71 : vector<512x16xf32>
    %cst_28 = arith.constant dense<0.000000e+00> : vector<16xf32>
    %73 = vector.multi_reduction <add>, %72, %cst_28 [0] : vector<512x16xf32> to vector<16xf32>
    %74 = vector.shape_cast %73 : vector<16xf32> to vector<1x16xf32>
    %cst_29 = arith.constant 5.120000e+02 : f32
    %75 = vector.broadcast %cst_29 : f32 to vector<1x16xf32>
    %76 = arith.divf %74, %75 : vector<1x16xf32>
    %cst_30 = arith.constant 9.99999974E-6 : f32
    %77 = vector.broadcast %cst_30 : f32 to vector<1x16xf32>
    %78 = arith.addf %76, %77 : vector<1x16xf32>
    %79 = math.rsqrt %78 : vector<1x16xf32>
    %80 = vector.broadcast %79 : vector<1x16xf32> to vector<512x16xf32>
    %81 = arith.mulf %71, %80 : vector<512x16xf32>
    %c0_31 = arith.constant 0 : index
    %c0_32 = arith.constant 0 : index
    %82 = vector.load %arg8[%c0_31, %c0_32] : memref<1x16xf32, #tpu.memory_space<vmem>>, vector<1x16xf32>
    %83 = vector.broadcast %82 : vector<1x16xf32> to vector<512x16xf32>
    %84 = arith.mulf %81, %83 : vector<512x16xf32>
    %c0_33 = arith.constant 0 : index
    %c0_34 = arith.constant 0 : index
    %85 = vector.load %arg9[%c0_33, %c0_34] : memref<1x16xf32, #tpu.memory_space<vmem>>, vector<1x16xf32>
    %86 = vector.broadcast %85 : vector<1x16xf32> to vector<512x16xf32>
    %87 = arith.addf %84, %86 : vector<512x16xf32>
    %cst_35 = arith.constant 0.000000e+00 : f32
    %88 = vector.broadcast %cst_35 : f32 to vector<512x16xf32>
    %89 = arith.maximumf %87, %88 : vector<512x16xf32>
    %90 = vector.shape_cast %89 : vector<512x16xf32> to vector<2x16x16x16xf32>
    %cst_36 = arith.constant 0.000000e+00 : f32
    %91 = vector.broadcast %cst_36 : f32 to vector<2x1x16x16xf32>
    %92 = tpu.concatenate %91, %90, %91 in 1 : vector<2x1x16x16xf32>, vector<2x16x16x16xf32>, vector<2x1x16x16xf32> -> vector<2x18x16x16xf32>
    %cst_37 = arith.constant 0.000000e+00 : f32
    %93 = vector.broadcast %cst_37 : f32 to vector<2x18x1x16xf32>
    %94 = tpu.concatenate %93, %92, %93 in 2 : vector<2x18x1x16xf32>, vector<2x18x16x16xf32>, vector<2x18x1x16xf32> -> vector<2x18x18x16xf32>
    %95 = vector.extract_strided_slice %94 {offsets = [0, 0, 0, 0], sizes = [2, 16, 16, 16], strides = [1, 1, 1, 1]} : vector<2x18x18x16xf32> to vector<2x16x16x16xf32>
    %96 = vector.extract_strided_slice %94 {offsets = [0, 0, 1, 0], sizes = [2, 16, 16, 16], strides = [1, 1, 1, 1]} : vector<2x18x18x16xf32> to vector<2x16x16x16xf32>
    %97 = vector.extract_strided_slice %94 {offsets = [0, 0, 2, 0], sizes = [2, 16, 16, 16], strides = [1, 1, 1, 1]} : vector<2x18x18x16xf32> to vector<2x16x16x16xf32>
    %98 = vector.extract_strided_slice %94 {offsets = [0, 1, 0, 0], sizes = [2, 16, 16, 16], strides = [1, 1, 1, 1]} : vector<2x18x18x16xf32> to vector<2x16x16x16xf32>
    %99 = vector.extract_strided_slice %94 {offsets = [0, 1, 1, 0], sizes = [2, 16, 16, 16], strides = [1, 1, 1, 1]} : vector<2x18x18x16xf32> to vector<2x16x16x16xf32>
    %100 = vector.extract_strided_slice %94 {offsets = [0, 1, 2, 0], sizes = [2, 16, 16, 16], strides = [1, 1, 1, 1]} : vector<2x18x18x16xf32> to vector<2x16x16x16xf32>
    %101 = vector.extract_strided_slice %94 {offsets = [0, 2, 0, 0], sizes = [2, 16, 16, 16], strides = [1, 1, 1, 1]} : vector<2x18x18x16xf32> to vector<2x16x16x16xf32>
    %102 = vector.extract_strided_slice %94 {offsets = [0, 2, 1, 0], sizes = [2, 16, 16, 16], strides = [1, 1, 1, 1]} : vector<2x18x18x16xf32> to vector<2x16x16x16xf32>
    %103 = vector.extract_strided_slice %94 {offsets = [0, 2, 2, 0], sizes = [2, 16, 16, 16], strides = [1, 1, 1, 1]} : vector<2x18x18x16xf32> to vector<2x16x16x16xf32>
    %104 = tpu.concatenate %95, %96, %97, %98, %99, %100, %101, %102, %103 in 3 : vector<2x16x16x16xf32>, vector<2x16x16x16xf32>, vector<2x16x16x16xf32>, vector<2x16x16x16xf32>, vector<2x16x16x16xf32>, vector<2x16x16x16xf32>, vector<2x16x16x16xf32>, vector<2x16x16x16xf32>, vector<2x16x16x16xf32> -> vector<2x16x16x144xf32>
    %105 = vector.shape_cast %104 : vector<2x16x16x144xf32> to vector<512x144xf32>
    %c0_38 = arith.constant 0 : index
    %c0_39 = arith.constant 0 : index
    %106 = vector.load %arg10[%c0_38, %c0_39] : memref<144x16xf32, #tpu.memory_space<vmem>>, vector<144x16xf32>
    %cst_40 = arith.constant dense<0.000000e+00> : vector<512x16xf32>
    %107 = tpu.matmul %105, %106, %cst_40 {dimension_numbers = #tpu.dot_dimension_numbers<[1], [0], [0], [1], [0, 0, 1, 1], [], []>} : vector<512x144xf32>, vector<144x16xf32>, vector<512x16xf32> -> vector<512x16xf32>
    %c0_41 = arith.constant 0 : index
    %c0_42 = arith.constant 0 : index
    %108 = vector.load %arg11[%c0_41, %c0_42] : memref<1x16xf32, #tpu.memory_space<vmem>>, vector<1x16xf32>
    %109 = vector.broadcast %108 : vector<1x16xf32> to vector<512x16xf32>
    %110 = arith.addf %107, %109 : vector<512x16xf32>
    %cst_43 = arith.constant dense<0.000000e+00> : vector<16xf32>
    %111 = vector.multi_reduction <add>, %110, %cst_43 [0] : vector<512x16xf32> to vector<16xf32>
    %112 = vector.shape_cast %111 : vector<16xf32> to vector<1x16xf32>
    %cst_44 = arith.constant 5.120000e+02 : f32
    %113 = vector.broadcast %cst_44 : f32 to vector<1x16xf32>
    %114 = arith.divf %112, %113 : vector<1x16xf32>
    %115 = vector.broadcast %114 : vector<1x16xf32> to vector<512x16xf32>
    %116 = arith.subf %110, %115 : vector<512x16xf32>
    %117 = arith.mulf %116, %116 : vector<512x16xf32>
    %cst_45 = arith.constant dense<0.000000e+00> : vector<16xf32>
    %118 = vector.multi_reduction <add>, %117, %cst_45 [0] : vector<512x16xf32> to vector<16xf32>
    %119 = vector.shape_cast %118 : vector<16xf32> to vector<1x16xf32>
    %cst_46 = arith.constant 5.120000e+02 : f32
    %120 = vector.broadcast %cst_46 : f32 to vector<1x16xf32>
    %121 = arith.divf %119, %120 : vector<1x16xf32>
    %cst_47 = arith.constant 9.99999974E-6 : f32
    %122 = vector.broadcast %cst_47 : f32 to vector<1x16xf32>
    %123 = arith.addf %121, %122 : vector<1x16xf32>
    %124 = math.rsqrt %123 : vector<1x16xf32>
    %125 = vector.broadcast %124 : vector<1x16xf32> to vector<512x16xf32>
    %126 = arith.mulf %116, %125 : vector<512x16xf32>
    %c0_48 = arith.constant 0 : index
    %c0_49 = arith.constant 0 : index
    %127 = vector.load %arg12[%c0_48, %c0_49] : memref<1x16xf32, #tpu.memory_space<vmem>>, vector<1x16xf32>
    %128 = vector.broadcast %127 : vector<1x16xf32> to vector<512x16xf32>
    %129 = arith.mulf %126, %128 : vector<512x16xf32>
    %c0_50 = arith.constant 0 : index
    %c0_51 = arith.constant 0 : index
    %130 = vector.load %arg13[%c0_50, %c0_51] : memref<1x16xf32, #tpu.memory_space<vmem>>, vector<1x16xf32>
    %131 = vector.broadcast %130 : vector<1x16xf32> to vector<512x16xf32>
    %132 = arith.addf %129, %131 : vector<512x16xf32>
    %cst_52 = arith.constant 0.000000e+00 : f32
    %133 = vector.broadcast %cst_52 : f32 to vector<512x16xf32>
    %134 = arith.maximumf %132, %133 : vector<512x16xf32>
    %135 = vector.shape_cast %134 : vector<512x16xf32> to vector<2x16x16x16xf32>
    %c0_53 = arith.constant 0 : index
    %c0_54 = arith.constant 0 : index
    %c0_55 = arith.constant 0 : index
    %c0_56 = arith.constant 0 : index
    %136 = vector.load %arg14[%c0_53, %c0_54, %c0_55, %c0_56] : memref<2x16x16x16xf32, #tpu.memory_space<vmem>>, vector<2x16x16x16xf32>
    tpu.vector_store %arg14[%c0_53, %c0_54, %c0_55, %c0_56], %135 {strides = array<i32>} : memref<2x16x16x16xf32, #tpu.memory_space<vmem>>, vector<2x16x16x16xf32>,
    return
  }
  func.func @transform_0(%arg0: i32) -> (i32, i32, i32, i32) {
    %c0_i32 = arith.constant 0 : i32
    %c0_i32_0 = arith.constant 0 : i32
    %c0_i32_1 = arith.constant 0 : i32
    %c0_i32_2 = arith.constant 0 : i32
    %c0_i32_3 = arith.constant 0 : i32
    return %c0_i32, %c0_i32_0, %c0_i32_1, %c0_i32_2 : i32, i32, i32, i32
  }
  func.func @transform_1(%arg0: i32) -> (i32, i32) {
    %c0_i32 = arith.constant 0 : i32
    %c0_i32_0 = arith.constant 0 : i32
    %c0_i32_1 = arith.constant 0 : i32
    return %c0_i32, %c0_i32_0 : i32, i32
  }
  func.func @transform_2(%arg0: i32) -> (i32, i32) {
    %c0_i32 = arith.constant 0 : i32
    %c0_i32_0 = arith.constant 0 : i32
    %c0_i32_1 = arith.constant 0 : i32
    return %c0_i32, %c0_i32_0 : i32, i32
  }
  func.func @transform_3(%arg0: i32) -> (i32, i32) {
    %c0_i32 = arith.constant 0 : i32
    %c0_i32_0 = arith.constant 0 : i32
    %c0_i32_1 = arith.constant 0 : i32
    return %c0_i32, %c0_i32_0 : i32, i32
  }
  func.func @transform_4(%arg0: i32) -> (i32, i32) {
    %c0_i32 = arith.constant 0 : i32
    %c0_i32_0 = arith.constant 0 : i32
    %c0_i32_1 = arith.constant 0 : i32
    return %c0_i32, %c0_i32_0 : i32, i32
  }
  func.func @transform_5(%arg0: i32) -> (i32, i32) {
    %c0_i32 = arith.constant 0 : i32
    %c0_i32_0 = arith.constant 0 : i32
    %c0_i32_1 = arith.constant 0 : i32
    return %c0_i32, %c0_i32_0 : i32, i32
  }
  func.func @transform_6(%arg0: i32) -> (i32, i32) {
    %c0_i32 = arith.constant 0 : i32
    %c0_i32_0 = arith.constant 0 : i32
    %c0_i32_1 = arith.constant 0 : i32
    return %c0_i32, %c0_i32_0 : i32, i32
  }
  func.func @transform_7(%arg0: i32) -> (i32, i32) {
    %c0_i32 = arith.constant 0 : i32
    %c0_i32_0 = arith.constant 0 : i32
    %c0_i32_1 = arith.constant 0 : i32
    return %c0_i32, %c0_i32_0 : i32, i32
  }
  func.func @transform_8(%arg0: i32) -> (i32, i32) {
    %c0_i32 = arith.constant 0 : i32
    %c0_i32_0 = arith.constant 0 : i32
    %c0_i32_1 = arith.constant 0 : i32
    return %c0_i32, %c0_i32_0 : i32, i32
  }
  func.func @transform_9(%arg0: i32) -> (i32, i32) {
    %c0_i32 = arith.constant 0 : i32
    %c0_i32_0 = arith.constant 0 : i32
    %c0_i32_1 = arith.constant 0 : i32
    return %c0_i32, %c0_i32_0 : i32, i32
  }
  func.func @transform_10(%arg0: i32) -> (i32, i32) {
    %c0_i32 = arith.constant 0 : i32
    %c0_i32_0 = arith.constant 0 : i32
    %c0_i32_1 = arith.constant 0 : i32
    return %c0_i32, %c0_i32_0 : i32, i32
  }
  func.func @transform_11(%arg0: i32) -> (i32, i32) {
    %c0_i32 = arith.constant 0 : i32
    %c0_i32_0 = arith.constant 0 : i32
    %c0_i32_1 = arith.constant 0 : i32
    return %c0_i32, %c0_i32_0 : i32, i32
  }
  func.func @transform_12(%arg0: i32) -> (i32, i32) {
    %c0_i32 = arith.constant 0 : i32
    %c0_i32_0 = arith.constant 0 : i32
    %c0_i32_1 = arith.constant 0 : i32
    return %c0_i32, %c0_i32_0 : i32, i32
  }
  func.func @transform_13(%arg0: i32) -> (i32, i32, i32, i32) {
    %c0_i32 = arith.constant 0 : i32
    %c0_i32_0 = arith.constant 0 : i32
    %c0_i32_1 = arith.constant 0 : i32
    %c0_i32_2 = arith.constant 0 : i32
    %c0_i32_3 = arith.constant 0 : i32
    return %c0_i32, %c0_i32_0, %c0_i32_1, %c0_i32_2 : i32, i32, i32, i32
  }
}

</mosaic_0001>

<llo_original>
// kernel: tpu_custom_call.1
$region0: #{tpu_custom_call.1}
  #allocation0 [shape = 'u32[]', space=smem, size = 0x4, offset = 0x4, fixed_abs, tag = 'smem constant byte address 0x4 - core index']
  #allocation1 [shape = 'u32[144,128]{1,0:T(1,128)}', space=vmem, size = 0x12000, scoped, tag = 'internal scratch']
  %s0 = inlined_call_operand.vmem [shape: f32[2,16,16,4], index: 0, kind: input, shape index: {}]
  %s1 = inlined_call_operand.vmem [shape: f32[36,16], index: 1, kind: input, shape index: {}]
  %s2 = inlined_call_operand.vmem [shape: f32[1,16], index: 2, kind: input, shape index: {}]
  %s3 = inlined_call_operand.vmem [shape: f32[1,16], index: 3, kind: input, shape index: {}]
  %s4 = inlined_call_operand.vmem [shape: f32[1,16], index: 4, kind: input, shape index: {}]
  %s5 = inlined_call_operand.vmem [shape: f32[144,16], index: 5, kind: input, shape index: {}]
  %s6 = inlined_call_operand.vmem [shape: f32[1,16], index: 6, kind: input, shape index: {}]
  %s7 = inlined_call_operand.vmem [shape: f32[1,16], index: 7, kind: input, shape index: {}]
  %s8 = inlined_call_operand.vmem [shape: f32[1,16], index: 8, kind: input, shape index: {}]
  %s9 = inlined_call_operand.vmem [shape: f32[144,16], index: 9, kind: input, shape index: {}]
  %s10 = inlined_call_operand.vmem [shape: f32[1,16], index: 10, kind: input, shape index: {}]
  %s11 = inlined_call_operand.vmem [shape: f32[1,16], index: 11, kind: input, shape index: {}]
  %s12 = inlined_call_operand.vmem [shape: f32[1,16], index: 12, kind: input, shape index: {}]
  %s13 = inlined_call_operand.hbm [shape: f32[2,16,16,16], index: 13, kind: output, shape index: {}]
  %s14 = sld [smem:[#allocation0]]
  $region62: #{tpu_custom_call.1} parent=0
    _
  %s16 = ssub.s32 1, %s14
  %s17 = scalar_select 0, %s16, %s14
  $region1: #{tpu_custom_call.1} parent=0
    #allocation2 [shape = 'u8[262144]{0}', space=vmem, size = 0x40000, scoped, tag = 'output window, operand 0, single buffered']
    #allocation3 [shape = 's32[1]{0}', space=sflag, size = 0x4, scoped, tag = 'scoped memory for tpu_custom_call.1']
    %18 = vsyncpa [#allocation3], 0
    // Predicated region
    $region2: #{tpu_custom_call.1} parent=1 // pred_check
      _
    $region3: #{tpu_custom_call.1} parent=1 // pred_check_branch
      %20 = sbr.rel (0) target = $region5
    $region4: #{tpu_custom_call.1} parent=1 // pred_region
      _
    $region5: #{tpu_custom_call.1} parent=1 // pred_fallthru
      _
    // Predicated region
    $region6: #{tpu_custom_call.1} parent=1 // pred_check
      _
    $region7: #{tpu_custom_call.1} parent=1 // pred_check_branch
      %22 = sbr.rel (0) target = $region9
    $region8: #{tpu_custom_call.1} parent=1 // pred_region
      _
    $region9: #{tpu_custom_call.1} parent=1 // pred_fallthru
      _
    // Predicated region
    $region10: #{tpu_custom_call.1} parent=1 // pred_check
      _
    $region11: #{tpu_custom_call.1} parent=1 // pred_check_branch
      %24 = sbr.rel (0) target = $region13
    $region12: #{tpu_custom_call.1} parent=1 // pred_region
      _
    $region13: #{tpu_custom_call.1} parent=1 // pred_fallthru
      _
    // Predicated region
    $region14: #{tpu_custom_call.1} parent=1 // pred_check
      _
    $region15: #{tpu_custom_call.1} parent=1 // pred_check_branch
      %26 = sbr.rel (0) target = $region17
    $region16: #{tpu_custom_call.1} parent=1 // pred_region
      _
    $region17: #{tpu_custom_call.1} parent=1 // pred_fallthru
      _
    // Predicated region
    $region18: #{tpu_custom_call.1} parent=1 // pred_check
      _
    $region19: #{tpu_custom_call.1} parent=1 // pred_check_branch
      %28 = sbr.rel (0) target = $region21
    $region20: #{tpu_custom_call.1} parent=1 // pred_region
      _
    $region21: #{tpu_custom_call.1} parent=1 // pred_fallthru
      _
    // Predicated region
    $region22: #{tpu_custom_call.1} parent=1 // pred_check
      _
    $region23: #{tpu_custom_call.1} parent=1 // pred_check_branch
      %30 = sbr.rel (0) target = $region25
    $region24: #{tpu_custom_call.1} parent=1 // pred_region
      _
    $region25: #{tpu_custom_call.1} parent=1 // pred_fallthru
      _
    // Predicated region
    $region26: #{tpu_custom_call.1} parent=1 // pred_check
      _
    $region27: #{tpu_custom_call.1} parent=1 // pred_check_branch
      %32 = sbr.rel (0) target = $region29
    $region28: #{tpu_custom_call.1} parent=1 // pred_region
      _
    $region29: #{tpu_custom_call.1} parent=1 // pred_fallthru
      _
    // Predicated region
    $region30: #{tpu_custom_call.1} parent=1 // pred_check
      _
    $region31: #{tpu_custom_call.1} parent=1 // pred_check_branch
      %34 = sbr.rel (0) target = $region33
    $region32: #{tpu_custom_call.1} parent=1 // pred_region
      _
    $region33: #{tpu_custom_call.1} parent=1 // pred_fallthru
      _
    // Predicated region
    $region34: #{tpu_custom_call.1} parent=1 // pred_check
      _
    $region35: #{tpu_custom_call.1} parent=1 // pred_check_branch
      %36 = sbr.rel (0) target = $region37
    $region36: #{tpu_custom_call.1} parent=1 // pred_region
      _
    $region37: #{tpu_custom_call.1} parent=1 // pred_fallthru
      _
    // Predicated region
    $region38: #{tpu_custom_call.1} parent=1 // pred_check
      _
    $region39: #{tpu_custom_call.1} parent=1 // pred_check_branch
      %38 = sbr.rel (0) target = $region41
    $region40: #{tpu_custom_call.1} parent=1 // pred_region
      _
    $region41: #{tpu_custom_call.1} parent=1 // pred_fallthru
      _
    // Predicated region
    $region42: #{tpu_custom_call.1} parent=1 // pred_check
      _
    $region43: #{tpu_custom_call.1} parent=1 // pred_check_branch
      %40 = sbr.rel (0) target = $region45
    $region44: #{tpu_custom_call.1} parent=1 // pred_region
      _
    $region45: #{tpu_custom_call.1} parent=1 // pred_fallthru
      _
    // Predicated region
    $region46: #{tpu_custom_call.1} parent=1 // pred_check
      _
    $region47: #{tpu_custom_call.1} parent=1 // pred_check_branch
      %42 = sbr.rel (0) target = $region49
    $region48: #{tpu_custom_call.1} parent=1 // pred_region
      _
    $region49: #{tpu_custom_call.1} parent=1 // pred_fallthru
      _
    // Predicated region
    $region50: #{tpu_custom_call.1} parent=1 // pred_check
      _
    $region51: #{tpu_custom_call.1} parent=1 // pred_check_branch
      %44 = sbr.rel (0) target = $region53
    $region52: #{tpu_custom_call.1} parent=1 // pred_region
      _
    $region53: #{tpu_custom_call.1} parent=1 // pred_fallthru
      _
    %v45 = vld [vmem:[%s0] sm:$0xff]
    %v46 = vld [vmem:[%s0 + $0x8] sm:$0xff]
    %v47 = vld [vmem:[%s0 + $0x10] sm:$0xff]
    %v48 = vld [vmem:[%s0 + $0x18] sm:$0xff]
    %v49 = vld [vmem:[%s0 + $0x20] sm:$0xff]
    %v50 = vld [vmem:[%s0 + $0x28] sm:$0xff]
    %v51 = vld [vmem:[%s0 + $0x30] sm:$0xff]
    %v52 = vld [vmem:[%s0 + $0x38] sm:$0xff]
    %v53 = vld [vmem:[%s0 + $0x40] sm:$0xff]
    %v54 = vld [vmem:[%s0 + $0x48] sm:$0xff]
    %v55 = vld [vmem:[%s0 + $0x50] sm:$0xff]
    %v56 = vld [vmem:[%s0 + $0x58] sm:$0xff]
    %v57 = vld [vmem:[%s0 + $0x60] sm:$0xff]
    %v58 = vld [vmem:[%s0 + $0x68] sm:$0xff]
    %v59 = vld [vmem:[%s0 + $0x70] sm:$0xff]
    %v60 = vld [vmem:[%s0 + $0x78] sm:$0xff]
    %v61 = vld [vmem:[%s0 + $0x80] sm:$0xff]
    %v62 = vld [vmem:[%s0 + $0x88] sm:$0xff]
    %v63 = vld [vmem:[%s0 + $0x90] sm:$0xff]
    %v64 = vld [vmem:[%s0 + $0x98] sm:$0xff]
    %v65 = vld [vmem:[%s0 + $0xa0] sm:$0xff]
    %v66 = vld [vmem:[%s0 + $0xa8] sm:$0xff]
    %v67 = vld [vmem:[%s0 + $0xb0] sm:$0xff]
    %v68 = vld [vmem:[%s0 + $0xb8] sm:$0xff]
    %v69 = vld [vmem:[%s0 + $0xc0] sm:$0xff]
    %v70 = vld [vmem:[%s0 + $0xc8] sm:$0xff]
    %v71 = vld [vmem:[%s0 + $0xd0] sm:$0xff]
    %v72 = vld [vmem:[%s0 + $0xd8] sm:$0xff]
    %v73 = vld [vmem:[%s0 + $0xe0] sm:$0xff]
    %v74 = vld [vmem:[%s0 + $0xe8] sm:$0xff]
    %v75 = vld [vmem:[%s0 + $0xf0] sm:$0xff]
    %v76 = vld [vmem:[%s0 + $0xf8] sm:$0xff]
    %v77 = vld [vmem:[%s0 + $0x100] sm:$0xff]
    %v78 = vld [vmem:[%s0 + $0x108] sm:$0xff]
    %v79 = vld [vmem:[%s0 + $0x110] sm:$0xff]
    %v80 = vld [vmem:[%s0 + $0x118] sm:$0xff]
    %v81 = vld [vmem:[%s0 + $0x120] sm:$0xff]
    %v82 = vld [vmem:[%s0 + $0x128] sm:$0xff]
    %v83 = vld [vmem:[%s0 + $0x130] sm:$0xff]
    %v84 = vld [vmem:[%s0 + $0x138] sm:$0xff]
    %v85 = vld [vmem:[%s0 + $0x140] sm:$0xff]
    %v86 = vld [vmem:[%s0 + $0x148] sm:$0xff]
    %v87 = vld [vmem:[%s0 + $0x150] sm:$0xff]
    %v88 = vld [vmem:[%s0 + $0x158] sm:$0xff]
    %v89 = vld [vmem:[%s0 + $0x160] sm:$0xff]
    %v90 = vld [vmem:[%s0 + $0x168] sm:$0xff]
    %v91 = vld [vmem:[%s0 + $0x170] sm:$0xff]
    %v92 = vld [vmem:[%s0 + $0x178] sm:$0xff]
    %v93 = vld [vmem:[%s0 + $0x180] sm:$0xff]
    %v94 = vld [vmem:[%s0 + $0x188] sm:$0xff]
    %v95 = vld [vmem:[%s0 + $0x190] sm:$0xff]
    %v96 = vld [vmem:[%s0 + $0x198] sm:$0xff]
    %v97 = vld [vmem:[%s0 + $0x1a0] sm:$0xff]
    %v98 = vld [vmem:[%s0 + $0x1a8] sm:$0xff]
    %v99 = vld [vmem:[%s0 + $0x1b0] sm:$0xff]
    %v100 = vld [vmem:[%s0 + $0x1b8] sm:$0xff]
    %v101 = vld [vmem:[%s0 + $0x1c0] sm:$0xff]
    %v102 = vld [vmem:[%s0 + $0x1c8] sm:$0xff]
    %v103 = vld [vmem:[%s0 + $0x1d0] sm:$0xff]
    %v104 = vld [vmem:[%s0 + $0x1d8] sm:$0xff]
    %v105 = vld [vmem:[%s0 + $0x1e0] sm:$0xff]
    %v106 = vld [vmem:[%s0 + $0x1e8] sm:$0xff]
    %v107 = vld [vmem:[%s0 + $0x1f0] sm:$0xff]
    %v108 = vld [vmem:[%s0 + $0x1f8] sm:$0xff]
    %vm174 = vcmask 1040384
    %v175 = vrot.slane 0.0, 7
    %v176 = vsel %vm174, %v175, %v175
    %v177 = vrot.slane %v45, 7
    %v178 = vrot.slane %v46, 7
    %v179 = vsel %vm174, %v177, %v178
    %v180 = vrot.slane %v47, 7
    %v181 = vrot.slane %v48, 7
    %v182 = vsel %vm174, %v180, %v181
    %v183 = vrot.slane %v49, 7
    %v184 = vrot.slane %v50, 7
    %v185 = vsel %vm174, %v183, %v184
    %v186 = vrot.slane %v51, 7
    %v187 = vrot.slane %v52, 7
    %v188 = vsel %vm174, %v186, %v187
    %v189 = vrot.slane %v53, 7
    %v190 = vrot.slane %v54, 7
    %v191 = vsel %vm174, %v189, %v190
    %v192 = vrot.slane %v55, 7
    %v193 = vrot.slane %v56, 7
    %v194 = vsel %vm174, %v192, %v193
    %v195 = vrot.slane %v57, 7
    %v196 = vrot.slane %v58, 7
    %v197 = vsel %vm174, %v195, %v196
    %v198 = vrot.slane %v59, 7
    %v199 = vrot.slane %v60, 7
    %v200 = vsel %vm174, %v198, %v199
    %v201 = vrot.slane %v61, 7
    %v202 = vrot.slane %v62, 7
    %v203 = vsel %vm174, %v201, %v202
    %v204 = vrot.slane %v63, 7
    %v205 = vrot.slane %v64, 7
    %v206 = vsel %vm174, %v204, %v205
    %v207 = vrot.slane %v65, 7
    %v208 = vrot.slane %v66, 7
    %v209 = vsel %vm174, %v207, %v208
    %v210 = vrot.slane %v67, 7
    %v211 = vrot.slane %v68, 7
    %v212 = vsel %vm174, %v210, %v211
    %v213 = vrot.slane %v69, 7
    %v214 = vrot.slane %v70, 7
    %v215 = vsel %vm174, %v213, %v214
    %v216 = vrot.slane %v71, 7
    %v217 = vrot.slane %v72, 7
    %v218 = vsel %vm174, %v216, %v217
    %v219 = vrot.slane %v73, 7
    %v220 = vrot.slane %v74, 7
    %v221 = vsel %vm174, %v219, %v220
    %v222 = vrot.slane %v75, 7
    %v223 = vrot.slane %v76, 7
    %v224 = vsel %vm174, %v222, %v223
    %v225 = vrot.slane %v77, 7
    %v226 = vrot.slane %v78, 7
    %v227 = vsel %vm174, %v225, %v226
    %v228 = vrot.slane %v79, 7
    %v229 = vrot.slane %v80, 7
    %v230 = vsel %vm174, %v228, %v229
    %v231 = vrot.slane %v81, 7
    %v232 = vrot.slane %v82, 7
    %v233 = vsel %vm174, %v231, %v232
    %v234 = vrot.slane %v83, 7
    %v235 = vrot.slane %v84, 7
    %v236 = vsel %vm174, %v234, %v235
    %v237 = vrot.slane %v85, 7
    %v238 = vrot.slane %v86, 7
    %v239 = vsel %vm174, %v237, %v238
    %v240 = vrot.slane %v87, 7
    %v241 = vrot.slane %v88, 7
    %v242 = vsel %vm174, %v240, %v241
    %v243 = vrot.slane %v89, 7
    %v244 = vrot.slane %v90, 7
    %v245 = vsel %vm174, %v243, %v244
    %v246 = vrot.slane %v91, 7
    %v247 = vrot.slane %v92, 7
    %v248 = vsel %vm174, %v246, %v247
    %v249 = vrot.slane %v93, 7
    %v250 = vrot.slane %v94, 7
    %v251 = vsel %vm174, %v249, %v250
    %v252 = vrot.slane %v95, 7
    %v253 = vrot.slane %v96, 7
    %v254 = vsel %vm174, %v252, %v253
    %v255 = vrot.slane %v97, 7
    %v256 = vrot.slane %v98, 7
    %v257 = vsel %vm174, %v255, %v256
    %v258 = vrot.slane %v99, 7
    %v259 = vrot.slane %v100, 7
    %v260 = vsel %vm174, %v258, %v259
    %v261 = vrot.slane %v101, 7
    %v262 = vrot.slane %v102, 7
    %v263 = vsel %vm174, %v261, %v262
    %v264 = vrot.slane %v103, 7
    %v265 = vrot.slane %v104, 7
    %v266 = vsel %vm174, %v264, %v265
    %v267 = vrot.slane %v105, 7
    %v268 = vrot.slane %v106, 7
    %v269 = vsel %vm174, %v267, %v268
    %v270 = vrot.slane %v107, 7
    %v271 = vrot.slane %v108, 7
    %v272 = vsel %vm174, %v270, %v271
    %v369 = vsel %vm174, 0.0, %v175
    %v370 = vsel %vm174, 0.0, %v177
    %v371 = vsel %vm174, 0.0, %v180
    %v372 = vsel %vm174, 0.0, %v183
    %v373 = vsel %vm174, 0.0, %v186
    %v374 = vsel %vm174, 0.0, %v189
    %v375 = vsel %vm174, 0.0, %v192
    %v376 = vsel %vm174, 0.0, %v195
    %v377 = vsel %vm174, 0.0, %v198
    %v378 = vsel %vm174, 0.0, %v201
    %v379 = vsel %vm174, 0.0, %v204
    %v380 = vsel %vm174, 0.0, %v207
    %v381 = vsel %vm174, 0.0, %v210
    %v382 = vsel %vm174, 0.0, %v213
    %v383 = vsel %vm174, 0.0, %v216
    %v384 = vsel %vm174, 0.0, %v219
    %v385 = vsel %vm174, 0.0, %v222
    %v386 = vsel %vm174, 0.0, %v225
    %v387 = vsel %vm174, 0.0, %v228
    %v388 = vsel %vm174, 0.0, %v231
    %v389 = vsel %vm174, 0.0, %v234
    %v390 = vsel %vm174, 0.0, %v237
    %v391 = vsel %vm174, 0.0, %v240
    %v392 = vsel %vm174, 0.0, %v243
    %v393 = vsel %vm174, 0.0, %v246
    %v394 = vsel %vm174, 0.0, %v249
    %v395 = vsel %vm174, 0.0, %v252
    %v396 = vsel %vm174, 0.0, %v255
    %v397 = vsel %vm174, 0.0, %v258
    %v398 = vsel %vm174, 0.0, %v261
    %v399 = vsel %vm174, 0.0, %v264
    %v400 = vsel %vm174, 0.0, %v267
    %v401 = vsel %vm174, 0.0, %v270
    %v402 = vsel %vm174, %v175, 0.0
    %v403 = vsel %vm174, %v178, 0.0
    %v404 = vsel %vm174, %v181, 0.0
    %v405 = vsel %vm174, %v184, 0.0
    %v406 = vsel %vm174, %v187, 0.0
    %v407 = vsel %vm174, %v190, 0.0
    %v408 = vsel %vm174, %v193, 0.0
    %v409 = vsel %vm174, %v196, 0.0
    %v410 = vsel %vm174, %v199, 0.0
    %v411 = vsel %vm174, %v202, 0.0
    %v412 = vsel %vm174, %v205, 0.0
    %v413 = vsel %vm174, %v208, 0.0
    %v414 = vsel %vm174, %v211, 0.0
    %v415 = vsel %vm174, %v214, 0.0
    %v416 = vsel %vm174, %v217, 0.0
    %v417 = vsel %vm174, %v220, 0.0
    %v418 = vsel %vm174, %v223, 0.0
    %v419 = vsel %vm174, %v226, 0.0
    %v420 = vsel %vm174, %v229, 0.0
    %v421 = vsel %vm174, %v232, 0.0
    %v422 = vsel %vm174, %v235, 0.0
    %v423 = vsel %vm174, %v238, 0.0
    %v424 = vsel %vm174, %v241, 0.0
    %v425 = vsel %vm174, %v244, 0.0
    %v426 = vsel %vm174, %v247, 0.0
    %v427 = vsel %vm174, %v250, 0.0
    %v428 = vsel %vm174, %v253, 0.0
    %v429 = vsel %vm174, %v256, 0.0
    %v430 = vsel %vm174, %v259, 0.0
    %v431 = vsel %vm174, %v262, 0.0
    %v432 = vsel %vm174, %v265, 0.0
    %v433 = vsel %vm174, %v268, 0.0
    %v434 = vsel %vm174, %v271, 0.0
    %vm497 = vcmask 1046528
    %v498 = vrot.slane %v369, 1
    %v499 = vrot.slane %v176, 1
    %v500 = vsel %vm497, %v498, %v499
    %v501 = vrot.slane %v402, 1
    %v502 = vsel %vm497, %v499, %v501
    %v503 = vrot.slane %v370, 1
    %v504 = vrot.slane %v179, 1
    %v505 = vsel %vm497, %v503, %v504
    %v506 = vrot.slane %v403, 1
    %v507 = vsel %vm497, %v504, %v506
    %v508 = vrot.slane %v371, 1
    %v509 = vrot.slane %v182, 1
    %v510 = vsel %vm497, %v508, %v509
    %v511 = vrot.slane %v404, 1
    %v512 = vsel %vm497, %v509, %v511
    %v513 = vrot.slane %v372, 1
    %v514 = vrot.slane %v185, 1
    %v515 = vsel %vm497, %v513, %v514
    %v516 = vrot.slane %v405, 1
    %v517 = vsel %vm497, %v514, %v516
    %v518 = vrot.slane %v373, 1
    %v519 = vrot.slane %v188, 1
    %v520 = vsel %vm497, %v518, %v519
    %v521 = vrot.slane %v406, 1
    %v522 = vsel %vm497, %v519, %v521
    %v523 = vrot.slane %v374, 1
    %v524 = vrot.slane %v191, 1
    %v525 = vsel %vm497, %v523, %v524
    %v526 = vrot.slane %v407, 1
    %v527 = vsel %vm497, %v524, %v526
    %v528 = vrot.slane %v375, 1
    %v529 = vrot.slane %v194, 1
    %v530 = vsel %vm497, %v528, %v529
    %v531 = vrot.slane %v408, 1
    %v532 = vsel %vm497, %v529, %v531
    %v533 = vrot.slane %v376, 1
    %v534 = vrot.slane %v197, 1
    %v535 = vsel %vm497, %v533, %v534
    %v536 = vrot.slane %v409, 1
    %v537 = vsel %vm497, %v534, %v536
    %v538 = vrot.slane %v377, 1
    %v539 = vrot.slane %v200, 1
    %v540 = vsel %vm497, %v538, %v539
    %v541 = vrot.slane %v410, 1
    %v542 = vsel %vm497, %v539, %v541
    %v543 = vrot.slane %v378, 1
    %v544 = vrot.slane %v203, 1
    %v545 = vsel %vm497, %v543, %v544
    %v546 = vrot.slane %v411, 1
    %v547 = vsel %vm497, %v544, %v546
    %v548 = vrot.slane %v379, 1
    %v549 = vrot.slane %v206, 1
    %v550 = vsel %vm497, %v548, %v549
    %v551 = vrot.slane %v412, 1
    %v552 = vsel %vm497, %v549, %v551
    %v553 = vrot.slane %v380, 1
    %v554 = vrot.slane %v209, 1
    %v555 = vsel %vm497, %v553, %v554
    %v556 = vrot.slane %v413, 1
    %v557 = vsel %vm497, %v554, %v556
    %v558 = vrot.slane %v381, 1
    %v559 = vrot.slane %v212, 1
    %v560 = vsel %vm497, %v558, %v559
    %v561 = vrot.slane %v414, 1
    %v562 = vsel %vm497, %v559, %v561
    %v563 = vrot.slane %v382, 1
    %v564 = vrot.slane %v215, 1
    %v565 = vsel %vm497, %v563, %v564
    %v566 = vrot.slane %v415, 1
    %v567 = vsel %vm497, %v564, %v566
    %v568 = vrot.slane %v383, 1
    %v569 = vrot.slane %v218, 1
    %v570 = vsel %vm497, %v568, %v569
    %v571 = vrot.slane %v416, 1
    %v572 = vsel %vm497, %v569, %v571
    %v573 = vrot.slane %v384, 1
    %v574 = vrot.slane %v221, 1
    %v575 = vsel %vm497, %v573, %v574
    %v576 = vrot.slane %v417, 1
    %v577 = vsel %vm497, %v574, %v576
    %v578 = vrot.slane %v386, 1
    %v579 = vrot.slane %v227, 1
    %v580 = vsel %vm497, %v578, %v579
    %v581 = vrot.slane %v419, 1
    %v582 = vsel %vm497, %v579, %v581
    %v583 = vrot.slane %v387, 1
    %v584 = vrot.slane %v230, 1
    %v585 = vsel %vm497, %v583, %v584
    %v586 = vrot.slane %v420, 1
    %v587 = vsel %vm497, %v584, %v586
    %v588 = vrot.slane %v388, 1
    %v589 = vrot.slane %v233, 1
    %v590 = vsel %vm497, %v588, %v589
    %v591 = vrot.slane %v421, 1
    %v592 = vsel %vm497, %v589, %v591
    %v593 = vrot.slane %v389, 1
    %v594 = vrot.slane %v236, 1
    %v595 = vsel %vm497, %v593, %v594
    %v596 = vrot.slane %v422, 1
    %v597 = vsel %vm497, %v594, %v596
    %v598 = vrot.slane %v390, 1
    %v599 = vrot.slane %v239, 1
    %v600 = vsel %vm497, %v598, %v599
    %v601 = vrot.slane %v423, 1
    %v602 = vsel %vm497, %v599, %v601
    %v603 = vrot.slane %v391, 1
    %v604 = vrot.slane %v242, 1
    %v605 = vsel %vm497, %v603, %v604
    %v606 = vrot.slane %v424, 1
    %v607 = vsel %vm497, %v604, %v606
    %v608 = vrot.slane %v392, 1
    %v609 = vrot.slane %v245, 1
    %v610 = vsel %vm497, %v608, %v609
    %v611 = vrot.slane %v425, 1
    %v612 = vsel %vm497, %v609, %v611
    %v613 = vrot.slane %v393, 1
    %v614 = vrot.slane %v248, 1
    %v615 = vsel %vm497, %v613, %v614
    %v616 = vrot.slane %v426, 1
    %v617 = vsel %vm497, %v614, %v616
    %v618 = vrot.slane %v394, 1
    %v619 = vrot.slane %v251, 1
    %v620 = vsel %vm497, %v618, %v619
    %v621 = vrot.slane %v427, 1
    %v622 = vsel %vm497, %v619, %v621
    %v623 = vrot.slane %v395, 1
    %v624 = vrot.slane %v254, 1
    %v625 = vsel %vm497, %v623, %v624
    %v626 = vrot.slane %v428, 1
    %v627 = vsel %vm497, %v624, %v626
    %v628 = vrot.slane %v396, 1
    %v629 = vrot.slane %v257, 1
    %v630 = vsel %vm497, %v628, %v629
    %v631 = vrot.slane %v429, 1
    %v632 = vsel %vm497, %v629, %v631
    %v633 = vrot.slane %v397, 1
    %v634 = vrot.slane %v260, 1
    %v635 = vsel %vm497, %v633, %v634
    %v636 = vrot.slane %v430, 1
    %v637 = vsel %vm497, %v634, %v636
    %v638 = vrot.slane %v398, 1
    %v639 = vrot.slane %v263, 1
    %v640 = vsel %vm497, %v638, %v639
    %v641 = vrot.slane %v431, 1
    %v642 = vsel %vm497, %v639, %v641
    %v643 = vrot.slane %v399, 1
    %v644 = vrot.slane %v266, 1
    %v645 = vsel %vm497, %v643, %v644
    %v646 = vrot.slane %v432, 1
    %v647 = vsel %vm497, %v644, %v646
    %v648 = vrot.slane %v400, 1
    %v649 = vrot.slane %v269, 1
    %v650 = vsel %vm497, %v648, %v649
    %v651 = vrot.slane %v433, 1
    %v652 = vsel %vm497, %v649, %v651
    %653 = vrot.lane.b32.xlu0 %v500, 4
    %v654 = vpop.permute.xlu0 %653
    %655 = vrot.lane.b32.xlu0 %v502, 4
    %v656 = vpop.permute.xlu0 %655
    %657 = vrot.lane.b32.xlu0 %v505, 4
    %v658 = vpop.permute.xlu0 %657
    %659 = vrot.lane.b32.xlu0 %v507, 4
    %v660 = vpop.permute.xlu0 %659
    %661 = vrot.lane.b32.xlu0 %v510, 4
    %v662 = vpop.permute.xlu0 %661
    %663 = vrot.lane.b32.xlu0 %v512, 4
    %v664 = vpop.permute.xlu0 %663
    %665 = vrot.lane.b32.xlu0 %v515, 4
    %v666 = vpop.permute.xlu0 %665
    %667 = vrot.lane.b32.xlu0 %v517, 4
    %v668 = vpop.permute.xlu0 %667
    %669 = vrot.lane.b32.xlu0 %v520, 4
    %v670 = vpop.permute.xlu0 %669
    %671 = vrot.lane.b32.xlu0 %v522, 4
    %v672 = vpop.permute.xlu0 %671
    %673 = vrot.lane.b32.xlu0 %v525, 4
    %v674 = vpop.permute.xlu0 %673
    %675 = vrot.lane.b32.xlu0 %v527, 4
    %v676 = vpop.permute.xlu0 %675
    %677 = vrot.lane.b32.xlu0 %v530, 4
    %v678 = vpop.permute.xlu0 %677
    %679 = vrot.lane.b32.xlu0 %v532, 4
    %v680 = vpop.permute.xlu0 %679
    %681 = vrot.lane.b32.xlu0 %v535, 4
    %v682 = vpop.permute.xlu0 %681
    %683 = vrot.lane.b32.xlu0 %v537, 4
    %v684 = vpop.permute.xlu0 %683
    %685 = vrot.lane.b32.xlu0 %v540, 4
    %v686 = vpop.permute.xlu0 %685
    %687 = vrot.lane.b32.xlu0 %v542, 4
    %v688 = vpop.permute.xlu0 %687
    %689 = vrot.lane.b32.xlu0 %v545, 4
    %v690 = vpop.permute.xlu0 %689
    %691 = vrot.lane.b32.xlu0 %v547, 4
    %v692 = vpop.permute.xlu0 %691
    %693 = vrot.lane.b32.xlu0 %v550, 4
    %v694 = vpop.permute.xlu0 %693
    %695 = vrot.lane.b32.xlu0 %v552, 4
    %v696 = vpop.permute.xlu0 %695
    %697 = vrot.lane.b32.xlu0 %v555, 4
    %v698 = vpop.permute.xlu0 %697
    %699 = vrot.lane.b32.xlu0 %v557, 4
    %v700 = vpop.permute.xlu0 %699
    %701 = vrot.lane.b32.xlu0 %v560, 4
    %v702 = vpop.permute.xlu0 %701
    %703 = vrot.lane.b32.xlu0 %v562, 4
    %v704 = vpop.permute.xlu0 %703
    %705 = vrot.lane.b32.xlu0 %v565, 4
    %v706 = vpop.permute.xlu0 %705
    %707 = vrot.lane.b32.xlu0 %v567, 4
    %v708 = vpop.permute.xlu0 %707
    %709 = vrot.lane.b32.xlu0 %v570, 4
    %v710 = vpop.permute.xlu0 %709
    %711 = vrot.lane.b32.xlu0 %v572, 4
    %v712 = vpop.permute.xlu0 %711
    %713 = vrot.lane.b32.xlu0 %v575, 4
    %v714 = vpop.permute.xlu0 %713
    %715 = vrot.lane.b32.xlu0 %v577, 4
    %v716 = vpop.permute.xlu0 %715
    %717 = vrot.lane.b32.xlu0 %v580, 4
    %v718 = vpop.permute.xlu0 %717
    %719 = vrot.lane.b32.xlu0 %v582, 4
    %v720 = vpop.permute.xlu0 %719
    %721 = vrot.lane.b32.xlu0 %v585, 4
    %v722 = vpop.permute.xlu0 %721
    %723 = vrot.lane.b32.xlu0 %v587, 4
    %v724 = vpop.permute.xlu0 %723
    %725 = vrot.lane.b32.xlu0 %v590, 4
    %v726 = vpop.permute.xlu0 %725
    %727 = vrot.lane.b32.xlu0 %v592, 4
    %v728 = vpop.permute.xlu0 %727
    %729 = vrot.lane.b32.xlu0 %v595, 4
    %v730 = vpop.permute.xlu0 %729
    %731 = vrot.lane.b32.xlu0 %v597, 4
    %v732 = vpop.permute.xlu0 %731
    %733 = vrot.lane.b32.xlu0 %v600, 4
    %v734 = vpop.permute.xlu0 %733
    %735 = vrot.lane.b32.xlu0 %v602, 4
    %v736 = vpop.permute.xlu0 %735
    %737 = vrot.lane.b32.xlu0 %v605, 4
    %v738 = vpop.permute.xlu0 %737
    %739 = vrot.lane.b32.xlu0 %v607, 4
    %v740 = vpop.permute.xlu0 %739
    %741 = vrot.lane.b32.xlu0 %v610, 4
    %v742 = vpop.permute.xlu0 %741
    %743 = vrot.lane.b32.xlu0 %v612, 4
    %v744 = vpop.permute.xlu0 %743
    %745 = vrot.lane.b32.xlu0 %v615, 4
    %v746 = vpop.permute.xlu0 %745
    %747 = vrot.lane.b32.xlu0 %v617, 4
    %v748 = vpop.permute.xlu0 %747
    %749 = vrot.lane.b32.xlu0 %v620, 4
    %v750 = vpop.permute.xlu0 %749
    %751 = vrot.lane.b32.xlu0 %v622, 4
    %v752 = vpop.permute.xlu0 %751
    %753 = vrot.lane.b32.xlu0 %v625, 4
    %v754 = vpop.permute.xlu0 %753
    %755 = vrot.lane.b32.xlu0 %v627, 4
    %v756 = vpop.permute.xlu0 %755
    %757 = vrot.lane.b32.xlu0 %v630, 4
    %v758 = vpop.permute.xlu0 %757
    %759 = vrot.lane.b32.xlu0 %v632, 4
    %v760 = vpop.permute.xlu0 %759
    %761 = vrot.lane.b32.xlu0 %v635, 4
    %v762 = vpop.permute.xlu0 %761
    %763 = vrot.lane.b32.xlu0 %v637, 4
    %v764 = vpop.permute.xlu0 %763
    %765 = vrot.lane.b32.xlu0 %v640, 4
    %v766 = vpop.permute.xlu0 %765
    %767 = vrot.lane.b32.xlu0 %v642, 4
    %v768 = vpop.permute.xlu0 %767
    %769 = vrot.lane.b32.xlu0 %v645, 4
    %v770 = vpop.permute.xlu0 %769
    %771 = vrot.lane.b32.xlu0 %v647, 4
    %v772 = vpop.permute.xlu0 %771
    %773 = vrot.lane.b32.xlu0 %v650, 4
    %v774 = vpop.permute.xlu0 %773
    %775 = vrot.lane.b32.xlu0 %v652, 4
    %v776 = vpop.permute.xlu0 %775
    %vm839 = vcmask 1045504
    %v840 = vrot.slane %v369, 2
    %v841 = vrot.slane %v176, 2
    %v842 = vsel %vm839, %v840, %v841
    %v843 = vrot.slane %v402, 2
    %v844 = vsel %vm839, %v841, %v843
    %v845 = vrot.slane %v370, 2
    %v846 = vrot.slane %v179, 2
    %v847 = vsel %vm839, %v845, %v846
    %v848 = vrot.slane %v403, 2
    %v849 = vsel %vm839, %v846, %v848
    %v850 = vrot.slane %v371, 2
    %v851 = vrot.slane %v182, 2
    %v852 = vsel %vm839, %v850, %v851
    %v853 = vrot.slane %v404, 2
    %v854 = vsel %vm839, %v851, %v853
    %v855 = vrot.slane %v372, 2
    %v856 = vrot.slane %v185, 2
    %v857 = vsel %vm839, %v855, %v856
    %v858 = vrot.slane %v405, 2
    %v859 = vsel %vm839, %v856, %v858
    %v860 = vrot.slane %v373, 2
    %v861 = vrot.slane %v188, 2
    %v862 = vsel %vm839, %v860, %v861
    %v863 = vrot.slane %v406, 2
    %v864 = vsel %vm839, %v861, %v863
    %v865 = vrot.slane %v374, 2
    %v866 = vrot.slane %v191, 2
    %v867 = vsel %vm839, %v865, %v866
    %v868 = vrot.slane %v407, 2
    %v869 = vsel %vm839, %v866, %v868
    %v870 = vrot.slane %v375, 2
    %v871 = vrot.slane %v194, 2
    %v872 = vsel %vm839, %v870, %v871
    %v873 = vrot.slane %v408, 2
    %v874 = vsel %vm839, %v871, %v873
    %v875 = vrot.slane %v376, 2
    %v876 = vrot.slane %v197, 2
    %v877 = vsel %vm839, %v875, %v876
    %v878 = vrot.slane %v409, 2
    %v879 = vsel %vm839, %v876, %v878
    %v880 = vrot.slane %v377, 2
    %v881 = vrot.slane %v200, 2
    %v882 = vsel %vm839, %v880, %v881
    %v883 = vrot.slane %v410, 2
    %v884 = vsel %vm839, %v881, %v883
    %v885 = vrot.slane %v378, 2
    %v886 = vrot.slane %v203, 2
    %v887 = vsel %vm839, %v885, %v886
    %v888 = vrot.slane %v411, 2
    %v889 = vsel %vm839, %v886, %v888
    %v890 = vrot.slane %v379, 2
    %v891 = vrot.slane %v206, 2
    %v892 = vsel %vm839, %v890, %v891
    %v893 = vrot.slane %v412, 2
    %v894 = vsel %vm839, %v891, %v893
    %v895 = vrot.slane %v380, 2
    %v896 = vrot.slane %v209, 2
    %v897 = vsel %vm839, %v895, %v896
    %v898 = vrot.slane %v413, 2
    %v899 = vsel %vm839, %v896, %v898
    %v900 = vrot.slane %v381, 2
    %v901 = vrot.slane %v212, 2
    %v902 = vsel %vm839, %v900, %v901
    %v903 = vrot.slane %v414, 2
    %v904 = vsel %vm839, %v901, %v903
    %v905 = vrot.slane %v382, 2
    %v906 = vrot.slane %v215, 2
    %v907 = vsel %vm839, %v905, %v906
    %v908 = vrot.slane %v415, 2
    %v909 = vsel %vm839, %v906, %v908
    %v910 = vrot.slane %v383, 2
    %v911 = vrot.slane %v218, 2
    %v912 = vsel %vm839, %v910, %v911
    %v913 = vrot.slane %v416, 2
    %v914 = vsel %vm839, %v911, %v913
    %v915 = vrot.slane %v384, 2
    %v916 = vrot.slane %v221, 2
    %v917 = vsel %vm839, %v915, %v916
    %v918 = vrot.slane %v417, 2
    %v919 = vsel %vm839, %v916, %v918
    %v920 = vrot.slane %v386, 2
    %v921 = vrot.slane %v227, 2
    %v922 = vsel %vm839, %v920, %v921
    %v923 = vrot.slane %v419, 2
    %v924 = vsel %vm839, %v921, %v923
    %v925 = vrot.slane %v387, 2
    %v926 = vrot.slane %v230, 2
    %v927 = vsel %vm839, %v925, %v926
    %v928 = vrot.slane %v420, 2
    %v929 = vsel %vm839, %v926, %v928
    %v930 = vrot.slane %v388, 2
    %v931 = vrot.slane %v233, 2
    %v932 = vsel %vm839, %v930, %v931
    %v933 = vrot.slane %v421, 2
    %v934 = vsel %vm839, %v931, %v933
    %v935 = vrot.slane %v389, 2
    %v936 = vrot.slane %v236, 2
    %v937 = vsel %vm839, %v935, %v936
    %v938 = vrot.slane %v422, 2
    %v939 = vsel %vm839, %v936, %v938
    %v940 = vrot.slane %v390, 2
    %v941 = vrot.slane %v239, 2
    %v942 = vsel %vm839, %v940, %v941
    %v943 = vrot.slane %v423, 2
    %v944 = vsel %vm839, %v941, %v943
    %v945 = vrot.slane %v391, 2
    %v946 = vrot.slane %v242, 2
    %v947 = vsel %vm839, %v945, %v946
    %v948 = vrot.slane %v424, 2
    %v949 = vsel %vm839, %v946, %v948
    %v950 = vrot.slane %v392, 2
    %v951 = vrot.slane %v245, 2
    %v952 = vsel %vm839, %v950, %v951
    %v953 = vrot.slane %v425, 2
    %v954 = vsel %vm839, %v951, %v953
    %v955 = vrot.slane %v393, 2
    %v956 = vrot.slane %v248, 2
    %v957 = vsel %vm839, %v955, %v956
    %v958 = vrot.slane %v426, 2
    %v959 = vsel %vm839, %v956, %v958
    %v960 = vrot.slane %v394, 2
    %v961 = vrot.slane %v251, 2
    %v962 = vsel %vm839, %v960, %v961
    %v963 = vrot.slane %v427, 2
    %v964 = vsel %vm839, %v961, %v963
    %v965 = vrot.slane %v395, 2
    %v966 = vrot.slane %v254, 2
    %v967 = vsel %vm839, %v965, %v966
    %v968 = vrot.slane %v428, 2
    %v969 = vsel %vm839, %v966, %v968
    %v970 = vrot.slane %v396, 2
    %v971 = vrot.slane %v257, 2
    %v972 = vsel %vm839, %v970, %v971
    %v973 = vrot.slane %v429, 2
    %v974 = vsel %vm839, %v971, %v973
    %v975 = vrot.slane %v397, 2
    %v976 = vrot.slane %v260, 2
    %v977 = vsel %vm839, %v975, %v976
    %v978 = vrot.slane %v430, 2
    %v979 = vsel %vm839, %v976, %v978
    %v980 = vrot.slane %v398, 2
    %v981 = vrot.slane %v263, 2
    %v982 = vsel %vm839, %v980, %v981
    %v983 = vrot.slane %v431, 2
    %v984 = vsel %vm839, %v981, %v983
    %v985 = vrot.slane %v399, 2
    %v986 = vrot.slane %v266, 2
    %v987 = vsel %vm839, %v985, %v986
    %v988 = vrot.slane %v432, 2
    %v989 = vsel %vm839, %v986, %v988
    %v990 = vrot.slane %v400, 2
    %v991 = vrot.slane %v269, 2
    %v992 = vsel %vm839, %v990, %v991
    %v993 = vrot.slane %v433, 2
    %v994 = vsel %vm839, %v991, %v993
    %995 = vrot.lane.b32.xlu0 %v842, 8
    %v996 = vpop.permute.xlu0 %995
    %997 = vrot.lane.b32.xlu0 %v844, 8
    %v998 = vpop.permute.xlu0 %997
    %999 = vrot.lane.b32.xlu0 %v847, 8
    %v1000 = vpop.permute.xlu0 %999
    %1001 = vrot.lane.b32.xlu0 %v849, 8
    %v1002 = vpop.permute.xlu0 %1001
    %1003 = vrot.lane.b32.xlu0 %v852, 8
    %v1004 = vpop.permute.xlu0 %1003
    %1005 = vrot.lane.b32.xlu0 %v854, 8
    %v1006 = vpop.permute.xlu0 %1005
    %1007 = vrot.lane.b32.xlu0 %v857, 8
    %v1008 = vpop.permute.xlu0 %1007
    %1009 = vrot.lane.b32.xlu0 %v859, 8
    %v1010 = vpop.permute.xlu0 %1009
    %1011 = vrot.lane.b32.xlu0 %v862, 8
    %v1012 = vpop.permute.xlu0 %1011
    %1013 = vrot.lane.b32.xlu0 %v864, 8
    %v1014 = vpop.permute.xlu0 %1013
    %1015 = vrot.lane.b32.xlu0 %v867, 8
    %v1016 = vpop.permute.xlu0 %1015
    %1017 = vrot.lane.b32.xlu0 %v869, 8
    %v1018 = vpop.permute.xlu0 %1017
    %1019 = vrot.lane.b32.xlu0 %v872, 8
    %v1020 = vpop.permute.xlu0 %1019
    %1021 = vrot.lane.b32.xlu0 %v874, 8
    %v1022 = vpop.permute.xlu0 %1021
    %1023 = vrot.lane.b32.xlu0 %v877, 8
    %v1024 = vpop.permute.xlu0 %1023
    %1025 = vrot.lane.b32.xlu0 %v879, 8
    %v1026 = vpop.permute.xlu0 %1025
    %1027 = vrot.lane.b32.xlu0 %v882, 8
    %v1028 = vpop.permute.xlu0 %1027
    %1029 = vrot.lane.b32.xlu0 %v884, 8
    %v1030 = vpop.permute.xlu0 %1029
    %1031 = vrot.lane.b32.xlu0 %v887, 8
    %v1032 = vpop.permute.xlu0 %1031
    %1033 = vrot.lane.b32.xlu0 %v889, 8
    %v1034 = vpop.permute.xlu0 %1033
    %1035 = vrot.lane.b32.xlu0 %v892, 8
    %v1036 = vpop.permute.xlu0 %1035
    %1037 = vrot.lane.b32.xlu0 %v894, 8
    %v1038 = vpop.permute.xlu0 %1037
    %1039 = vrot.lane.b32.xlu0 %v897, 8
    %v1040 = vpop.permute.xlu0 %1039
    %1041 = vrot.lane.b32.xlu0 %v899, 8
    %v1042 = vpop.permute.xlu0 %1041
    %1043 = vrot.lane.b32.xlu0 %v902, 8
    %v1044 = vpop.permute.xlu0 %1043
    %1045 = vrot.lane.b32.xlu0 %v904, 8
    %v1046 = vpop.permute.xlu0 %1045
    %1047 = vrot.lane.b32.xlu0 %v907, 8
    %v1048 = vpop.permute.xlu0 %1047
    %1049 = vrot.lane.b32.xlu0 %v909, 8
    %v1050 = vpop.permute.xlu0 %1049
    %1051 = vrot.lane.b32.xlu0 %v912, 8
    %v1052 = vpop.permute.xlu0 %1051
    %1053 = vrot.lane.b32.xlu0 %v914, 8
    %v1054 = vpop.permute.xlu0 %1053
    %1055 = vrot.lane.b32.xlu0 %v917, 8
    %v1056 = vpop.permute.xlu0 %1055
    %1057 = vrot.lane.b32.xlu0 %v919, 8
    %v1058 = vpop.permute.xlu0 %1057
    %1059 = vrot.lane.b32.xlu0 %v922, 8
    %v1060 = vpop.permute.xlu0 %1059
    %1061 = vrot.lane.b32.xlu0 %v924, 8
    %v1062 = vpop.permute.xlu0 %1061
    %1063 = vrot.lane.b32.xlu0 %v927, 8
    %v1064 = vpop.permute.xlu0 %1063
    %1065 = vrot.lane.b32.xlu0 %v929, 8
    %v1066 = vpop.permute.xlu0 %1065
    %1067 = vrot.lane.b32.xlu0 %v932, 8
    %v1068 = vpop.permute.xlu0 %1067
    %1069 = vrot.lane.b32.xlu0 %v934, 8
    %v1070 = vpop.permute.xlu0 %1069
    %1071 = vrot.lane.b32.xlu0 %v937, 8
    %v1072 = vpop.permute.xlu0 %1071
    %1073 = vrot.lane.b32.xlu0 %v939, 8
    %v1074 = vpop.permute.xlu0 %1073
    %1075 = vrot.lane.b32.xlu0 %v942, 8
    %v1076 = vpop.permute.xlu0 %1075
    %1077 = vrot.lane.b32.xlu0 %v944, 8
    %v1078 = vpop.permute.xlu0 %1077
    %1079 = vrot.lane.b32.xlu0 %v947, 8
    %v1080 = vpop.permute.xlu0 %1079
    %1081 = vrot.lane.b32.xlu0 %v949, 8
    %v1082 = vpop.permute.xlu0 %1081
    %1083 = vrot.lane.b32.xlu0 %v952, 8
    %v1084 = vpop.permute.xlu0 %1083
    %1085 = vrot.lane.b32.xlu0 %v954, 8
    %v1086 = vpop.permute.xlu0 %1085
    %1087 = vrot.lane.b32.xlu0 %v957, 8
    %v1088 = vpop.permute.xlu0 %1087
    %1089 = vrot.lane.b32.xlu0 %v959, 8
    %v1090 = vpop.permute.xlu0 %1089
    %1091 = vrot.lane.b32.xlu0 %v962, 8
    %v1092 = vpop.permute.xlu0 %1091
    %1093 = vrot.lane.b32.xlu0 %v964, 8
    %v1094 = vpop.permute.xlu0 %1093
    %1095 = vrot.lane.b32.xlu0 %v967, 8
    %v1096 = vpop.permute.xlu0 %1095
    %1097 = vrot.lane.b32.xlu0 %v969, 8
    %v1098 = vpop.permute.xlu0 %1097
    %1099 = vrot.lane.b32.xlu0 %v972, 8
    %v1100 = vpop.permute.xlu0 %1099
    %1101 = vrot.lane.b32.xlu0 %v974, 8
    %v1102 = vpop.permute.xlu0 %1101
    %1103 = vrot.lane.b32.xlu0 %v977, 8
    %v1104 = vpop.permute.xlu0 %1103
    %1105 = vrot.lane.b32.xlu0 %v979, 8
    %v1106 = vpop.permute.xlu0 %1105
    %1107 = vrot.lane.b32.xlu0 %v982, 8
    %v1108 = vpop.permute.xlu0 %1107
    %1109 = vrot.lane.b32.xlu0 %v984, 8
    %v1110 = vpop.permute.xlu0 %1109
    %1111 = vrot.lane.b32.xlu0 %v987, 8
    %v1112 = vpop.permute.xlu0 %1111
    %1113 = vrot.lane.b32.xlu0 %v989, 8
    %v1114 = vpop.permute.xlu0 %1113
    %1115 = vrot.lane.b32.xlu0 %v992, 8
    %v1116 = vpop.permute.xlu0 %1115
    %1117 = vrot.lane.b32.xlu0 %v994, 8
    %v1118 = vpop.permute.xlu0 %1117
    %1183 = vrot.lane.b32.xlu0 %v370, 12
    %v1184 = vpop.permute.xlu0 %1183
    %1185 = vrot.lane.b32.xlu0 %v179, 12
    %v1186 = vpop.permute.xlu0 %1185
    %1187 = vrot.lane.b32.xlu0 %v371, 12
    %v1188 = vpop.permute.xlu0 %1187
    %1189 = vrot.lane.b32.xlu0 %v182, 12
    %v1190 = vpop.permute.xlu0 %1189
    %1191 = vrot.lane.b32.xlu0 %v372, 12
    %v1192 = vpop.permute.xlu0 %1191
    %1193 = vrot.lane.b32.xlu0 %v185, 12
    %v1194 = vpop.permute.xlu0 %1193
    %1195 = vrot.lane.b32.xlu0 %v373, 12
    %v1196 = vpop.permute.xlu0 %1195
    %1197 = vrot.lane.b32.xlu0 %v188, 12
    %v1198 = vpop.permute.xlu0 %1197
    %1199 = vrot.lane.b32.xlu0 %v374, 12
    %v1200 = vpop.permute.xlu0 %1199
    %1201 = vrot.lane.b32.xlu0 %v191, 12
    %v1202 = vpop.permute.xlu0 %1201
    %1203 = vrot.lane.b32.xlu0 %v375, 12
    %v1204 = vpop.permute.xlu0 %1203
    %1205 = vrot.lane.b32.xlu0 %v194, 12
    %v1206 = vpop.permute.xlu0 %1205
    %1207 = vrot.lane.b32.xlu0 %v376, 12
    %v1208 = vpop.permute.xlu0 %1207
    %1209 = vrot.lane.b32.xlu0 %v197, 12
    %v1210 = vpop.permute.xlu0 %1209
    %1211 = vrot.lane.b32.xlu0 %v377, 12
    %v1212 = vpop.permute.xlu0 %1211
    %1213 = vrot.lane.b32.xlu0 %v200, 12
    %v1214 = vpop.permute.xlu0 %1213
    %1215 = vrot.lane.b32.xlu0 %v378, 12
    %v1216 = vpop.permute.xlu0 %1215
    %1217 = vrot.lane.b32.xlu0 %v203, 12
    %v1218 = vpop.permute.xlu0 %1217
    %1219 = vrot.lane.b32.xlu0 %v379, 12
    %v1220 = vpop.permute.xlu0 %1219
    %1221 = vrot.lane.b32.xlu0 %v206, 12
    %v1222 = vpop.permute.xlu0 %1221
    %1223 = vrot.lane.b32.xlu0 %v380, 12
    %v1224 = vpop.permute.xlu0 %1223
    %1225 = vrot.lane.b32.xlu0 %v209, 12
    %v1226 = vpop.permute.xlu0 %1225
    %1227 = vrot.lane.b32.xlu0 %v381, 12
    %v1228 = vpop.permute.xlu0 %1227
    %1229 = vrot.lane.b32.xlu0 %v212, 12
    %v1230 = vpop.permute.xlu0 %1229
    %1231 = vrot.lane.b32.xlu0 %v382, 12
    %v1232 = vpop.permute.xlu0 %1231
    %1233 = vrot.lane.b32.xlu0 %v215, 12
    %v1234 = vpop.permute.xlu0 %1233
    %1235 = vrot.lane.b32.xlu0 %v383, 12
    %v1236 = vpop.permute.xlu0 %1235
    %1237 = vrot.lane.b32.xlu0 %v218, 12
    %v1238 = vpop.permute.xlu0 %1237
    %1239 = vrot.lane.b32.xlu0 %v384, 12
    %v1240 = vpop.permute.xlu0 %1239
    %1241 = vrot.lane.b32.xlu0 %v221, 12
    %v1242 = vpop.permute.xlu0 %1241
    %1243 = vrot.lane.b32.xlu0 %v385, 12
    %v1244 = vpop.permute.xlu0 %1243
    %1245 = vrot.lane.b32.xlu0 %v224, 12
    %v1246 = vpop.permute.xlu0 %1245
    %1247 = vrot.lane.b32.xlu0 %v386, 12
    %v1248 = vpop.permute.xlu0 %1247
    %1249 = vrot.lane.b32.xlu0 %v227, 12
    %v1250 = vpop.permute.xlu0 %1249
    %1251 = vrot.lane.b32.xlu0 %v387, 12
    %v1252 = vpop.permute.xlu0 %1251
    %1253 = vrot.lane.b32.xlu0 %v230, 12
    %v1254 = vpop.permute.xlu0 %1253
    %1255 = vrot.lane.b32.xlu0 %v388, 12
    %v1256 = vpop.permute.xlu0 %1255
    %1257 = vrot.lane.b32.xlu0 %v233, 12
    %v1258 = vpop.permute.xlu0 %1257
    %1259 = vrot.lane.b32.xlu0 %v389, 12
    %v1260 = vpop.permute.xlu0 %1259
    %1261 = vrot.lane.b32.xlu0 %v236, 12
    %v1262 = vpop.permute.xlu0 %1261
    %1263 = vrot.lane.b32.xlu0 %v390, 12
    %v1264 = vpop.permute.xlu0 %1263
    %1265 = vrot.lane.b32.xlu0 %v239, 12
    %v1266 = vpop.permute.xlu0 %1265
    %1267 = vrot.lane.b32.xlu0 %v391, 12
    %v1268 = vpop.permute.xlu0 %1267
    %1269 = vrot.lane.b32.xlu0 %v242, 12
    %v1270 = vpop.permute.xlu0 %1269
    %1271 = vrot.lane.b32.xlu0 %v392, 12
    %v1272 = vpop.permute.xlu0 %1271
    %1273 = vrot.lane.b32.xlu0 %v245, 12
    %v1274 = vpop.permute.xlu0 %1273
    %1275 = vrot.lane.b32.xlu0 %v393, 12
    %v1276 = vpop.permute.xlu0 %1275
    %1277 = vrot.lane.b32.xlu0 %v248, 12
    %v1278 = vpop.permute.xlu0 %1277
    %1279 = vrot.lane.b32.xlu0 %v394, 12
    %v1280 = vpop.permute.xlu0 %1279
    %1281 = vrot.lane.b32.xlu0 %v251, 12
    %v1282 = vpop.permute.xlu0 %1281
    %1283 = vrot.lane.b32.xlu0 %v395, 12
    %v1284 = vpop.permute.xlu0 %1283
    %1285 = vrot.lane.b32.xlu0 %v254, 12
    %v1286 = vpop.permute.xlu0 %1285
    %1287 = vrot.lane.b32.xlu0 %v396, 12
    %v1288 = vpop.permute.xlu0 %1287
    %1289 = vrot.lane.b32.xlu0 %v257, 12
    %v1290 = vpop.permute.xlu0 %1289
    %1291 = vrot.lane.b32.xlu0 %v397, 12
    %v1292 = vpop.permute.xlu0 %1291
    %1293 = vrot.lane.b32.xlu0 %v260, 12
    %v1294 = vpop.permute.xlu0 %1293
    %1295 = vrot.lane.b32.xlu0 %v398, 12
    %v1296 = vpop.permute.xlu0 %1295
    %1297 = vrot.lane.b32.xlu0 %v263, 12
    %v1298 = vpop.permute.xlu0 %1297
    %1299 = vrot.lane.b32.xlu0 %v399, 12
    %v1300 = vpop.permute.xlu0 %1299
    %1301 = vrot.lane.b32.xlu0 %v266, 12
    %v1302 = vpop.permute.xlu0 %1301
    %1303 = vrot.lane.b32.xlu0 %v400, 12
    %v1304 = vpop.permute.xlu0 %1303
    %1305 = vrot.lane.b32.xlu0 %v269, 12
    %v1306 = vpop.permute.xlu0 %1305
    %1307 = vrot.lane.b32.xlu0 %v401, 12
    %v1308 = vpop.permute.xlu0 %1307
    %1309 = vrot.lane.b32.xlu0 %v272, 12
    %v1310 = vpop.permute.xlu0 %1309
    %v1377 = vrot.slane %v385, 1
    %v1378 = vrot.slane %v224, 1
    %v1379 = vsel %vm497, %v1377, %v1378
    %v1380 = vrot.slane %v418, 1
    %v1381 = vsel %vm497, %v1378, %v1380
    %v1382 = vrot.slane %v401, 1
    %v1383 = vrot.slane %v272, 1
    %v1384 = vsel %vm497, %v1382, %v1383
    %v1385 = vrot.slane %v434, 1
    %v1386 = vsel %vm497, %v1383, %v1385
    %1387 = vrot.lane.b32.xlu0 %v505, 16
    %v1388 = vpop.permute.xlu0 %1387
    %1389 = vrot.lane.b32.xlu0 %v507, 16
    %v1390 = vpop.permute.xlu0 %1389
    %1391 = vrot.lane.b32.xlu0 %v510, 16
    %v1392 = vpop.permute.xlu0 %1391
    %1393 = vrot.lane.b32.xlu0 %v512, 16
    %v1394 = vpop.permute.xlu0 %1393
    %1395 = vrot.lane.b32.xlu0 %v515, 16
    %v1396 = vpop.permute.xlu0 %1395
    %1397 = vrot.lane.b32.xlu0 %v517, 16
    %v1398 = vpop.permute.xlu0 %1397
    %1399 = vrot.lane.b32.xlu0 %v520, 16
    %v1400 = vpop.permute.xlu0 %1399
    %1401 = vrot.lane.b32.xlu0 %v522, 16
    %v1402 = vpop.permute.xlu0 %1401
    %1403 = vrot.lane.b32.xlu0 %v525, 16
    %v1404 = vpop.permute.xlu0 %1403
    %1405 = vrot.lane.b32.xlu0 %v527, 16
    %v1406 = vpop.permute.xlu0 %1405
    %1407 = vrot.lane.b32.xlu0 %v530, 16
    %v1408 = vpop.permute.xlu0 %1407
    %1409 = vrot.lane.b32.xlu0 %v532, 16
    %v1410 = vpop.permute.xlu0 %1409
    %1411 = vrot.lane.b32.xlu0 %v535, 16
    %v1412 = vpop.permute.xlu0 %1411
    %1413 = vrot.lane.b32.xlu0 %v537, 16
    %v1414 = vpop.permute.xlu0 %1413
    %1415 = vrot.lane.b32.xlu0 %v540, 16
    %v1416 = vpop.permute.xlu0 %1415
    %1417 = vrot.lane.b32.xlu0 %v542, 16
    %v1418 = vpop.permute.xlu0 %1417
    %1419 = vrot.lane.b32.xlu0 %v545, 16
    %v1420 = vpop.permute.xlu0 %1419
    %1421 = vrot.lane.b32.xlu0 %v547, 16
    %v1422 = vpop.permute.xlu0 %1421
    %1423 = vrot.lane.b32.xlu0 %v550, 16
    %v1424 = vpop.permute.xlu0 %1423
    %1425 = vrot.lane.b32.xlu0 %v552, 16
    %v1426 = vpop.permute.xlu0 %1425
    %1427 = vrot.lane.b32.xlu0 %v555, 16
    %v1428 = vpop.permute.xlu0 %1427
    %1429 = vrot.lane.b32.xlu0 %v557, 16
    %v1430 = vpop.permute.xlu0 %1429
    %1431 = vrot.lane.b32.xlu0 %v560, 16
    %v1432 = vpop.permute.xlu0 %1431
    %1433 = vrot.lane.b32.xlu0 %v562, 16
    %v1434 = vpop.permute.xlu0 %1433
    %1435 = vrot.lane.b32.xlu0 %v565, 16
    %v1436 = vpop.permute.xlu0 %1435
    %1437 = vrot.lane.b32.xlu0 %v567, 16
    %v1438 = vpop.permute.xlu0 %1437
    %1439 = vrot.lane.b32.xlu0 %v570, 16
    %v1440 = vpop.permute.xlu0 %1439
    %1441 = vrot.lane.b32.xlu0 %v572, 16
    %v1442 = vpop.permute.xlu0 %1441
    %1443 = vrot.lane.b32.xlu0 %v575, 16
    %v1444 = vpop.permute.xlu0 %1443
    %1445 = vrot.lane.b32.xlu0 %v577, 16
    %v1446 = vpop.permute.xlu0 %1445
    %1447 = vrot.lane.b32.xlu0 %v1379, 16
    %v1448 = vpop.permute.xlu0 %1447
    %1449 = vrot.lane.b32.xlu0 %v1381, 16
    %v1450 = vpop.permute.xlu0 %1449
    %1451 = vrot.lane.b32.xlu0 %v580, 16
    %v1452 = vpop.permute.xlu0 %1451
    %1453 = vrot.lane.b32.xlu0 %v582, 16
    %v1454 = vpop.permute.xlu0 %1453
    %1455 = vrot.lane.b32.xlu0 %v585, 16
    %v1456 = vpop.permute.xlu0 %1455
    %1457 = vrot.lane.b32.xlu0 %v587, 16
    %v1458 = vpop.permute.xlu0 %1457
    %1459 = vrot.lane.b32.xlu0 %v590, 16
    %v1460 = vpop.permute.xlu0 %1459
    %1461 = vrot.lane.b32.xlu0 %v592, 16
    %v1462 = vpop.permute.xlu0 %1461
    %1463 = vrot.lane.b32.xlu0 %v595, 16
    %v1464 = vpop.permute.xlu0 %1463
    %1465 = vrot.lane.b32.xlu0 %v597, 16
    %v1466 = vpop.permute.xlu0 %1465
    %1467 = vrot.lane.b32.xlu0 %v600, 16
    %v1468 = vpop.permute.xlu0 %1467
    %1469 = vrot.lane.b32.xlu0 %v602, 16
    %v1470 = vpop.permute.xlu0 %1469
    %1471 = vrot.lane.b32.xlu0 %v605, 16
    %v1472 = vpop.permute.xlu0 %1471
    %1473 = vrot.lane.b32.xlu0 %v607, 16
    %v1474 = vpop.permute.xlu0 %1473
    %1475 = vrot.lane.b32.xlu0 %v610, 16
    %v1476 = vpop.permute.xlu0 %1475
    %1477 = vrot.lane.b32.xlu0 %v612, 16
    %v1478 = vpop.permute.xlu0 %1477
    %1479 = vrot.lane.b32.xlu0 %v615, 16
    %v1480 = vpop.permute.xlu0 %1479
    %1481 = vrot.lane.b32.xlu0 %v617, 16
    %v1482 = vpop.permute.xlu0 %1481
    %1483 = vrot.lane.b32.xlu0 %v620, 16
    %v1484 = vpop.permute.xlu0 %1483
    %1485 = vrot.lane.b32.xlu0 %v622, 16
    %v1486 = vpop.permute.xlu0 %1485
    %1487 = vrot.lane.b32.xlu0 %v625, 16
    %v1488 = vpop.permute.xlu0 %1487
    %1489 = vrot.lane.b32.xlu0 %v627, 16
    %v1490 = vpop.permute.xlu0 %1489
    %1491 = vrot.lane.b32.xlu0 %v630, 16
    %v1492 = vpop.permute.xlu0 %1491
    %1493 = vrot.lane.b32.xlu0 %v632, 16
    %v1494 = vpop.permute.xlu0 %1493
    %1495 = vrot.lane.b32.xlu0 %v635, 16
    %v1496 = vpop.permute.xlu0 %1495
    %1497 = vrot.lane.b32.xlu0 %v637, 16
    %v1498 = vpop.permute.xlu0 %1497
    %1499 = vrot.lane.b32.xlu0 %v640, 16
    %v1500 = vpop.permute.xlu0 %1499
    %1501 = vrot.lane.b32.xlu0 %v642, 16
    %v1502 = vpop.permute.xlu0 %1501
    %1503 = vrot.lane.b32.xlu0 %v645, 16
    %v1504 = vpop.permute.xlu0 %1503
    %1505 = vrot.lane.b32.xlu0 %v647, 16
    %v1506 = vpop.permute.xlu0 %1505
    %1507 = vrot.lane.b32.xlu0 %v650, 16
    %v1508 = vpop.permute.xlu0 %1507
    %1509 = vrot.lane.b32.xlu0 %v652, 16
    %v1510 = vpop.permute.xlu0 %1509
    %1511 = vrot.lane.b32.xlu0 %v1384, 16
    %v1512 = vpop.permute.xlu0 %1511
    %1513 = vrot.lane.b32.xlu0 %v1386, 16
    %v1514 = vpop.permute.xlu0 %1513
    %v1579 = vrot.slane %v385, 2
    %v1580 = vrot.slane %v224, 2
    %v1581 = vsel %vm839, %v1579, %v1580
    %v1582 = vrot.slane %v418, 2
    %v1583 = vsel %vm839, %v1580, %v1582
    %v1584 = vrot.slane %v401, 2
    %v1585 = vrot.slane %v272, 2
    %v1586 = vsel %vm839, %v1584, %v1585
    %v1587 = vrot.slane %v434, 2
    %v1588 = vsel %vm839, %v1585, %v1587
    %1589 = vrot.lane.b32.xlu0 %v847, 20
    %v1590 = vpop.permute.xlu0 %1589
    %1591 = vrot.lane.b32.xlu0 %v849, 20
    %v1592 = vpop.permute.xlu0 %1591
    %1593 = vrot.lane.b32.xlu0 %v852, 20
    %v1594 = vpop.permute.xlu0 %1593
    %1595 = vrot.lane.b32.xlu0 %v854, 20
    %v1596 = vpop.permute.xlu0 %1595
    %1597 = vrot.lane.b32.xlu0 %v857, 20
    %v1598 = vpop.permute.xlu0 %1597
    %1599 = vrot.lane.b32.xlu0 %v859, 20
    %v1600 = vpop.permute.xlu0 %1599
    %1601 = vrot.lane.b32.xlu0 %v862, 20
    %v1602 = vpop.permute.xlu0 %1601
    %1603 = vrot.lane.b32.xlu0 %v864, 20
    %v1604 = vpop.permute.xlu0 %1603
    %1605 = vrot.lane.b32.xlu0 %v867, 20
    %v1606 = vpop.permute.xlu0 %1605
    %1607 = vrot.lane.b32.xlu0 %v869, 20
    %v1608 = vpop.permute.xlu0 %1607
    %1609 = vrot.lane.b32.xlu0 %v872, 20
    %v1610 = vpop.permute.xlu0 %1609
    %1611 = vrot.lane.b32.xlu0 %v874, 20
    %v1612 = vpop.permute.xlu0 %1611
    %1613 = vrot.lane.b32.xlu0 %v877, 20
    %v1614 = vpop.permute.xlu0 %1613
    %1615 = vrot.lane.b32.xlu0 %v879, 20
    %v1616 = vpop.permute.xlu0 %1615
    %1617 = vrot.lane.b32.xlu0 %v882, 20
    %v1618 = vpop.permute.xlu0 %1617
    %1619 = vrot.lane.b32.xlu0 %v884, 20
    %v1620 = vpop.permute.xlu0 %1619
    %1621 = vrot.lane.b32.xlu0 %v887, 20
    %v1622 = vpop.permute.xlu0 %1621
    %1623 = vrot.lane.b32.xlu0 %v889, 20
    %v1624 = vpop.permute.xlu0 %1623
    %1625 = vrot.lane.b32.xlu0 %v892, 20
    %v1626 = vpop.permute.xlu0 %1625
    %1627 = vrot.lane.b32.xlu0 %v894, 20
    %v1628 = vpop.permute.xlu0 %1627
    %1629 = vrot.lane.b32.xlu0 %v897, 20
    %v1630 = vpop.permute.xlu0 %1629
    %1631 = vrot.lane.b32.xlu0 %v899, 20
    %v1632 = vpop.permute.xlu0 %1631
    %1633 = vrot.lane.b32.xlu0 %v902, 20
    %v1634 = vpop.permute.xlu0 %1633
    %1635 = vrot.lane.b32.xlu0 %v904, 20
    %v1636 = vpop.permute.xlu0 %1635
    %1637 = vrot.lane.b32.xlu0 %v907, 20
    %v1638 = vpop.permute.xlu0 %1637
    %1639 = vrot.lane.b32.xlu0 %v909, 20
    %v1640 = vpop.permute.xlu0 %1639
    %1641 = vrot.lane.b32.xlu0 %v912, 20
    %v1642 = vpop.permute.xlu0 %1641
    %1643 = vrot.lane.b32.xlu0 %v914, 20
    %v1644 = vpop.permute.xlu0 %1643
    %1645 = vrot.lane.b32.xlu0 %v917, 20
    %v1646 = vpop.permute.xlu0 %1645
    %1647 = vrot.lane.b32.xlu0 %v919, 20
    %v1648 = vpop.permute.xlu0 %1647
    %1649 = vrot.lane.b32.xlu0 %v1581, 20
    %v1650 = vpop.permute.xlu0 %1649
    %1651 = vrot.lane.b32.xlu0 %v1583, 20
    %v1652 = vpop.permute.xlu0 %1651
    %1653 = vrot.lane.b32.xlu0 %v922, 20
    %v1654 = vpop.permute.xlu0 %1653
    %1655 = vrot.lane.b32.xlu0 %v924, 20
    %v1656 = vpop.permute.xlu0 %1655
    %1657 = vrot.lane.b32.xlu0 %v927, 20
    %v1658 = vpop.permute.xlu0 %1657
    %1659 = vrot.lane.b32.xlu0 %v929, 20
    %v1660 = vpop.permute.xlu0 %1659
    %1661 = vrot.lane.b32.xlu0 %v932, 20
    %v1662 = vpop.permute.xlu0 %1661
    %1663 = vrot.lane.b32.xlu0 %v934, 20
    %v1664 = vpop.permute.xlu0 %1663
    %1665 = vrot.lane.b32.xlu0 %v937, 20
    %v1666 = vpop.permute.xlu0 %1665
    %1667 = vrot.lane.b32.xlu0 %v939, 20
    %v1668 = vpop.permute.xlu0 %1667
    %1669 = vrot.lane.b32.xlu0 %v942, 20
    %v1670 = vpop.permute.xlu0 %1669
    %1671 = vrot.lane.b32.xlu0 %v944, 20
    %v1672 = vpop.permute.xlu0 %1671
    %1673 = vrot.lane.b32.xlu0 %v947, 20
    %v1674 = vpop.permute.xlu0 %1673
    %1675 = vrot.lane.b32.xlu0 %v949, 20
    %v1676 = vpop.permute.xlu0 %1675
    %1677 = vrot.lane.b32.xlu0 %v952, 20
    %v1678 = vpop.permute.xlu0 %1677
    %1679 = vrot.lane.b32.xlu0 %v954, 20
    %v1680 = vpop.permute.xlu0 %1679
    %1681 = vrot.lane.b32.xlu0 %v957, 20
    %v1682 = vpop.permute.xlu0 %1681
    %1683 = vrot.lane.b32.xlu0 %v959, 20
    %v1684 = vpop.permute.xlu0 %1683
    %1685 = vrot.lane.b32.xlu0 %v962, 20
    %v1686 = vpop.permute.xlu0 %1685
    %1687 = vrot.lane.b32.xlu0 %v964, 20
    %v1688 = vpop.permute.xlu0 %1687
    %1689 = vrot.lane.b32.xlu0 %v967, 20
    %v1690 = vpop.permute.xlu0 %1689
    %1691 = vrot.lane.b32.xlu0 %v969, 20
    %v1692 = vpop.permute.xlu0 %1691
    %1693 = vrot.lane.b32.xlu0 %v972, 20
    %v1694 = vpop.permute.xlu0 %1693
    %1695 = vrot.lane.b32.xlu0 %v974, 20
    %v1696 = vpop.permute.xlu0 %1695
    %1697 = vrot.lane.b32.xlu0 %v977, 20
    %v1698 = vpop.permute.xlu0 %1697
    %1699 = vrot.lane.b32.xlu0 %v979, 20
    %v1700 = vpop.permute.xlu0 %1699
    %1701 = vrot.lane.b32.xlu0 %v982, 20
    %v1702 = vpop.permute.xlu0 %1701
    %1703 = vrot.lane.b32.xlu0 %v984, 20
    %v1704 = vpop.permute.xlu0 %1703
    %1705 = vrot.lane.b32.xlu0 %v987, 20
    %v1706 = vpop.permute.xlu0 %1705
    %1707 = vrot.lane.b32.xlu0 %v989, 20
    %v1708 = vpop.permute.xlu0 %1707
    %1709 = vrot.lane.b32.xlu0 %v992, 20
    %v1710 = vpop.permute.xlu0 %1709
    %1711 = vrot.lane.b32.xlu0 %v994, 20
    %v1712 = vpop.permute.xlu0 %1711
    %1713 = vrot.lane.b32.xlu0 %v1586, 20
    %v1714 = vpop.permute.xlu0 %1713
    %1715 = vrot.lane.b32.xlu0 %v1588, 20
    %v1716 = vpop.permute.xlu0 %1715
    %1781 = vrot.lane.b32.xlu0 %v371, 24
    %v1782 = vpop.permute.xlu0 %1781
    %1783 = vrot.lane.b32.xlu0 %v182, 24
    %v1784 = vpop.permute.xlu0 %1783
    %1785 = vrot.lane.b32.xlu0 %v372, 24
    %v1786 = vpop.permute.xlu0 %1785
    %1787 = vrot.lane.b32.xlu0 %v185, 24
    %v1788 = vpop.permute.xlu0 %1787
    %1789 = vrot.lane.b32.xlu0 %v373, 24
    %v1790 = vpop.permute.xlu0 %1789
    %1791 = vrot.lane.b32.xlu0 %v188, 24
    %v1792 = vpop.permute.xlu0 %1791
    %1793 = vrot.lane.b32.xlu0 %v374, 24
    %v1794 = vpop.permute.xlu0 %1793
    %1795 = vrot.lane.b32.xlu0 %v191, 24
    %v1796 = vpop.permute.xlu0 %1795
    %1797 = vrot.lane.b32.xlu0 %v375, 24
    %v1798 = vpop.permute.xlu0 %1797
    %1799 = vrot.lane.b32.xlu0 %v194, 24
    %v1800 = vpop.permute.xlu0 %1799
    %1801 = vrot.lane.b32.xlu0 %v376, 24
    %v1802 = vpop.permute.xlu0 %1801
    %1803 = vrot.lane.b32.xlu0 %v197, 24
    %v1804 = vpop.permute.xlu0 %1803
    %1805 = vrot.lane.b32.xlu0 %v377, 24
    %v1806 = vpop.permute.xlu0 %1805
    %1807 = vrot.lane.b32.xlu0 %v200, 24
    %v1808 = vpop.permute.xlu0 %1807
    %1809 = vrot.lane.b32.xlu0 %v378, 24
    %v1810 = vpop.permute.xlu0 %1809
    %1811 = vrot.lane.b32.xlu0 %v203, 24
    %v1812 = vpop.permute.xlu0 %1811
    %1813 = vrot.lane.b32.xlu0 %v379, 24
    %v1814 = vpop.permute.xlu0 %1813
    %1815 = vrot.lane.b32.xlu0 %v206, 24
    %v1816 = vpop.permute.xlu0 %1815
    %1817 = vrot.lane.b32.xlu0 %v380, 24
    %v1818 = vpop.permute.xlu0 %1817
    %1819 = vrot.lane.b32.xlu0 %v209, 24
    %v1820 = vpop.permute.xlu0 %1819
    %1821 = vrot.lane.b32.xlu0 %v381, 24
    %v1822 = vpop.permute.xlu0 %1821
    %1823 = vrot.lane.b32.xlu0 %v212, 24
    %v1824 = vpop.permute.xlu0 %1823
    %1825 = vrot.lane.b32.xlu0 %v382, 24
    %v1826 = vpop.permute.xlu0 %1825
    %1827 = vrot.lane.b32.xlu0 %v215, 24
    %v1828 = vpop.permute.xlu0 %1827
    %1829 = vrot.lane.b32.xlu0 %v383, 24
    %v1830 = vpop.permute.xlu0 %1829
    %1831 = vrot.lane.b32.xlu0 %v218, 24
    %v1832 = vpop.permute.xlu0 %1831
    %1833 = vrot.lane.b32.xlu0 %v384, 24
    %v1834 = vpop.permute.xlu0 %1833
    %1835 = vrot.lane.b32.xlu0 %v221, 24
    %v1836 = vpop.permute.xlu0 %1835
    %1837 = vrot.lane.b32.xlu0 %v385, 24
    %v1838 = vpop.permute.xlu0 %1837
    %1839 = vrot.lane.b32.xlu0 %v224, 24
    %v1840 = vpop.permute.xlu0 %1839
    %1841 = vrot.lane.b32.xlu0 %v369, 24
    %v1842 = vpop.permute.xlu0 %1841
    %1843 = vrot.lane.b32.xlu0 %v176, 24
    %v1844 = vpop.permute.xlu0 %1843
    %1845 = vrot.lane.b32.xlu0 %v387, 24
    %v1846 = vpop.permute.xlu0 %1845
    %1847 = vrot.lane.b32.xlu0 %v230, 24
    %v1848 = vpop.permute.xlu0 %1847
    %1849 = vrot.lane.b32.xlu0 %v388, 24
    %v1850 = vpop.permute.xlu0 %1849
    %1851 = vrot.lane.b32.xlu0 %v233, 24
    %v1852 = vpop.permute.xlu0 %1851
    %1853 = vrot.lane.b32.xlu0 %v389, 24
    %v1854 = vpop.permute.xlu0 %1853
    %1855 = vrot.lane.b32.xlu0 %v236, 24
    %v1856 = vpop.permute.xlu0 %1855
    %1857 = vrot.lane.b32.xlu0 %v390, 24
    %v1858 = vpop.permute.xlu0 %1857
    %1859 = vrot.lane.b32.xlu0 %v239, 24
    %v1860 = vpop.permute.xlu0 %1859
    %1861 = vrot.lane.b32.xlu0 %v391, 24
    %v1862 = vpop.permute.xlu0 %1861
    %1863 = vrot.lane.b32.xlu0 %v242, 24
    %v1864 = vpop.permute.xlu0 %1863
    %1865 = vrot.lane.b32.xlu0 %v392, 24
    %v1866 = vpop.permute.xlu0 %1865
    %1867 = vrot.lane.b32.xlu0 %v245, 24
    %v1868 = vpop.permute.xlu0 %1867
    %1869 = vrot.lane.b32.xlu0 %v393, 24
    %v1870 = vpop.permute.xlu0 %1869
    %1871 = vrot.lane.b32.xlu0 %v248, 24
    %v1872 = vpop.permute.xlu0 %1871
    %1873 = vrot.lane.b32.xlu0 %v394, 24
    %v1874 = vpop.permute.xlu0 %1873
    %1875 = vrot.lane.b32.xlu0 %v251, 24
    %v1876 = vpop.permute.xlu0 %1875
    %1877 = vrot.lane.b32.xlu0 %v395, 24
    %v1878 = vpop.permute.xlu0 %1877
    %1879 = vrot.lane.b32.xlu0 %v254, 24
    %v1880 = vpop.permute.xlu0 %1879
    %1881 = vrot.lane.b32.xlu0 %v396, 24
    %v1882 = vpop.permute.xlu0 %1881
    %1883 = vrot.lane.b32.xlu0 %v257, 24
    %v1884 = vpop.permute.xlu0 %1883
    %1885 = vrot.lane.b32.xlu0 %v397, 24
    %v1886 = vpop.permute.xlu0 %1885
    %1887 = vrot.lane.b32.xlu0 %v260, 24
    %v1888 = vpop.permute.xlu0 %1887
    %1889 = vrot.lane.b32.xlu0 %v398, 24
    %v1890 = vpop.permute.xlu0 %1889
    %1891 = vrot.lane.b32.xlu0 %v263, 24
    %v1892 = vpop.permute.xlu0 %1891
    %1893 = vrot.lane.b32.xlu0 %v399, 24
    %v1894 = vpop.permute.xlu0 %1893
    %1895 = vrot.lane.b32.xlu0 %v266, 24
    %v1896 = vpop.permute.xlu0 %1895
    %1897 = vrot.lane.b32.xlu0 %v400, 24
    %v1898 = vpop.permute.xlu0 %1897
    %1899 = vrot.lane.b32.xlu0 %v269, 24
    %v1900 = vpop.permute.xlu0 %1899
    %1901 = vrot.lane.b32.xlu0 %v401, 24
    %v1902 = vpop.permute.xlu0 %1901
    %1903 = vrot.lane.b32.xlu0 %v272, 24
    %v1904 = vpop.permute.xlu0 %1903
    %1967 = vrot.lane.b32.xlu0 %v510, 28
    %v1968 = vpop.permute.xlu0 %1967
    %1969 = vrot.lane.b32.xlu0 %v512, 28
    %v1970 = vpop.permute.xlu0 %1969
    %1971 = vrot.lane.b32.xlu0 %v515, 28
    %v1972 = vpop.permute.xlu0 %1971
    %1973 = vrot.lane.b32.xlu0 %v517, 28
    %v1974 = vpop.permute.xlu0 %1973
    %1975 = vrot.lane.b32.xlu0 %v520, 28
    %v1976 = vpop.permute.xlu0 %1975
    %1977 = vrot.lane.b32.xlu0 %v522, 28
    %v1978 = vpop.permute.xlu0 %1977
    %1979 = vrot.lane.b32.xlu0 %v525, 28
    %v1980 = vpop.permute.xlu0 %1979
    %1981 = vrot.lane.b32.xlu0 %v527, 28
    %v1982 = vpop.permute.xlu0 %1981
    %1983 = vrot.lane.b32.xlu0 %v530, 28
    %v1984 = vpop.permute.xlu0 %1983
    %1985 = vrot.lane.b32.xlu0 %v532, 28
    %v1986 = vpop.permute.xlu0 %1985
    %1987 = vrot.lane.b32.xlu0 %v535, 28
    %v1988 = vpop.permute.xlu0 %1987
    %1989 = vrot.lane.b32.xlu0 %v537, 28
    %v1990 = vpop.permute.xlu0 %1989
    %1991 = vrot.lane.b32.xlu0 %v540, 28
    %v1992 = vpop.permute.xlu0 %1991
    %1993 = vrot.lane.b32.xlu0 %v542, 28
    %v1994 = vpop.permute.xlu0 %1993
    %1995 = vrot.lane.b32.xlu0 %v545, 28
    %v1996 = vpop.permute.xlu0 %1995
    %1997 = vrot.lane.b32.xlu0 %v547, 28
    %v1998 = vpop.permute.xlu0 %1997
    %1999 = vrot.lane.b32.xlu0 %v550, 28
    %v2000 = vpop.permute.xlu0 %1999
    %2001 = vrot.lane.b32.xlu0 %v552, 28
    %v2002 = vpop.permute.xlu0 %2001
    %2003 = vrot.lane.b32.xlu0 %v555, 28
    %v2004 = vpop.permute.xlu0 %2003
    %2005 = vrot.lane.b32.xlu0 %v557, 28
    %v2006 = vpop.permute.xlu0 %2005
    %2007 = vrot.lane.b32.xlu0 %v560, 28
    %v2008 = vpop.permute.xlu0 %2007
    %2009 = vrot.lane.b32.xlu0 %v562, 28
    %v2010 = vpop.permute.xlu0 %2009
    %2011 = vrot.lane.b32.xlu0 %v565, 28
    %v2012 = vpop.permute.xlu0 %2011
    %2013 = vrot.lane.b32.xlu0 %v567, 28
    %v2014 = vpop.permute.xlu0 %2013
    %2015 = vrot.lane.b32.xlu0 %v570, 28
    %v2016 = vpop.permute.xlu0 %2015
    %2017 = vrot.lane.b32.xlu0 %v572, 28
    %v2018 = vpop.permute.xlu0 %2017
    %2019 = vrot.lane.b32.xlu0 %v575, 28
    %v2020 = vpop.permute.xlu0 %2019
    %2021 = vrot.lane.b32.xlu0 %v577, 28
    %v2022 = vpop.permute.xlu0 %2021
    %2023 = vrot.lane.b32.xlu0 %v1379, 28
    %v2024 = vpop.permute.xlu0 %2023
    %2025 = vrot.lane.b32.xlu0 %v1381, 28
    %v2026 = vpop.permute.xlu0 %2025
    %2027 = vrot.lane.b32.xlu0 %v500, 28
    %v2028 = vpop.permute.xlu0 %2027
    %2029 = vrot.lane.b32.xlu0 %v502, 28
    %v2030 = vpop.permute.xlu0 %2029
    %2031 = vrot.lane.b32.xlu0 %v585, 28
    %v2032 = vpop.permute.xlu0 %2031
    %2033 = vrot.lane.b32.xlu0 %v587, 28
    %v2034 = vpop.permute.xlu0 %2033
    %2035 = vrot.lane.b32.xlu0 %v590, 28
    %v2036 = vpop.permute.xlu0 %2035
    %2037 = vrot.lane.b32.xlu0 %v592, 28
    %v2038 = vpop.permute.xlu0 %2037
    %2039 = vrot.lane.b32.xlu0 %v595, 28
    %v2040 = vpop.permute.xlu0 %2039
    %2041 = vrot.lane.b32.xlu0 %v597, 28
    %v2042 = vpop.permute.xlu0 %2041
    %2043 = vrot.lane.b32.xlu0 %v600, 28
    %v2044 = vpop.permute.xlu0 %2043
    %2045 = vrot.lane.b32.xlu0 %v602, 28
    %v2046 = vpop.permute.xlu0 %2045
    %2047 = vrot.lane.b32.xlu0 %v605, 28
    %v2048 = vpop.permute.xlu0 %2047
    %2049 = vrot.lane.b32.xlu0 %v607, 28
    %v2050 = vpop.permute.xlu0 %2049
    %2051 = vrot.lane.b32.xlu0 %v610, 28
    %v2052 = vpop.permute.xlu0 %2051
    %2053 = vrot.lane.b32.xlu0 %v612, 28
    %v2054 = vpop.permute.xlu0 %2053
    %2055 = vrot.lane.b32.xlu0 %v615, 28
    %v2056 = vpop.permute.xlu0 %2055
    %2057 = vrot.lane.b32.xlu0 %v617, 28
    %v2058 = vpop.permute.xlu0 %2057
    %2059 = vrot.lane.b32.xlu0 %v620, 28
    %v2060 = vpop.permute.xlu0 %2059
    %2061 = vrot.lane.b32.xlu0 %v622, 28
    %v2062 = vpop.permute.xlu0 %2061
    %2063 = vrot.lane.b32.xlu0 %v625, 28
    %v2064 = vpop.permute.xlu0 %2063
    %2065 = vrot.lane.b32.xlu0 %v627, 28
    %v2066 = vpop.permute.xlu0 %2065
    %2067 = vrot.lane.b32.xlu0 %v630, 28
    %v2068 = vpop.permute.xlu0 %2067
    %2069 = vrot.lane.b32.xlu0 %v632, 28
    %v2070 = vpop.permute.xlu0 %2069
    %2071 = vrot.lane.b32.xlu0 %v635, 28
    %v2072 = vpop.permute.xlu0 %2071
    %2073 = vrot.lane.b32.xlu0 %v637, 28
    %v2074 = vpop.permute.xlu0 %2073
    %2075 = vrot.lane.b32.xlu0 %v640, 28
    %v2076 = vpop.permute.xlu0 %2075
    %2077 = vrot.lane.b32.xlu0 %v642, 28
    %v2078 = vpop.permute.xlu0 %2077
    %2079 = vrot.lane.b32.xlu0 %v645, 28
    %v2080 = vpop.permute.xlu0 %2079
    %2081 = vrot.lane.b32.xlu0 %v647, 28
    %v2082 = vpop.permute.xlu0 %2081
    %2083 = vrot.lane.b32.xlu0 %v650, 28
    %v2084 = vpop.permute.xlu0 %2083
    %2085 = vrot.lane.b32.xlu0 %v652, 28
    %v2086 = vpop.permute.xlu0 %2085
    %2087 = vrot.lane.b32.xlu0 %v1384, 28
    %v2088 = vpop.permute.xlu0 %2087
    %2089 = vrot.lane.b32.xlu0 %v1386, 28
    %v2090 = vpop.permute.xlu0 %2089
    %2153 = vrot.lane.b32.xlu0 %v852, 32
    %v2154 = vpop.permute.xlu0 %2153
    %2155 = vrot.lane.b32.xlu0 %v854, 32
    %v2156 = vpop.permute.xlu0 %2155
    %2157 = vrot.lane.b32.xlu0 %v857, 32
    %v2158 = vpop.permute.xlu0 %2157
    %2159 = vrot.lane.b32.xlu0 %v859, 32
    %v2160 = vpop.permute.xlu0 %2159
    %2161 = vrot.lane.b32.xlu0 %v862, 32
    %v2162 = vpop.permute.xlu0 %2161
    %2163 = vrot.lane.b32.xlu0 %v864, 32
    %v2164 = vpop.permute.xlu0 %2163
    %2165 = vrot.lane.b32.xlu0 %v867, 32
    %v2166 = vpop.permute.xlu0 %2165
    %2167 = vrot.lane.b32.xlu0 %v869, 32
    %v2168 = vpop.permute.xlu0 %2167
    %2169 = vrot.lane.b32.xlu0 %v872, 32
    %v2170 = vpop.permute.xlu0 %2169
    %2171 = vrot.lane.b32.xlu0 %v874, 32
    %v2172 = vpop.permute.xlu0 %2171
    %2173 = vrot.lane.b32.xlu0 %v877, 32
    %v2174 = vpop.permute.xlu0 %2173
    %2175 = vrot.lane.b32.xlu0 %v879, 32
    %v2176 = vpop.permute.xlu0 %2175
    %2177 = vrot.lane.b32.xlu0 %v882, 32
    %v2178 = vpop.permute.xlu0 %2177
    %2179 = vrot.lane.b32.xlu0 %v884, 32
    %v2180 = vpop.permute.xlu0 %2179
    %2181 = vrot.lane.b32.xlu0 %v887, 32
    %v2182 = vpop.permute.xlu0 %2181
    %2183 = vrot.lane.b32.xlu0 %v889, 32
    %v2184 = vpop.permute.xlu0 %2183
    %2185 = vrot.lane.b32.xlu0 %v892, 32
    %v2186 = vpop.permute.xlu0 %2185
    %2187 = vrot.lane.b32.xlu0 %v894, 32
    %v2188 = vpop.permute.xlu0 %2187
    %2189 = vrot.lane.b32.xlu0 %v897, 32
    %v2190 = vpop.permute.xlu0 %2189
    %2191 = vrot.lane.b32.xlu0 %v899, 32
    %v2192 = vpop.permute.xlu0 %2191
    %2193 = vrot.lane.b32.xlu0 %v902, 32
    %v2194 = vpop.permute.xlu0 %2193
    %2195 = vrot.lane.b32.xlu0 %v904, 32
    %v2196 = vpop.permute.xlu0 %2195
    %2197 = vrot.lane.b32.xlu0 %v907, 32
    %v2198 = vpop.permute.xlu0 %2197
    %2199 = vrot.lane.b32.xlu0 %v909, 32
    %v2200 = vpop.permute.xlu0 %2199
    %2201 = vrot.lane.b32.xlu0 %v912, 32
    %v2202 = vpop.permute.xlu0 %2201
    %2203 = vrot.lane.b32.xlu0 %v914, 32
    %v2204 = vpop.permute.xlu0 %2203
    %2205 = vrot.lane.b32.xlu0 %v917, 32
    %v2206 = vpop.permute.xlu0 %2205
    %2207 = vrot.lane.b32.xlu0 %v919, 32
    %v2208 = vpop.permute.xlu0 %2207
    %2209 = vrot.lane.b32.xlu0 %v1581, 32
    %v2210 = vpop.permute.xlu0 %2209
    %2211 = vrot.lane.b32.xlu0 %v1583, 32
    %v2212 = vpop.permute.xlu0 %2211
    %2213 = vrot.lane.b32.xlu0 %v842, 32
    %v2214 = vpop.permute.xlu0 %2213
    %2215 = vrot.lane.b32.xlu0 %v844, 32
    %v2216 = vpop.permute.xlu0 %2215
    %2217 = vrot.lane.b32.xlu0 %v927, 32
    %v2218 = vpop.permute.xlu0 %2217
    %2219 = vrot.lane.b32.xlu0 %v929, 32
    %v2220 = vpop.permute.xlu0 %2219
    %2221 = vrot.lane.b32.xlu0 %v932, 32
    %v2222 = vpop.permute.xlu0 %2221
    %2223 = vrot.lane.b32.xlu0 %v934, 32
    %v2224 = vpop.permute.xlu0 %2223
    %2225 = vrot.lane.b32.xlu0 %v937, 32
    %v2226 = vpop.permute.xlu0 %2225
    %2227 = vrot.lane.b32.xlu0 %v939, 32
    %v2228 = vpop.permute.xlu0 %2227
    %2229 = vrot.lane.b32.xlu0 %v942, 32
    %v2230 = vpop.permute.xlu0 %2229
    %2231 = vrot.lane.b32.xlu0 %v944, 32
    %v2232 = vpop.permute.xlu0 %2231
    %2233 = vrot.lane.b32.xlu0 %v947, 32
    %v2234 = vpop.permute.xlu0 %2233
    %2235 = vrot.lane.b32.xlu0 %v949, 32
    %v2236 = vpop.permute.xlu0 %2235
    %2237 = vrot.lane.b32.xlu0 %v952, 32
    %v2238 = vpop.permute.xlu0 %2237
    %2239 = vrot.lane.b32.xlu0 %v954, 32
    %v2240 = vpop.permute.xlu0 %2239
    %2241 = vrot.lane.b32.xlu0 %v957, 32
    %v2242 = vpop.permute.xlu0 %2241
    %2243 = vrot.lane.b32.xlu0 %v959, 32
    %v2244 = vpop.permute.xlu0 %2243
    %2245 = vrot.lane.b32.xlu0 %v962, 32
    %v2246 = vpop.permute.xlu0 %2245
    %2247 = vrot.lane.b32.xlu0 %v964, 32
    %v2248 = vpop.permute.xlu0 %2247
    %2249 = vrot.lane.b32.xlu0 %v967, 32
    %v2250 = vpop.permute.xlu0 %2249
    %2251 = vrot.lane.b32.xlu0 %v969, 32
    %v2252 = vpop.permute.xlu0 %2251
    %2253 = vrot.lane.b32.xlu0 %v972, 32
    %v2254 = vpop.permute.xlu0 %2253
    %2255 = vrot.lane.b32.xlu0 %v974, 32
    %v2256 = vpop.permute.xlu0 %2255
    %2257 = vrot.lane.b32.xlu0 %v977, 32
    %v2258 = vpop.permute.xlu0 %2257
    %2259 = vrot.lane.b32.xlu0 %v979, 32
    %v2260 = vpop.permute.xlu0 %2259
    %2261 = vrot.lane.b32.xlu0 %v982, 32
    %v2262 = vpop.permute.xlu0 %2261
    %2263 = vrot.lane.b32.xlu0 %v984, 32
    %v2264 = vpop.permute.xlu0 %2263
    %2265 = vrot.lane.b32.xlu0 %v987, 32
    %v2266 = vpop.permute.xlu0 %2265
    %2267 = vrot.lane.b32.xlu0 %v989, 32
    %v2268 = vpop.permute.xlu0 %2267
    %2269 = vrot.lane.b32.xlu0 %v992, 32
    %v2270 = vpop.permute.xlu0 %2269
    %2271 = vrot.lane.b32.xlu0 %v994, 32
    %v2272 = vpop.permute.xlu0 %2271
    %2273 = vrot.lane.b32.xlu0 %v1586, 32
    %v2274 = vpop.permute.xlu0 %2273
    %2275 = vrot.lane.b32.xlu0 %v1588, 32
    %v2276 = vpop.permute.xlu0 %2275
    %vm2339 = vcmask 31744
    %v2340 = vsel %vm2339, %v369, %v654
    %v2341 = vsel %vm2339, %v176, %v656
    %v2342 = vsel %vm2339, %v370, %v658
    %v2343 = vsel %vm2339, %v179, %v660
    %v2344 = vsel %vm2339, %v371, %v662
    %v2345 = vsel %vm2339, %v182, %v664
    %v2346 = vsel %vm2339, %v372, %v666
    %v2347 = vsel %vm2339, %v185, %v668
    %v2348 = vsel %vm2339, %v373, %v670
    %v2349 = vsel %vm2339, %v188, %v672
    %v2350 = vsel %vm2339, %v374, %v674
    %v2351 = vsel %vm2339, %v191, %v676
    %v2352 = vsel %vm2339, %v375, %v678
    %v2353 = vsel %vm2339, %v194, %v680
    %v2354 = vsel %vm2339, %v376, %v682
    %v2355 = vsel %vm2339, %v197, %v684
    %v2356 = vsel %vm2339, %v377, %v686
    %v2357 = vsel %vm2339, %v200, %v688
    %v2358 = vsel %vm2339, %v378, %v690
    %v2359 = vsel %vm2339, %v203, %v692
    %v2360 = vsel %vm2339, %v379, %v694
    %v2361 = vsel %vm2339, %v206, %v696
    %v2362 = vsel %vm2339, %v380, %v698
    %v2363 = vsel %vm2339, %v209, %v700
    %v2364 = vsel %vm2339, %v381, %v702
    %v2365 = vsel %vm2339, %v212, %v704
    %v2366 = vsel %vm2339, %v382, %v706
    %v2367 = vsel %vm2339, %v215, %v708
    %v2368 = vsel %vm2339, %v383, %v710
    %v2369 = vsel %vm2339, %v218, %v712
    %v2370 = vsel %vm2339, %v384, %v714
    %v2371 = vsel %vm2339, %v221, %v716
    %v2372 = vsel %vm2339, %v386, %v718
    %v2373 = vsel %vm2339, %v227, %v720
    %v2374 = vsel %vm2339, %v387, %v722
    %v2375 = vsel %vm2339, %v230, %v724
    %v2376 = vsel %vm2339, %v388, %v726
    %v2377 = vsel %vm2339, %v233, %v728
    %v2378 = vsel %vm2339, %v389, %v730
    %v2379 = vsel %vm2339, %v236, %v732
    %v2380 = vsel %vm2339, %v390, %v734
    %v2381 = vsel %vm2339, %v239, %v736
    %v2382 = vsel %vm2339, %v391, %v738
    %v2383 = vsel %vm2339, %v242, %v740
    %v2384 = vsel %vm2339, %v392, %v742
    %v2385 = vsel %vm2339, %v245, %v744
    %v2386 = vsel %vm2339, %v393, %v746
    %v2387 = vsel %vm2339, %v248, %v748
    %v2388 = vsel %vm2339, %v394, %v750
    %v2389 = vsel %vm2339, %v251, %v752
    %v2390 = vsel %vm2339, %v395, %v754
    %v2391 = vsel %vm2339, %v254, %v756
    %v2392 = vsel %vm2339, %v396, %v758
    %v2393 = vsel %vm2339, %v257, %v760
    %v2394 = vsel %vm2339, %v397, %v762
    %v2395 = vsel %vm2339, %v260, %v764
    %v2396 = vsel %vm2339, %v398, %v766
    %v2397 = vsel %vm2339, %v263, %v768
    %v2398 = vsel %vm2339, %v399, %v770
    %v2399 = vsel %vm2339, %v266, %v772
    %v2400 = vsel %vm2339, %v400, %v774
    %v2401 = vsel %vm2339, %v269, %v776
    %vm2402 = vcmask 64512
    %v2403 = vsel %vm2402, %v2340, %v996
    %v2404 = vsel %vm2402, %v2341, %v998
    %v2405 = vsel %vm2402, %v2342, %v1000
    %v2406 = vsel %vm2402, %v2343, %v1002
    %v2407 = vsel %vm2402, %v2344, %v1004
    %v2408 = vsel %vm2402, %v2345, %v1006
    %v2409 = vsel %vm2402, %v2346, %v1008
    %v2410 = vsel %vm2402, %v2347, %v1010
    %v2411 = vsel %vm2402, %v2348, %v1012
    %v2412 = vsel %vm2402, %v2349, %v1014
    %v2413 = vsel %vm2402, %v2350, %v1016
    %v2414 = vsel %vm2402, %v2351, %v1018
    %v2415 = vsel %vm2402, %v2352, %v1020
    %v2416 = vsel %vm2402, %v2353, %v1022
    %v2417 = vsel %vm2402, %v2354, %v1024
    %v2418 = vsel %vm2402, %v2355, %v1026
    %v2419 = vsel %vm2402, %v2356, %v1028
    %v2420 = vsel %vm2402, %v2357, %v1030
    %v2421 = vsel %vm2402, %v2358, %v1032
    %v2422 = vsel %vm2402, %v2359, %v1034
    %v2423 = vsel %vm2402, %v2360, %v1036
    %v2424 = vsel %vm2402, %v2361, %v1038
    %v2425 = vsel %vm2402, %v2362, %v1040
    %v2426 = vsel %vm2402, %v2363, %v1042
    %v2427 = vsel %vm2402, %v2364, %v1044
    %v2428 = vsel %vm2402, %v2365, %v1046
    %v2429 = vsel %vm2402, %v2366, %v1048
    %v2430 = vsel %vm2402, %v2367, %v1050
    %v2431 = vsel %vm2402, %v2368, %v1052
    %v2432 = vsel %vm2402, %v2369, %v1054
    %v2433 = vsel %vm2402, %v2370, %v1056
    %v2434 = vsel %vm2402, %v2371, %v1058
    %v2435 = vsel %vm2402, %v2372, %v1060
    %v2436 = vsel %vm2402, %v2373, %v1062
    %v2437 = vsel %vm2402, %v2374, %v1064
    %v2438 = vsel %vm2402, %v2375, %v1066
    %v2439 = vsel %vm2402, %v2376, %v1068
    %v2440 = vsel %vm2402, %v2377, %v1070
    %v2441 = vsel %vm2402, %v2378, %v1072
    %v2442 = vsel %vm2402, %v2379, %v1074
    %v2443 = vsel %vm2402, %v2380, %v1076
    %v2444 = vsel %vm2402, %v2381, %v1078
    %v2445 = vsel %vm2402, %v2382, %v1080
    %v2446 = vsel %vm2402, %v2383, %v1082
    %v2447 = vsel %vm2402, %v2384, %v1084
    %v2448 = vsel %vm2402, %v2385, %v1086
    %v2449 = vsel %vm2402, %v2386, %v1088
    %v2450 = vsel %vm2402, %v2387, %v1090
    %v2451 = vsel %vm2402, %v2388, %v1092
    %v2452 = vsel %vm2402, %v2389, %v1094
    %v2453 = vsel %vm2402, %v2390, %v1096
    %v2454 = vsel %vm2402, %v2391, %v1098
    %v2455 = vsel %vm2402, %v2392, %v1100
    %v2456 = vsel %vm2402, %v2393, %v1102
    %v2457 = vsel %vm2402, %v2394, %v1104
    %v2458 = vsel %vm2402, %v2395, %v1106
    %v2459 = vsel %vm2402, %v2396, %v1108
    %v2460 = vsel %vm2402, %v2397, %v1110
    %v2461 = vsel %vm2402, %v2398, %v1112
    %v2462 = vsel %vm2402, %v2399, %v1114
    %v2463 = vsel %vm2402, %v2400, %v1116
    %v2464 = vsel %vm2402, %v2401, %v1118
    %vm2465 = vcmask 97280
    %v2466 = vsel %vm2465, %v2403, %v1184
    %v2467 = vsel %vm2465, %v2404, %v1186
    %v2468 = vsel %vm2465, %v2405, %v1188
    %v2469 = vsel %vm2465, %v2406, %v1190
    %v2470 = vsel %vm2465, %v2407, %v1192
    %v2471 = vsel %vm2465, %v2408, %v1194
    %v2472 = vsel %vm2465, %v2409, %v1196
    %v2473 = vsel %vm2465, %v2410, %v1198
    %v2474 = vsel %vm2465, %v2411, %v1200
    %v2475 = vsel %vm2465, %v2412, %v1202
    %v2476 = vsel %vm2465, %v2413, %v1204
    %v2477 = vsel %vm2465, %v2414, %v1206
    %v2478 = vsel %vm2465, %v2415, %v1208
    %v2479 = vsel %vm2465, %v2416, %v1210
    %v2480 = vsel %vm2465, %v2417, %v1212
    %v2481 = vsel %vm2465, %v2418, %v1214
    %v2482 = vsel %vm2465, %v2419, %v1216
    %v2483 = vsel %vm2465, %v2420, %v1218
    %v2484 = vsel %vm2465, %v2421, %v1220
    %v2485 = vsel %vm2465, %v2422, %v1222
    %v2486 = vsel %vm2465, %v2423, %v1224
    %v2487 = vsel %vm2465, %v2424, %v1226
    %v2488 = vsel %vm2465, %v2425, %v1228
    %v2489 = vsel %vm2465, %v2426, %v1230
    %v2490 = vsel %vm2465, %v2427, %v1232
    %v2491 = vsel %vm2465, %v2428, %v1234
    %v2492 = vsel %vm2465, %v2429, %v1236
    %v2493 = vsel %vm2465, %v2430, %v1238
    %v2494 = vsel %vm2465, %v2431, %v1240
    %v2495 = vsel %vm2465, %v2432, %v1242
    %v2496 = vsel %vm2465, %v2433, %v1244
    %v2497 = vsel %vm2465, %v2434, %v1246
    %v2498 = vsel %vm2465, %v2403, %v1248
    %v2499 = vsel %vm2465, %v2404, %v1250
    %v2500 = vsel %vm2465, %v2435, %v1252
    %v2501 = vsel %vm2465, %v2436, %v1254
    %v2502 = vsel %vm2465, %v2437, %v1256
    %v2503 = vsel %vm2465, %v2438, %v1258
    %v2504 = vsel %vm2465, %v2439, %v1260
    %v2505 = vsel %vm2465, %v2440, %v1262
    %v2506 = vsel %vm2465, %v2441, %v1264
    %v2507 = vsel %vm2465, %v2442, %v1266
    %v2508 = vsel %vm2465, %v2443, %v1268
    %v2509 = vsel %vm2465, %v2444, %v1270
    %v2510 = vsel %vm2465, %v2445, %v1272
    %v2511 = vsel %vm2465, %v2446, %v1274
    %v2512 = vsel %vm2465, %v2447, %v1276
    %v2513 = vsel %vm2465, %v2448, %v1278
    %v2514 = vsel %vm2465, %v2449, %v1280
    %v2515 = vsel %vm2465, %v2450, %v1282
    %v2516 = vsel %vm2465, %v2451, %v1284
    %v2517 = vsel %vm2465, %v2452, %v1286
    %v2518 = vsel %vm2465, %v2453, %v1288
    %v2519 = vsel %vm2465, %v2454, %v1290
    %v2520 = vsel %vm2465, %v2455, %v1292
    %v2521 = vsel %vm2465, %v2456, %v1294
    %v2522 = vsel %vm2465, %v2457, %v1296
    %v2523 = vsel %vm2465, %v2458, %v1298
    %v2524 = vsel %vm2465, %v2459, %v1300
    %v2525 = vsel %vm2465, %v2460, %v1302
    %v2526 = vsel %vm2465, %v2461, %v1304
    %v2527 = vsel %vm2465, %v2462, %v1306
    %v2528 = vsel %vm2465, %v2463, %v1308
    %v2529 = vsel %vm2465, %v2464, %v1310
    %vm2530 = vcmask 130048
    %v2531 = vsel %vm2530, %v2466, %v1388
    %v2532 = vsel %vm2530, %v2467, %v1390
    %v2533 = vsel %vm2530, %v2468, %v1392
    %v2534 = vsel %vm2530, %v2469, %v1394
    %v2535 = vsel %vm2530, %v2470, %v1396
    %v2536 = vsel %vm2530, %v2471, %v1398
    %v2537 = vsel %vm2530, %v2472, %v1400
    %v2538 = vsel %vm2530, %v2473, %v1402
    %v2539 = vsel %vm2530, %v2474, %v1404
    %v2540 = vsel %vm2530, %v2475, %v1406
    %v2541 = vsel %vm2530, %v2476, %v1408
    %v2542 = vsel %vm2530, %v2477, %v1410
    %v2543 = vsel %vm2530, %v2478, %v1412
    %v2544 = vsel %vm2530, %v2479, %v1414
    %v2545 = vsel %vm2530, %v2480, %v1416
    %v2546 = vsel %vm2530, %v2481, %v1418
    %v2547 = vsel %vm2530, %v2482, %v1420
    %v2548 = vsel %vm2530, %v2483, %v1422
    %v2549 = vsel %vm2530, %v2484, %v1424
    %v2550 = vsel %vm2530, %v2485, %v1426
    %v2551 = vsel %vm2530, %v2486, %v1428
    %v2552 = vsel %vm2530, %v2487, %v1430
    %v2553 = vsel %vm2530, %v2488, %v1432
    %v2554 = vsel %vm2530, %v2489, %v1434
    %v2555 = vsel %vm2530, %v2490, %v1436
    %v2556 = vsel %vm2530, %v2491, %v1438
    %v2557 = vsel %vm2530, %v2492, %v1440
    %v2558 = vsel %vm2530, %v2493, %v1442
    %v2559 = vsel %vm2530, %v2494, %v1444
    %v2560 = vsel %vm2530, %v2495, %v1446
    %v2561 = vsel %vm2530, %v2496, %v1448
    %v2562 = vsel %vm2530, %v2497, %v1450
    %v2563 = vsel %vm2530, %v2498, %v1452
    %v2564 = vsel %vm2530, %v2499, %v1454
    %v2565 = vsel %vm2530, %v2500, %v1456
    %v2566 = vsel %vm2530, %v2501, %v1458
    %v2567 = vsel %vm2530, %v2502, %v1460
    %v2568 = vsel %vm2530, %v2503, %v1462
    %v2569 = vsel %vm2530, %v2504, %v1464
    %v2570 = vsel %vm2530, %v2505, %v1466
    %v2571 = vsel %vm2530, %v2506, %v1468
    %v2572 = vsel %vm2530, %v2507, %v1470
    %v2573 = vsel %vm2530, %v2508, %v1472
    %v2574 = vsel %vm2530, %v2509, %v1474
    %v2575 = vsel %vm2530, %v2510, %v1476
    %v2576 = vsel %vm2530, %v2511, %v1478
    %v2577 = vsel %vm2530, %v2512, %v1480
    %v2578 = vsel %vm2530, %v2513, %v1482
    %v2579 = vsel %vm2530, %v2514, %v1484
    %v2580 = vsel %vm2530, %v2515, %v1486
    %v2581 = vsel %vm2530, %v2516, %v1488
    %v2582 = vsel %vm2530, %v2517, %v1490
    %v2583 = vsel %vm2530, %v2518, %v1492
    %v2584 = vsel %vm2530, %v2519, %v1494
    %v2585 = vsel %vm2530, %v2520, %v1496
    %v2586 = vsel %vm2530, %v2521, %v1498
    %v2587 = vsel %vm2530, %v2522, %v1500
    %v2588 = vsel %vm2530, %v2523, %v1502
    %v2589 = vsel %vm2530, %v2524, %v1504
    %v2590 = vsel %vm2530, %v2525, %v1506
    %v2591 = vsel %vm2530, %v2526, %v1508
    %v2592 = vsel %vm2530, %v2527, %v1510
    %v2593 = vsel %vm2530, %v2528, %v1512
    %v2594 = vsel %vm2530, %v2529, %v1514
    %vm2595 = vcmask 162816
    %v2596 = vsel %vm2595, %v2531, %v1590
    %v2597 = vsel %vm2595, %v2532, %v1592
    %v2598 = vsel %vm2595, %v2533, %v1594
    %v2599 = vsel %vm2595, %v2534, %v1596
    %v2600 = vsel %vm2595, %v2535, %v1598
    %v2601 = vsel %vm2595, %v2536, %v1600
    %v2602 = vsel %vm2595, %v2537, %v1602
    %v2603 = vsel %vm2595, %v2538, %v1604
    %v2604 = vsel %vm2595, %v2539, %v1606
    %v2605 = vsel %vm2595, %v2540, %v1608
    %v2606 = vsel %vm2595, %v2541, %v1610
    %v2607 = vsel %vm2595, %v2542, %v1612
    %v2608 = vsel %vm2595, %v2543, %v1614
    %v2609 = vsel %vm2595, %v2544, %v1616
    %v2610 = vsel %vm2595, %v2545, %v1618
    %v2611 = vsel %vm2595, %v2546, %v1620
    %v2612 = vsel %vm2595, %v2547, %v1622
    %v2613 = vsel %vm2595, %v2548, %v1624
    %v2614 = vsel %vm2595, %v2549, %v1626
    %v2615 = vsel %vm2595, %v2550, %v1628
    %v2616 = vsel %vm2595, %v2551, %v1630
    %v2617 = vsel %vm2595, %v2552, %v1632
    %v2618 = vsel %vm2595, %v2553, %v1634
    %v2619 = vsel %vm2595, %v2554, %v1636
    %v2620 = vsel %vm2595, %v2555, %v1638
    %v2621 = vsel %vm2595, %v2556, %v1640
    %v2622 = vsel %vm2595, %v2557, %v1642
    %v2623 = vsel %vm2595, %v2558, %v1644
    %v2624 = vsel %vm2595, %v2559, %v1646
    %v2625 = vsel %vm2595, %v2560, %v1648
    %v2626 = vsel %vm2595, %v2561, %v1650
    %v2627 = vsel %vm2595, %v2562, %v1652
    %v2628 = vsel %vm2595, %v2563, %v1654
    %v2629 = vsel %vm2595, %v2564, %v1656
    %v2630 = vsel %vm2595, %v2565, %v1658
    %v2631 = vsel %vm2595, %v2566, %v1660
    %v2632 = vsel %vm2595, %v2567, %v1662
    %v2633 = vsel %vm2595, %v2568, %v1664
    %v2634 = vsel %vm2595, %v2569, %v1666
    %v2635 = vsel %vm2595, %v2570, %v1668
    %v2636 = vsel %vm2595, %v2571, %v1670
    %v2637 = vsel %vm2595, %v2572, %v1672
    %v2638 = vsel %vm2595, %v2573, %v1674
    %v2639 = vsel %vm2595, %v2574, %v1676
    %v2640 = vsel %vm2595, %v2575, %v1678
    %v2641 = vsel %vm2595, %v2576, %v1680
    %v2642 = vsel %vm2595, %v2577, %v1682
    %v2643 = vsel %vm2595, %v2578, %v1684
    %v2644 = vsel %vm2595, %v2579, %v1686
    %v2645 = vsel %vm2595, %v2580, %v1688
    %v2646 = vsel %vm2595, %v2581, %v1690
    %v2647 = vsel %vm2595, %v2582, %v1692
    %v2648 = vsel %vm2595, %v2583, %v1694
    %v2649 = vsel %vm2595, %v2584, %v1696
    %v2650 = vsel %vm2595, %v2585, %v1698
    %v2651 = vsel %vm2595, %v2586, %v1700
    %v2652 = vsel %vm2595, %v2587, %v1702
    %v2653 = vsel %vm2595, %v2588, %v1704
    %v2654 = vsel %vm2595, %v2589, %v1706
    %v2655 = vsel %vm2595, %v2590, %v1708
    %v2656 = vsel %vm2595, %v2591, %v1710
    %v2657 = vsel %vm2595, %v2592, %v1712
    %v2658 = vsel %vm2595, %v2593, %v1714
    %v2659 = vsel %vm2595, %v2594, %v1716
    %vm2660 = vcmask 195584
    %v2661 = vsel %vm2660, %v2596, %v1782
    %v2662 = vsel %vm2660, %v2597, %v1784
    %v2663 = vsel %vm2660, %v2598, %v1786
    %v2664 = vsel %vm2660, %v2599, %v1788
    %v2665 = vsel %vm2660, %v2600, %v1790
    %v2666 = vsel %vm2660, %v2601, %v1792
    %v2667 = vsel %vm2660, %v2602, %v1794
    %v2668 = vsel %vm2660, %v2603, %v1796
    %v2669 = vsel %vm2660, %v2604, %v1798
    %v2670 = vsel %vm2660, %v2605, %v1800
    %v2671 = vsel %vm2660, %v2606, %v1802
    %v2672 = vsel %vm2660, %v2607, %v1804
    %v2673 = vsel %vm2660, %v2608, %v1806
    %v2674 = vsel %vm2660, %v2609, %v1808
    %v2675 = vsel %vm2660, %v2610, %v1810
    %v2676 = vsel %vm2660, %v2611, %v1812
    %v2677 = vsel %vm2660, %v2612, %v1814
    %v2678 = vsel %vm2660, %v2613, %v1816
    %v2679 = vsel %vm2660, %v2614, %v1818
    %v2680 = vsel %vm2660, %v2615, %v1820
    %v2681 = vsel %vm2660, %v2616, %v1822
    %v2682 = vsel %vm2660, %v2617, %v1824
    %v2683 = vsel %vm2660, %v2618, %v1826
    %v2684 = vsel %vm2660, %v2619, %v1828
    %v2685 = vsel %vm2660, %v2620, %v1830
    %v2686 = vsel %vm2660, %v2621, %v1832
    %v2687 = vsel %vm2660, %v2622, %v1834
    %v2688 = vsel %vm2660, %v2623, %v1836
    %v2689 = vsel %vm2660, %v2624, %v1838
    %v2690 = vsel %vm2660, %v2625, %v1840
    %v2691 = vsel %vm2660, %v2626, %v1842
    %v2692 = vsel %vm2660, %v2627, %v1844
    %v2693 = vsel %vm2660, %v2628, %v1846
    %v2694 = vsel %vm2660, %v2629, %v1848
    %v2695 = vsel %vm2660, %v2630, %v1850
    %v2696 = vsel %vm2660, %v2631, %v1852
    %v2697 = vsel %vm2660, %v2632, %v1854
    %v2698 = vsel %vm2660, %v2633, %v1856
    %v2699 = vsel %vm2660, %v2634, %v1858
    %v2700 = vsel %vm2660, %v2635, %v1860
    %v2701 = vsel %vm2660, %v2636, %v1862
    %v2702 = vsel %vm2660, %v2637, %v1864
    %v2703 = vsel %vm2660, %v2638, %v1866
    %v2704 = vsel %vm2660, %v2639, %v1868
    %v2705 = vsel %vm2660, %v2640, %v1870
    %v2706 = vsel %vm2660, %v2641, %v1872
    %v2707 = vsel %vm2660, %v2642, %v1874
    %v2708 = vsel %vm2660, %v2643, %v1876
    %v2709 = vsel %vm2660, %v2644, %v1878
    %v2710 = vsel %vm2660, %v2645, %v1880
    %v2711 = vsel %vm2660, %v2646, %v1882
    %v2712 = vsel %vm2660, %v2647, %v1884
    %v2713 = vsel %vm2660, %v2648, %v1886
    %v2714 = vsel %vm2660, %v2649, %v1888
    %v2715 = vsel %vm2660, %v2650, %v1890
    %v2716 = vsel %vm2660, %v2651, %v1892
    %v2717 = vsel %vm2660, %v2652, %v1894
    %v2718 = vsel %vm2660, %v2653, %v1896
    %v2719 = vsel %vm2660, %v2654, %v1898
    %v2720 = vsel %vm2660, %v2655, %v1900
    %v2721 = vsel %vm2660, %v2656, %v1902
    %v2722 = vsel %vm2660, %v2657, %v1904
    %v2723 = vsel %vm2660, %v2658, %v1842
    %v2724 = vsel %vm2660, %v2659, %v1844
    %vm2725 = vcmask 228352
    %v2726 = vsel %vm2725, %v2661, %v1968
    %v2727 = vsel %vm2725, %v2662, %v1970
    %v2728 = vsel %vm2725, %v2663, %v1972
    %v2729 = vsel %vm2725, %v2664, %v1974
    %v2730 = vsel %vm2725, %v2665, %v1976
    %v2731 = vsel %vm2725, %v2666, %v1978
    %v2732 = vsel %vm2725, %v2667, %v1980
    %v2733 = vsel %vm2725, %v2668, %v1982
    %v2734 = vsel %vm2725, %v2669, %v1984
    %v2735 = vsel %vm2725, %v2670, %v1986
    %v2736 = vsel %vm2725, %v2671, %v1988
    %v2737 = vsel %vm2725, %v2672, %v1990
    %v2738 = vsel %vm2725, %v2673, %v1992
    %v2739 = vsel %vm2725, %v2674, %v1994
    %v2740 = vsel %vm2725, %v2675, %v1996
    %v2741 = vsel %vm2725, %v2676, %v1998
    %v2742 = vsel %vm2725, %v2677, %v2000
    %v2743 = vsel %vm2725, %v2678, %v2002
    %v2744 = vsel %vm2725, %v2679, %v2004
    %v2745 = vsel %vm2725, %v2680, %v2006
    %v2746 = vsel %vm2725, %v2681, %v2008
    %v2747 = vsel %vm2725, %v2682, %v2010
    %v2748 = vsel %vm2725, %v2683, %v2012
    %v2749 = vsel %vm2725, %v2684, %v2014
    %v2750 = vsel %vm2725, %v2685, %v2016
    %v2751 = vsel %vm2725, %v2686, %v2018
    %v2752 = vsel %vm2725, %v2687, %v2020
    %v2753 = vsel %vm2725, %v2688, %v2022
    %v2754 = vsel %vm2725, %v2689, %v2024
    %v2755 = vsel %vm2725, %v2690, %v2026
    %v2756 = vsel %vm2725, %v2691, %v2028
    %v2757 = vsel %vm2725, %v2692, %v2030
    %v2758 = vsel %vm2725, %v2693, %v2032
    %v2759 = vsel %vm2725, %v2694, %v2034
    %v2760 = vsel %vm2725, %v2695, %v2036
    %v2761 = vsel %vm2725, %v2696, %v2038
    %v2762 = vsel %vm2725, %v2697, %v2040
    %v2763 = vsel %vm2725, %v2698, %v2042
    %v2764 = vsel %vm2725, %v2699, %v2044
    %v2765 = vsel %vm2725, %v2700, %v2046
    %v2766 = vsel %vm2725, %v2701, %v2048
    %v2767 = vsel %vm2725, %v2702, %v2050
    %v2768 = vsel %vm2725, %v2703, %v2052
    %v2769 = vsel %vm2725, %v2704, %v2054
    %v2770 = vsel %vm2725, %v2705, %v2056
    %v2771 = vsel %vm2725, %v2706, %v2058
    %v2772 = vsel %vm2725, %v2707, %v2060
    %v2773 = vsel %vm2725, %v2708, %v2062
    %v2774 = vsel %vm2725, %v2709, %v2064
    %v2775 = vsel %vm2725, %v2710, %v2066
    %v2776 = vsel %vm2725, %v2711, %v2068
    %v2777 = vsel %vm2725, %v2712, %v2070
    %v2778 = vsel %vm2725, %v2713, %v2072
    %v2779 = vsel %vm2725, %v2714, %v2074
    %v2780 = vsel %vm2725, %v2715, %v2076
    %v2781 = vsel %vm2725, %v2716, %v2078
    %v2782 = vsel %vm2725, %v2717, %v2080
    %v2783 = vsel %vm2725, %v2718, %v2082
    %v2784 = vsel %vm2725, %v2719, %v2084
    %v2785 = vsel %vm2725, %v2720, %v2086
    %v2786 = vsel %vm2725, %v2721, %v2088
    %v2787 = vsel %vm2725, %v2722, %v2090
    %v2788 = vsel %vm2725, %v2723, %v2028
    %v2789 = vsel %vm2725, %v2724, %v2030
    %vm2790 = vcmask 261120
    %v2791 = vsel %vm2790, %v2726, %v2154
    %v2792 = vsel %vm2790, %v2727, %v2156
    %v2793 = vsel %vm2790, %v2728, %v2158
    %v2794 = vsel %vm2790, %v2729, %v2160
    %v2795 = vsel %vm2790, %v2730, %v2162
    %v2796 = vsel %vm2790, %v2731, %v2164
    %v2797 = vsel %vm2790, %v2732, %v2166
    %v2798 = vsel %vm2790, %v2733, %v2168
    %v2799 = vsel %vm2790, %v2734, %v2170
    %v2800 = vsel %vm2790, %v2735, %v2172
    %v2801 = vsel %vm2790, %v2736, %v2174
    %v2802 = vsel %vm2790, %v2737, %v2176
    %v2803 = vsel %vm2790, %v2738, %v2178
    %v2804 = vsel %vm2790, %v2739, %v2180
    %v2805 = vsel %vm2790, %v2740, %v2182
    %v2806 = vsel %vm2790, %v2741, %v2184
    %v2807 = vsel %vm2790, %v2742, %v2186
    %v2808 = vsel %vm2790, %v2743, %v2188
    %v2809 = vsel %vm2790, %v2744, %v2190
    %v2810 = vsel %vm2790, %v2745, %v2192
    %v2811 = vsel %vm2790, %v2746, %v2194
    %v2812 = vsel %vm2790, %v2747, %v2196
    %v2813 = vsel %vm2790, %v2748, %v2198
    %v2814 = vsel %vm2790, %v2749, %v2200
    %v2815 = vsel %vm2790, %v2750, %v2202
    %v2816 = vsel %vm2790, %v2751, %v2204
    %v2817 = vsel %vm2790, %v2752, %v2206
    %v2818 = vsel %vm2790, %v2753, %v2208
    %v2819 = vsel %vm2790, %v2754, %v2210
    %v2820 = vsel %vm2790, %v2755, %v2212
    %v2821 = vsel %vm2790, %v2756, %v2214
    %v2822 = vsel %vm2790, %v2757, %v2216
    %v2823 = vsel %vm2790, %v2758, %v2218
    %v2824 = vsel %vm2790, %v2759, %v2220
    %v2825 = vsel %vm2790, %v2760, %v2222
    %v2826 = vsel %vm2790, %v2761, %v2224
    %v2827 = vsel %vm2790, %v2762, %v2226
    %v2828 = vsel %vm2790, %v2763, %v2228
    %v2829 = vsel %vm2790, %v2764, %v2230
    %v2830 = vsel %vm2790, %v2765, %v2232
    %v2831 = vsel %vm2790, %v2766, %v2234
    %v2832 = vsel %vm2790, %v2767, %v2236
    %v2833 = vsel %vm2790, %v2768, %v2238
    %v2834 = vsel %vm2790, %v2769, %v2240
    %v2835 = vsel %vm2790, %v2770, %v2242
    %v2836 = vsel %vm2790, %v2771, %v2244
    %v2837 = vsel %vm2790, %v2772, %v2246
    %v2838 = vsel %vm2790, %v2773, %v2248
    %v2839 = vsel %vm2790, %v2774, %v2250
    %v2840 = vsel %vm2790, %v2775, %v2252
    %v2841 = vsel %vm2790, %v2776, %v2254
    %v2842 = vsel %vm2790, %v2777, %v2256
    %v2843 = vsel %vm2790, %v2778, %v2258
    %v2844 = vsel %vm2790, %v2779, %v2260
    %v2845 = vsel %vm2790, %v2780, %v2262
    %v2846 = vsel %vm2790, %v2781, %v2264
    %v2847 = vsel %vm2790, %v2782, %v2266
    %v2848 = vsel %vm2790, %v2783, %v2268
    %v2849 = vsel %vm2790, %v2784, %v2270
    %v2850 = vsel %vm2790, %v2785, %v2272
    %v2851 = vsel %vm2790, %v2786, %v2274
    %v2852 = vsel %vm2790, %v2787, %v2276
    %v2853 = vsel %vm2790, %v2788, %v2214
    %v2854 = vsel %vm2790, %v2789, %v2216
    %v2855 = vld [vmem:[%s1] sm:$0xff]
    %v2856 = vld [vmem:[%s1 + $0x8] sm:$0xff]
    %v2857 = vld [vmem:[%s1 + $0x10] sm:$0xff]
    %v2858 = vld [vmem:[%s1 + $0x18] sm:$0xff]
    %v2859 = vld [vmem:[%s1 + $0x20] sm:$0xf]
    %v2860 = vld [vmem:[%s2] sm:$0x1]
    %v2862 = vlaneseq
    %v2863 = vshrl.u32 %v2862, 7
    %v2864 = vsub.s32 0, %v2863
    %v2865 = vrot.slane %v2860, %v2864
    %vm2867 = vcmask 293888
    %v2869 = vsel %vm2867, %v2791, 0
    %v2872 = vsel %vm2867, %v2792, 0
    %v2875 = vsel %vm2867, %v2793, 0
    %v2878 = vsel %vm2867, %v2794, 0
    %v2881 = vsel %vm2867, %v2795, 0
    %v2884 = vsel %vm2867, %v2796, 0
    %v2887 = vsel %vm2867, %v2797, 0
    %v2890 = vsel %vm2867, %v2798, 0
    %v2893 = vsel %vm2867, %v2799, 0
    %v2896 = vsel %vm2867, %v2800, 0
    %v2899 = vsel %vm2867, %v2801, 0
    %v2902 = vsel %vm2867, %v2802, 0
    %v2905 = vsel %vm2867, %v2803, 0
    %v2908 = vsel %vm2867, %v2804, 0
    %v2911 = vsel %vm2867, %v2805, 0
    %v2914 = vsel %vm2867, %v2806, 0
    %v2917 = vsel %vm2867, %v2807, 0
    %v2920 = vsel %vm2867, %v2808, 0
    %v2923 = vsel %vm2867, %v2809, 0
    %v2926 = vsel %vm2867, %v2810, 0
    %v2929 = vsel %vm2867, %v2811, 0
    %v2932 = vsel %vm2867, %v2812, 0
    %v2935 = vsel %vm2867, %v2813, 0
    %v2938 = vsel %vm2867, %v2814, 0
    %v2941 = vsel %vm2867, %v2815, 0
    %v2944 = vsel %vm2867, %v2816, 0
    %v2947 = vsel %vm2867, %v2817, 0
    %v2950 = vsel %vm2867, %v2818, 0
    %v2953 = vsel %vm2867, %v2819, 0
    %v2956 = vsel %vm2867, %v2820, 0
    %v2959 = vsel %vm2867, %v2821, 0
    %v2962 = vsel %vm2867, %v2822, 0
    %v2965 = vsel %vm2867, %v2823, 0
    %v2968 = vsel %vm2867, %v2824, 0
    %v2971 = vsel %vm2867, %v2825, 0
    %v2974 = vsel %vm2867, %v2826, 0
    %v2977 = vsel %vm2867, %v2827, 0
    %v2980 = vsel %vm2867, %v2828, 0
    %v2983 = vsel %vm2867, %v2829, 0
    %v2986 = vsel %vm2867, %v2830, 0
    %v2989 = vsel %vm2867, %v2831, 0
    %v2992 = vsel %vm2867, %v2832, 0
    %v2995 = vsel %vm2867, %v2833, 0
    %v2998 = vsel %vm2867, %v2834, 0
    %v3001 = vsel %vm2867, %v2835, 0
    %v3004 = vsel %vm2867, %v2836, 0
    %v3007 = vsel %vm2867, %v2837, 0
    %v3010 = vsel %vm2867, %v2838, 0
    %v3013 = vsel %vm2867, %v2839, 0
    %v3016 = vsel %vm2867, %v2840, 0
    %v3019 = vsel %vm2867, %v2841, 0
    %v3022 = vsel %vm2867, %v2842, 0
    %v3025 = vsel %vm2867, %v2843, 0
    %v3028 = vsel %vm2867, %v2844, 0
    %v3031 = vsel %vm2867, %v2845, 0
    %v3034 = vsel %vm2867, %v2846, 0
    %v3037 = vsel %vm2867, %v2847, 0
    %v3040 = vsel %vm2867, %v2848, 0
    %v3043 = vsel %vm2867, %v2849, 0
    %v3046 = vsel %vm2867, %v2850, 0
    %v3049 = vsel %vm2867, %v2851, 0
    %v3052 = vsel %vm2867, %v2852, 0
    %v3055 = vsel %vm2867, %v2853, 0
    %v3058 = vsel %vm2867, %v2854, 0
    %vm3060 = vcmask 1043456
    %v3062 = vsel %vm3060, %v2859, 0
    %3064 = vmatprep.subr.mxu0 0.0
    %3065 = vmatpush1.msra.mxu0 %v2855
    %3066 = vmatprep.subr.mxu0 0.0
    %3067 = vmatpush1.msra.mxu0 %v2856
    %3068 = vmatprep.subr.mxu0 0.0
    %3069 = vmatpush1.msra.mxu0 %v2857
    %3070 = vmatprep.subr.mxu0 0.0
    %3071 = vmatpush1.msra.mxu0 %v2858
    %3072 = vmatprep.subr.mxu0 0.0
    %3073 = vmatpush1.msra.mxu0 %v3062
    %3074 = vmatprep.subr.mxu0 0.0
    %3075 = vmatpush1.msra.mxu0 0.0
    %3076 = vmatprep.subr.mxu0 0.0
    %3077 = vmatpush1.msra.mxu0 0.0
    %3078 = vmatprep.subr.mxu0 0.0
    %3079 = vmatpush1.msra.mxu0 0.0
    %3080 = vmatprep.subr.mxu0 0.0
    %3081 = vmatpush1.msra.mxu0 0.0
    %3082 = vmatprep.subr.mxu0 0.0
    %3083 = vmatpush1.msra.mxu0 0.0
    %3084 = vmatprep.subr.mxu0 0.0
    %3085 = vmatpush1.msra.mxu0 0.0
    %3086 = vmatprep.subr.mxu0 0.0
    %3087 = vmatpush1.msra.mxu0 0.0
    %3088 = vmatprep.subr.mxu0 0.0
    %3089 = vmatpush1.msra.mxu0 0.0
    %3090 = vmatprep.subr.mxu0 0.0
    %3091 = vmatpush1.msra.mxu0 0.0
    %3092 = vmatprep.subr.mxu0 0.0
    %3093 = vmatpush1.msra.mxu0 0.0
    %3094 = vmatprep.subr.mxu0 0.0
    %3095 = vmatpush1.msra.mxu0 0.0
    %3096 = vmatprep.subr.mxu0 0.0
    %3097 = vmatpush1.msra.mxu0 0.0
    %3098 = vmatprep.subr.mxu0 0.0
    %3099 = vmatpush1.msra.mxu0 0.0
    %3100 = vmatprep.subr.mxu0 0.0
    %3101 = vmatpush1.msra.mxu0 0.0
    %3102 = vmatprep.subr.mxu0 0.0
    %3103 = vmatpush1.msra.mxu0 0.0
    %3104 = vmatprep.subr.mxu0 0.0
    %3105 = vmatpush1.msra.mxu0 0.0
    %3106 = vmatprep.subr.mxu0 0.0
    %3107 = vmatpush1.msra.mxu0 0.0
    %3108 = vmatprep.subr.mxu0 0.0
    %3109 = vmatpush1.msra.mxu0 0.0
    %3110 = vmatprep.subr.mxu0 0.0
    %3111 = vmatpush1.msra.mxu0 0.0
    %3112 = vmatprep.subr.mxu0 0.0
    %3113 = vmatpush1.msra.mxu0 0.0
    %3114 = vmatprep.subr.mxu0 0.0
    %3115 = vmatpush1.msra.mxu0 0.0
    %3116 = vmatprep.subr.mxu0 0.0
    %3117 = vmatpush1.msra.mxu0 0.0
    %3118 = vmatprep.subr.mxu0 0.0
    %3119 = vmatpush1.msra.mxu0 0.0
    %3120 = vmatprep.subr.mxu0 0.0
    %3121 = vmatpush1.msra.mxu0 0.0
    %3122 = vmatprep.subr.mxu0 0.0
    %3123 = vmatpush1.msra.mxu0 0.0
    %3124 = vmatprep.subr.mxu0 0.0
    %3125 = vmatpush1.msra.mxu0 0.0
    %3126 = vmatprep.subr.mxu0 0.0
    %3127 = vmatpush1.msra.mxu0 0.0
    %3128 = vmatprep.mubr.f32.mxu0 0.0
    %3129 = vmatmul.mubr.f32.gmra.mrb[0].mxu0 %v2869
    %v3130 = vpop.f32.mrb[0].mxu0
    %v3131 = vadd.f32 %v2865, %v3130
    %v3132 = vpop.f32.mrb[0].mxu0
    %3133 = vmatprep.mubr.f32.mxu0 0.0
    %3134 = vmatmul.mubr.f32.gmra.mrb[0].mxu0 %v2872
    %v3135 = vpop.f32.mrb[0].mxu0
    %v3136 = vadd.f32 %v2865, %v3135
    %v3137 = vpop.f32.mrb[0].mxu0
    %3138 = vmatprep.mubr.f32.mxu0 0.0
    %3139 = vmatmul.mubr.f32.gmra.mrb[0].mxu0 %v2875
    %v3140 = vpop.f32.mrb[0].mxu0
    %v3141 = vadd.f32 %v2865, %v3140
    %v3142 = vpop.f32.mrb[0].mxu0
    %3143 = vmatprep.mubr.f32.mxu0 0.0
    %3144 = vmatmul.mubr.f32.gmra.mrb[0].mxu0 %v2878
    %v3145 = vpop.f32.mrb[0].mxu0
    %v3146 = vadd.f32 %v2865, %v3145
    %v3147 = vpop.f32.mrb[0].mxu0
    %3148 = vmatprep.mubr.f32.mxu0 0.0
    %3149 = vmatmul.mubr.f32.gmra.mrb[0].mxu0 %v2881
    %v3150 = vpop.f32.mrb[0].mxu0
    %v3151 = vadd.f32 %v2865, %v3150
    %v3152 = vpop.f32.mrb[0].mxu0
    %3153 = vmatprep.mubr.f32.mxu0 0.0
    %3154 = vmatmul.mubr.f32.gmra.mrb[0].mxu0 %v2884
    %v3155 = vpop.f32.mrb[0].mxu0
    %v3156 = vadd.f32 %v2865, %v3155
    %v3157 = vpop.f32.mrb[0].mxu0
    %3158 = vmatprep.mubr.f32.mxu0 0.0
    %3159 = vmatmul.mubr.f32.gmra.mrb[0].mxu0 %v2887
    %v3160 = vpop.f32.mrb[0].mxu0
    %v3161 = vadd.f32 %v2865, %v3160
    %v3162 = vpop.f32.mrb[0].mxu0
    %3163 = vmatprep.mubr.f32.mxu0 0.0
    %3164 = vmatmul.mubr.f32.gmra.mrb[0].mxu0 %v2890
    %v3165 = vpop.f32.mrb[0].mxu0
    %v3166 = vadd.f32 %v2865, %v3165
    %v3167 = vpop.f32.mrb[0].mxu0
    %3168 = vmatprep.mubr.f32.mxu0 0.0
    %3169 = vmatmul.mubr.f32.gmra.mrb[0].mxu0 %v2893
    %v3170 = vpop.f32.mrb[0].mxu0
    %v3171 = vadd.f32 %v2865, %v3170
    %v3172 = vpop.f32.mrb[0].mxu0
    %3173 = vmatprep.mubr.f32.mxu0 0.0
    %3174 = vmatmul.mubr.f32.gmra.mrb[0].mxu0 %v2896
    %v3175 = vpop.f32.mrb[0].mxu0
    %v3176 = vadd.f32 %v2865, %v3175
    %v3177 = vpop.f32.mrb[0].mxu0
    %3178 = vmatprep.mubr.f32.mxu0 0.0
    %3179 = vmatmul.mubr.f32.gmra.mrb[0].mxu0 %v2899
    %v3180 = vpop.f32.mrb[0].mxu0
    %v3181 = vadd.f32 %v2865, %v3180
    %v3182 = vpop.f32.mrb[0].mxu0
    %3183 = vmatprep.mubr.f32.mxu0 0.0
    %3184 = vmatmul.mubr.f32.gmra.mrb[0].mxu0 %v2902
    %v3185 = vpop.f32.mrb[0].mxu0
    %v3186 = vadd.f32 %v2865, %v3185
    %v3187 = vpop.f32.mrb[0].mxu0
    %3188 = vmatprep.mubr.f32.mxu0 0.0
    %3189 = vmatmul.mubr.f32.gmra.mrb[0].mxu0 %v2905
    %v3190 = vpop.f32.mrb[0].mxu0
    %v3191 = vadd.f32 %v2865, %v3190
    %v3192 = vpop.f32.mrb[0].mxu0
    %3193 = vmatprep.mubr.f32.mxu0 0.0
    %3194 = vmatmul.mubr.f32.gmra.mrb[0].mxu0 %v2908
    %v3195 = vpop.f32.mrb[0].mxu0
    %v3196 = vadd.f32 %v2865, %v3195
    %v3197 = vpop.f32.mrb[0].mxu0
    %3198 = vmatprep.mubr.f32.mxu0 0.0
    %3199 = vmatmul.mubr.f32.gmra.mrb[0].mxu0 %v2911
    %v3200 = vpop.f32.mrb[0].mxu0
    %v3201 = vadd.f32 %v2865, %v3200
    %v3202 = vpop.f32.mrb[0].mxu0
    %3203 = vmatprep.mubr.f32.mxu0 0.0
    %3204 = vmatmul.mubr.f32.gmra.mrb[0].mxu0 %v2914
    %v3205 = vpop.f32.mrb[0].mxu0
    %v3206 = vadd.f32 %v2865, %v3205
    %v3207 = vpop.f32.mrb[0].mxu0
    %3208 = vmatprep.mubr.f32.mxu0 0.0
    %3209 = vmatmul.mubr.f32.gmra.mrb[0].mxu0 %v2917
    %v3210 = vpop.f32.mrb[0].mxu0
    %v3211 = vadd.f32 %v2865, %v3210
    %v3212 = vpop.f32.mrb[0].mxu0
    %3213 = vmatprep.mubr.f32.mxu0 0.0
    %3214 = vmatmul.mubr.f32.gmra.mrb[0].mxu0 %v2920
    %v3215 = vpop.f32.mrb[0].mxu0
    %v3216 = vadd.f32 %v2865, %v3215
    %v3217 = vpop.f32.mrb[0].mxu0
    %3218 = vmatprep.mubr.f32.mxu0 0.0
    %3219 = vmatmul.mubr.f32.gmra.mrb[0].mxu0 %v2923
    %v3220 = vpop.f32.mrb[0].mxu0
    %v3221 = vadd.f32 %v2865, %v3220
    %v3222 = vpop.f32.mrb[0].mxu0
    %3223 = vmatprep.mubr.f32.mxu0 0.0
    %3224 = vmatmul.mubr.f32.gmra.mrb[0].mxu0 %v2926
    %v3225 = vpop.f32.mrb[0].mxu0
    %v3226 = vadd.f32 %v2865, %v3225
    %v3227 = vpop.f32.mrb[0].mxu0
    %3228 = vmatprep.mubr.f32.mxu0 0.0
    %3229 = vmatmul.mubr.f32.gmra.mrb[0].mxu0 %v2929
    %v3230 = vpop.f32.mrb[0].mxu0
    %v3231 = vadd.f32 %v2865, %v3230
    %v3232 = vpop.f32.mrb[0].mxu0
    %3233 = vmatprep.mubr.f32.mxu0 0.0
    %3234 = vmatmul.mubr.f32.gmra.mrb[0].mxu0 %v2932
    %v3235 = vpop.f32.mrb[0].mxu0
    %v3236 = vadd.f32 %v2865, %v3235
    %v3237 = vpop.f32.mrb[0].mxu0
    %3238 = vmatprep.mubr.f32.mxu0 0.0
    %3239 = vmatmul.mubr.f32.gmra.mrb[0].mxu0 %v2935
    %v3240 = vpop.f32.mrb[0].mxu0
    %v3241 = vadd.f32 %v2865, %v3240
    %v3242 = vpop.f32.mrb[0].mxu0
    %3243 = vmatprep.mubr.f32.mxu0 0.0
    %3244 = vmatmul.mubr.f32.gmra.mrb[0].mxu0 %v2938
    %v3245 = vpop.f32.mrb[0].mxu0
    %v3246 = vadd.f32 %v2865, %v3245
    %v3247 = vpop.f32.mrb[0].mxu0
    %3248 = vmatprep.mubr.f32.mxu0 0.0
    %3249 = vmatmul.mubr.f32.gmra.mrb[0].mxu0 %v2941
    %v3250 = vpop.f32.mrb[0].mxu0
    %v3251 = vadd.f32 %v2865, %v3250
    %v3252 = vpop.f32.mrb[0].mxu0
    %3253 = vmatprep.mubr.f32.mxu0 0.0
    %3254 = vmatmul.mubr.f32.gmra.mrb[0].mxu0 %v2944
    %v3255 = vpop.f32.mrb[0].mxu0
    %v3256 = vadd.f32 %v2865, %v3255
    %v3257 = vpop.f32.mrb[0].mxu0
    %3258 = vmatprep.mubr.f32.mxu0 0.0
    %3259 = vmatmul.mubr.f32.gmra.mrb[0].mxu0 %v2947
    %v3260 = vpop.f32.mrb[0].mxu0
    %v3261 = vadd.f32 %v2865, %v3260
    %v3262 = vpop.f32.mrb[0].mxu0
    %3263 = vmatprep.mubr.f32.mxu0 0.0
    %3264 = vmatmul.mubr.f32.gmra.mrb[0].mxu0 %v2950
    %v3265 = vpop.f32.mrb[0].mxu0
    %v3266 = vadd.f32 %v2865, %v3265
    %v3267 = vpop.f32.mrb[0].mxu0
    %3268 = vmatprep.mubr.f32.mxu0 0.0
    %3269 = vmatmul.mubr.f32.gmra.mrb[0].mxu0 %v2953
    %v3270 = vpop.f32.mrb[0].mxu0
    %v3271 = vadd.f32 %v2865, %v3270
    %v3272 = vpop.f32.mrb[0].mxu0
    %3273 = vmatprep.mubr.f32.mxu0 0.0
    %3274 = vmatmul.mubr.f32.gmra.mrb[0].mxu0 %v2956
    %v3275 = vpop.f32.mrb[0].mxu0
    %v3276 = vadd.f32 %v2865, %v3275
    %v3277 = vpop.f32.mrb[0].mxu0
    %3278 = vmatprep.mubr.f32.mxu0 0.0
    %3279 = vmatmul.mubr.f32.gmra.mrb[0].mxu0 %v2959
    %v3280 = vpop.f32.mrb[0].mxu0
    %v3281 = vadd.f32 %v2865, %v3280
    %v3282 = vpop.f32.mrb[0].mxu0
    %3283 = vmatprep.mubr.f32.mxu0 0.0
    %3284 = vmatmul.mubr.f32.gmra.mrb[0].mxu0 %v2962
    %v3285 = vpop.f32.mrb[0].mxu0
    %v3286 = vadd.f32 %v2865, %v3285
    %v3287 = vpop.f32.mrb[0].mxu0
    %3288 = vmatprep.mubr.f32.mxu0 0.0
    %3289 = vmatmul.mubr.f32.gmra.mrb[0].mxu0 %v2965
    %v3290 = vpop.f32.mrb[0].mxu0
    %v3291 = vadd.f32 %v2865, %v3290
    %v3292 = vpop.f32.mrb[0].mxu0
    %3293 = vmatprep.mubr.f32.mxu0 0.0
    %3294 = vmatmul.mubr.f32.gmra.mrb[0].mxu0 %v2968
    %v3295 = vpop.f32.mrb[0].mxu0
    %v3296 = vadd.f32 %v2865, %v3295
    %v3297 = vpop.f32.mrb[0].mxu0
    %3298 = vmatprep.mubr.f32.mxu0 0.0
    %3299 = vmatmul.mubr.f32.gmra.mrb[0].mxu0 %v2971
    %v3300 = vpop.f32.mrb[0].mxu0
    %v3301 = vadd.f32 %v2865, %v3300
    %v3302 = vpop.f32.mrb[0].mxu0
    %3303 = vmatprep.mubr.f32.mxu0 0.0
    %3304 = vmatmul.mubr.f32.gmra.mrb[0].mxu0 %v2974
    %v3305 = vpop.f32.mrb[0].mxu0
    %v3306 = vadd.f32 %v2865, %v3305
    %v3307 = vpop.f32.mrb[0].mxu0
    %3308 = vmatprep.mubr.f32.mxu0 0.0
    %3309 = vmatmul.mubr.f32.gmra.mrb[0].mxu0 %v2977
    %v3310 = vpop.f32.mrb[0].mxu0
    %v3311 = vadd.f32 %v2865, %v3310
    %v3312 = vpop.f32.mrb[0].mxu0
    %3313 = vmatprep.mubr.f32.mxu0 0.0
    %3314 = vmatmul.mubr.f32.gmra.mrb[0].mxu0 %v2980
    %v3315 = vpop.f32.mrb[0].mxu0
    %v3316 = vadd.f32 %v2865, %v3315
    %v3317 = vpop.f32.mrb[0].mxu0
    %3318 = vmatprep.mubr.f32.mxu0 0.0
    %3319 = vmatmul.mubr.f32.gmra.mrb[0].mxu0 %v2983
    %v3320 = vpop.f32.mrb[0].mxu0
    %v3321 = vadd.f32 %v2865, %v3320
    %v3322 = vpop.f32.mrb[0].mxu0
    %3323 = vmatprep.mubr.f32.mxu0 0.0
    %3324 = vmatmul.mubr.f32.gmra.mrb[0].mxu0 %v2986
    %v3325 = vpop.f32.mrb[0].mxu0
    %v3326 = vadd.f32 %v2865, %v3325
    %v3327 = vpop.f32.mrb[0].mxu0
    %3328 = vmatprep.mubr.f32.mxu0 0.0
    %3329 = vmatmul.mubr.f32.gmra.mrb[0].mxu0 %v2989
    %v3330 = vpop.f32.mrb[0].mxu0
    %v3331 = vadd.f32 %v2865, %v3330
    %v3332 = vpop.f32.mrb[0].mxu0
    %3333 = vmatprep.mubr.f32.mxu0 0.0
    %3334 = vmatmul.mubr.f32.gmra.mrb[0].mxu0 %v2992
    %v3335 = vpop.f32.mrb[0].mxu0
    %v3336 = vadd.f32 %v2865, %v3335
    %v3337 = vpop.f32.mrb[0].mxu0
    %3338 = vmatprep.mubr.f32.mxu0 0.0
    %3339 = vmatmul.mubr.f32.gmra.mrb[0].mxu0 %v2995
    %v3340 = vpop.f32.mrb[0].mxu0
    %v3341 = vadd.f32 %v2865, %v3340
    %v3342 = vpop.f32.mrb[0].mxu0
    %3343 = vmatprep.mubr.f32.mxu0 0.0
    %3344 = vmatmul.mubr.f32.gmra.mrb[0].mxu0 %v2998
    %v3345 = vpop.f32.mrb[0].mxu0
    %v3346 = vadd.f32 %v2865, %v3345
    %v3347 = vpop.f32.mrb[0].mxu0
    %3348 = vmatprep.mubr.f32.mxu0 0.0
    %3349 = vmatmul.mubr.f32.gmra.mrb[0].mxu0 %v3001
    %v3350 = vpop.f32.mrb[0].mxu0
    %v3351 = vadd.f32 %v2865, %v3350
    %v3352 = vpop.f32.mrb[0].mxu0
    %3353 = vmatprep.mubr.f32.mxu0 0.0
    %3354 = vmatmul.mubr.f32.gmra.mrb[0].mxu0 %v3004
    %v3355 = vpop.f32.mrb[0].mxu0
    %v3356 = vadd.f32 %v2865, %v3355
    %v3357 = vpop.f32.mrb[0].mxu0
    %3358 = vmatprep.mubr.f32.mxu0 0.0
    %3359 = vmatmul.mubr.f32.gmra.mrb[0].mxu0 %v3007
    %v3360 = vpop.f32.mrb[0].mxu0
    %v3361 = vadd.f32 %v2865, %v3360
    %v3362 = vpop.f32.mrb[0].mxu0
    %3363 = vmatprep.mubr.f32.mxu0 0.0
    %3364 = vmatmul.mubr.f32.gmra.mrb[0].mxu0 %v3010
    %v3365 = vpop.f32.mrb[0].mxu0
    %v3366 = vadd.f32 %v2865, %v3365
    %v3367 = vpop.f32.mrb[0].mxu0
    %3368 = vmatprep.mubr.f32.mxu0 0.0
    %3369 = vmatmul.mubr.f32.gmra.mrb[0].mxu0 %v3013
    %v3370 = vpop.f32.mrb[0].mxu0
    %v3371 = vadd.f32 %v2865, %v3370
    %v3372 = vpop.f32.mrb[0].mxu0
    %3373 = vmatprep.mubr.f32.mxu0 0.0
    %3374 = vmatmul.mubr.f32.gmra.mrb[0].mxu0 %v3016
    %v3375 = vpop.f32.mrb[0].mxu0
    %v3376 = vadd.f32 %v2865, %v3375
    %v3377 = vpop.f32.mrb[0].mxu0
    %3378 = vmatprep.mubr.f32.mxu0 0.0
    %3379 = vmatmul.mubr.f32.gmra.mrb[0].mxu0 %v3019
    %v3380 = vpop.f32.mrb[0].mxu0
    %v3381 = vadd.f32 %v2865, %v3380
    %v3382 = vpop.f32.mrb[0].mxu0
    %3383 = vmatprep.mubr.f32.mxu0 0.0
    %3384 = vmatmul.mubr.f32.gmra.mrb[0].mxu0 %v3022
    %v3385 = vpop.f32.mrb[0].mxu0
    %v3386 = vadd.f32 %v2865, %v3385
    %v3387 = vpop.f32.mrb[0].mxu0
    %3388 = vmatprep.mubr.f32.mxu0 0.0
    %3389 = vmatmul.mubr.f32.gmra.mrb[0].mxu0 %v3025
    %v3390 = vpop.f32.mrb[0].mxu0
    %v3391 = vadd.f32 %v2865, %v3390
    %v3392 = vpop.f32.mrb[0].mxu0
    %3393 = vmatprep.mubr.f32.mxu0 0.0
    %3394 = vmatmul.mubr.f32.gmra.mrb[0].mxu0 %v3028
    %v3395 = vpop.f32.mrb[0].mxu0
    %v3396 = vadd.f32 %v2865, %v3395
    %v3397 = vpop.f32.mrb[0].mxu0
    %3398 = vmatprep.mubr.f32.mxu0 0.0
    %3399 = vmatmul.mubr.f32.gmra.mrb[0].mxu0 %v3031
    %v3400 = vpop.f32.mrb[0].mxu0
    %v3401 = vadd.f32 %v2865, %v3400
    %v3402 = vpop.f32.mrb[0].mxu0
    %3403 = vmatprep.mubr.f32.mxu0 0.0
    %3404 = vmatmul.mubr.f32.gmra.mrb[0].mxu0 %v3034
    %v3405 = vpop.f32.mrb[0].mxu0
    %v3406 = vadd.f32 %v2865, %v3405
    %v3407 = vpop.f32.mrb[0].mxu0
    %3408 = vmatprep.mubr.f32.mxu0 0.0
    %3409 = vmatmul.mubr.f32.gmra.mrb[0].mxu0 %v3037
    %v3410 = vpop.f32.mrb[0].mxu0
    %v3411 = vadd.f32 %v2865, %v3410
    %v3412 = vpop.f32.mrb[0].mxu0
    %3413 = vmatprep.mubr.f32.mxu0 0.0
    %3414 = vmatmul.mubr.f32.gmra.mrb[0].mxu0 %v3040
    %v3415 = vpop.f32.mrb[0].mxu0
    %v3416 = vadd.f32 %v2865, %v3415
    %v3417 = vpop.f32.mrb[0].mxu0
    %3418 = vmatprep.mubr.f32.mxu0 0.0
    %3419 = vmatmul.mubr.f32.gmra.mrb[0].mxu0 %v3043
    %v3420 = vpop.f32.mrb[0].mxu0
    %v3421 = vadd.f32 %v2865, %v3420
    %v3422 = vpop.f32.mrb[0].mxu0
    %3423 = vmatprep.mubr.f32.mxu0 0.0
    %3424 = vmatmul.mubr.f32.gmra.mrb[0].mxu0 %v3046
    %v3425 = vpop.f32.mrb[0].mxu0
    %v3426 = vadd.f32 %v2865, %v3425
    %v3427 = vpop.f32.mrb[0].mxu0
    %3428 = vmatprep.mubr.f32.mxu0 0.0
    %3429 = vmatmul.mubr.f32.gmra.mrb[0].mxu0 %v3049
    %v3430 = vpop.f32.mrb[0].mxu0
    %v3431 = vadd.f32 %v2865, %v3430
    %v3432 = vpop.f32.mrb[0].mxu0
    %3433 = vmatprep.mubr.f32.mxu0 0.0
    %3434 = vmatmul.mubr.f32.gmra.mrb[0].mxu0 %v3052
    %v3435 = vpop.f32.mrb[0].mxu0
    %v3436 = vadd.f32 %v2865, %v3435
    %v3437 = vpop.f32.mrb[0].mxu0
    %3438 = vmatprep.mubr.f32.mxu0 0.0
    %3439 = vmatmul.mubr.f32.gmra.mrb[0].mxu0 %v3055
    %v3440 = vpop.f32.mrb[0].mxu0
    %v3441 = vadd.f32 %v2865, %v3440
    %v3442 = vpop.f32.mrb[0].mxu0
    %3443 = vmatprep.mubr.f32.mxu0 0.0
    %3444 = vmatmul.mubr.f32.gmra.mrb[0].mxu0 %v3058
    %v3445 = vpop.f32.mrb[0].mxu0
    %v3446 = vadd.f32 %v2865, %v3445
    %v3447 = vpop.f32.mrb[0].mxu0
    %3448 = vdwg.mxu0
    %v3449 = vsel %vm2530, %v3131, 0.0
    %v3450 = vsel %vm2530, %v3136, 0.0
    %v3451 = vadd.f32 %v3449, %v3450
    %v3452 = vsel %vm2530, %v3141, 0.0
    %v3453 = vadd.f32 %v3451, %v3452
    %v3454 = vsel %vm2530, %v3146, 0.0
    %v3455 = vadd.f32 %v3453, %v3454
    %v3456 = vsel %vm2530, %v3151, 0.0
    %v3457 = vadd.f32 %v3455, %v3456
    %v3458 = vsel %vm2530, %v3156, 0.0
    %v3459 = vadd.f32 %v3457, %v3458
    %v3460 = vsel %vm2530, %v3161, 0.0
    %v3461 = vadd.f32 %v3459, %v3460
    %v3462 = vsel %vm2530, %v3166, 0.0
    %v3463 = vadd.f32 %v3461, %v3462
    %v3464 = vsel %vm2530, %v3171, 0.0
    %v3465 = vadd.f32 %v3463, %v3464
    %v3466 = vsel %vm2530, %v3176, 0.0
    %v3467 = vadd.f32 %v3465, %v3466
    %v3468 = vsel %vm2530, %v3181, 0.0
    %v3469 = vadd.f32 %v3467, %v3468
    %v3470 = vsel %vm2530, %v3186, 0.0
    %v3471 = vadd.f32 %v3469, %v3470
    %v3472 = vsel %vm2530, %v3191, 0.0
    %v3473 = vadd.f32 %v3471, %v3472
    %v3474 = vsel %vm2530, %v3196, 0.0
    %v3475 = vadd.f32 %v3473, %v3474
    %v3476 = vsel %vm2530, %v3201, 0.0
    %v3477 = vadd.f32 %v3475, %v3476
    %v3478 = vsel %vm2530, %v3206, 0.0
    %v3479 = vadd.f32 %v3477, %v3478
    %v3480 = vsel %vm2530, %v3211, 0.0
    %v3481 = vadd.f32 %v3479, %v3480
    %v3482 = vsel %vm2530, %v3216, 0.0
    %v3483 = vadd.f32 %v3481, %v3482
    %v3484 = vsel %vm2530, %v3221, 0.0
    %v3485 = vadd.f32 %v3483, %v3484
    %v3486 = vsel %vm2530, %v3226, 0.0
    %v3487 = vadd.f32 %v3485, %v3486
    %v3488 = vsel %vm2530, %v3231, 0.0
    %v3489 = vadd.f32 %v3487, %v3488
    %v3490 = vsel %vm2530, %v3236, 0.0
    %v3491 = vadd.f32 %v3489, %v3490
    %v3492 = vsel %vm2530, %v3241, 0.0
    %v3493 = vadd.f32 %v3491, %v3492
    %v3494 = vsel %vm2530, %v3246, 0.0
    %v3495 = vadd.f32 %v3493, %v3494
    %v3496 = vsel %vm2530, %v3251, 0.0
    %v3497 = vadd.f32 %v3495, %v3496
    %v3498 = vsel %vm2530, %v3256, 0.0
    %v3499 = vadd.f32 %v3497, %v3498
    %v3500 = vsel %vm2530, %v3261, 0.0
    %v3501 = vadd.f32 %v3499, %v3500
    %v3502 = vsel %vm2530, %v3266, 0.0
    %v3503 = vadd.f32 %v3501, %v3502
    %v3504 = vsel %vm2530, %v3271, 0.0
    %v3505 = vadd.f32 %v3503, %v3504
    %v3506 = vsel %vm2530, %v3276, 0.0
    %v3507 = vadd.f32 %v3505, %v3506
    %v3508 = vsel %vm2530, %v3281, 0.0
    %v3509 = vadd.f32 %v3507, %v3508
    %v3510 = vsel %vm2530, %v3286, 0.0
    %v3511 = vadd.f32 %v3509, %v3510
    %v3512 = vsel %vm2530, %v3291, 0.0
    %v3513 = vadd.f32 %v3511, %v3512
    %v3514 = vsel %vm2530, %v3296, 0.0
    %v3515 = vadd.f32 %v3513, %v3514
    %v3516 = vsel %vm2530, %v3301, 0.0
    %v3517 = vadd.f32 %v3515, %v3516
    %v3518 = vsel %vm2530, %v3306, 0.0
    %v3519 = vadd.f32 %v3517, %v3518
    %v3520 = vsel %vm2530, %v3311, 0.0
    %v3521 = vadd.f32 %v3519, %v3520
    %v3522 = vsel %vm2530, %v3316, 0.0
    %v3523 = vadd.f32 %v3521, %v3522
    %v3524 = vsel %vm2530, %v3321, 0.0
    %v3525 = vadd.f32 %v3523, %v3524
    %v3526 = vsel %vm2530, %v3326, 0.0
    %v3527 = vadd.f32 %v3525, %v3526
    %v3528 = vsel %vm2530, %v3331, 0.0
    %v3529 = vadd.f32 %v3527, %v3528
    %v3530 = vsel %vm2530, %v3336, 0.0
    %v3531 = vadd.f32 %v3529, %v3530
    %v3532 = vsel %vm2530, %v3341, 0.0
    %v3533 = vadd.f32 %v3531, %v3532
    %v3534 = vsel %vm2530, %v3346, 0.0
    %v3535 = vadd.f32 %v3533, %v3534
    %v3536 = vsel %vm2530, %v3351, 0.0
    %v3537 = vadd.f32 %v3535, %v3536
    %v3538 = vsel %vm2530, %v3356, 0.0
    %v3539 = vadd.f32 %v3537, %v3538
    %v3540 = vsel %vm2530, %v3361, 0.0
    %v3541 = vadd.f32 %v3539, %v3540
    %v3542 = vsel %vm2530, %v3366, 0.0
    %v3543 = vadd.f32 %v3541, %v3542
    %v3544 = vsel %vm2530, %v3371, 0.0
    %v3545 = vadd.f32 %v3543, %v3544
    %v3546 = vsel %vm2530, %v3376, 0.0
    %v3547 = vadd.f32 %v3545, %v3546
    %v3548 = vsel %vm2530, %v3381, 0.0
    %v3549 = vadd.f32 %v3547, %v3548
    %v3550 = vsel %vm2530, %v3386, 0.0
    %v3551 = vadd.f32 %v3549, %v3550
    %v3552 = vsel %vm2530, %v3391, 0.0
    %v3553 = vadd.f32 %v3551, %v3552
    %v3554 = vsel %vm2530, %v3396, 0.0
    %v3555 = vadd.f32 %v3553, %v3554
    %v3556 = vsel %vm2530, %v3401, 0.0
    %v3557 = vadd.f32 %v3555, %v3556
    %v3558 = vsel %vm2530, %v3406, 0.0
    %v3559 = vadd.f32 %v3557, %v3558
    %v3560 = vsel %vm2530, %v3411, 0.0
    %v3561 = vadd.f32 %v3559, %v3560
    %v3562 = vsel %vm2530, %v3416, 0.0
    %v3563 = vadd.f32 %v3561, %v3562
    %v3564 = vsel %vm2530, %v3421, 0.0
    %v3565 = vadd.f32 %v3563, %v3564
    %v3566 = vsel %vm2530, %v3426, 0.0
    %v3567 = vadd.f32 %v3565, %v3566
    %v3568 = vsel %vm2530, %v3431, 0.0
    %v3569 = vadd.f32 %v3567, %v3568
    %v3570 = vsel %vm2530, %v3436, 0.0
    %v3571 = vadd.f32 %v3569, %v3570
    %v3572 = vsel %vm2530, %v3441, 0.0
    %v3573 = vadd.f32 %v3571, %v3572
    %v3574 = vsel %vm2530, %v3446, 0.0
    %v3575 = vadd.f32 %v3573, %v3574
    %v3576 = vrot.slane %v3575, 4
    %v3577 = vadd.f32 %v3575, %v3576
    %v3578 = vrot.slane %v3577, 2
    %v3579 = vadd.f32 %v3577, %v3578
    %v3580 = vrot.slane %v3579, 1
    %v3581 = vadd.f32 %v3579, %v3580
    %v3582 = vrcp.pop 512.0
    %v3583 = vmul.f32 %v3581, %v3582
    %v3584 = vsub.f32 %v3131, %v3583
    %v3585 = vsub.f32 %v3136, %v3583
    %v3586 = vsub.f32 %v3141, %v3583
    %v3587 = vsub.f32 %v3146, %v3583
    %v3588 = vsub.f32 %v3151, %v3583
    %v3589 = vsub.f32 %v3156, %v3583
    %v3590 = vsub.f32 %v3161, %v3583
    %v3591 = vsub.f32 %v3166, %v3583
    %v3592 = vsub.f32 %v3171, %v3583
    %v3593 = vsub.f32 %v3176, %v3583
    %v3594 = vsub.f32 %v3181, %v3583
    %v3595 = vsub.f32 %v3186, %v3583
    %v3596 = vsub.f32 %v3191, %v3583
    %v3597 = vsub.f32 %v3196, %v3583
    %v3598 = vsub.f32 %v3201, %v3583
    %v3599 = vsub.f32 %v3206, %v3583
    %v3600 = vsub.f32 %v3211, %v3583
    %v3601 = vsub.f32 %v3216, %v3583
    %v3602 = vsub.f32 %v3221, %v3583
    %v3603 = vsub.f32 %v3226, %v3583
    %v3604 = vsub.f32 %v3231, %v3583
    %v3605 = vsub.f32 %v3236, %v3583
    %v3606 = vsub.f32 %v3241, %v3583
    %v3607 = vsub.f32 %v3246, %v3583
    %v3608 = vsub.f32 %v3251, %v3583
    %v3609 = vsub.f32 %v3256, %v3583
    %v3610 = vsub.f32 %v3261, %v3583
    %v3611 = vsub.f32 %v3266, %v3583
    %v3612 = vsub.f32 %v3271, %v3583
    %v3613 = vsub.f32 %v3276, %v3583
    %v3614 = vsub.f32 %v3281, %v3583
    %v3615 = vsub.f32 %v3286, %v3583
    %v3616 = vsub.f32 %v3291, %v3583
    %v3617 = vsub.f32 %v3296, %v3583
    %v3618 = vsub.f32 %v3301, %v3583
    %v3619 = vsub.f32 %v3306, %v3583
    %v3620 = vsub.f32 %v3311, %v3583
    %v3621 = vsub.f32 %v3316, %v3583
    %v3622 = vsub.f32 %v3321, %v3583
    %v3623 = vsub.f32 %v3326, %v3583
    %v3624 = vsub.f32 %v3331, %v3583
    %v3625 = vsub.f32 %v3336, %v3583
    %v3626 = vsub.f32 %v3341, %v3583
    %v3627 = vsub.f32 %v3346, %v3583
    %v3628 = vsub.f32 %v3351, %v3583
    %v3629 = vsub.f32 %v3356, %v3583
    %v3630 = vsub.f32 %v3361, %v3583
    %v3631 = vsub.f32 %v3366, %v3583
    %v3632 = vsub.f32 %v3371, %v3583
    %v3633 = vsub.f32 %v3376, %v3583
    %v3634 = vsub.f32 %v3381, %v3583
    %v3635 = vsub.f32 %v3386, %v3583
    %v3636 = vsub.f32 %v3391, %v3583
    %v3637 = vsub.f32 %v3396, %v3583
    %v3638 = vsub.f32 %v3401, %v3583
    %v3639 = vsub.f32 %v3406, %v3583
    %v3640 = vsub.f32 %v3411, %v3583
    %v3641 = vsub.f32 %v3416, %v3583
    %v3642 = vsub.f32 %v3421, %v3583
    %v3643 = vsub.f32 %v3426, %v3583
    %v3644 = vsub.f32 %v3431, %v3583
    %v3645 = vsub.f32 %v3436, %v3583
    %v3646 = vsub.f32 %v3441, %v3583
    %v3647 = vsub.f32 %v3446, %v3583
    %v3648 = vmul.f32 %v3584, %v3584
    %v3649 = vmul.f32 %v3585, %v3585
    %v3650 = vmul.f32 %v3586, %v3586
    %v3651 = vmul.f32 %v3587, %v3587
    %v3652 = vmul.f32 %v3588, %v3588
    %v3653 = vmul.f32 %v3589, %v3589
    %v3654 = vmul.f32 %v3590, %v3590
    %v3655 = vmul.f32 %v3591, %v3591
    %v3656 = vmul.f32 %v3592, %v3592
    %v3657 = vmul.f32 %v3593, %v3593
    %v3658 = vmul.f32 %v3594, %v3594
    %v3659 = vmul.f32 %v3595, %v3595
    %v3660 = vmul.f32 %v3596, %v3596
    %v3661 = vmul.f32 %v3597, %v3597
    %v3662 = vmul.f32 %v3598, %v3598
    %v3663 = vmul.f32 %v3599, %v3599
    %v3664 = vmul.f32 %v3600, %v3600
    %v3665 = vmul.f32 %v3601, %v3601
    %v3666 = vmul.f32 %v3602, %v3602
    %v3667 = vmul.f32 %v3603, %v3603
    %v3668 = vmul.f32 %v3604, %v3604
    %v3669 = vmul.f32 %v3605, %v3605
    %v3670 = vmul.f32 %v3606, %v3606
    %v3671 = vmul.f32 %v3607, %v3607
    %v3672 = vmul.f32 %v3608, %v3608
    %v3673 = vmul.f32 %v3609, %v3609
    %v3674 = vmul.f32 %v3610, %v3610
    %v3675 = vmul.f32 %v3611, %v3611
    %v3676 = vmul.f32 %v3612, %v3612
    %v3677 = vmul.f32 %v3613, %v3613
    %v3678 = vmul.f32 %v3614, %v3614
    %v3679 = vmul.f32 %v3615, %v3615
    %v3680 = vmul.f32 %v3616, %v3616
    %v3681 = vmul.f32 %v3617, %v3617
    %v3682 = vmul.f32 %v3618, %v3618
    %v3683 = vmul.f32 %v3619, %v3619
    %v3684 = vmul.f32 %v3620, %v3620
    %v3685 = vmul.f32 %v3621, %v3621
    %v3686 = vmul.f32 %v3622, %v3622
    %v3687 = vmul.f32 %v3623, %v3623
    %v3688 = vmul.f32 %v3624, %v3624
    %v3689 = vmul.f32 %v3625, %v3625
    %v3690 = vmul.f32 %v3626, %v3626
    %v3691 = vmul.f32 %v3627, %v3627
    %v3692 = vmul.f32 %v3628, %v3628
    %v3693 = vmul.f32 %v3629, %v3629
    %v3694 = vmul.f32 %v3630, %v3630
    %v3695 = vmul.f32 %v3631, %v3631
    %v3696 = vmul.f32 %v3632, %v3632
    %v3697 = vmul.f32 %v3633, %v3633
    %v3698 = vmul.f32 %v3634, %v3634
    %v3699 = vmul.f32 %v3635, %v3635
    %v3700 = vmul.f32 %v3636, %v3636
    %v3701 = vmul.f32 %v3637, %v3637
    %v3702 = vmul.f32 %v3638, %v3638
    %v3703 = vmul.f32 %v3639, %v3639
    %v3704 = vmul.f32 %v3640, %v3640
    %v3705 = vmul.f32 %v3641, %v3641
    %v3706 = vmul.f32 %v3642, %v3642
    %v3707 = vmul.f32 %v3643, %v3643
    %v3708 = vmul.f32 %v3644, %v3644
    %v3709 = vmul.f32 %v3645, %v3645
    %v3710 = vmul.f32 %v3646, %v3646
    %v3711 = vmul.f32 %v3647, %v3647
    %v3712 = vsel %vm2530, %v3648, 0.0
    %v3713 = vsel %vm2530, %v3649, 0.0
    %v3714 = vadd.f32 %v3712, %v3713
    %v3715 = vsel %vm2530, %v3650, 0.0
    %v3716 = vadd.f32 %v3714, %v3715
    %v3717 = vsel %vm2530, %v3651, 0.0
    %v3718 = vadd.f32 %v3716, %v3717
    %v3719 = vsel %vm2530, %v3652, 0.0
    %v3720 = vadd.f32 %v3718, %v3719
    %v3721 = vsel %vm2530, %v3653, 0.0
    %v3722 = vadd.f32 %v3720, %v3721
    %v3723 = vsel %vm2530, %v3654, 0.0
    %v3724 = vadd.f32 %v3722, %v3723
    %v3725 = vsel %vm2530, %v3655, 0.0
    %v3726 = vadd.f32 %v3724, %v3725
    %v3727 = vsel %vm2530, %v3656, 0.0
    %v3728 = vadd.f32 %v3726, %v3727
    %v3729 = vsel %vm2530, %v3657, 0.0
    %v3730 = vadd.f32 %v3728, %v3729
    %v3731 = vsel %vm2530, %v3658, 0.0
    %v3732 = vadd.f32 %v3730, %v3731
    %v3733 = vsel %vm2530, %v3659, 0.0
    %v3734 = vadd.f32 %v3732, %v3733
    %v3735 = vsel %vm2530, %v3660, 0.0
    %v3736 = vadd.f32 %v3734, %v3735
    %v3737 = vsel %vm2530, %v3661, 0.0
    %v3738 = vadd.f32 %v3736, %v3737
    %v3739 = vsel %vm2530, %v3662, 0.0
    %v3740 = vadd.f32 %v3738, %v3739
    %v3741 = vsel %vm2530, %v3663, 0.0
    %v3742 = vadd.f32 %v3740, %v3741
    %v3743 = vsel %vm2530, %v3664, 0.0
    %v3744 = vadd.f32 %v3742, %v3743
    %v3745 = vsel %vm2530, %v3665, 0.0
    %v3746 = vadd.f32 %v3744, %v3745
    %v3747 = vsel %vm2530, %v3666, 0.0
    %v3748 = vadd.f32 %v3746, %v3747
    %v3749 = vsel %vm2530, %v3667, 0.0
    %v3750 = vadd.f32 %v3748, %v3749
    %v3751 = vsel %vm2530, %v3668, 0.0
    %v3752 = vadd.f32 %v3750, %v3751
    %v3753 = vsel %vm2530, %v3669, 0.0
    %v3754 = vadd.f32 %v3752, %v3753
    %v3755 = vsel %vm2530, %v3670, 0.0
    %v3756 = vadd.f32 %v3754, %v3755
    %v3757 = vsel %vm2530, %v3671, 0.0
    %v3758 = vadd.f32 %v3756, %v3757
    %v3759 = vsel %vm2530, %v3672, 0.0
    %v3760 = vadd.f32 %v3758, %v3759
    %v3761 = vsel %vm2530, %v3673, 0.0
    %v3762 = vadd.f32 %v3760, %v3761
    %v3763 = vsel %vm2530, %v3674, 0.0
    %v3764 = vadd.f32 %v3762, %v3763
    %v3765 = vsel %vm2530, %v3675, 0.0
    %v3766 = vadd.f32 %v3764, %v3765
    %v3767 = vsel %vm2530, %v3676, 0.0
    %v3768 = vadd.f32 %v3766, %v3767
    %v3769 = vsel %vm2530, %v3677, 0.0
    %v3770 = vadd.f32 %v3768, %v3769
    %v3771 = vsel %vm2530, %v3678, 0.0
    %v3772 = vadd.f32 %v3770, %v3771
    %v3773 = vsel %vm2530, %v3679, 0.0
    %v3774 = vadd.f32 %v3772, %v3773
    %v3775 = vsel %vm2530, %v3680, 0.0
    %v3776 = vadd.f32 %v3774, %v3775
    %v3777 = vsel %vm2530, %v3681, 0.0
    %v3778 = vadd.f32 %v3776, %v3777
    %v3779 = vsel %vm2530, %v3682, 0.0
    %v3780 = vadd.f32 %v3778, %v3779
    %v3781 = vsel %vm2530, %v3683, 0.0
    %v3782 = vadd.f32 %v3780, %v3781
    %v3783 = vsel %vm2530, %v3684, 0.0
    %v3784 = vadd.f32 %v3782, %v3783
    %v3785 = vsel %vm2530, %v3685, 0.0
    %v3786 = vadd.f32 %v3784, %v3785
    %v3787 = vsel %vm2530, %v3686, 0.0
    %v3788 = vadd.f32 %v3786, %v3787
    %v3789 = vsel %vm2530, %v3687, 0.0
    %v3790 = vadd.f32 %v3788, %v3789
    %v3791 = vsel %vm2530, %v3688, 0.0
    %v3792 = vadd.f32 %v3790, %v3791
    %v3793 = vsel %vm2530, %v3689, 0.0
    %v3794 = vadd.f32 %v3792, %v3793
    %v3795 = vsel %vm2530, %v3690, 0.0
    %v3796 = vadd.f32 %v3794, %v3795
    %v3797 = vsel %vm2530, %v3691, 0.0
    %v3798 = vadd.f32 %v3796, %v3797
    %v3799 = vsel %vm2530, %v3692, 0.0
    %v3800 = vadd.f32 %v3798, %v3799
    %v3801 = vsel %vm2530, %v3693, 0.0
    %v3802 = vadd.f32 %v3800, %v3801
    %v3803 = vsel %vm2530, %v3694, 0.0
    %v3804 = vadd.f32 %v3802, %v3803
    %v3805 = vsel %vm2530, %v3695, 0.0
    %v3806 = vadd.f32 %v3804, %v3805
    %v3807 = vsel %vm2530, %v3696, 0.0
    %v3808 = vadd.f32 %v3806, %v3807
    %v3809 = vsel %vm2530, %v3697, 0.0
    %v3810 = vadd.f32 %v3808, %v3809
    %v3811 = vsel %vm2530, %v3698, 0.0
    %v3812 = vadd.f32 %v3810, %v3811
    %v3813 = vsel %vm2530, %v3699, 0.0
    %v3814 = vadd.f32 %v3812, %v3813
    %v3815 = vsel %vm2530, %v3700, 0.0
    %v3816 = vadd.f32 %v3814, %v3815
    %v3817 = vsel %vm2530, %v3701, 0.0
    %v3818 = vadd.f32 %v3816, %v3817
    %v3819 = vsel %vm2530, %v3702, 0.0
    %v3820 = vadd.f32 %v3818, %v3819
    %v3821 = vsel %vm2530, %v3703, 0.0
    %v3822 = vadd.f32 %v3820, %v3821
    %v3823 = vsel %vm2530, %v3704, 0.0
    %v3824 = vadd.f32 %v3822, %v3823
    %v3825 = vsel %vm2530, %v3705, 0.0
    %v3826 = vadd.f32 %v3824, %v3825
    %v3827 = vsel %vm2530, %v3706, 0.0
    %v3828 = vadd.f32 %v3826, %v3827
    %v3829 = vsel %vm2530, %v3707, 0.0
    %v3830 = vadd.f32 %v3828, %v3829
    %v3831 = vsel %vm2530, %v3708, 0.0
    %v3832 = vadd.f32 %v3830, %v3831
    %v3833 = vsel %vm2530, %v3709, 0.0
    %v3834 = vadd.f32 %v3832, %v3833
    %v3835 = vsel %vm2530, %v3710, 0.0
    %v3836 = vadd.f32 %v3834, %v3835
    %v3837 = vsel %vm2530, %v3711, 0.0
    %v3838 = vadd.f32 %v3836, %v3837
    %v3839 = vrot.slane %v3838, 4
    %v3840 = vadd.f32 %v3838, %v3839
    %v3841 = vrot.slane %v3840, 2
    %v3842 = vadd.f32 %v3840, %v3841
    %v3843 = vrot.slane %v3842, 1
    %v3844 = vadd.f32 %v3842, %v3843
    %v3845 = vmul.f32 %v3844, %v3582
    %v3846 = vadd.f32 %v3845, 1e-05
    %v3847 = vrsqrt.pop %v3846
    %v3848 = vmul.f32 %v3584, %v3847
    %v3849 = vmul.f32 %v3585, %v3847
    %v3850 = vmul.f32 %v3586, %v3847
    %v3851 = vmul.f32 %v3587, %v3847
    %v3852 = vmul.f32 %v3588, %v3847
    %v3853 = vmul.f32 %v3589, %v3847
    %v3854 = vmul.f32 %v3590, %v3847
    %v3855 = vmul.f32 %v3591, %v3847
    %v3856 = vmul.f32 %v3592, %v3847
    %v3857 = vmul.f32 %v3593, %v3847
    %v3858 = vmul.f32 %v3594, %v3847
    %v3859 = vmul.f32 %v3595, %v3847
    %v3860 = vmul.f32 %v3596, %v3847
    %v3861 = vmul.f32 %v3597, %v3847
    %v3862 = vmul.f32 %v3598, %v3847
    %v3863 = vmul.f32 %v3599, %v3847
    %v3864 = vmul.f32 %v3600, %v3847
    %v3865 = vmul.f32 %v3601, %v3847
    %v3866 = vmul.f32 %v3602, %v3847
    %v3867 = vmul.f32 %v3603, %v3847
    %v3868 = vmul.f32 %v3604, %v3847
    %v3869 = vmul.f32 %v3605, %v3847
    %v3870 = vmul.f32 %v3606, %v3847
    %v3871 = vmul.f32 %v3607, %v3847
    %v3872 = vmul.f32 %v3608, %v3847
    %v3873 = vmul.f32 %v3609, %v3847
    %v3874 = vmul.f32 %v3610, %v3847
    %v3875 = vmul.f32 %v3611, %v3847
    %v3876 = vmul.f32 %v3612, %v3847
    %v3877 = vmul.f32 %v3613, %v3847
    %v3878 = vmul.f32 %v3614, %v3847
    %v3879 = vmul.f32 %v3615, %v3847
    %v3880 = vmul.f32 %v3616, %v3847
    %v3881 = vmul.f32 %v3617, %v3847
    %v3882 = vmul.f32 %v3618, %v3847
    %v3883 = vmul.f32 %v3619, %v3847
    %v3884 = vmul.f32 %v3620, %v3847
    %v3885 = vmul.f32 %v3621, %v3847
    %v3886 = vmul.f32 %v3622, %v3847
    %v3887 = vmul.f32 %v3623, %v3847
    %v3888 = vmul.f32 %v3624, %v3847
    %v3889 = vmul.f32 %v3625, %v3847
    %v3890 = vmul.f32 %v3626, %v3847
    %v3891 = vmul.f32 %v3627, %v3847
    %v3892 = vmul.f32 %v3628, %v3847
    %v3893 = vmul.f32 %v3629, %v3847
    %v3894 = vmul.f32 %v3630, %v3847
    %v3895 = vmul.f32 %v3631, %v3847
    %v3896 = vmul.f32 %v3632, %v3847
    %v3897 = vmul.f32 %v3633, %v3847
    %v3898 = vmul.f32 %v3634, %v3847
    %v3899 = vmul.f32 %v3635, %v3847
    %v3900 = vmul.f32 %v3636, %v3847
    %v3901 = vmul.f32 %v3637, %v3847
    %v3902 = vmul.f32 %v3638, %v3847
    %v3903 = vmul.f32 %v3639, %v3847
    %v3904 = vmul.f32 %v3640, %v3847
    %v3905 = vmul.f32 %v3641, %v3847
    %v3906 = vmul.f32 %v3642, %v3847
    %v3907 = vmul.f32 %v3643, %v3847
    %v3908 = vmul.f32 %v3644, %v3847
    %v3909 = vmul.f32 %v3645, %v3847
    %v3910 = vmul.f32 %v3646, %v3847
    %v3911 = vmul.f32 %v3647, %v3847
    %v3912 = vld [vmem:[%s3] sm:$0x1]
    %v3914 = vlaneseq
    %v3915 = vshrl.u32 %v3914, 7
    %v3916 = vsub.s32 0, %v3915
    %v3917 = vrot.slane %v3912, %v3916
    %v3919 = vmul.f32 %v3848, %v3917
    %v3920 = vmul.f32 %v3849, %v3917
    %v3921 = vmul.f32 %v3850, %v3917
    %v3922 = vmul.f32 %v3851, %v3917
    %v3923 = vmul.f32 %v3852, %v3917
    %v3924 = vmul.f32 %v3853, %v3917
    %v3925 = vmul.f32 %v3854, %v3917
    %v3926 = vmul.f32 %v3855, %v3917
    %v3927 = vmul.f32 %v3856, %v3917
    %v3928 = vmul.f32 %v3857, %v3917
    %v3929 = vmul.f32 %v3858, %v3917
    %v3930 = vmul.f32 %v3859, %v3917
    %v3931 = vmul.f32 %v3860, %v3917
    %v3932 = vmul.f32 %v3861, %v3917
    %v3933 = vmul.f32 %v3862, %v3917
    %v3934 = vmul.f32 %v3863, %v3917
    %v3935 = vmul.f32 %v3864, %v3917
    %v3936 = vmul.f32 %v3865, %v3917
    %v3937 = vmul.f32 %v3866, %v3917
    %v3938 = vmul.f32 %v3867, %v3917
    %v3939 = vmul.f32 %v3868, %v3917
    %v3940 = vmul.f32 %v3869, %v3917
    %v3941 = vmul.f32 %v3870, %v3917
    %v3942 = vmul.f32 %v3871, %v3917
    %v3943 = vmul.f32 %v3872, %v3917
    %v3944 = vmul.f32 %v3873, %v3917
    %v3945 = vmul.f32 %v3874, %v3917
    %v3946 = vmul.f32 %v3875, %v3917
    %v3947 = vmul.f32 %v3876, %v3917
    %v3948 = vmul.f32 %v3877, %v3917
    %v3949 = vmul.f32 %v3878, %v3917
    %v3950 = vmul.f32 %v3879, %v3917
    %v3951 = vmul.f32 %v3880, %v3917
    %v3952 = vmul.f32 %v3881, %v3917
    %v3953 = vmul.f32 %v3882, %v3917
    %v3954 = vmul.f32 %v3883, %v3917
    %v3955 = vmul.f32 %v3884, %v3917
    %v3956 = vmul.f32 %v3885, %v3917
    %v3957 = vmul.f32 %v3886, %v3917
    %v3958 = vmul.f32 %v3887, %v3917
    %v3959 = vmul.f32 %v3888, %v3917
    %v3960 = vmul.f32 %v3889, %v3917
    %v3961 = vmul.f32 %v3890, %v3917
    %v3962 = vmul.f32 %v3891, %v3917
    %v3963 = vmul.f32 %v3892, %v3917
    %v3964 = vmul.f32 %v3893, %v3917
    %v3965 = vmul.f32 %v3894, %v3917
    %v3966 = vmul.f32 %v3895, %v3917
    %v3967 = vmul.f32 %v3896, %v3917
    %v3968 = vmul.f32 %v3897, %v3917
    %v3969 = vmul.f32 %v3898, %v3917
    %v3970 = vmul.f32 %v3899, %v3917
    %v3971 = vmul.f32 %v3900, %v3917
    %v3972 = vmul.f32 %v3901, %v3917
    %v3973 = vmul.f32 %v3902, %v3917
    %v3974 = vmul.f32 %v3903, %v3917
    %v3975 = vmul.f32 %v3904, %v3917
    %v3976 = vmul.f32 %v3905, %v3917
    %v3977 = vmul.f32 %v3906, %v3917
    %v3978 = vmul.f32 %v3907, %v3917
    %v3979 = vmul.f32 %v3908, %v3917
    %v3980 = vmul.f32 %v3909, %v3917
    %v3981 = vmul.f32 %v3910, %v3917
    %v3982 = vmul.f32 %v3911, %v3917
    %v3983 = vld [vmem:[%s4] sm:$0x1]
    %v3985 = vlaneseq
    %v3986 = vshrl.u32 %v3985, 7
    %v3987 = vsub.s32 0, %v3986
    %v3988 = vrot.slane %v3983, %v3987
    %v3990 = vadd.f32 %v3919, %v3988
    %v3991 = vadd.f32 %v3920, %v3988
    %v3992 = vadd.f32 %v3921, %v3988
    %v3993 = vadd.f32 %v3922, %v3988
    %v3994 = vadd.f32 %v3923, %v3988
    %v3995 = vadd.f32 %v3924, %v3988
    %v3996 = vadd.f32 %v3925, %v3988
    %v3997 = vadd.f32 %v3926, %v3988
    %v3998 = vadd.f32 %v3927, %v3988
    %v3999 = vadd.f32 %v3928, %v3988
    %v4000 = vadd.f32 %v3929, %v3988
    %v4001 = vadd.f32 %v3930, %v3988
    %v4002 = vadd.f32 %v3931, %v3988
    %v4003 = vadd.f32 %v3932, %v3988
    %v4004 = vadd.f32 %v3933, %v3988
    %v4005 = vadd.f32 %v3934, %v3988
    %v4006 = vadd.f32 %v3935, %v3988
    %v4007 = vadd.f32 %v3936, %v3988
    %v4008 = vadd.f32 %v3937, %v3988
    %v4009 = vadd.f32 %v3938, %v3988
    %v4010 = vadd.f32 %v3939, %v3988
    %v4011 = vadd.f32 %v3940, %v3988
    %v4012 = vadd.f32 %v3941, %v3988
    %v4013 = vadd.f32 %v3942, %v3988
    %v4014 = vadd.f32 %v3943, %v3988
    %v4015 = vadd.f32 %v3944, %v3988
    %v4016 = vadd.f32 %v3945, %v3988
    %v4017 = vadd.f32 %v3946, %v3988
    %v4018 = vadd.f32 %v3947, %v3988
    %v4019 = vadd.f32 %v3948, %v3988
    %v4020 = vadd.f32 %v3949, %v3988
    %v4021 = vadd.f32 %v3950, %v3988
    %v4022 = vadd.f32 %v3951, %v3988
    %v4023 = vadd.f32 %v3952, %v3988
    %v4024 = vadd.f32 %v3953, %v3988
    %v4025 = vadd.f32 %v3954, %v3988
    %v4026 = vadd.f32 %v3955, %v3988
    %v4027 = vadd.f32 %v3956, %v3988
    %v4028 = vadd.f32 %v3957, %v3988
    %v4029 = vadd.f32 %v3958, %v3988
    %v4030 = vadd.f32 %v3959, %v3988
    %v4031 = vadd.f32 %v3960, %v3988
    %v4032 = vadd.f32 %v3961, %v3988
    %v4033 = vadd.f32 %v3962, %v3988
    %v4034 = vadd.f32 %v3963, %v3988
    %v4035 = vadd.f32 %v3964, %v3988
    %v4036 = vadd.f32 %v3965, %v3988
    %v4037 = vadd.f32 %v3966, %v3988
    %v4038 = vadd.f32 %v3967, %v3988
    %v4039 = vadd.f32 %v3968, %v3988
    %v4040 = vadd.f32 %v3969, %v3988
    %v4041 = vadd.f32 %v3970, %v3988
    %v4042 = vadd.f32 %v3971, %v3988
    %v4043 = vadd.f32 %v3972, %v3988
    %v4044 = vadd.f32 %v3973, %v3988
    %v4045 = vadd.f32 %v3974, %v3988
    %v4046 = vadd.f32 %v3975, %v3988
    %v4047 = vadd.f32 %v3976, %v3988
    %v4048 = vadd.f32 %v3977, %v3988
    %v4049 = vadd.f32 %v3978, %v3988
    %v4050 = vadd.f32 %v3979, %v3988
    %v4051 = vadd.f32 %v3980, %v3988
    %v4052 = vadd.f32 %v3981, %v3988
    %v4053 = vadd.f32 %v3982, %v3988
    %v4054 = vmax.f32 %v3990, 0.0
    %v4055 = vmax.f32 %v3991, 0.0
    %v4056 = vmax.f32 %v3992, 0.0
    %v4057 = vmax.f32 %v3993, 0.0
    %v4058 = vmax.f32 %v3994, 0.0
    %v4059 = vmax.f32 %v3995, 0.0
    %v4060 = vmax.f32 %v3996, 0.0
    %v4061 = vmax.f32 %v3997, 0.0
    %v4062 = vmax.f32 %v3998, 0.0
    %v4063 = vmax.f32 %v3999, 0.0
    %v4064 = vmax.f32 %v4000, 0.0
    %v4065 = vmax.f32 %v4001, 0.0
    %v4066 = vmax.f32 %v4002, 0.0
    %v4067 = vmax.f32 %v4003, 0.0
    %v4068 = vmax.f32 %v4004, 0.0
    %v4069 = vmax.f32 %v4005, 0.0
    %v4070 = vmax.f32 %v4006, 0.0
    %v4071 = vmax.f32 %v4007, 0.0
    %v4072 = vmax.f32 %v4008, 0.0
    %v4073 = vmax.f32 %v4009, 0.0
    %v4074 = vmax.f32 %v4010, 0.0
    %v4075 = vmax.f32 %v4011, 0.0
    %v4076 = vmax.f32 %v4012, 0.0
    %v4077 = vmax.f32 %v4013, 0.0
    %v4078 = vmax.f32 %v4014, 0.0
    %v4079 = vmax.f32 %v4015, 0.0
    %v4080 = vmax.f32 %v4016, 0.0
    %v4081 = vmax.f32 %v4017, 0.0
    %v4082 = vmax.f32 %v4018, 0.0
    %v4083 = vmax.f32 %v4019, 0.0
    %v4084 = vmax.f32 %v4020, 0.0
    %v4085 = vmax.f32 %v4021, 0.0
    %v4086 = vmax.f32 %v4022, 0.0
    %v4087 = vmax.f32 %v4023, 0.0
    %v4088 = vmax.f32 %v4024, 0.0
    %v4089 = vmax.f32 %v4025, 0.0
    %v4090 = vmax.f32 %v4026, 0.0
    %v4091 = vmax.f32 %v4027, 0.0
    %v4092 = vmax.f32 %v4028, 0.0
    %v4093 = vmax.f32 %v4029, 0.0
    %v4094 = vmax.f32 %v4030, 0.0
    %v4095 = vmax.f32 %v4031, 0.0
    %v4096 = vmax.f32 %v4032, 0.0
    %v4097 = vmax.f32 %v4033, 0.0
    %v4098 = vmax.f32 %v4034, 0.0
    %v4099 = vmax.f32 %v4035, 0.0
    %v4100 = vmax.f32 %v4036, 0.0
    %v4101 = vmax.f32 %v4037, 0.0
    %v4102 = vmax.f32 %v4038, 0.0
    %v4103 = vmax.f32 %v4039, 0.0
    %v4104 = vmax.f32 %v4040, 0.0
    %v4105 = vmax.f32 %v4041, 0.0
    %v4106 = vmax.f32 %v4042, 0.0
    %v4107 = vmax.f32 %v4043, 0.0
    %v4108 = vmax.f32 %v4044, 0.0
    %v4109 = vmax.f32 %v4045, 0.0
    %v4110 = vmax.f32 %v4046, 0.0
    %v4111 = vmax.f32 %v4047, 0.0
    %v4112 = vmax.f32 %v4048, 0.0
    %v4113 = vmax.f32 %v4049, 0.0
    %v4114 = vmax.f32 %v4050, 0.0
    %v4115 = vmax.f32 %v4051, 0.0
    %v4116 = vmax.f32 %v4052, 0.0
    %v4117 = vmax.f32 %v4053, 0.0
    %v4182 = vrot.slane %v4054, 7
    %v4183 = vrot.slane %v4055, 7
    %v4184 = vsel %vm174, %v4182, %v4183
    %v4185 = vrot.slane %v4056, 7
    %v4186 = vrot.slane %v4057, 7
    %v4187 = vsel %vm174, %v4185, %v4186
    %v4188 = vrot.slane %v4058, 7
    %v4189 = vrot.slane %v4059, 7
    %v4190 = vsel %vm174, %v4188, %v4189
    %v4191 = vrot.slane %v4060, 7
    %v4192 = vrot.slane %v4061, 7
    %v4193 = vsel %vm174, %v4191, %v4192
    %v4194 = vrot.slane %v4062, 7
    %v4195 = vrot.slane %v4063, 7
    %v4196 = vsel %vm174, %v4194, %v4195
    %v4197 = vrot.slane %v4064, 7
    %v4198 = vrot.slane %v4065, 7
    %v4199 = vsel %vm174, %v4197, %v4198
    %v4200 = vrot.slane %v4066, 7
    %v4201 = vrot.slane %v4067, 7
    %v4202 = vsel %vm174, %v4200, %v4201
    %v4203 = vrot.slane %v4068, 7
    %v4204 = vrot.slane %v4069, 7
    %v4205 = vsel %vm174, %v4203, %v4204
    %v4206 = vrot.slane %v4070, 7
    %v4207 = vrot.slane %v4071, 7
    %v4208 = vsel %vm174, %v4206, %v4207
    %v4209 = vrot.slane %v4072, 7
    %v4210 = vrot.slane %v4073, 7
    %v4211 = vsel %vm174, %v4209, %v4210
    %v4212 = vrot.slane %v4074, 7
    %v4213 = vrot.slane %v4075, 7
    %v4214 = vsel %vm174, %v4212, %v4213
    %v4215 = vrot.slane %v4076, 7
    %v4216 = vrot.slane %v4077, 7
    %v4217 = vsel %vm174, %v4215, %v4216
    %v4218 = vrot.slane %v4078, 7
    %v4219 = vrot.slane %v4079, 7
    %v4220 = vsel %vm174, %v4218, %v4219
    %v4221 = vrot.slane %v4080, 7
    %v4222 = vrot.slane %v4081, 7
    %v4223 = vsel %vm174, %v4221, %v4222
    %v4224 = vrot.slane %v4082, 7
    %v4225 = vrot.slane %v4083, 7
    %v4226 = vsel %vm174, %v4224, %v4225
    %v4227 = vrot.slane %v4084, 7
    %v4228 = vrot.slane %v4085, 7
    %v4229 = vsel %vm174, %v4227, %v4228
    %v4230 = vrot.slane %v4086, 7
    %v4231 = vrot.slane %v4087, 7
    %v4232 = vsel %vm174, %v4230, %v4231
    %v4233 = vrot.slane %v4088, 7
    %v4234 = vrot.slane %v4089, 7
    %v4235 = vsel %vm174, %v4233, %v4234
    %v4236 = vrot.slane %v4090, 7
    %v4237 = vrot.slane %v4091, 7
    %v4238 = vsel %vm174, %v4236, %v4237
    %v4239 = vrot.slane %v4092, 7
    %v4240 = vrot.slane %v4093, 7
    %v4241 = vsel %vm174, %v4239, %v4240
    %v4242 = vrot.slane %v4094, 7
    %v4243 = vrot.slane %v4095, 7
    %v4244 = vsel %vm174, %v4242, %v4243
    %v4245 = vrot.slane %v4096, 7
    %v4246 = vrot.slane %v4097, 7
    %v4247 = vsel %vm174, %v4245, %v4246
    %v4248 = vrot.slane %v4098, 7
    %v4249 = vrot.slane %v4099, 7
    %v4250 = vsel %vm174, %v4248, %v4249
    %v4251 = vrot.slane %v4100, 7
    %v4252 = vrot.slane %v4101, 7
    %v4253 = vsel %vm174, %v4251, %v4252
    %v4254 = vrot.slane %v4102, 7
    %v4255 = vrot.slane %v4103, 7
    %v4256 = vsel %vm174, %v4254, %v4255
    %v4257 = vrot.slane %v4104, 7
    %v4258 = vrot.slane %v4105, 7
    %v4259 = vsel %vm174, %v4257, %v4258
    %v4260 = vrot.slane %v4106, 7
    %v4261 = vrot.slane %v4107, 7
    %v4262 = vsel %vm174, %v4260, %v4261
    %v4263 = vrot.slane %v4108, 7
    %v4264 = vrot.slane %v4109, 7
    %v4265 = vsel %vm174, %v4263, %v4264
    %v4266 = vrot.slane %v4110, 7
    %v4267 = vrot.slane %v4111, 7
    %v4268 = vsel %vm174, %v4266, %v4267
    %v4269 = vrot.slane %v4112, 7
    %v4270 = vrot.slane %v4113, 7
    %v4271 = vsel %vm174, %v4269, %v4270
    %v4272 = vrot.slane %v4114, 7
    %v4273 = vrot.slane %v4115, 7
    %v4274 = vsel %vm174, %v4272, %v4273
    %v4275 = vrot.slane %v4116, 7
    %v4276 = vrot.slane %v4117, 7
    %v4277 = vsel %vm174, %v4275, %v4276
    %v4372 = vsel %vm174, 0.0, %v4182
    %v4373 = vsel %vm174, 0.0, %v4185
    %v4374 = vsel %vm174, 0.0, %v4188
    %v4375 = vsel %vm174, 0.0, %v4191
    %v4376 = vsel %vm174, 0.0, %v4194
    %v4377 = vsel %vm174, 0.0, %v4197
    %v4378 = vsel %vm174, 0.0, %v4200
    %v4379 = vsel %vm174, 0.0, %v4203
    %v4380 = vsel %vm174, 0.0, %v4206
    %v4381 = vsel %vm174, 0.0, %v4209
    %v4382 = vsel %vm174, 0.0, %v4212
    %v4383 = vsel %vm174, 0.0, %v4215
    %v4384 = vsel %vm174, 0.0, %v4218
    %v4385 = vsel %vm174, 0.0, %v4221
    %v4386 = vsel %vm174, 0.0, %v4224
    %v4387 = vsel %vm174, 0.0, %v4227
    %v4388 = vsel %vm174, 0.0, %v4230
    %v4389 = vsel %vm174, 0.0, %v4233
    %v4390 = vsel %vm174, 0.0, %v4236
    %v4391 = vsel %vm174, 0.0, %v4239
    %v4392 = vsel %vm174, 0.0, %v4242
    %v4393 = vsel %vm174, 0.0, %v4245
    %v4394 = vsel %vm174, 0.0, %v4248
    %v4395 = vsel %vm174, 0.0, %v4251
    %v4396 = vsel %vm174, 0.0, %v4254
    %v4397 = vsel %vm174, 0.0, %v4257
    %v4398 = vsel %vm174, 0.0, %v4260
    %v4399 = vsel %vm174, 0.0, %v4263
    %v4400 = vsel %vm174, 0.0, %v4266
    %v4401 = vsel %vm174, 0.0, %v4269
    %v4402 = vsel %vm174, 0.0, %v4272
    %v4403 = vsel %vm174, 0.0, %v4275
    %v4404 = vsel %vm174, %v4183, 0.0
    %v4405 = vsel %vm174, %v4186, 0.0
    %v4406 = vsel %vm174, %v4189, 0.0
    %v4407 = vsel %vm174, %v4192, 0.0
    %v4408 = vsel %vm174, %v4195, 0.0
    %v4409 = vsel %vm174, %v4198, 0.0
    %v4410 = vsel %vm174, %v4201, 0.0
    %v4411 = vsel %vm174, %v4204, 0.0
    %v4412 = vsel %vm174, %v4207, 0.0
    %v4413 = vsel %vm174, %v4210, 0.0
    %v4414 = vsel %vm174, %v4213, 0.0
    %v4415 = vsel %vm174, %v4216, 0.0
    %v4416 = vsel %vm174, %v4219, 0.0
    %v4417 = vsel %vm174, %v4222, 0.0
    %v4418 = vsel %vm174, %v4225, 0.0
    %v4419 = vsel %vm174, %v4228, 0.0
    %v4420 = vsel %vm174, %v4231, 0.0
    %v4421 = vsel %vm174, %v4234, 0.0
    %v4422 = vsel %vm174, %v4237, 0.0
    %v4423 = vsel %vm174, %v4240, 0.0
    %v4424 = vsel %vm174, %v4243, 0.0
    %v4425 = vsel %vm174, %v4246, 0.0
    %v4426 = vsel %vm174, %v4249, 0.0
    %v4427 = vsel %vm174, %v4252, 0.0
    %v4428 = vsel %vm174, %v4255, 0.0
    %v4429 = vsel %vm174, %v4258, 0.0
    %v4430 = vsel %vm174, %v4261, 0.0
    %v4431 = vsel %vm174, %v4264, 0.0
    %v4432 = vsel %vm174, %v4267, 0.0
    %v4433 = vsel %vm174, %v4270, 0.0
    %v4434 = vsel %vm174, %v4273, 0.0
    %v4435 = vsel %vm174, %v4276, 0.0
    %v4496 = vrot.slane %v4372, 1
    %v4497 = vrot.slane %v4184, 1
    %v4498 = vsel %vm497, %v4496, %v4497
    %v4499 = vrot.slane %v4404, 1
    %v4500 = vsel %vm497, %v4497, %v4499
    %v4501 = vrot.slane %v4373, 1
    %v4502 = vrot.slane %v4187, 1
    %v4503 = vsel %vm497, %v4501, %v4502
    %v4504 = vrot.slane %v4405, 1
    %v4505 = vsel %vm497, %v4502, %v4504
    %v4506 = vrot.slane %v4374, 1
    %v4507 = vrot.slane %v4190, 1
    %v4508 = vsel %vm497, %v4506, %v4507
    %v4509 = vrot.slane %v4406, 1
    %v4510 = vsel %vm497, %v4507, %v4509
    %v4511 = vrot.slane %v4375, 1
    %v4512 = vrot.slane %v4193, 1
    %v4513 = vsel %vm497, %v4511, %v4512
    %v4514 = vrot.slane %v4407, 1
    %v4515 = vsel %vm497, %v4512, %v4514
    %v4516 = vrot.slane %v4376, 1
    %v4517 = vrot.slane %v4196, 1
    %v4518 = vsel %vm497, %v4516, %v4517
    %v4519 = vrot.slane %v4408, 1
    %v4520 = vsel %vm497, %v4517, %v4519
    %v4521 = vrot.slane %v4377, 1
    %v4522 = vrot.slane %v4199, 1
    %v4523 = vsel %vm497, %v4521, %v4522
    %v4524 = vrot.slane %v4409, 1
    %v4525 = vsel %vm497, %v4522, %v4524
    %v4526 = vrot.slane %v4378, 1
    %v4527 = vrot.slane %v4202, 1
    %v4528 = vsel %vm497, %v4526, %v4527
    %v4529 = vrot.slane %v4410, 1
    %v4530 = vsel %vm497, %v4527, %v4529
    %v4531 = vrot.slane %v4379, 1
    %v4532 = vrot.slane %v4205, 1
    %v4533 = vsel %vm497, %v4531, %v4532
    %v4534 = vrot.slane %v4411, 1
    %v4535 = vsel %vm497, %v4532, %v4534
    %v4536 = vrot.slane %v4380, 1
    %v4537 = vrot.slane %v4208, 1
    %v4538 = vsel %vm497, %v4536, %v4537
    %v4539 = vrot.slane %v4412, 1
    %v4540 = vsel %vm497, %v4537, %v4539
    %v4541 = vrot.slane %v4381, 1
    %v4542 = vrot.slane %v4211, 1
    %v4543 = vsel %vm497, %v4541, %v4542
    %v4544 = vrot.slane %v4413, 1
    %v4545 = vsel %vm497, %v4542, %v4544
    %v4546 = vrot.slane %v4382, 1
    %v4547 = vrot.slane %v4214, 1
    %v4548 = vsel %vm497, %v4546, %v4547
    %v4549 = vrot.slane %v4414, 1
    %v4550 = vsel %vm497, %v4547, %v4549
    %v4551 = vrot.slane %v4383, 1
    %v4552 = vrot.slane %v4217, 1
    %v4553 = vsel %vm497, %v4551, %v4552
    %v4554 = vrot.slane %v4415, 1
    %v4555 = vsel %vm497, %v4552, %v4554
    %v4556 = vrot.slane %v4384, 1
    %v4557 = vrot.slane %v4220, 1
    %v4558 = vsel %vm497, %v4556, %v4557
    %v4559 = vrot.slane %v4416, 1
    %v4560 = vsel %vm497, %v4557, %v4559
    %v4561 = vrot.slane %v4385, 1
    %v4562 = vrot.slane %v4223, 1
    %v4563 = vsel %vm497, %v4561, %v4562
    %v4564 = vrot.slane %v4417, 1
    %v4565 = vsel %vm497, %v4562, %v4564
    %v4566 = vrot.slane %v4386, 1
    %v4567 = vrot.slane %v4226, 1
    %v4568 = vsel %vm497, %v4566, %v4567
    %v4569 = vrot.slane %v4418, 1
    %v4570 = vsel %vm497, %v4567, %v4569
    %v4571 = vrot.slane %v4388, 1
    %v4572 = vrot.slane %v4232, 1
    %v4573 = vsel %vm497, %v4571, %v4572
    %v4574 = vrot.slane %v4420, 1
    %v4575 = vsel %vm497, %v4572, %v4574
    %v4576 = vrot.slane %v4389, 1
    %v4577 = vrot.slane %v4235, 1
    %v4578 = vsel %vm497, %v4576, %v4577
    %v4579 = vrot.slane %v4421, 1
    %v4580 = vsel %vm497, %v4577, %v4579
    %v4581 = vrot.slane %v4390, 1
    %v4582 = vrot.slane %v4238, 1
    %v4583 = vsel %vm497, %v4581, %v4582
    %v4584 = vrot.slane %v4422, 1
    %v4585 = vsel %vm497, %v4582, %v4584
    %v4586 = vrot.slane %v4391, 1
    %v4587 = vrot.slane %v4241, 1
    %v4588 = vsel %vm497, %v4586, %v4587
    %v4589 = vrot.slane %v4423, 1
    %v4590 = vsel %vm497, %v4587, %v4589
    %v4591 = vrot.slane %v4392, 1
    %v4592 = vrot.slane %v4244, 1
    %v4593 = vsel %vm497, %v4591, %v4592
    %v4594 = vrot.slane %v4424, 1
    %v4595 = vsel %vm497, %v4592, %v4594
    %v4596 = vrot.slane %v4393, 1
    %v4597 = vrot.slane %v4247, 1
    %v4598 = vsel %vm497, %v4596, %v4597
    %v4599 = vrot.slane %v4425, 1
    %v4600 = vsel %vm497, %v4597, %v4599
    %v4601 = vrot.slane %v4394, 1
    %v4602 = vrot.slane %v4250, 1
    %v4603 = vsel %vm497, %v4601, %v4602
    %v4604 = vrot.slane %v4426, 1
    %v4605 = vsel %vm497, %v4602, %v4604
    %v4606 = vrot.slane %v4395, 1
    %v4607 = vrot.slane %v4253, 1
    %v4608 = vsel %vm497, %v4606, %v4607
    %v4609 = vrot.slane %v4427, 1
    %v4610 = vsel %vm497, %v4607, %v4609
    %v4611 = vrot.slane %v4396, 1
    %v4612 = vrot.slane %v4256, 1
    %v4613 = vsel %vm497, %v4611, %v4612
    %v4614 = vrot.slane %v4428, 1
    %v4615 = vsel %vm497, %v4612, %v4614
    %v4616 = vrot.slane %v4397, 1
    %v4617 = vrot.slane %v4259, 1
    %v4618 = vsel %vm497, %v4616, %v4617
    %v4619 = vrot.slane %v4429, 1
    %v4620 = vsel %vm497, %v4617, %v4619
    %v4621 = vrot.slane %v4398, 1
    %v4622 = vrot.slane %v4262, 1
    %v4623 = vsel %vm497, %v4621, %v4622
    %v4624 = vrot.slane %v4430, 1
    %v4625 = vsel %vm497, %v4622, %v4624
    %v4626 = vrot.slane %v4399, 1
    %v4627 = vrot.slane %v4265, 1
    %v4628 = vsel %vm497, %v4626, %v4627
    %v4629 = vrot.slane %v4431, 1
    %v4630 = vsel %vm497, %v4627, %v4629
    %v4631 = vrot.slane %v4400, 1
    %v4632 = vrot.slane %v4268, 1
    %v4633 = vsel %vm497, %v4631, %v4632
    %v4634 = vrot.slane %v4432, 1
    %v4635 = vsel %vm497, %v4632, %v4634
    %v4636 = vrot.slane %v4401, 1
    %v4637 = vrot.slane %v4271, 1
    %v4638 = vsel %vm497, %v4636, %v4637
    %v4639 = vrot.slane %v4433, 1
    %v4640 = vsel %vm497, %v4637, %v4639
    %v4641 = vrot.slane %v4402, 1
    %v4642 = vrot.slane %v4274, 1
    %v4643 = vsel %vm497, %v4641, %v4642
    %v4644 = vrot.slane %v4434, 1
    %v4645 = vsel %vm497, %v4642, %v4644
    %4646 = vrot.lane.b32.xlu0 %v500, 16
    %v4647 = vpop.permute.xlu0 %4646
    %4648 = vrot.lane.b32.xlu0 %v502, 16
    %v4649 = vpop.permute.xlu0 %4648
    %4650 = vrot.lane.b32.xlu0 %v4498, 16
    %v4651 = vpop.permute.xlu0 %4650
    %4652 = vrot.lane.b32.xlu0 %v4500, 16
    %v4653 = vpop.permute.xlu0 %4652
    %4654 = vrot.lane.b32.xlu0 %v4503, 16
    %v4655 = vpop.permute.xlu0 %4654
    %4656 = vrot.lane.b32.xlu0 %v4505, 16
    %v4657 = vpop.permute.xlu0 %4656
    %4658 = vrot.lane.b32.xlu0 %v4508, 16
    %v4659 = vpop.permute.xlu0 %4658
    %4660 = vrot.lane.b32.xlu0 %v4510, 16
    %v4661 = vpop.permute.xlu0 %4660
    %4662 = vrot.lane.b32.xlu0 %v4513, 16
    %v4663 = vpop.permute.xlu0 %4662
    %4664 = vrot.lane.b32.xlu0 %v4515, 16
    %v4665 = vpop.permute.xlu0 %4664
    %4666 = vrot.lane.b32.xlu0 %v4518, 16
    %v4667 = vpop.permute.xlu0 %4666
    %4668 = vrot.lane.b32.xlu0 %v4520, 16
    %v4669 = vpop.permute.xlu0 %4668
    %4670 = vrot.lane.b32.xlu0 %v4523, 16
    %v4671 = vpop.permute.xlu0 %4670
    %4672 = vrot.lane.b32.xlu0 %v4525, 16
    %v4673 = vpop.permute.xlu0 %4672
    %4674 = vrot.lane.b32.xlu0 %v4528, 16
    %v4675 = vpop.permute.xlu0 %4674
    %4676 = vrot.lane.b32.xlu0 %v4530, 16
    %v4677 = vpop.permute.xlu0 %4676
    %4678 = vrot.lane.b32.xlu0 %v4533, 16
    %v4679 = vpop.permute.xlu0 %4678
    %4680 = vrot.lane.b32.xlu0 %v4535, 16
    %v4681 = vpop.permute.xlu0 %4680
    %4682 = vrot.lane.b32.xlu0 %v4538, 16
    %v4683 = vpop.permute.xlu0 %4682
    %4684 = vrot.lane.b32.xlu0 %v4540, 16
    %v4685 = vpop.permute.xlu0 %4684
    %4686 = vrot.lane.b32.xlu0 %v4543, 16
    %v4687 = vpop.permute.xlu0 %4686
    %4688 = vrot.lane.b32.xlu0 %v4545, 16
    %v4689 = vpop.permute.xlu0 %4688
    %4690 = vrot.lane.b32.xlu0 %v4548, 16
    %v4691 = vpop.permute.xlu0 %4690
    %4692 = vrot.lane.b32.xlu0 %v4550, 16
    %v4693 = vpop.permute.xlu0 %4692
    %4694 = vrot.lane.b32.xlu0 %v4553, 16
    %v4695 = vpop.permute.xlu0 %4694
    %4696 = vrot.lane.b32.xlu0 %v4555, 16
    %v4697 = vpop.permute.xlu0 %4696
    %4698 = vrot.lane.b32.xlu0 %v4558, 16
    %v4699 = vpop.permute.xlu0 %4698
    %4700 = vrot.lane.b32.xlu0 %v4560, 16
    %v4701 = vpop.permute.xlu0 %4700
    %4702 = vrot.lane.b32.xlu0 %v4563, 16
    %v4703 = vpop.permute.xlu0 %4702
    %4704 = vrot.lane.b32.xlu0 %v4565, 16
    %v4705 = vpop.permute.xlu0 %4704
    %4706 = vrot.lane.b32.xlu0 %v4568, 16
    %v4707 = vpop.permute.xlu0 %4706
    %4708 = vrot.lane.b32.xlu0 %v4570, 16
    %v4709 = vpop.permute.xlu0 %4708
    %4710 = vrot.lane.b32.xlu0 %v4573, 16
    %v4711 = vpop.permute.xlu0 %4710
    %4712 = vrot.lane.b32.xlu0 %v4575, 16
    %v4713 = vpop.permute.xlu0 %4712
    %4714 = vrot.lane.b32.xlu0 %v4578, 16
    %v4715 = vpop.permute.xlu0 %4714
    %4716 = vrot.lane.b32.xlu0 %v4580, 16
    %v4717 = vpop.permute.xlu0 %4716
    %4718 = vrot.lane.b32.xlu0 %v4583, 16
    %v4719 = vpop.permute.xlu0 %4718
    %4720 = vrot.lane.b32.xlu0 %v4585, 16
    %v4721 = vpop.permute.xlu0 %4720
    %4722 = vrot.lane.b32.xlu0 %v4588, 16
    %v4723 = vpop.permute.xlu0 %4722
    %4724 = vrot.lane.b32.xlu0 %v4590, 16
    %v4725 = vpop.permute.xlu0 %4724
    %4726 = vrot.lane.b32.xlu0 %v4593, 16
    %v4727 = vpop.permute.xlu0 %4726
    %4728 = vrot.lane.b32.xlu0 %v4595, 16
    %v4729 = vpop.permute.xlu0 %4728
    %4730 = vrot.lane.b32.xlu0 %v4598, 16
    %v4731 = vpop.permute.xlu0 %4730
    %4732 = vrot.lane.b32.xlu0 %v4600, 16
    %v4733 = vpop.permute.xlu0 %4732
    %4734 = vrot.lane.b32.xlu0 %v4603, 16
    %v4735 = vpop.permute.xlu0 %4734
    %4736 = vrot.lane.b32.xlu0 %v4605, 16
    %v4737 = vpop.permute.xlu0 %4736
    %4738 = vrot.lane.b32.xlu0 %v4608, 16
    %v4739 = vpop.permute.xlu0 %4738
    %4740 = vrot.lane.b32.xlu0 %v4610, 16
    %v4741 = vpop.permute.xlu0 %4740
    %4742 = vrot.lane.b32.xlu0 %v4613, 16
    %v4743 = vpop.permute.xlu0 %4742
    %4744 = vrot.lane.b32.xlu0 %v4615, 16
    %v4745 = vpop.permute.xlu0 %4744
    %4746 = vrot.lane.b32.xlu0 %v4618, 16
    %v4747 = vpop.permute.xlu0 %4746
    %4748 = vrot.lane.b32.xlu0 %v4620, 16
    %v4749 = vpop.permute.xlu0 %4748
    %4750 = vrot.lane.b32.xlu0 %v4623, 16
    %v4751 = vpop.permute.xlu0 %4750
    %4752 = vrot.lane.b32.xlu0 %v4625, 16
    %v4753 = vpop.permute.xlu0 %4752
    %4754 = vrot.lane.b32.xlu0 %v4628, 16
    %v4755 = vpop.permute.xlu0 %4754
    %4756 = vrot.lane.b32.xlu0 %v4630, 16
    %v4757 = vpop.permute.xlu0 %4756
    %4758 = vrot.lane.b32.xlu0 %v4633, 16
    %v4759 = vpop.permute.xlu0 %4758
    %4760 = vrot.lane.b32.xlu0 %v4635, 16
    %v4761 = vpop.permute.xlu0 %4760
    %4762 = vrot.lane.b32.xlu0 %v4638, 16
    %v4763 = vpop.permute.xlu0 %4762
    %4764 = vrot.lane.b32.xlu0 %v4640, 16
    %v4765 = vpop.permute.xlu0 %4764
    %4766 = vrot.lane.b32.xlu0 %v4643, 16
    %v4767 = vpop.permute.xlu0 %4766
    %4768 = vrot.lane.b32.xlu0 %v4645, 16
    %v4769 = vpop.permute.xlu0 %4768
    %v4832 = vrot.slane %v4372, 2
    %v4833 = vrot.slane %v4184, 2
    %v4834 = vsel %vm839, %v4832, %v4833
    %v4835 = vrot.slane %v4404, 2
    %v4836 = vsel %vm839, %v4833, %v4835
    %v4837 = vrot.slane %v4373, 2
    %v4838 = vrot.slane %v4187, 2
    %v4839 = vsel %vm839, %v4837, %v4838
    %v4840 = vrot.slane %v4405, 2
    %v4841 = vsel %vm839, %v4838, %v4840
    %v4842 = vrot.slane %v4374, 2
    %v4843 = vrot.slane %v4190, 2
    %v4844 = vsel %vm839, %v4842, %v4843
    %v4845 = vrot.slane %v4406, 2
    %v4846 = vsel %vm839, %v4843, %v4845
    %v4847 = vrot.slane %v4375, 2
    %v4848 = vrot.slane %v4193, 2
    %v4849 = vsel %vm839, %v4847, %v4848
    %v4850 = vrot.slane %v4407, 2
    %v4851 = vsel %vm839, %v4848, %v4850
    %v4852 = vrot.slane %v4376, 2
    %v4853 = vrot.slane %v4196, 2
    %v4854 = vsel %vm839, %v4852, %v4853
    %v4855 = vrot.slane %v4408, 2
    %v4856 = vsel %vm839, %v4853, %v4855
    %v4857 = vrot.slane %v4377, 2
    %v4858 = vrot.slane %v4199, 2
    %v4859 = vsel %vm839, %v4857, %v4858
    %v4860 = vrot.slane %v4409, 2
    %v4861 = vsel %vm839, %v4858, %v4860
    %v4862 = vrot.slane %v4378, 2
    %v4863 = vrot.slane %v4202, 2
    %v4864 = vsel %vm839, %v4862, %v4863
    %v4865 = vrot.slane %v4410, 2
    %v4866 = vsel %vm839, %v4863, %v4865
    %v4867 = vrot.slane %v4379, 2
    %v4868 = vrot.slane %v4205, 2
    %v4869 = vsel %vm839, %v4867, %v4868
    %v4870 = vrot.slane %v4411, 2
    %v4871 = vsel %vm839, %v4868, %v4870
    %v4872 = vrot.slane %v4380, 2
    %v4873 = vrot.slane %v4208, 2
    %v4874 = vsel %vm839, %v4872, %v4873
    %v4875 = vrot.slane %v4412, 2
    %v4876 = vsel %vm839, %v4873, %v4875
    %v4877 = vrot.slane %v4381, 2
    %v4878 = vrot.slane %v4211, 2
    %v4879 = vsel %vm839, %v4877, %v4878
    %v4880 = vrot.slane %v4413, 2
    %v4881 = vsel %vm839, %v4878, %v4880
    %v4882 = vrot.slane %v4382, 2
    %v4883 = vrot.slane %v4214, 2
    %v4884 = vsel %vm839, %v4882, %v4883
    %v4885 = vrot.slane %v4414, 2
    %v4886 = vsel %vm839, %v4883, %v4885
    %v4887 = vrot.slane %v4383, 2
    %v4888 = vrot.slane %v4217, 2
    %v4889 = vsel %vm839, %v4887, %v4888
    %v4890 = vrot.slane %v4415, 2
    %v4891 = vsel %vm839, %v4888, %v4890
    %v4892 = vrot.slane %v4384, 2
    %v4893 = vrot.slane %v4220, 2
    %v4894 = vsel %vm839, %v4892, %v4893
    %v4895 = vrot.slane %v4416, 2
    %v4896 = vsel %vm839, %v4893, %v4895
    %v4897 = vrot.slane %v4385, 2
    %v4898 = vrot.slane %v4223, 2
    %v4899 = vsel %vm839, %v4897, %v4898
    %v4900 = vrot.slane %v4417, 2
    %v4901 = vsel %vm839, %v4898, %v4900
    %v4902 = vrot.slane %v4386, 2
    %v4903 = vrot.slane %v4226, 2
    %v4904 = vsel %vm839, %v4902, %v4903
    %v4905 = vrot.slane %v4418, 2
    %v4906 = vsel %vm839, %v4903, %v4905
    %v4907 = vrot.slane %v4388, 2
    %v4908 = vrot.slane %v4232, 2
    %v4909 = vsel %vm839, %v4907, %v4908
    %v4910 = vrot.slane %v4420, 2
    %v4911 = vsel %vm839, %v4908, %v4910
    %v4912 = vrot.slane %v4389, 2
    %v4913 = vrot.slane %v4235, 2
    %v4914 = vsel %vm839, %v4912, %v4913
    %v4915 = vrot.slane %v4421, 2
    %v4916 = vsel %vm839, %v4913, %v4915
    %v4917 = vrot.slane %v4390, 2
    %v4918 = vrot.slane %v4238, 2
    %v4919 = vsel %vm839, %v4917, %v4918
    %v4920 = vrot.slane %v4422, 2
    %v4921 = vsel %vm839, %v4918, %v4920
    %v4922 = vrot.slane %v4391, 2
    %v4923 = vrot.slane %v4241, 2
    %v4924 = vsel %vm839, %v4922, %v4923
    %v4925 = vrot.slane %v4423, 2
    %v4926 = vsel %vm839, %v4923, %v4925
    %v4927 = vrot.slane %v4392, 2
    %v4928 = vrot.slane %v4244, 2
    %v4929 = vsel %vm839, %v4927, %v4928
    %v4930 = vrot.slane %v4424, 2
    %v4931 = vsel %vm839, %v4928, %v4930
    %v4932 = vrot.slane %v4393, 2
    %v4933 = vrot.slane %v4247, 2
    %v4934 = vsel %vm839, %v4932, %v4933
    %v4935 = vrot.slane %v4425, 2
    %v4936 = vsel %vm839, %v4933, %v4935
    %v4937 = vrot.slane %v4394, 2
    %v4938 = vrot.slane %v4250, 2
    %v4939 = vsel %vm839, %v4937, %v4938
    %v4940 = vrot.slane %v4426, 2
    %v4941 = vsel %vm839, %v4938, %v4940
    %v4942 = vrot.slane %v4395, 2
    %v4943 = vrot.slane %v4253, 2
    %v4944 = vsel %vm839, %v4942, %v4943
    %v4945 = vrot.slane %v4427, 2
    %v4946 = vsel %vm839, %v4943, %v4945
    %v4947 = vrot.slane %v4396, 2
    %v4948 = vrot.slane %v4256, 2
    %v4949 = vsel %vm839, %v4947, %v4948
    %v4950 = vrot.slane %v4428, 2
    %v4951 = vsel %vm839, %v4948, %v4950
    %v4952 = vrot.slane %v4397, 2
    %v4953 = vrot.slane %v4259, 2
    %v4954 = vsel %vm839, %v4952, %v4953
    %v4955 = vrot.slane %v4429, 2
    %v4956 = vsel %vm839, %v4953, %v4955
    %v4957 = vrot.slane %v4398, 2
    %v4958 = vrot.slane %v4262, 2
    %v4959 = vsel %vm839, %v4957, %v4958
    %v4960 = vrot.slane %v4430, 2
    %v4961 = vsel %vm839, %v4958, %v4960
    %v4962 = vrot.slane %v4399, 2
    %v4963 = vrot.slane %v4265, 2
    %v4964 = vsel %vm839, %v4962, %v4963
    %v4965 = vrot.slane %v4431, 2
    %v4966 = vsel %vm839, %v4963, %v4965
    %v4967 = vrot.slane %v4400, 2
    %v4968 = vrot.slane %v4268, 2
    %v4969 = vsel %vm839, %v4967, %v4968
    %v4970 = vrot.slane %v4432, 2
    %v4971 = vsel %vm839, %v4968, %v4970
    %v4972 = vrot.slane %v4401, 2
    %v4973 = vrot.slane %v4271, 2
    %v4974 = vsel %vm839, %v4972, %v4973
    %v4975 = vrot.slane %v4433, 2
    %v4976 = vsel %vm839, %v4973, %v4975
    %v4977 = vrot.slane %v4402, 2
    %v4978 = vrot.slane %v4274, 2
    %v4979 = vsel %vm839, %v4977, %v4978
    %v4980 = vrot.slane %v4434, 2
    %v4981 = vsel %vm839, %v4978, %v4980
    %4982 = vrot.lane.b32.xlu0 %v4834, 32
    %v4983 = vpop.permute.xlu0 %4982
    %4984 = vrot.lane.b32.xlu0 %v4836, 32
    %v4985 = vpop.permute.xlu0 %4984
    %4986 = vrot.lane.b32.xlu0 %v4839, 32
    %v4987 = vpop.permute.xlu0 %4986
    %4988 = vrot.lane.b32.xlu0 %v4841, 32
    %v4989 = vpop.permute.xlu0 %4988
    %4990 = vrot.lane.b32.xlu0 %v4844, 32
    %v4991 = vpop.permute.xlu0 %4990
    %4992 = vrot.lane.b32.xlu0 %v4846, 32
    %v4993 = vpop.permute.xlu0 %4992
    %4994 = vrot.lane.b32.xlu0 %v4849, 32
    %v4995 = vpop.permute.xlu0 %4994
    %4996 = vrot.lane.b32.xlu0 %v4851, 32
    %v4997 = vpop.permute.xlu0 %4996
    %4998 = vrot.lane.b32.xlu0 %v4854, 32
    %v4999 = vpop.permute.xlu0 %4998
    %5000 = vrot.lane.b32.xlu0 %v4856, 32
    %v5001 = vpop.permute.xlu0 %5000
    %5002 = vrot.lane.b32.xlu0 %v4859, 32
    %v5003 = vpop.permute.xlu0 %5002
    %5004 = vrot.lane.b32.xlu0 %v4861, 32
    %v5005 = vpop.permute.xlu0 %5004
    %5006 = vrot.lane.b32.xlu0 %v4864, 32
    %v5007 = vpop.permute.xlu0 %5006
    %5008 = vrot.lane.b32.xlu0 %v4866, 32
    %v5009 = vpop.permute.xlu0 %5008
    %5010 = vrot.lane.b32.xlu0 %v4869, 32
    %v5011 = vpop.permute.xlu0 %5010
    %5012 = vrot.lane.b32.xlu0 %v4871, 32
    %v5013 = vpop.permute.xlu0 %5012
    %5014 = vrot.lane.b32.xlu0 %v4874, 32
    %v5015 = vpop.permute.xlu0 %5014
    %5016 = vrot.lane.b32.xlu0 %v4876, 32
    %v5017 = vpop.permute.xlu0 %5016
    %5018 = vrot.lane.b32.xlu0 %v4879, 32
    %v5019 = vpop.permute.xlu0 %5018
    %5020 = vrot.lane.b32.xlu0 %v4881, 32
    %v5021 = vpop.permute.xlu0 %5020
    %5022 = vrot.lane.b32.xlu0 %v4884, 32
    %v5023 = vpop.permute.xlu0 %5022
    %5024 = vrot.lane.b32.xlu0 %v4886, 32
    %v5025 = vpop.permute.xlu0 %5024
    %5026 = vrot.lane.b32.xlu0 %v4889, 32
    %v5027 = vpop.permute.xlu0 %5026
    %5028 = vrot.lane.b32.xlu0 %v4891, 32
    %v5029 = vpop.permute.xlu0 %5028
    %5030 = vrot.lane.b32.xlu0 %v4894, 32
    %v5031 = vpop.permute.xlu0 %5030
    %5032 = vrot.lane.b32.xlu0 %v4896, 32
    %v5033 = vpop.permute.xlu0 %5032
    %5034 = vrot.lane.b32.xlu0 %v4899, 32
    %v5035 = vpop.permute.xlu0 %5034
    %5036 = vrot.lane.b32.xlu0 %v4901, 32
    %v5037 = vpop.permute.xlu0 %5036
    %5038 = vrot.lane.b32.xlu0 %v4904, 32
    %v5039 = vpop.permute.xlu0 %5038
    %5040 = vrot.lane.b32.xlu0 %v4906, 32
    %v5041 = vpop.permute.xlu0 %5040
    %5042 = vrot.lane.b32.xlu0 %v4909, 32
    %v5043 = vpop.permute.xlu0 %5042
    %5044 = vrot.lane.b32.xlu0 %v4911, 32
    %v5045 = vpop.permute.xlu0 %5044
    %5046 = vrot.lane.b32.xlu0 %v4914, 32
    %v5047 = vpop.permute.xlu0 %5046
    %5048 = vrot.lane.b32.xlu0 %v4916, 32
    %v5049 = vpop.permute.xlu0 %5048
    %5050 = vrot.lane.b32.xlu0 %v4919, 32
    %v5051 = vpop.permute.xlu0 %5050
    %5052 = vrot.lane.b32.xlu0 %v4921, 32
    %v5053 = vpop.permute.xlu0 %5052
    %5054 = vrot.lane.b32.xlu0 %v4924, 32
    %v5055 = vpop.permute.xlu0 %5054
    %5056 = vrot.lane.b32.xlu0 %v4926, 32
    %v5057 = vpop.permute.xlu0 %5056
    %5058 = vrot.lane.b32.xlu0 %v4929, 32
    %v5059 = vpop.permute.xlu0 %5058
    %5060 = vrot.lane.b32.xlu0 %v4931, 32
    %v5061 = vpop.permute.xlu0 %5060
    %5062 = vrot.lane.b32.xlu0 %v4934, 32
    %v5063 = vpop.permute.xlu0 %5062
    %5064 = vrot.lane.b32.xlu0 %v4936, 32
    %v5065 = vpop.permute.xlu0 %5064
    %5066 = vrot.lane.b32.xlu0 %v4939, 32
    %v5067 = vpop.permute.xlu0 %5066
    %5068 = vrot.lane.b32.xlu0 %v4941, 32
    %v5069 = vpop.permute.xlu0 %5068
    %5070 = vrot.lane.b32.xlu0 %v4944, 32
    %v5071 = vpop.permute.xlu0 %5070
    %5072 = vrot.lane.b32.xlu0 %v4946, 32
    %v5073 = vpop.permute.xlu0 %5072
    %5074 = vrot.lane.b32.xlu0 %v4949, 32
    %v5075 = vpop.permute.xlu0 %5074
    %5076 = vrot.lane.b32.xlu0 %v4951, 32
    %v5077 = vpop.permute.xlu0 %5076
    %5078 = vrot.lane.b32.xlu0 %v4954, 32
    %v5079 = vpop.permute.xlu0 %5078
    %5080 = vrot.lane.b32.xlu0 %v4956, 32
    %v5081 = vpop.permute.xlu0 %5080
    %5082 = vrot.lane.b32.xlu0 %v4959, 32
    %v5083 = vpop.permute.xlu0 %5082
    %5084 = vrot.lane.b32.xlu0 %v4961, 32
    %v5085 = vpop.permute.xlu0 %5084
    %5086 = vrot.lane.b32.xlu0 %v4964, 32
    %v5087 = vpop.permute.xlu0 %5086
    %5088 = vrot.lane.b32.xlu0 %v4966, 32
    %v5089 = vpop.permute.xlu0 %5088
    %5090 = vrot.lane.b32.xlu0 %v4969, 32
    %v5091 = vpop.permute.xlu0 %5090
    %5092 = vrot.lane.b32.xlu0 %v4971, 32
    %v5093 = vpop.permute.xlu0 %5092
    %5094 = vrot.lane.b32.xlu0 %v4974, 32
    %v5095 = vpop.permute.xlu0 %5094
    %5096 = vrot.lane.b32.xlu0 %v4976, 32
    %v5097 = vpop.permute.xlu0 %5096
    %5098 = vrot.lane.b32.xlu0 %v4979, 32
    %v5099 = vpop.permute.xlu0 %5098
    %5100 = vrot.lane.b32.xlu0 %v4981, 32
    %v5101 = vpop.permute.xlu0 %5100
    %5164 = vrot.lane.b32.xlu0 %v4372, 48
    %v5165 = vpop.permute.xlu0 %5164
    %5166 = vrot.lane.b32.xlu0 %v4184, 48
    %v5167 = vpop.permute.xlu0 %5166
    %5168 = vrot.lane.b32.xlu0 %v4373, 48
    %v5169 = vpop.permute.xlu0 %5168
    %5170 = vrot.lane.b32.xlu0 %v4187, 48
    %v5171 = vpop.permute.xlu0 %5170
    %5172 = vrot.lane.b32.xlu0 %v4374, 48
    %v5173 = vpop.permute.xlu0 %5172
    %5174 = vrot.lane.b32.xlu0 %v4190, 48
    %v5175 = vpop.permute.xlu0 %5174
    %5176 = vrot.lane.b32.xlu0 %v4375, 48
    %v5177 = vpop.permute.xlu0 %5176
    %5178 = vrot.lane.b32.xlu0 %v4193, 48
    %v5179 = vpop.permute.xlu0 %5178
    %5180 = vrot.lane.b32.xlu0 %v4376, 48
    %v5181 = vpop.permute.xlu0 %5180
    %5182 = vrot.lane.b32.xlu0 %v4196, 48
    %v5183 = vpop.permute.xlu0 %5182
    %5184 = vrot.lane.b32.xlu0 %v4377, 48
    %v5185 = vpop.permute.xlu0 %5184
    %5186 = vrot.lane.b32.xlu0 %v4199, 48
    %v5187 = vpop.permute.xlu0 %5186
    %5188 = vrot.lane.b32.xlu0 %v4378, 48
    %v5189 = vpop.permute.xlu0 %5188
    %5190 = vrot.lane.b32.xlu0 %v4202, 48
    %v5191 = vpop.permute.xlu0 %5190
    %5192 = vrot.lane.b32.xlu0 %v4379, 48
    %v5193 = vpop.permute.xlu0 %5192
    %5194 = vrot.lane.b32.xlu0 %v4205, 48
    %v5195 = vpop.permute.xlu0 %5194
    %5196 = vrot.lane.b32.xlu0 %v4380, 48
    %v5197 = vpop.permute.xlu0 %5196
    %5198 = vrot.lane.b32.xlu0 %v4208, 48
    %v5199 = vpop.permute.xlu0 %5198
    %5200 = vrot.lane.b32.xlu0 %v4381, 48
    %v5201 = vpop.permute.xlu0 %5200
    %5202 = vrot.lane.b32.xlu0 %v4211, 48
    %v5203 = vpop.permute.xlu0 %5202
    %5204 = vrot.lane.b32.xlu0 %v4382, 48
    %v5205 = vpop.permute.xlu0 %5204
    %5206 = vrot.lane.b32.xlu0 %v4214, 48
    %v5207 = vpop.permute.xlu0 %5206
    %5208 = vrot.lane.b32.xlu0 %v4383, 48
    %v5209 = vpop.permute.xlu0 %5208
    %5210 = vrot.lane.b32.xlu0 %v4217, 48
    %v5211 = vpop.permute.xlu0 %5210
    %5212 = vrot.lane.b32.xlu0 %v4384, 48
    %v5213 = vpop.permute.xlu0 %5212
    %5214 = vrot.lane.b32.xlu0 %v4220, 48
    %v5215 = vpop.permute.xlu0 %5214
    %5216 = vrot.lane.b32.xlu0 %v4385, 48
    %v5217 = vpop.permute.xlu0 %5216
    %5218 = vrot.lane.b32.xlu0 %v4223, 48
    %v5219 = vpop.permute.xlu0 %5218
    %5220 = vrot.lane.b32.xlu0 %v4386, 48
    %v5221 = vpop.permute.xlu0 %5220
    %5222 = vrot.lane.b32.xlu0 %v4226, 48
    %v5223 = vpop.permute.xlu0 %5222
    %5224 = vrot.lane.b32.xlu0 %v4387, 48
    %v5225 = vpop.permute.xlu0 %5224
    %5226 = vrot.lane.b32.xlu0 %v4229, 48
    %v5227 = vpop.permute.xlu0 %5226
    %5228 = vrot.lane.b32.xlu0 %v4388, 48
    %v5229 = vpop.permute.xlu0 %5228
    %5230 = vrot.lane.b32.xlu0 %v4232, 48
    %v5231 = vpop.permute.xlu0 %5230
    %5232 = vrot.lane.b32.xlu0 %v4389, 48
    %v5233 = vpop.permute.xlu0 %5232
    %5234 = vrot.lane.b32.xlu0 %v4235, 48
    %v5235 = vpop.permute.xlu0 %5234
    %5236 = vrot.lane.b32.xlu0 %v4390, 48
    %v5237 = vpop.permute.xlu0 %5236
    %5238 = vrot.lane.b32.xlu0 %v4238, 48
    %v5239 = vpop.permute.xlu0 %5238
    %5240 = vrot.lane.b32.xlu0 %v4391, 48
    %v5241 = vpop.permute.xlu0 %5240
    %5242 = vrot.lane.b32.xlu0 %v4241, 48
    %v5243 = vpop.permute.xlu0 %5242
    %5244 = vrot.lane.b32.xlu0 %v4392, 48
    %v5245 = vpop.permute.xlu0 %5244
    %5246 = vrot.lane.b32.xlu0 %v4244, 48
    %v5247 = vpop.permute.xlu0 %5246
    %5248 = vrot.lane.b32.xlu0 %v4393, 48
    %v5249 = vpop.permute.xlu0 %5248
    %5250 = vrot.lane.b32.xlu0 %v4247, 48
    %v5251 = vpop.permute.xlu0 %5250
    %5252 = vrot.lane.b32.xlu0 %v4394, 48
    %v5253 = vpop.permute.xlu0 %5252
    %5254 = vrot.lane.b32.xlu0 %v4250, 48
    %v5255 = vpop.permute.xlu0 %5254
    %5256 = vrot.lane.b32.xlu0 %v4395, 48
    %v5257 = vpop.permute.xlu0 %5256
    %5258 = vrot.lane.b32.xlu0 %v4253, 48
    %v5259 = vpop.permute.xlu0 %5258
    %5260 = vrot.lane.b32.xlu0 %v4396, 48
    %v5261 = vpop.permute.xlu0 %5260
    %5262 = vrot.lane.b32.xlu0 %v4256, 48
    %v5263 = vpop.permute.xlu0 %5262
    %5264 = vrot.lane.b32.xlu0 %v4397, 48
    %v5265 = vpop.permute.xlu0 %5264
    %5266 = vrot.lane.b32.xlu0 %v4259, 48
    %v5267 = vpop.permute.xlu0 %5266
    %5268 = vrot.lane.b32.xlu0 %v4398, 48
    %v5269 = vpop.permute.xlu0 %5268
    %5270 = vrot.lane.b32.xlu0 %v4262, 48
    %v5271 = vpop.permute.xlu0 %5270
    %5272 = vrot.lane.b32.xlu0 %v4399, 48
    %v5273 = vpop.permute.xlu0 %5272
    %5274 = vrot.lane.b32.xlu0 %v4265, 48
    %v5275 = vpop.permute.xlu0 %5274
    %5276 = vrot.lane.b32.xlu0 %v4400, 48
    %v5277 = vpop.permute.xlu0 %5276
    %5278 = vrot.lane.b32.xlu0 %v4268, 48
    %v5279 = vpop.permute.xlu0 %5278
    %5280 = vrot.lane.b32.xlu0 %v4401, 48
    %v5281 = vpop.permute.xlu0 %5280
    %5282 = vrot.lane.b32.xlu0 %v4271, 48
    %v5283 = vpop.permute.xlu0 %5282
    %5284 = vrot.lane.b32.xlu0 %v4402, 48
    %v5285 = vpop.permute.xlu0 %5284
    %5286 = vrot.lane.b32.xlu0 %v4274, 48
    %v5287 = vpop.permute.xlu0 %5286
    %5288 = vrot.lane.b32.xlu0 %v4403, 48
    %v5289 = vpop.permute.xlu0 %5288
    %5290 = vrot.lane.b32.xlu0 %v4277, 48
    %v5291 = vpop.permute.xlu0 %5290
    %v5358 = vrot.slane %v4387, 1
    %v5359 = vrot.slane %v4229, 1
    %v5360 = vsel %vm497, %v5358, %v5359
    %v5361 = vrot.slane %v4419, 1
    %v5362 = vsel %vm497, %v5359, %v5361
    %v5363 = vrot.slane %v4403, 1
    %v5364 = vrot.slane %v4277, 1
    %v5365 = vsel %vm497, %v5363, %v5364
    %v5366 = vrot.slane %v4435, 1
    %v5367 = vsel %vm497, %v5364, %v5366
    %5368 = vrot.lane.b32.xlu0 %v4498, 64
    %v5369 = vpop.permute.xlu0 %5368
    %5370 = vrot.lane.b32.xlu0 %v4500, 64
    %v5371 = vpop.permute.xlu0 %5370
    %5372 = vrot.lane.b32.xlu0 %v4503, 64
    %v5373 = vpop.permute.xlu0 %5372
    %5374 = vrot.lane.b32.xlu0 %v4505, 64
    %v5375 = vpop.permute.xlu0 %5374
    %5376 = vrot.lane.b32.xlu0 %v4508, 64
    %v5377 = vpop.permute.xlu0 %5376
    %5378 = vrot.lane.b32.xlu0 %v4510, 64
    %v5379 = vpop.permute.xlu0 %5378
    %5380 = vrot.lane.b32.xlu0 %v4513, 64
    %v5381 = vpop.permute.xlu0 %5380
    %5382 = vrot.lane.b32.xlu0 %v4515, 64
    %v5383 = vpop.permute.xlu0 %5382
    %5384 = vrot.lane.b32.xlu0 %v4518, 64
    %v5385 = vpop.permute.xlu0 %5384
    %5386 = vrot.lane.b32.xlu0 %v4520, 64
    %v5387 = vpop.permute.xlu0 %5386
    %5388 = vrot.lane.b32.xlu0 %v4523, 64
    %v5389 = vpop.permute.xlu0 %5388
    %5390 = vrot.lane.b32.xlu0 %v4525, 64
    %v5391 = vpop.permute.xlu0 %5390
    %5392 = vrot.lane.b32.xlu0 %v4528, 64
    %v5393 = vpop.permute.xlu0 %5392
    %5394 = vrot.lane.b32.xlu0 %v4530, 64
    %v5395 = vpop.permute.xlu0 %5394
    %5396 = vrot.lane.b32.xlu0 %v4533, 64
    %v5397 = vpop.permute.xlu0 %5396
    %5398 = vrot.lane.b32.xlu0 %v4535, 64
    %v5399 = vpop.permute.xlu0 %5398
    %5400 = vrot.lane.b32.xlu0 %v4538, 64
    %v5401 = vpop.permute.xlu0 %5400
    %5402 = vrot.lane.b32.xlu0 %v4540, 64
    %v5403 = vpop.permute.xlu0 %5402
    %5404 = vrot.lane.b32.xlu0 %v4543, 64
    %v5405 = vpop.permute.xlu0 %5404
    %5406 = vrot.lane.b32.xlu0 %v4545, 64
    %v5407 = vpop.permute.xlu0 %5406
    %5408 = vrot.lane.b32.xlu0 %v4548, 64
    %v5409 = vpop.permute.xlu0 %5408
    %5410 = vrot.lane.b32.xlu0 %v4550, 64
    %v5411 = vpop.permute.xlu0 %5410
    %5412 = vrot.lane.b32.xlu0 %v4553, 64
    %v5413 = vpop.permute.xlu0 %5412
    %5414 = vrot.lane.b32.xlu0 %v4555, 64
    %v5415 = vpop.permute.xlu0 %5414
    %5416 = vrot.lane.b32.xlu0 %v4558, 64
    %v5417 = vpop.permute.xlu0 %5416
    %5418 = vrot.lane.b32.xlu0 %v4560, 64
    %v5419 = vpop.permute.xlu0 %5418
    %5420 = vrot.lane.b32.xlu0 %v4563, 64
    %v5421 = vpop.permute.xlu0 %5420
    %5422 = vrot.lane.b32.xlu0 %v4565, 64
    %v5423 = vpop.permute.xlu0 %5422
    %5424 = vrot.lane.b32.xlu0 %v4568, 64
    %v5425 = vpop.permute.xlu0 %5424
    %5426 = vrot.lane.b32.xlu0 %v4570, 64
    %v5427 = vpop.permute.xlu0 %5426
    %5428 = vrot.lane.b32.xlu0 %v5360, 64
    %v5429 = vpop.permute.xlu0 %5428
    %5430 = vrot.lane.b32.xlu0 %v5362, 64
    %v5431 = vpop.permute.xlu0 %5430
    %5432 = vrot.lane.b32.xlu0 %v4573, 64
    %v5433 = vpop.permute.xlu0 %5432
    %5434 = vrot.lane.b32.xlu0 %v4575, 64
    %v5435 = vpop.permute.xlu0 %5434
    %5436 = vrot.lane.b32.xlu0 %v4578, 64
    %v5437 = vpop.permute.xlu0 %5436
    %5438 = vrot.lane.b32.xlu0 %v4580, 64
    %v5439 = vpop.permute.xlu0 %5438
    %5440 = vrot.lane.b32.xlu0 %v4583, 64
    %v5441 = vpop.permute.xlu0 %5440
    %5442 = vrot.lane.b32.xlu0 %v4585, 64
    %v5443 = vpop.permute.xlu0 %5442
    %5444 = vrot.lane.b32.xlu0 %v4588, 64
    %v5445 = vpop.permute.xlu0 %5444
    %5446 = vrot.lane.b32.xlu0 %v4590, 64
    %v5447 = vpop.permute.xlu0 %5446
    %5448 = vrot.lane.b32.xlu0 %v4593, 64
    %v5449 = vpop.permute.xlu0 %5448
    %5450 = vrot.lane.b32.xlu0 %v4595, 64
    %v5451 = vpop.permute.xlu0 %5450
    %5452 = vrot.lane.b32.xlu0 %v4598, 64
    %v5453 = vpop.permute.xlu0 %5452
    %5454 = vrot.lane.b32.xlu0 %v4600, 64
    %v5455 = vpop.permute.xlu0 %5454
    %5456 = vrot.lane.b32.xlu0 %v4603, 64
    %v5457 = vpop.permute.xlu0 %5456
    %5458 = vrot.lane.b32.xlu0 %v4605, 64
    %v5459 = vpop.permute.xlu0 %5458
    %5460 = vrot.lane.b32.xlu0 %v4608, 64
    %v5461 = vpop.permute.xlu0 %5460
    %5462 = vrot.lane.b32.xlu0 %v4610, 64
    %v5463 = vpop.permute.xlu0 %5462
    %5464 = vrot.lane.b32.xlu0 %v4613, 64
    %v5465 = vpop.permute.xlu0 %5464
    %5466 = vrot.lane.b32.xlu0 %v4615, 64
    %v5467 = vpop.permute.xlu0 %5466
    %5468 = vrot.lane.b32.xlu0 %v4618, 64
    %v5469 = vpop.permute.xlu0 %5468
    %5470 = vrot.lane.b32.xlu0 %v4620, 64
    %v5471 = vpop.permute.xlu0 %5470
    %5472 = vrot.lane.b32.xlu0 %v4623, 64
    %v5473 = vpop.permute.xlu0 %5472
    %5474 = vrot.lane.b32.xlu0 %v4625, 64
    %v5475 = vpop.permute.xlu0 %5474
    %5476 = vrot.lane.b32.xlu0 %v4628, 64
    %v5477 = vpop.permute.xlu0 %5476
    %5478 = vrot.lane.b32.xlu0 %v4630, 64
    %v5479 = vpop.permute.xlu0 %5478
    %5480 = vrot.lane.b32.xlu0 %v4633, 64
    %v5481 = vpop.permute.xlu0 %5480
    %5482 = vrot.lane.b32.xlu0 %v4635, 64
    %v5483 = vpop.permute.xlu0 %5482
    %5484 = vrot.lane.b32.xlu0 %v4638, 64
    %v5485 = vpop.permute.xlu0 %5484
    %5486 = vrot.lane.b32.xlu0 %v4640, 64
    %v5487 = vpop.permute.xlu0 %5486
    %5488 = vrot.lane.b32.xlu0 %v4643, 64
    %v5489 = vpop.permute.xlu0 %5488
    %5490 = vrot.lane.b32.xlu0 %v4645, 64
    %v5491 = vpop.permute.xlu0 %5490
    %5492 = vrot.lane.b32.xlu0 %v5365, 64
    %v5493 = vpop.permute.xlu0 %5492
    %5494 = vrot.lane.b32.xlu0 %v5367, 64
    %v5495 = vpop.permute.xlu0 %5494
    %v5560 = vrot.slane %v4387, 2
    %v5561 = vrot.slane %v4229, 2
    %v5562 = vsel %vm839, %v5560, %v5561
    %v5563 = vrot.slane %v4419, 2
    %v5564 = vsel %vm839, %v5561, %v5563
    %v5565 = vrot.slane %v4403, 2
    %v5566 = vrot.slane %v4277, 2
    %v5567 = vsel %vm839, %v5565, %v5566
    %v5568 = vrot.slane %v4435, 2
    %v5569 = vsel %vm839, %v5566, %v5568
    %5570 = vrot.lane.b32.xlu0 %v4834, 80
    %v5571 = vpop.permute.xlu0 %5570
    %5572 = vrot.lane.b32.xlu0 %v4836, 80
    %v5573 = vpop.permute.xlu0 %5572
    %5574 = vrot.lane.b32.xlu0 %v4839, 80
    %v5575 = vpop.permute.xlu0 %5574
    %5576 = vrot.lane.b32.xlu0 %v4841, 80
    %v5577 = vpop.permute.xlu0 %5576
    %5578 = vrot.lane.b32.xlu0 %v4844, 80
    %v5579 = vpop.permute.xlu0 %5578
    %5580 = vrot.lane.b32.xlu0 %v4846, 80
    %v5581 = vpop.permute.xlu0 %5580
    %5582 = vrot.lane.b32.xlu0 %v4849, 80
    %v5583 = vpop.permute.xlu0 %5582
    %5584 = vrot.lane.b32.xlu0 %v4851, 80
    %v5585 = vpop.permute.xlu0 %5584
    %5586 = vrot.lane.b32.xlu0 %v4854, 80
    %v5587 = vpop.permute.xlu0 %5586
    %5588 = vrot.lane.b32.xlu0 %v4856, 80
    %v5589 = vpop.permute.xlu0 %5588
    %5590 = vrot.lane.b32.xlu0 %v4859, 80
    %v5591 = vpop.permute.xlu0 %5590
    %5592 = vrot.lane.b32.xlu0 %v4861, 80
    %v5593 = vpop.permute.xlu0 %5592
    %5594 = vrot.lane.b32.xlu0 %v4864, 80
    %v5595 = vpop.permute.xlu0 %5594
    %5596 = vrot.lane.b32.xlu0 %v4866, 80
    %v5597 = vpop.permute.xlu0 %5596
    %5598 = vrot.lane.b32.xlu0 %v4869, 80
    %v5599 = vpop.permute.xlu0 %5598
    %5600 = vrot.lane.b32.xlu0 %v4871, 80
    %v5601 = vpop.permute.xlu0 %5600
    %5602 = vrot.lane.b32.xlu0 %v4874, 80
    %v5603 = vpop.permute.xlu0 %5602
    %5604 = vrot.lane.b32.xlu0 %v4876, 80
    %v5605 = vpop.permute.xlu0 %5604
    %5606 = vrot.lane.b32.xlu0 %v4879, 80
    %v5607 = vpop.permute.xlu0 %5606
    %5608 = vrot.lane.b32.xlu0 %v4881, 80
    %v5609 = vpop.permute.xlu0 %5608
    %5610 = vrot.lane.b32.xlu0 %v4884, 80
    %v5611 = vpop.permute.xlu0 %5610
    %5612 = vrot.lane.b32.xlu0 %v4886, 80
    %v5613 = vpop.permute.xlu0 %5612
    %5614 = vrot.lane.b32.xlu0 %v4889, 80
    %v5615 = vpop.permute.xlu0 %5614
    %5616 = vrot.lane.b32.xlu0 %v4891, 80
    %v5617 = vpop.permute.xlu0 %5616
    %5618 = vrot.lane.b32.xlu0 %v4894, 80
    %v5619 = vpop.permute.xlu0 %5618
    %5620 = vrot.lane.b32.xlu0 %v4896, 80
    %v5621 = vpop.permute.xlu0 %5620
    %5622 = vrot.lane.b32.xlu0 %v4899, 80
    %v5623 = vpop.permute.xlu0 %5622
    %5624 = vrot.lane.b32.xlu0 %v4901, 80
    %v5625 = vpop.permute.xlu0 %5624
    %5626 = vrot.lane.b32.xlu0 %v4904, 80
    %v5627 = vpop.permute.xlu0 %5626
    %5628 = vrot.lane.b32.xlu0 %v4906, 80
    %v5629 = vpop.permute.xlu0 %5628
    %5630 = vrot.lane.b32.xlu0 %v5562, 80
    %v5631 = vpop.permute.xlu0 %5630
    %5632 = vrot.lane.b32.xlu0 %v5564, 80
    %v5633 = vpop.permute.xlu0 %5632
    %5634 = vrot.lane.b32.xlu0 %v4909, 80
    %v5635 = vpop.permute.xlu0 %5634
    %5636 = vrot.lane.b32.xlu0 %v4911, 80
    %v5637 = vpop.permute.xlu0 %5636
    %5638 = vrot.lane.b32.xlu0 %v4914, 80
    %v5639 = vpop.permute.xlu0 %5638
    %5640 = vrot.lane.b32.xlu0 %v4916, 80
    %v5641 = vpop.permute.xlu0 %5640
    %5642 = vrot.lane.b32.xlu0 %v4919, 80
    %v5643 = vpop.permute.xlu0 %5642
    %5644 = vrot.lane.b32.xlu0 %v4921, 80
    %v5645 = vpop.permute.xlu0 %5644
    %5646 = vrot.lane.b32.xlu0 %v4924, 80
    %v5647 = vpop.permute.xlu0 %5646
    %5648 = vrot.lane.b32.xlu0 %v4926, 80
    %v5649 = vpop.permute.xlu0 %5648
    %5650 = vrot.lane.b32.xlu0 %v4929, 80
    %v5651 = vpop.permute.xlu0 %5650
    %5652 = vrot.lane.b32.xlu0 %v4931, 80
    %v5653 = vpop.permute.xlu0 %5652
    %5654 = vrot.lane.b32.xlu0 %v4934, 80
    %v5655 = vpop.permute.xlu0 %5654
    %5656 = vrot.lane.b32.xlu0 %v4936, 80
    %v5657 = vpop.permute.xlu0 %5656
    %5658 = vrot.lane.b32.xlu0 %v4939, 80
    %v5659 = vpop.permute.xlu0 %5658
    %5660 = vrot.lane.b32.xlu0 %v4941, 80
    %v5661 = vpop.permute.xlu0 %5660
    %5662 = vrot.lane.b32.xlu0 %v4944, 80
    %v5663 = vpop.permute.xlu0 %5662
    %5664 = vrot.lane.b32.xlu0 %v4946, 80
    %v5665 = vpop.permute.xlu0 %5664
    %5666 = vrot.lane.b32.xlu0 %v4949, 80
    %v5667 = vpop.permute.xlu0 %5666
    %5668 = vrot.lane.b32.xlu0 %v4951, 80
    %v5669 = vpop.permute.xlu0 %5668
    %5670 = vrot.lane.b32.xlu0 %v4954, 80
    %v5671 = vpop.permute.xlu0 %5670
    %5672 = vrot.lane.b32.xlu0 %v4956, 80
    %v5673 = vpop.permute.xlu0 %5672
    %5674 = vrot.lane.b32.xlu0 %v4959, 80
    %v5675 = vpop.permute.xlu0 %5674
    %5676 = vrot.lane.b32.xlu0 %v4961, 80
    %v5677 = vpop.permute.xlu0 %5676
    %5678 = vrot.lane.b32.xlu0 %v4964, 80
    %v5679 = vpop.permute.xlu0 %5678
    %5680 = vrot.lane.b32.xlu0 %v4966, 80
    %v5681 = vpop.permute.xlu0 %5680
    %5682 = vrot.lane.b32.xlu0 %v4969, 80
    %v5683 = vpop.permute.xlu0 %5682
    %5684 = vrot.lane.b32.xlu0 %v4971, 80
    %v5685 = vpop.permute.xlu0 %5684
    %5686 = vrot.lane.b32.xlu0 %v4974, 80
    %v5687 = vpop.permute.xlu0 %5686
    %5688 = vrot.lane.b32.xlu0 %v4976, 80
    %v5689 = vpop.permute.xlu0 %5688
    %5690 = vrot.lane.b32.xlu0 %v4979, 80
    %v5691 = vpop.permute.xlu0 %5690
    %5692 = vrot.lane.b32.xlu0 %v4981, 80
    %v5693 = vpop.permute.xlu0 %5692
    %5694 = vrot.lane.b32.xlu0 %v5567, 80
    %v5695 = vpop.permute.xlu0 %5694
    %5696 = vrot.lane.b32.xlu0 %v5569, 80
    %v5697 = vpop.permute.xlu0 %5696
    %5762 = vrot.lane.b32.xlu0 %v4373, 96
    %v5763 = vpop.permute.xlu0 %5762
    %5764 = vrot.lane.b32.xlu0 %v4187, 96
    %v5765 = vpop.permute.xlu0 %5764
    %5766 = vrot.lane.b32.xlu0 %v4374, 96
    %v5767 = vpop.permute.xlu0 %5766
    %5768 = vrot.lane.b32.xlu0 %v4190, 96
    %v5769 = vpop.permute.xlu0 %5768
    %5770 = vrot.lane.b32.xlu0 %v4375, 96
    %v5771 = vpop.permute.xlu0 %5770
    %5772 = vrot.lane.b32.xlu0 %v4193, 96
    %v5773 = vpop.permute.xlu0 %5772
    %5774 = vrot.lane.b32.xlu0 %v4376, 96
    %v5775 = vpop.permute.xlu0 %5774
    %5776 = vrot.lane.b32.xlu0 %v4196, 96
    %v5777 = vpop.permute.xlu0 %5776
    %5778 = vrot.lane.b32.xlu0 %v4377, 96
    %v5779 = vpop.permute.xlu0 %5778
    %5780 = vrot.lane.b32.xlu0 %v4199, 96
    %v5781 = vpop.permute.xlu0 %5780
    %5782 = vrot.lane.b32.xlu0 %v4378, 96
    %v5783 = vpop.permute.xlu0 %5782
    %5784 = vrot.lane.b32.xlu0 %v4202, 96
    %v5785 = vpop.permute.xlu0 %5784
    %5786 = vrot.lane.b32.xlu0 %v4379, 96
    %v5787 = vpop.permute.xlu0 %5786
    %5788 = vrot.lane.b32.xlu0 %v4205, 96
    %v5789 = vpop.permute.xlu0 %5788
    %5790 = vrot.lane.b32.xlu0 %v4380, 96
    %v5791 = vpop.permute.xlu0 %5790
    %5792 = vrot.lane.b32.xlu0 %v4208, 96
    %v5793 = vpop.permute.xlu0 %5792
    %5794 = vrot.lane.b32.xlu0 %v4381, 96
    %v5795 = vpop.permute.xlu0 %5794
    %5796 = vrot.lane.b32.xlu0 %v4211, 96
    %v5797 = vpop.permute.xlu0 %5796
    %5798 = vrot.lane.b32.xlu0 %v4382, 96
    %v5799 = vpop.permute.xlu0 %5798
    %5800 = vrot.lane.b32.xlu0 %v4214, 96
    %v5801 = vpop.permute.xlu0 %5800
    %5802 = vrot.lane.b32.xlu0 %v4383, 96
    %v5803 = vpop.permute.xlu0 %5802
    %5804 = vrot.lane.b32.xlu0 %v4217, 96
    %v5805 = vpop.permute.xlu0 %5804
    %5806 = vrot.lane.b32.xlu0 %v4384, 96
    %v5807 = vpop.permute.xlu0 %5806
    %5808 = vrot.lane.b32.xlu0 %v4220, 96
    %v5809 = vpop.permute.xlu0 %5808
    %5810 = vrot.lane.b32.xlu0 %v4385, 96
    %v5811 = vpop.permute.xlu0 %5810
    %5812 = vrot.lane.b32.xlu0 %v4223, 96
    %v5813 = vpop.permute.xlu0 %5812
    %5814 = vrot.lane.b32.xlu0 %v4386, 96
    %v5815 = vpop.permute.xlu0 %5814
    %5816 = vrot.lane.b32.xlu0 %v4226, 96
    %v5817 = vpop.permute.xlu0 %5816
    %5818 = vrot.lane.b32.xlu0 %v4387, 96
    %v5819 = vpop.permute.xlu0 %5818
    %5820 = vrot.lane.b32.xlu0 %v4229, 96
    %v5821 = vpop.permute.xlu0 %5820
    %5822 = vrot.lane.b32.xlu0 %v369, 96
    %v5823 = vpop.permute.xlu0 %5822
    %5824 = vrot.lane.b32.xlu0 %v176, 96
    %v5825 = vpop.permute.xlu0 %5824
    %5826 = vrot.lane.b32.xlu0 %v4389, 96
    %v5827 = vpop.permute.xlu0 %5826
    %5828 = vrot.lane.b32.xlu0 %v4235, 96
    %v5829 = vpop.permute.xlu0 %5828
    %5830 = vrot.lane.b32.xlu0 %v4390, 96
    %v5831 = vpop.permute.xlu0 %5830
    %5832 = vrot.lane.b32.xlu0 %v4238, 96
    %v5833 = vpop.permute.xlu0 %5832
    %5834 = vrot.lane.b32.xlu0 %v4391, 96
    %v5835 = vpop.permute.xlu0 %5834
    %5836 = vrot.lane.b32.xlu0 %v4241, 96
    %v5837 = vpop.permute.xlu0 %5836
    %5838 = vrot.lane.b32.xlu0 %v4392, 96
    %v5839 = vpop.permute.xlu0 %5838
    %5840 = vrot.lane.b32.xlu0 %v4244, 96
    %v5841 = vpop.permute.xlu0 %5840
    %5842 = vrot.lane.b32.xlu0 %v4393, 96
    %v5843 = vpop.permute.xlu0 %5842
    %5844 = vrot.lane.b32.xlu0 %v4247, 96
    %v5845 = vpop.permute.xlu0 %5844
    %5846 = vrot.lane.b32.xlu0 %v4394, 96
    %v5847 = vpop.permute.xlu0 %5846
    %5848 = vrot.lane.b32.xlu0 %v4250, 96
    %v5849 = vpop.permute.xlu0 %5848
    %5850 = vrot.lane.b32.xlu0 %v4395, 96
    %v5851 = vpop.permute.xlu0 %5850
    %5852 = vrot.lane.b32.xlu0 %v4253, 96
    %v5853 = vpop.permute.xlu0 %5852
    %5854 = vrot.lane.b32.xlu0 %v4396, 96
    %v5855 = vpop.permute.xlu0 %5854
    %5856 = vrot.lane.b32.xlu0 %v4256, 96
    %v5857 = vpop.permute.xlu0 %5856
    %5858 = vrot.lane.b32.xlu0 %v4397, 96
    %v5859 = vpop.permute.xlu0 %5858
    %5860 = vrot.lane.b32.xlu0 %v4259, 96
    %v5861 = vpop.permute.xlu0 %5860
    %5862 = vrot.lane.b32.xlu0 %v4398, 96
    %v5863 = vpop.permute.xlu0 %5862
    %5864 = vrot.lane.b32.xlu0 %v4262, 96
    %v5865 = vpop.permute.xlu0 %5864
    %5866 = vrot.lane.b32.xlu0 %v4399, 96
    %v5867 = vpop.permute.xlu0 %5866
    %5868 = vrot.lane.b32.xlu0 %v4265, 96
    %v5869 = vpop.permute.xlu0 %5868
    %5870 = vrot.lane.b32.xlu0 %v4400, 96
    %v5871 = vpop.permute.xlu0 %5870
    %5872 = vrot.lane.b32.xlu0 %v4268, 96
    %v5873 = vpop.permute.xlu0 %5872
    %5874 = vrot.lane.b32.xlu0 %v4401, 96
    %v5875 = vpop.permute.xlu0 %5874
    %5876 = vrot.lane.b32.xlu0 %v4271, 96
    %v5877 = vpop.permute.xlu0 %5876
    %5878 = vrot.lane.b32.xlu0 %v4402, 96
    %v5879 = vpop.permute.xlu0 %5878
    %5880 = vrot.lane.b32.xlu0 %v4274, 96
    %v5881 = vpop.permute.xlu0 %5880
    %5882 = vrot.lane.b32.xlu0 %v4403, 96
    %v5883 = vpop.permute.xlu0 %5882
    %5884 = vrot.lane.b32.xlu0 %v4277, 96
    %v5885 = vpop.permute.xlu0 %5884
    %5948 = vrot.lane.b32.xlu0 %v4503, 112
    %v5949 = vpop.permute.xlu0 %5948
    %5950 = vrot.lane.b32.xlu0 %v4505, 112
    %v5951 = vpop.permute.xlu0 %5950
    %5952 = vrot.lane.b32.xlu0 %v4508, 112
    %v5953 = vpop.permute.xlu0 %5952
    %5954 = vrot.lane.b32.xlu0 %v4510, 112
    %v5955 = vpop.permute.xlu0 %5954
    %5956 = vrot.lane.b32.xlu0 %v4513, 112
    %v5957 = vpop.permute.xlu0 %5956
    %5958 = vrot.lane.b32.xlu0 %v4515, 112
    %v5959 = vpop.permute.xlu0 %5958
    %5960 = vrot.lane.b32.xlu0 %v4518, 112
    %v5961 = vpop.permute.xlu0 %5960
    %5962 = vrot.lane.b32.xlu0 %v4520, 112
    %v5963 = vpop.permute.xlu0 %5962
    %5964 = vrot.lane.b32.xlu0 %v4523, 112
    %v5965 = vpop.permute.xlu0 %5964
    %5966 = vrot.lane.b32.xlu0 %v4525, 112
    %v5967 = vpop.permute.xlu0 %5966
    %5968 = vrot.lane.b32.xlu0 %v4528, 112
    %v5969 = vpop.permute.xlu0 %5968
    %5970 = vrot.lane.b32.xlu0 %v4530, 112
    %v5971 = vpop.permute.xlu0 %5970
    %5972 = vrot.lane.b32.xlu0 %v4533, 112
    %v5973 = vpop.permute.xlu0 %5972
    %5974 = vrot.lane.b32.xlu0 %v4535, 112
    %v5975 = vpop.permute.xlu0 %5974
    %5976 = vrot.lane.b32.xlu0 %v4538, 112
    %v5977 = vpop.permute.xlu0 %5976
    %5978 = vrot.lane.b32.xlu0 %v4540, 112
    %v5979 = vpop.permute.xlu0 %5978
    %5980 = vrot.lane.b32.xlu0 %v4543, 112
    %v5981 = vpop.permute.xlu0 %5980
    %5982 = vrot.lane.b32.xlu0 %v4545, 112
    %v5983 = vpop.permute.xlu0 %5982
    %5984 = vrot.lane.b32.xlu0 %v4548, 112
    %v5985 = vpop.permute.xlu0 %5984
    %5986 = vrot.lane.b32.xlu0 %v4550, 112
    %v5987 = vpop.permute.xlu0 %5986
    %5988 = vrot.lane.b32.xlu0 %v4553, 112
    %v5989 = vpop.permute.xlu0 %5988
    %5990 = vrot.lane.b32.xlu0 %v4555, 112
    %v5991 = vpop.permute.xlu0 %5990
    %5992 = vrot.lane.b32.xlu0 %v4558, 112
    %v5993 = vpop.permute.xlu0 %5992
    %5994 = vrot.lane.b32.xlu0 %v4560, 112
    %v5995 = vpop.permute.xlu0 %5994
    %5996 = vrot.lane.b32.xlu0 %v4563, 112
    %v5997 = vpop.permute.xlu0 %5996
    %5998 = vrot.lane.b32.xlu0 %v4565, 112
    %v5999 = vpop.permute.xlu0 %5998
    %6000 = vrot.lane.b32.xlu0 %v4568, 112
    %v6001 = vpop.permute.xlu0 %6000
    %6002 = vrot.lane.b32.xlu0 %v4570, 112
    %v6003 = vpop.permute.xlu0 %6002
    %6004 = vrot.lane.b32.xlu0 %v5360, 112
    %v6005 = vpop.permute.xlu0 %6004
    %6006 = vrot.lane.b32.xlu0 %v5362, 112
    %v6007 = vpop.permute.xlu0 %6006
    %6008 = vrot.lane.b32.xlu0 %v500, 112
    %v6009 = vpop.permute.xlu0 %6008
    %6010 = vrot.lane.b32.xlu0 %v502, 112
    %v6011 = vpop.permute.xlu0 %6010
    %6012 = vrot.lane.b32.xlu0 %v4578, 112
    %v6013 = vpop.permute.xlu0 %6012
    %6014 = vrot.lane.b32.xlu0 %v4580, 112
    %v6015 = vpop.permute.xlu0 %6014
    %6016 = vrot.lane.b32.xlu0 %v4583, 112
    %v6017 = vpop.permute.xlu0 %6016
    %6018 = vrot.lane.b32.xlu0 %v4585, 112
    %v6019 = vpop.permute.xlu0 %6018
    %6020 = vrot.lane.b32.xlu0 %v4588, 112
    %v6021 = vpop.permute.xlu0 %6020
    %6022 = vrot.lane.b32.xlu0 %v4590, 112
    %v6023 = vpop.permute.xlu0 %6022
    %6024 = vrot.lane.b32.xlu0 %v4593, 112
    %v6025 = vpop.permute.xlu0 %6024
    %6026 = vrot.lane.b32.xlu0 %v4595, 112
    %v6027 = vpop.permute.xlu0 %6026
    %6028 = vrot.lane.b32.xlu0 %v4598, 112
    %v6029 = vpop.permute.xlu0 %6028
    %6030 = vrot.lane.b32.xlu0 %v4600, 112
    %v6031 = vpop.permute.xlu0 %6030
    %6032 = vrot.lane.b32.xlu0 %v4603, 112
    %v6033 = vpop.permute.xlu0 %6032
    %6034 = vrot.lane.b32.xlu0 %v4605, 112
    %v6035 = vpop.permute.xlu0 %6034
    %6036 = vrot.lane.b32.xlu0 %v4608, 112
    %v6037 = vpop.permute.xlu0 %6036
    %6038 = vrot.lane.b32.xlu0 %v4610, 112
    %v6039 = vpop.permute.xlu0 %6038
    %6040 = vrot.lane.b32.xlu0 %v4613, 112
    %v6041 = vpop.permute.xlu0 %6040
    %6042 = vrot.lane.b32.xlu0 %v4615, 112
    %v6043 = vpop.permute.xlu0 %6042
    %6044 = vrot.lane.b32.xlu0 %v4618, 112
    %v6045 = vpop.permute.xlu0 %6044
    %6046 = vrot.lane.b32.xlu0 %v4620, 112
    %v6047 = vpop.permute.xlu0 %6046
    %6048 = vrot.lane.b32.xlu0 %v4623, 112
    %v6049 = vpop.permute.xlu0 %6048
    %6050 = vrot.lane.b32.xlu0 %v4625, 112
    %v6051 = vpop.permute.xlu0 %6050
    %6052 = vrot.lane.b32.xlu0 %v4628, 112
    %v6053 = vpop.permute.xlu0 %6052
    %6054 = vrot.lane.b32.xlu0 %v4630, 112
    %v6055 = vpop.permute.xlu0 %6054
    %6056 = vrot.lane.b32.xlu0 %v4633, 112
    %v6057 = vpop.permute.xlu0 %6056
    %6058 = vrot.lane.b32.xlu0 %v4635, 112
    %v6059 = vpop.permute.xlu0 %6058
    %6060 = vrot.lane.b32.xlu0 %v4638, 112
    %v6061 = vpop.permute.xlu0 %6060
    %6062 = vrot.lane.b32.xlu0 %v4640, 112
    %v6063 = vpop.permute.xlu0 %6062
    %6064 = vrot.lane.b32.xlu0 %v4643, 112
    %v6065 = vpop.permute.xlu0 %6064
    %6066 = vrot.lane.b32.xlu0 %v4645, 112
    %v6067 = vpop.permute.xlu0 %6066
    %6068 = vrot.lane.b32.xlu0 %v5365, 112
    %v6069 = vpop.permute.xlu0 %6068
    %6070 = vrot.lane.b32.xlu0 %v5367, 112
    %v6071 = vpop.permute.xlu0 %6070
    %v6134 = vsel %vm2530, %v369, %v4647
    %v6135 = vsel %vm2530, %v176, %v4649
    %v6136 = vsel %vm2530, %v4372, %v4651
    %v6137 = vsel %vm2530, %v4184, %v4653
    %v6138 = vsel %vm2530, %v4373, %v4655
    %v6139 = vsel %vm2530, %v4187, %v4657
    %v6140 = vsel %vm2530, %v4374, %v4659
    %v6141 = vsel %vm2530, %v4190, %v4661
    %v6142 = vsel %vm2530, %v4375, %v4663
    %v6143 = vsel %vm2530, %v4193, %v4665
    %v6144 = vsel %vm2530, %v4376, %v4667
    %v6145 = vsel %vm2530, %v4196, %v4669
    %v6146 = vsel %vm2530, %v4377, %v4671
    %v6147 = vsel %vm2530, %v4199, %v4673
    %v6148 = vsel %vm2530, %v4378, %v4675
    %v6149 = vsel %vm2530, %v4202, %v4677
    %v6150 = vsel %vm2530, %v4379, %v4679
    %v6151 = vsel %vm2530, %v4205, %v4681
    %v6152 = vsel %vm2530, %v4380, %v4683
    %v6153 = vsel %vm2530, %v4208, %v4685
    %v6154 = vsel %vm2530, %v4381, %v4687
    %v6155 = vsel %vm2530, %v4211, %v4689
    %v6156 = vsel %vm2530, %v4382, %v4691
    %v6157 = vsel %vm2530, %v4214, %v4693
    %v6158 = vsel %vm2530, %v4383, %v4695
    %v6159 = vsel %vm2530, %v4217, %v4697
    %v6160 = vsel %vm2530, %v4384, %v4699
    %v6161 = vsel %vm2530, %v4220, %v4701
    %v6162 = vsel %vm2530, %v4385, %v4703
    %v6163 = vsel %vm2530, %v4223, %v4705
    %v6164 = vsel %vm2530, %v4386, %v4707
    %v6165 = vsel %vm2530, %v4226, %v4709
    %v6166 = vsel %vm2530, %v4388, %v4711
    %v6167 = vsel %vm2530, %v4232, %v4713
    %v6168 = vsel %vm2530, %v4389, %v4715
    %v6169 = vsel %vm2530, %v4235, %v4717
    %v6170 = vsel %vm2530, %v4390, %v4719
    %v6171 = vsel %vm2530, %v4238, %v4721
    %v6172 = vsel %vm2530, %v4391, %v4723
    %v6173 = vsel %vm2530, %v4241, %v4725
    %v6174 = vsel %vm2530, %v4392, %v4727
    %v6175 = vsel %vm2530, %v4244, %v4729
    %v6176 = vsel %vm2530, %v4393, %v4731
    %v6177 = vsel %vm2530, %v4247, %v4733
    %v6178 = vsel %vm2530, %v4394, %v4735
    %v6179 = vsel %vm2530, %v4250, %v4737
    %v6180 = vsel %vm2530, %v4395, %v4739
    %v6181 = vsel %vm2530, %v4253, %v4741
    %v6182 = vsel %vm2530, %v4396, %v4743
    %v6183 = vsel %vm2530, %v4256, %v4745
    %v6184 = vsel %vm2530, %v4397, %v4747
    %v6185 = vsel %vm2530, %v4259, %v4749
    %v6186 = vsel %vm2530, %v4398, %v4751
    %v6187 = vsel %vm2530, %v4262, %v4753
    %v6188 = vsel %vm2530, %v4399, %v4755
    %v6189 = vsel %vm2530, %v4265, %v4757
    %v6190 = vsel %vm2530, %v4400, %v4759
    %v6191 = vsel %vm2530, %v4268, %v4761
    %v6192 = vsel %vm2530, %v4401, %v4763
    %v6193 = vsel %vm2530, %v4271, %v4765
    %v6194 = vsel %vm2530, %v4402, %v4767
    %v6195 = vsel %vm2530, %v4274, %v4769
    %v6196 = vsel %vm2790, %v6134, %v2214
    %v6197 = vsel %vm2790, %v6135, %v2216
    %v6198 = vsel %vm2790, %v6136, %v4983
    %v6199 = vsel %vm2790, %v6137, %v4985
    %v6200 = vsel %vm2790, %v6138, %v4987
    %v6201 = vsel %vm2790, %v6139, %v4989
    %v6202 = vsel %vm2790, %v6140, %v4991
    %v6203 = vsel %vm2790, %v6141, %v4993
    %v6204 = vsel %vm2790, %v6142, %v4995
    %v6205 = vsel %vm2790, %v6143, %v4997
    %v6206 = vsel %vm2790, %v6144, %v4999
    %v6207 = vsel %vm2790, %v6145, %v5001
    %v6208 = vsel %vm2790, %v6146, %v5003
    %v6209 = vsel %vm2790, %v6147, %v5005
    %v6210 = vsel %vm2790, %v6148, %v5007
    %v6211 = vsel %vm2790, %v6149, %v5009
    %v6212 = vsel %vm2790, %v6150, %v5011
    %v6213 = vsel %vm2790, %v6151, %v5013
    %v6214 = vsel %vm2790, %v6152, %v5015
    %v6215 = vsel %vm2790, %v6153, %v5017
    %v6216 = vsel %vm2790, %v6154, %v5019
    %v6217 = vsel %vm2790, %v6155, %v5021
    %v6218 = vsel %vm2790, %v6156, %v5023
    %v6219 = vsel %vm2790, %v6157, %v5025
    %v6220 = vsel %vm2790, %v6158, %v5027
    %v6221 = vsel %vm2790, %v6159, %v5029
    %v6222 = vsel %vm2790, %v6160, %v5031
    %v6223 = vsel %vm2790, %v6161, %v5033
    %v6224 = vsel %vm2790, %v6162, %v5035
    %v6225 = vsel %vm2790, %v6163, %v5037
    %v6226 = vsel %vm2790, %v6164, %v5039
    %v6227 = vsel %vm2790, %v6165, %v5041
    %v6228 = vsel %vm2790, %v6166, %v5043
    %v6229 = vsel %vm2790, %v6167, %v5045
    %v6230 = vsel %vm2790, %v6168, %v5047
    %v6231 = vsel %vm2790, %v6169, %v5049
    %v6232 = vsel %vm2790, %v6170, %v5051
    %v6233 = vsel %vm2790, %v6171, %v5053
    %v6234 = vsel %vm2790, %v6172, %v5055
    %v6235 = vsel %vm2790, %v6173, %v5057
    %v6236 = vsel %vm2790, %v6174, %v5059
    %v6237 = vsel %vm2790, %v6175, %v5061
    %v6238 = vsel %vm2790, %v6176, %v5063
    %v6239 = vsel %vm2790, %v6177, %v5065
    %v6240 = vsel %vm2790, %v6178, %v5067
    %v6241 = vsel %vm2790, %v6179, %v5069
    %v6242 = vsel %vm2790, %v6180, %v5071
    %v6243 = vsel %vm2790, %v6181, %v5073
    %v6244 = vsel %vm2790, %v6182, %v5075
    %v6245 = vsel %vm2790, %v6183, %v5077
    %v6246 = vsel %vm2790, %v6184, %v5079
    %v6247 = vsel %vm2790, %v6185, %v5081
    %v6248 = vsel %vm2790, %v6186, %v5083
    %v6249 = vsel %vm2790, %v6187, %v5085
    %v6250 = vsel %vm2790, %v6188, %v5087
    %v6251 = vsel %vm2790, %v6189, %v5089
    %v6252 = vsel %vm2790, %v6190, %v5091
    %v6253 = vsel %vm2790, %v6191, %v5093
    %v6254 = vsel %vm2790, %v6192, %v5095
    %v6255 = vsel %vm2790, %v6193, %v5097
    %v6256 = vsel %vm2790, %v6194, %v5099
    %v6257 = vsel %vm2790, %v6195, %v5101
    %vm6258 = vcmask 392192
    %v6259 = vsel %vm6258, %v6196, %v5165
    %v6260 = vsel %vm6258, %v6197, %v5167
    %v6261 = vsel %vm6258, %v6198, %v5169
    %v6262 = vsel %vm6258, %v6199, %v5171
    %v6263 = vsel %vm6258, %v6200, %v5173
    %v6264 = vsel %vm6258, %v6201, %v5175
    %v6265 = vsel %vm6258, %v6202, %v5177
    %v6266 = vsel %vm6258, %v6203, %v5179
    %v6267 = vsel %vm6258, %v6204, %v5181
    %v6268 = vsel %vm6258, %v6205, %v5183
    %v6269 = vsel %vm6258, %v6206, %v5185
    %v6270 = vsel %vm6258, %v6207, %v5187
    %v6271 = vsel %vm6258, %v6208, %v5189
    %v6272 = vsel %vm6258, %v6209, %v5191
    %v6273 = vsel %vm6258, %v6210, %v5193
    %v6274 = vsel %vm6258, %v6211, %v5195
    %v6275 = vsel %vm6258, %v6212, %v5197
    %v6276 = vsel %vm6258, %v6213, %v5199
    %v6277 = vsel %vm6258, %v6214, %v5201
    %v6278 = vsel %vm6258, %v6215, %v5203
    %v6279 = vsel %vm6258, %v6216, %v5205
    %v6280 = vsel %vm6258, %v6217, %v5207
    %v6281 = vsel %vm6258, %v6218, %v5209
    %v6282 = vsel %vm6258, %v6219, %v5211
    %v6283 = vsel %vm6258, %v6220, %v5213
    %v6284 = vsel %vm6258, %v6221, %v5215
    %v6285 = vsel %vm6258, %v6222, %v5217
    %v6286 = vsel %vm6258, %v6223, %v5219
    %v6287 = vsel %vm6258, %v6224, %v5221
    %v6288 = vsel %vm6258, %v6225, %v5223
    %v6289 = vsel %vm6258, %v6226, %v5225
    %v6290 = vsel %vm6258, %v6227, %v5227
    %v6291 = vsel %vm6258, %v6196, %v5229
    %v6292 = vsel %vm6258, %v6197, %v5231
    %v6293 = vsel %vm6258, %v6228, %v5233
    %v6294 = vsel %vm6258, %v6229, %v5235
    %v6295 = vsel %vm6258, %v6230, %v5237
    %v6296 = vsel %vm6258, %v6231, %v5239
    %v6297 = vsel %vm6258, %v6232, %v5241
    %v6298 = vsel %vm6258, %v6233, %v5243
    %v6299 = vsel %vm6258, %v6234, %v5245
    %v6300 = vsel %vm6258, %v6235, %v5247
    %v6301 = vsel %vm6258, %v6236, %v5249
    %v6302 = vsel %vm6258, %v6237, %v5251
    %v6303 = vsel %vm6258, %v6238, %v5253
    %v6304 = vsel %vm6258, %v6239, %v5255
    %v6305 = vsel %vm6258, %v6240, %v5257
    %v6306 = vsel %vm6258, %v6241, %v5259
    %v6307 = vsel %vm6258, %v6242, %v5261
    %v6308 = vsel %vm6258, %v6243, %v5263
    %v6309 = vsel %vm6258, %v6244, %v5265
    %v6310 = vsel %vm6258, %v6245, %v5267
    %v6311 = vsel %vm6258, %v6246, %v5269
    %v6312 = vsel %vm6258, %v6247, %v5271
    %v6313 = vsel %vm6258, %v6248, %v5273
    %v6314 = vsel %vm6258, %v6249, %v5275
    %v6315 = vsel %vm6258, %v6250, %v5277
    %v6316 = vsel %vm6258, %v6251, %v5279
    %v6317 = vsel %vm6258, %v6252, %v5281
    %v6318 = vsel %vm6258, %v6253, %v5283
    %v6319 = vsel %vm6258, %v6254, %v5285
    %v6320 = vsel %vm6258, %v6255, %v5287
    %v6321 = vsel %vm6258, %v6256, %v5289
    %v6322 = vsel %vm6258, %v6257, %v5291
    %vm6323 = vcmask 523264
    %v6324 = vsel %vm6323, %v6259, %v5369
    %v6325 = vsel %vm6323, %v6260, %v5371
    %v6326 = vsel %vm6323, %v6261, %v5373
    %v6327 = vsel %vm6323, %v6262, %v5375
    %v6328 = vsel %vm6323, %v6263, %v5377
    %v6329 = vsel %vm6323, %v6264, %v5379
    %v6330 = vsel %vm6323, %v6265, %v5381
    %v6331 = vsel %vm6323, %v6266, %v5383
    %v6332 = vsel %vm6323, %v6267, %v5385
    %v6333 = vsel %vm6323, %v6268, %v5387
    %v6334 = vsel %vm6323, %v6269, %v5389
    %v6335 = vsel %vm6323, %v6270, %v5391
    %v6336 = vsel %vm6323, %v6271, %v5393
    %v6337 = vsel %vm6323, %v6272, %v5395
    %v6338 = vsel %vm6323, %v6273, %v5397
    %v6339 = vsel %vm6323, %v6274, %v5399
    %v6340 = vsel %vm6323, %v6275, %v5401
    %v6341 = vsel %vm6323, %v6276, %v5403
    %v6342 = vsel %vm6323, %v6277, %v5405
    %v6343 = vsel %vm6323, %v6278, %v5407
    %v6344 = vsel %vm6323, %v6279, %v5409
    %v6345 = vsel %vm6323, %v6280, %v5411
    %v6346 = vsel %vm6323, %v6281, %v5413
    %v6347 = vsel %vm6323, %v6282, %v5415
    %v6348 = vsel %vm6323, %v6283, %v5417
    %v6349 = vsel %vm6323, %v6284, %v5419
    %v6350 = vsel %vm6323, %v6285, %v5421
    %v6351 = vsel %vm6323, %v6286, %v5423
    %v6352 = vsel %vm6323, %v6287, %v5425
    %v6353 = vsel %vm6323, %v6288, %v5427
    %v6354 = vsel %vm6323, %v6289, %v5429
    %v6355 = vsel %vm6323, %v6290, %v5431
    %v6356 = vsel %vm6323, %v6291, %v5433
    %v6357 = vsel %vm6323, %v6292, %v5435
    %v6358 = vsel %vm6323, %v6293, %v5437
    %v6359 = vsel %vm6323, %v6294, %v5439
    %v6360 = vsel %vm6323, %v6295, %v5441
    %v6361 = vsel %vm6323, %v6296, %v5443
    %v6362 = vsel %vm6323, %v6297, %v5445
    %v6363 = vsel %vm6323, %v6298, %v5447
    %v6364 = vsel %vm6323, %v6299, %v5449
    %v6365 = vsel %vm6323, %v6300, %v5451
    %v6366 = vsel %vm6323, %v6301, %v5453
    %v6367 = vsel %vm6323, %v6302, %v5455
    %v6368 = vsel %vm6323, %v6303, %v5457
    %v6369 = vsel %vm6323, %v6304, %v5459
    %v6370 = vsel %vm6323, %v6305, %v5461
    %v6371 = vsel %vm6323, %v6306, %v5463
    %v6372 = vsel %vm6323, %v6307, %v5465
    %v6373 = vsel %vm6323, %v6308, %v5467
    %v6374 = vsel %vm6323, %v6309, %v5469
    %v6375 = vsel %vm6323, %v6310, %v5471
    %v6376 = vsel %vm6323, %v6311, %v5473
    %v6377 = vsel %vm6323, %v6312, %v5475
    %v6378 = vsel %vm6323, %v6313, %v5477
    %v6379 = vsel %vm6323, %v6314, %v5479
    %v6380 = vsel %vm6323, %v6315, %v5481
    %v6381 = vsel %vm6323, %v6316, %v5483
    %v6382 = vsel %vm6323, %v6317, %v5485
    %v6383 = vsel %vm6323, %v6318, %v5487
    %v6384 = vsel %vm6323, %v6319, %v5489
    %v6385 = vsel %vm6323, %v6320, %v5491
    %v6386 = vsel %vm6323, %v6321, %v5493
    %v6387 = vsel %vm6323, %v6322, %v5495
    %vm6388 = vcmask 654336
    %v6389 = vsel %vm6388, %v6324, %v5571
    %v6390 = vsel %vm6388, %v6325, %v5573
    %v6391 = vsel %vm6388, %v6326, %v5575
    %v6392 = vsel %vm6388, %v6327, %v5577
    %v6393 = vsel %vm6388, %v6328, %v5579
    %v6394 = vsel %vm6388, %v6329, %v5581
    %v6395 = vsel %vm6388, %v6330, %v5583
    %v6396 = vsel %vm6388, %v6331, %v5585
    %v6397 = vsel %vm6388, %v6332, %v5587
    %v6398 = vsel %vm6388, %v6333, %v5589
    %v6399 = vsel %vm6388, %v6334, %v5591
    %v6400 = vsel %vm6388, %v6335, %v5593
    %v6401 = vsel %vm6388, %v6336, %v5595
    %v6402 = vsel %vm6388, %v6337, %v5597
    %v6403 = vsel %vm6388, %v6338, %v5599
    %v6404 = vsel %vm6388, %v6339, %v5601
    %v6405 = vsel %vm6388, %v6340, %v5603
    %v6406 = vsel %vm6388, %v6341, %v5605
    %v6407 = vsel %vm6388, %v6342, %v5607
    %v6408 = vsel %vm6388, %v6343, %v5609
    %v6409 = vsel %vm6388, %v6344, %v5611
    %v6410 = vsel %vm6388, %v6345, %v5613
    %v6411 = vsel %vm6388, %v6346, %v5615
    %v6412 = vsel %vm6388, %v6347, %v5617
    %v6413 = vsel %vm6388, %v6348, %v5619
    %v6414 = vsel %vm6388, %v6349, %v5621
    %v6415 = vsel %vm6388, %v6350, %v5623
    %v6416 = vsel %vm6388, %v6351, %v5625
    %v6417 = vsel %vm6388, %v6352, %v5627
    %v6418 = vsel %vm6388, %v6353, %v5629
    %v6419 = vsel %vm6388, %v6354, %v5631
    %v6420 = vsel %vm6388, %v6355, %v5633
    %v6421 = vsel %vm6388, %v6356, %v5635
    %v6422 = vsel %vm6388, %v6357, %v5637
    %v6423 = vsel %vm6388, %v6358, %v5639
    %v6424 = vsel %vm6388, %v6359, %v5641
    %v6425 = vsel %vm6388, %v6360, %v5643
    %v6426 = vsel %vm6388, %v6361, %v5645
    %v6427 = vsel %vm6388, %v6362, %v5647
    %v6428 = vsel %vm6388, %v6363, %v5649
    %v6429 = vsel %vm6388, %v6364, %v5651
    %v6430 = vsel %vm6388, %v6365, %v5653
    %v6431 = vsel %vm6388, %v6366, %v5655
    %v6432 = vsel %vm6388, %v6367, %v5657
    %v6433 = vsel %vm6388, %v6368, %v5659
    %v6434 = vsel %vm6388, %v6369, %v5661
    %v6435 = vsel %vm6388, %v6370, %v5663
    %v6436 = vsel %vm6388, %v6371, %v5665
    %v6437 = vsel %vm6388, %v6372, %v5667
    %v6438 = vsel %vm6388, %v6373, %v5669
    %v6439 = vsel %vm6388, %v6374, %v5671
    %v6440 = vsel %vm6388, %v6375, %v5673
    %v6441 = vsel %vm6388, %v6376, %v5675
    %v6442 = vsel %vm6388, %v6377, %v5677
    %v6443 = vsel %vm6388, %v6378, %v5679
    %v6444 = vsel %vm6388, %v6379, %v5681
    %v6445 = vsel %vm6388, %v6380, %v5683
    %v6446 = vsel %vm6388, %v6381, %v5685
    %v6447 = vsel %vm6388, %v6382, %v5687
    %v6448 = vsel %vm6388, %v6383, %v5689
    %v6449 = vsel %vm6388, %v6384, %v5691
    %v6450 = vsel %vm6388, %v6385, %v5693
    %v6451 = vsel %vm6388, %v6386, %v5695
    %v6452 = vsel %vm6388, %v6387, %v5697
    %vm6453 = vcmask 785408
    %v6454 = vsel %vm6453, %v6389, %v5763
    %v6455 = vsel %vm6453, %v6390, %v5765
    %v6456 = vsel %vm6453, %v6391, %v5767
    %v6457 = vsel %vm6453, %v6392, %v5769
    %v6458 = vsel %vm6453, %v6393, %v5771
    %v6459 = vsel %vm6453, %v6394, %v5773
    %v6460 = vsel %vm6453, %v6395, %v5775
    %v6461 = vsel %vm6453, %v6396, %v5777
    %v6462 = vsel %vm6453, %v6397, %v5779
    %v6463 = vsel %vm6453, %v6398, %v5781
    %v6464 = vsel %vm6453, %v6399, %v5783
    %v6465 = vsel %vm6453, %v6400, %v5785
    %v6466 = vsel %vm6453, %v6401, %v5787
    %v6467 = vsel %vm6453, %v6402, %v5789
    %v6468 = vsel %vm6453, %v6403, %v5791
    %v6469 = vsel %vm6453, %v6404, %v5793
    %v6470 = vsel %vm6453, %v6405, %v5795
    %v6471 = vsel %vm6453, %v6406, %v5797
    %v6472 = vsel %vm6453, %v6407, %v5799
    %v6473 = vsel %vm6453, %v6408, %v5801
    %v6474 = vsel %vm6453, %v6409, %v5803
    %v6475 = vsel %vm6453, %v6410, %v5805
    %v6476 = vsel %vm6453, %v6411, %v5807
    %v6477 = vsel %vm6453, %v6412, %v5809
    %v6478 = vsel %vm6453, %v6413, %v5811
    %v6479 = vsel %vm6453, %v6414, %v5813
    %v6480 = vsel %vm6453, %v6415, %v5815
    %v6481 = vsel %vm6453, %v6416, %v5817
    %v6482 = vsel %vm6453, %v6417, %v5819
    %v6483 = vsel %vm6453, %v6418, %v5821
    %v6484 = vsel %vm6453, %v6419, %v5823
    %v6485 = vsel %vm6453, %v6420, %v5825
    %v6486 = vsel %vm6453, %v6421, %v5827
    %v6487 = vsel %vm6453, %v6422, %v5829
    %v6488 = vsel %vm6453, %v6423, %v5831
    %v6489 = vsel %vm6453, %v6424, %v5833
    %v6490 = vsel %vm6453, %v6425, %v5835
    %v6491 = vsel %vm6453, %v6426, %v5837
    %v6492 = vsel %vm6453, %v6427, %v5839
    %v6493 = vsel %vm6453, %v6428, %v5841
    %v6494 = vsel %vm6453, %v6429, %v5843
    %v6495 = vsel %vm6453, %v6430, %v5845
    %v6496 = vsel %vm6453, %v6431, %v5847
    %v6497 = vsel %vm6453, %v6432, %v5849
    %v6498 = vsel %vm6453, %v6433, %v5851
    %v6499 = vsel %vm6453, %v6434, %v5853
    %v6500 = vsel %vm6453, %v6435, %v5855
    %v6501 = vsel %vm6453, %v6436, %v5857
    %v6502 = vsel %vm6453, %v6437, %v5859
    %v6503 = vsel %vm6453, %v6438, %v5861
    %v6504 = vsel %vm6453, %v6439, %v5863
    %v6505 = vsel %vm6453, %v6440, %v5865
    %v6506 = vsel %vm6453, %v6441, %v5867
    %v6507 = vsel %vm6453, %v6442, %v5869
    %v6508 = vsel %vm6453, %v6443, %v5871
    %v6509 = vsel %vm6453, %v6444, %v5873
    %v6510 = vsel %vm6453, %v6445, %v5875
    %v6511 = vsel %vm6453, %v6446, %v5877
    %v6512 = vsel %vm6453, %v6447, %v5879
    %v6513 = vsel %vm6453, %v6448, %v5881
    %v6514 = vsel %vm6453, %v6449, %v5883
    %v6515 = vsel %vm6453, %v6450, %v5885
    %v6516 = vsel %vm6453, %v6451, %v5823
    %v6517 = vsel %vm6453, %v6452, %v5825
    %vm6518 = vcmask 916480
    %v6519 = vsel %vm6518, %v6454, %v5949
    %v6520 = vsel %vm6518, %v6455, %v5951
    %v6521 = vsel %vm6518, %v6456, %v5953
    %v6522 = vsel %vm6518, %v6457, %v5955
    %v6523 = vsel %vm6518, %v6458, %v5957
    %v6524 = vsel %vm6518, %v6459, %v5959
    %v6525 = vsel %vm6518, %v6460, %v5961
    %v6526 = vsel %vm6518, %v6461, %v5963
    %v6527 = vsel %vm6518, %v6462, %v5965
    %v6528 = vsel %vm6518, %v6463, %v5967
    %v6529 = vsel %vm6518, %v6464, %v5969
    %v6530 = vsel %vm6518, %v6465, %v5971
    %v6531 = vsel %vm6518, %v6466, %v5973
    %v6532 = vsel %vm6518, %v6467, %v5975
    %v6533 = vsel %vm6518, %v6468, %v5977
    %v6534 = vsel %vm6518, %v6469, %v5979
    %v6535 = vsel %vm6518, %v6470, %v5981
    %v6536 = vsel %vm6518, %v6471, %v5983
    %v6537 = vsel %vm6518, %v6472, %v5985
    %v6538 = vsel %vm6518, %v6473, %v5987
    %v6539 = vsel %vm6518, %v6474, %v5989
    %v6540 = vsel %vm6518, %v6475, %v5991
    %v6541 = vsel %vm6518, %v6476, %v5993
    %v6542 = vsel %vm6518, %v6477, %v5995
    %v6543 = vsel %vm6518, %v6478, %v5997
    %v6544 = vsel %vm6518, %v6479, %v5999
    %v6545 = vsel %vm6518, %v6480, %v6001
    %v6546 = vsel %vm6518, %v6481, %v6003
    %v6547 = vsel %vm6518, %v6482, %v6005
    %v6548 = vsel %vm6518, %v6483, %v6007
    %v6549 = vsel %vm6518, %v6484, %v6009
    %v6550 = vsel %vm6518, %v6485, %v6011
    %v6551 = vsel %vm6518, %v6486, %v6013
    %v6552 = vsel %vm6518, %v6487, %v6015
    %v6553 = vsel %vm6518, %v6488, %v6017
    %v6554 = vsel %vm6518, %v6489, %v6019
    %v6555 = vsel %vm6518, %v6490, %v6021
    %v6556 = vsel %vm6518, %v6491, %v6023
    %v6557 = vsel %vm6518, %v6492, %v6025
    %v6558 = vsel %vm6518, %v6493, %v6027
    %v6559 = vsel %vm6518, %v6494, %v6029
    %v6560 = vsel %vm6518, %v6495, %v6031
    %v6561 = vsel %vm6518, %v6496, %v6033
    %v6562 = vsel %vm6518, %v6497, %v6035
    %v6563 = vsel %vm6518, %v6498, %v6037
    %v6564 = vsel %vm6518, %v6499, %v6039
    %v6565 = vsel %vm6518, %v6500, %v6041
    %v6566 = vsel %vm6518, %v6501, %v6043
    %v6567 = vsel %vm6518, %v6502, %v6045
    %v6568 = vsel %vm6518, %v6503, %v6047
    %v6569 = vsel %vm6518, %v6504, %v6049
    %v6570 = vsel %vm6518, %v6505, %v6051
    %v6571 = vsel %vm6518, %v6506, %v6053
    %v6572 = vsel %vm6518, %v6507, %v6055
    %v6573 = vsel %vm6518, %v6508, %v6057
    %v6574 = vsel %vm6518, %v6509, %v6059
    %v6575 = vsel %vm6518, %v6510, %v6061
    %v6576 = vsel %vm6518, %v6511, %v6063
    %v6577 = vsel %vm6518, %v6512, %v6065
    %v6578 = vsel %vm6518, %v6513, %v6067
    %v6579 = vsel %vm6518, %v6514, %v6069
    %v6580 = vsel %vm6518, %v6515, %v6071
    %v6581 = vsel %vm6518, %v6516, %v6009
    %v6582 = vsel %vm6518, %v6517, %v6011
    %v6583 = vld [vmem:[%s5] sm:$0xff]
    %v6584 = vld [vmem:[%s5 + $0x8] sm:$0xff]
    %v6585 = vld [vmem:[%s5 + $0x10] sm:$0xff]
    %v6586 = vld [vmem:[%s5 + $0x18] sm:$0xff]
    %v6587 = vld [vmem:[%s5 + $0x20] sm:$0xff]
    %v6588 = vld [vmem:[%s5 + $0x28] sm:$0xff]
    %v6589 = vld [vmem:[%s5 + $0x30] sm:$0xff]
    %v6590 = vld [vmem:[%s5 + $0x38] sm:$0xff]
    %v6591 = vld [vmem:[%s5 + $0x40] sm:$0xff]
    %v6592 = vld [vmem:[%s5 + $0x48] sm:$0xff]
    %v6593 = vld [vmem:[%s5 + $0x50] sm:$0xff]
    %v6594 = vld [vmem:[%s5 + $0x58] sm:$0xff]
    %v6595 = vld [vmem:[%s5 + $0x60] sm:$0xff]
    %v6596 = vld [vmem:[%s5 + $0x68] sm:$0xff]
    %v6597 = vld [vmem:[%s5 + $0x70] sm:$0xff]
    %v6598 = vld [vmem:[%s5 + $0x78] sm:$0xff]
    %v6599 = vld [vmem:[%s5 + $0x80] sm:$0xff]
    %v6600 = vld [vmem:[%s5 + $0x88] sm:$0xff]
    %v6601 = vld [vmem:[%s6] sm:$0x1]
    %v6603 = vlaneseq
    %v6604 = vshrl.u32 %v6603, 7
    %v6605 = vsub.s32 0, %v6604
    %v6606 = vrot.slane %v6601, %v6605
    %v6608 = vsel %vm2530, %v4839, 0
    %v6610 = vsel %vm2530, %v4841, 0
    %v6612 = vsel %vm2530, %v4844, 0
    %v6614 = vsel %vm2530, %v4846, 0
    %v6616 = vsel %vm2530, %v4849, 0
    %v6618 = vsel %vm2530, %v4851, 0
    %v6620 = vsel %vm2530, %v4854, 0
    %v6622 = vsel %vm2530, %v4856, 0
    %v6624 = vsel %vm2530, %v4859, 0
    %v6626 = vsel %vm2530, %v4861, 0
    %v6628 = vsel %vm2530, %v4864, 0
    %v6630 = vsel %vm2530, %v4866, 0
    %v6632 = vsel %vm2530, %v4869, 0
    %v6634 = vsel %vm2530, %v4871, 0
    %v6636 = vsel %vm2530, %v4874, 0
    %v6638 = vsel %vm2530, %v4876, 0
    %v6640 = vsel %vm2530, %v4879, 0
    %v6642 = vsel %vm2530, %v4881, 0
    %v6644 = vsel %vm2530, %v4884, 0
    %v6646 = vsel %vm2530, %v4886, 0
    %v6648 = vsel %vm2530, %v4889, 0
    %v6650 = vsel %vm2530, %v4891, 0
    %v6652 = vsel %vm2530, %v4894, 0
    %v6654 = vsel %vm2530, %v4896, 0
    %v6656 = vsel %vm2530, %v4899, 0
    %v6658 = vsel %vm2530, %v4901, 0
    %v6660 = vsel %vm2530, %v4904, 0
    %v6662 = vsel %vm2530, %v4906, 0
    %v6664 = vsel %vm2530, %v5562, 0
    %v6666 = vsel %vm2530, %v5564, 0
    %v6668 = vsel %vm2530, %v842, 0
    %v6670 = vsel %vm2530, %v844, 0
    %v6672 = vsel %vm2530, %v4914, 0
    %v6674 = vsel %vm2530, %v4916, 0
    %v6676 = vsel %vm2530, %v4919, 0
    %v6678 = vsel %vm2530, %v4921, 0
    %v6680 = vsel %vm2530, %v4924, 0
    %v6682 = vsel %vm2530, %v4926, 0
    %v6684 = vsel %vm2530, %v4929, 0
    %v6686 = vsel %vm2530, %v4931, 0
    %v6688 = vsel %vm2530, %v4934, 0
    %v6690 = vsel %vm2530, %v4936, 0
    %v6692 = vsel %vm2530, %v4939, 0
    %v6694 = vsel %vm2530, %v4941, 0
    %v6696 = vsel %vm2530, %v4944, 0
    %v6698 = vsel %vm2530, %v4946, 0
    %v6700 = vsel %vm2530, %v4949, 0
    %v6702 = vsel %vm2530, %v4951, 0
    %v6704 = vsel %vm2530, %v4954, 0
    %v6706 = vsel %vm2530, %v4956, 0
    %v6708 = vsel %vm2530, %v4959, 0
    %v6710 = vsel %vm2530, %v4961, 0
    %v6712 = vsel %vm2530, %v4964, 0
    %v6714 = vsel %vm2530, %v4966, 0
    %v6716 = vsel %vm2530, %v4969, 0
    %v6718 = vsel %vm2530, %v4971, 0
    %v6720 = vsel %vm2530, %v4974, 0
    %v6722 = vsel %vm2530, %v4976, 0
    %v6724 = vsel %vm2530, %v4979, 0
    %v6726 = vsel %vm2530, %v4981, 0
    %v6728 = vsel %vm2530, %v5567, 0
    %v6730 = vsel %vm2530, %v5569, 0
    %6732 = vmatprep.subr.mxu0 0.0
    %6733 = vmatpush1.msra.mxu0 %v6583
    %6734 = vmatprep.subr.mxu0 0.0
    %6735 = vmatpush1.msra.mxu0 %v6584
    %6736 = vmatprep.subr.mxu0 0.0
    %6737 = vmatpush1.msra.mxu0 %v6585
    %6738 = vmatprep.subr.mxu0 0.0
    %6739 = vmatpush1.msra.mxu0 %v6586
    %6740 = vmatprep.subr.mxu0 0.0
    %6741 = vmatpush1.msra.mxu0 %v6587
    %6742 = vmatprep.subr.mxu0 0.0
    %6743 = vmatpush1.msra.mxu0 %v6588
    %6744 = vmatprep.subr.mxu0 0.0
    %6745 = vmatpush1.msra.mxu0 %v6589
    %6746 = vmatprep.subr.mxu0 0.0
    %6747 = vmatpush1.msra.mxu0 %v6590
    %6748 = vmatprep.subr.mxu0 0.0
    %6749 = vmatpush1.msra.mxu0 %v6591
    %6750 = vmatprep.subr.mxu0 0.0
    %6751 = vmatpush1.msra.mxu0 %v6592
    %6752 = vmatprep.subr.mxu0 0.0
    %6753 = vmatpush1.msra.mxu0 %v6593
    %6754 = vmatprep.subr.mxu0 0.0
    %6755 = vmatpush1.msra.mxu0 %v6594
    %6756 = vmatprep.subr.mxu0 0.0
    %6757 = vmatpush1.msra.mxu0 %v6595
    %6758 = vmatprep.subr.mxu0 0.0
    %6759 = vmatpush1.msra.mxu0 %v6596
    %6760 = vmatprep.subr.mxu0 0.0
    %6761 = vmatpush1.msra.mxu0 %v6597
    %6762 = vmatprep.subr.mxu0 0.0
    %6763 = vmatpush1.msra.mxu0 %v6598
    %6764 = vmatprep.subr.mxu0 0.0
    %6765 = vmatpush1.msra.mxu0 %v6599
    %6766 = vmatprep.subr.mxu0 0.0
    %6767 = vmatpush1.msra.mxu0 %v6600
    %6768 = vmatprep.subr.mxu0 0.0
    %6769 = vmatpush1.msra.mxu0 0.0
    %6770 = vmatprep.subr.mxu0 0.0
    %6771 = vmatpush1.msra.mxu0 0.0
    %6772 = vmatprep.subr.mxu0 0.0
    %6773 = vmatpush1.msra.mxu0 0.0
    %6774 = vmatprep.subr.mxu0 0.0
    %6775 = vmatpush1.msra.mxu0 0.0
    %6776 = vmatprep.subr.mxu0 0.0
    %6777 = vmatpush1.msra.mxu0 0.0
    %6778 = vmatprep.subr.mxu0 0.0
    %6779 = vmatpush1.msra.mxu0 0.0
    %6780 = vmatprep.subr.mxu0 0.0
    %6781 = vmatpush1.msra.mxu0 0.0
    %6782 = vmatprep.subr.mxu0 0.0
    %6783 = vmatpush1.msra.mxu0 0.0
    %6784 = vmatprep.subr.mxu0 0.0
    %6785 = vmatpush1.msra.mxu0 0.0
    %6786 = vmatprep.subr.mxu0 0.0
    %6787 = vmatpush1.msra.mxu0 0.0
    %6788 = vmatprep.subr.mxu0 0.0
    %6789 = vmatpush1.msra.mxu0 0.0
    %6790 = vmatprep.subr.mxu0 0.0
    %6791 = vmatpush1.msra.mxu0 0.0
    %6792 = vmatprep.subr.mxu0 0.0
    %6793 = vmatpush1.msra.mxu0 0.0
    %6794 = vmatprep.subr.mxu0 0.0
    %6795 = vmatpush1.msra.mxu0 0.0
    %6796 = vmatprep.mubr.f32.mxu0 %v6608
    %6797 = vmatmul.mubr.f32.gmra.mrb[0].mxu0 %v6519
    %v6798 = vpop.f32.mrb[0].mxu0
    %v6799 = vadd.f32 %v6606, %v6798
    %v6800 = vpop.f32.mrb[0].mxu0
    %6801 = vmatprep.mubr.f32.mxu0 %v6610
    %6802 = vmatmul.mubr.f32.gmra.mrb[0].mxu0 %v6520
    %v6803 = vpop.f32.mrb[0].mxu0
    %v6804 = vadd.f32 %v6606, %v6803
    %v6805 = vpop.f32.mrb[0].mxu0
    %6806 = vmatprep.mubr.f32.mxu0 %v6612
    %6807 = vmatmul.mubr.f32.gmra.mrb[0].mxu0 %v6521
    %v6808 = vpop.f32.mrb[0].mxu0
    %v6809 = vadd.f32 %v6606, %v6808
    %v6810 = vpop.f32.mrb[0].mxu0
    %6811 = vmatprep.mubr.f32.mxu0 %v6614
    %6812 = vmatmul.mubr.f32.gmra.mrb[0].mxu0 %v6522
    %v6813 = vpop.f32.mrb[0].mxu0
    %v6814 = vadd.f32 %v6606, %v6813
    %v6815 = vpop.f32.mrb[0].mxu0
    %6816 = vmatprep.mubr.f32.mxu0 %v6616
    %6817 = vmatmul.mubr.f32.gmra.mrb[0].mxu0 %v6523
    %v6818 = vpop.f32.mrb[0].mxu0
    %v6819 = vadd.f32 %v6606, %v6818
    %v6820 = vpop.f32.mrb[0].mxu0
    %6821 = vmatprep.mubr.f32.mxu0 %v6618
    %6822 = vmatmul.mubr.f32.gmra.mrb[0].mxu0 %v6524
    %v6823 = vpop.f32.mrb[0].mxu0
    %v6824 = vadd.f32 %v6606, %v6823
    %v6825 = vpop.f32.mrb[0].mxu0
    %6826 = vmatprep.mubr.f32.mxu0 %v6620
    %6827 = vmatmul.mubr.f32.gmra.mrb[0].mxu0 %v6525
    %v6828 = vpop.f32.mrb[0].mxu0
    %v6829 = vadd.f32 %v6606, %v6828
    %v6830 = vpop.f32.mrb[0].mxu0
    %6831 = vmatprep.mubr.f32.mxu0 %v6622
    %6832 = vmatmul.mubr.f32.gmra.mrb[0].mxu0 %v6526
    %v6833 = vpop.f32.mrb[0].mxu0
    %v6834 = vadd.f32 %v6606, %v6833
    %v6835 = vpop.f32.mrb[0].mxu0
    %6836 = vmatprep.mubr.f32.mxu0 %v6624
    %6837 = vmatmul.mubr.f32.gmra.mrb[0].mxu0 %v6527
    %v6838 = vpop.f32.mrb[0].mxu0
    %v6839 = vadd.f32 %v6606, %v6838
    %v6840 = vpop.f32.mrb[0].mxu0
    %6841 = vmatprep.mubr.f32.mxu0 %v6626
    %6842 = vmatmul.mubr.f32.gmra.mrb[0].mxu0 %v6528
    %v6843 = vpop.f32.mrb[0].mxu0
    %v6844 = vadd.f32 %v6606, %v6843
    %v6845 = vpop.f32.mrb[0].mxu0
    %6846 = vmatprep.mubr.f32.mxu0 %v6628
    %6847 = vmatmul.mubr.f32.gmra.mrb[0].mxu0 %v6529
    %v6848 = vpop.f32.mrb[0].mxu0
    %v6849 = vadd.f32 %v6606, %v6848
    %v6850 = vpop.f32.mrb[0].mxu0
    %6851 = vmatprep.mubr.f32.mxu0 %v6630
    %6852 = vmatmul.mubr.f32.gmra.mrb[0].mxu0 %v6530
    %v6853 = vpop.f32.mrb[0].mxu0
    %v6854 = vadd.f32 %v6606, %v6853
    %v6855 = vpop.f32.mrb[0].mxu0
    %6856 = vmatprep.mubr.f32.mxu0 %v6632
    %6857 = vmatmul.mubr.f32.gmra.mrb[0].mxu0 %v6531
    %v6858 = vpop.f32.mrb[0].mxu0
    %v6859 = vadd.f32 %v6606, %v6858
    %v6860 = vpop.f32.mrb[0].mxu0
    %6861 = vmatprep.mubr.f32.mxu0 %v6634
    %6862 = vmatmul.mubr.f32.gmra.mrb[0].mxu0 %v6532
    %v6863 = vpop.f32.mrb[0].mxu0
    %v6864 = vadd.f32 %v6606, %v6863
    %v6865 = vpop.f32.mrb[0].mxu0
    %6866 = vmatprep.mubr.f32.mxu0 %v6636
    %6867 = vmatmul.mubr.f32.gmra.mrb[0].mxu0 %v6533
    %v6868 = vpop.f32.mrb[0].mxu0
    %v6869 = vadd.f32 %v6606, %v6868
    %v6870 = vpop.f32.mrb[0].mxu0
    %6871 = vmatprep.mubr.f32.mxu0 %v6638
    %6872 = vmatmul.mubr.f32.gmra.mrb[0].mxu0 %v6534
    %v6873 = vpop.f32.mrb[0].mxu0
    %v6874 = vadd.f32 %v6606, %v6873
    %v6875 = vpop.f32.mrb[0].mxu0
    %6876 = vmatprep.mubr.f32.mxu0 %v6640
    %6877 = vmatmul.mubr.f32.gmra.mrb[0].mxu0 %v6535
    %v6878 = vpop.f32.mrb[0].mxu0
    %v6879 = vadd.f32 %v6606, %v6878
    %v6880 = vpop.f32.mrb[0].mxu0
    %6881 = vmatprep.mubr.f32.mxu0 %v6642
    %6882 = vmatmul.mubr.f32.gmra.mrb[0].mxu0 %v6536
    %v6883 = vpop.f32.mrb[0].mxu0
    %v6884 = vadd.f32 %v6606, %v6883
    %v6885 = vpop.f32.mrb[0].mxu0
    %6886 = vmatprep.mubr.f32.mxu0 %v6644
    %6887 = vmatmul.mubr.f32.gmra.mrb[0].mxu0 %v6537
    %v6888 = vpop.f32.mrb[0].mxu0
    %v6889 = vadd.f32 %v6606, %v6888
    %v6890 = vpop.f32.mrb[0].mxu0
    %6891 = vmatprep.mubr.f32.mxu0 %v6646
    %6892 = vmatmul.mubr.f32.gmra.mrb[0].mxu0 %v6538
    %v6893 = vpop.f32.mrb[0].mxu0
    %v6894 = vadd.f32 %v6606, %v6893
    %v6895 = vpop.f32.mrb[0].mxu0
    %6896 = vmatprep.mubr.f32.mxu0 %v6648
    %6897 = vmatmul.mubr.f32.gmra.mrb[0].mxu0 %v6539
    %v6898 = vpop.f32.mrb[0].mxu0
    %v6899 = vadd.f32 %v6606, %v6898
    %v6900 = vpop.f32.mrb[0].mxu0
    %6901 = vmatprep.mubr.f32.mxu0 %v6650
    %6902 = vmatmul.mubr.f32.gmra.mrb[0].mxu0 %v6540
    %v6903 = vpop.f32.mrb[0].mxu0
    %v6904 = vadd.f32 %v6606, %v6903
    %v6905 = vpop.f32.mrb[0].mxu0
    %6906 = vmatprep.mubr.f32.mxu0 %v6652
    %6907 = vmatmul.mubr.f32.gmra.mrb[0].mxu0 %v6541
    %v6908 = vpop.f32.mrb[0].mxu0
    %v6909 = vadd.f32 %v6606, %v6908
    %v6910 = vpop.f32.mrb[0].mxu0
    %6911 = vmatprep.mubr.f32.mxu0 %v6654
    %6912 = vmatmul.mubr.f32.gmra.mrb[0].mxu0 %v6542
    %v6913 = vpop.f32.mrb[0].mxu0
    %v6914 = vadd.f32 %v6606, %v6913
    %v6915 = vpop.f32.mrb[0].mxu0
    %6916 = vmatprep.mubr.f32.mxu0 %v6656
    %6917 = vmatmul.mubr.f32.gmra.mrb[0].mxu0 %v6543
    %v6918 = vpop.f32.mrb[0].mxu0
    %v6919 = vadd.f32 %v6606, %v6918
    %v6920 = vpop.f32.mrb[0].mxu0
    %6921 = vmatprep.mubr.f32.mxu0 %v6658
    %6922 = vmatmul.mubr.f32.gmra.mrb[0].mxu0 %v6544
    %v6923 = vpop.f32.mrb[0].mxu0
    %v6924 = vadd.f32 %v6606, %v6923
    %v6925 = vpop.f32.mrb[0].mxu0
    %6926 = vmatprep.mubr.f32.mxu0 %v6660
    %6927 = vmatmul.mubr.f32.gmra.mrb[0].mxu0 %v6545
    %v6928 = vpop.f32.mrb[0].mxu0
    %v6929 = vadd.f32 %v6606, %v6928
    %v6930 = vpop.f32.mrb[0].mxu0
    %6931 = vmatprep.mubr.f32.mxu0 %v6662
    %6932 = vmatmul.mubr.f32.gmra.mrb[0].mxu0 %v6546
    %v6933 = vpop.f32.mrb[0].mxu0
    %v6934 = vadd.f32 %v6606, %v6933
    %v6935 = vpop.f32.mrb[0].mxu0
    %6936 = vmatprep.mubr.f32.mxu0 %v6664
    %6937 = vmatmul.mubr.f32.gmra.mrb[0].mxu0 %v6547
    %v6938 = vpop.f32.mrb[0].mxu0
    %v6939 = vadd.f32 %v6606, %v6938
    %v6940 = vpop.f32.mrb[0].mxu0
    %6941 = vmatprep.mubr.f32.mxu0 %v6666
    %6942 = vmatmul.mubr.f32.gmra.mrb[0].mxu0 %v6548
    %v6943 = vpop.f32.mrb[0].mxu0
    %v6944 = vadd.f32 %v6606, %v6943
    %v6945 = vpop.f32.mrb[0].mxu0
    %6946 = vmatprep.mubr.f32.mxu0 %v6668
    %6947 = vmatmul.mubr.f32.gmra.mrb[0].mxu0 %v6549
    %v6948 = vpop.f32.mrb[0].mxu0
    %v6949 = vadd.f32 %v6606, %v6948
    %v6950 = vpop.f32.mrb[0].mxu0
    %6951 = vmatprep.mubr.f32.mxu0 %v6670
    %6952 = vmatmul.mubr.f32.gmra.mrb[0].mxu0 %v6550
    %v6953 = vpop.f32.mrb[0].mxu0
    %v6954 = vadd.f32 %v6606, %v6953
    %v6955 = vpop.f32.mrb[0].mxu0
    %6956 = vmatprep.mubr.f32.mxu0 %v6672
    %6957 = vmatmul.mubr.f32.gmra.mrb[0].mxu0 %v6551
    %v6958 = vpop.f32.mrb[0].mxu0
    %v6959 = vadd.f32 %v6606, %v6958
    %v6960 = vpop.f32.mrb[0].mxu0
    %6961 = vmatprep.mubr.f32.mxu0 %v6674
    %6962 = vmatmul.mubr.f32.gmra.mrb[0].mxu0 %v6552
    %v6963 = vpop.f32.mrb[0].mxu0
    %v6964 = vadd.f32 %v6606, %v6963
    %v6965 = vpop.f32.mrb[0].mxu0
    %6966 = vmatprep.mubr.f32.mxu0 %v6676
    %6967 = vmatmul.mubr.f32.gmra.mrb[0].mxu0 %v6553
    %v6968 = vpop.f32.mrb[0].mxu0
    %v6969 = vadd.f32 %v6606, %v6968
    %v6970 = vpop.f32.mrb[0].mxu0
    %6971 = vmatprep.mubr.f32.mxu0 %v6678
    %6972 = vmatmul.mubr.f32.gmra.mrb[0].mxu0 %v6554
    %v6973 = vpop.f32.mrb[0].mxu0
    %v6974 = vadd.f32 %v6606, %v6973
    %v6975 = vpop.f32.mrb[0].mxu0
    %6976 = vmatprep.mubr.f32.mxu0 %v6680
    %6977 = vmatmul.mubr.f32.gmra.mrb[0].mxu0 %v6555
    %v6978 = vpop.f32.mrb[0].mxu0
    %v6979 = vadd.f32 %v6606, %v6978
    %v6980 = vpop.f32.mrb[0].mxu0
    %6981 = vmatprep.mubr.f32.mxu0 %v6682
    %6982 = vmatmul.mubr.f32.gmra.mrb[0].mxu0 %v6556
    %v6983 = vpop.f32.mrb[0].mxu0
    %v6984 = vadd.f32 %v6606, %v6983
    %v6985 = vpop.f32.mrb[0].mxu0
    %6986 = vmatprep.mubr.f32.mxu0 %v6684
    %6987 = vmatmul.mubr.f32.gmra.mrb[0].mxu0 %v6557
    %v6988 = vpop.f32.mrb[0].mxu0
    %v6989 = vadd.f32 %v6606, %v6988
    %v6990 = vpop.f32.mrb[0].mxu0
    %6991 = vmatprep.mubr.f32.mxu0 %v6686
    %6992 = vmatmul.mubr.f32.gmra.mrb[0].mxu0 %v6558
    %v6993 = vpop.f32.mrb[0].mxu0
    %v6994 = vadd.f32 %v6606, %v6993
    %v6995 = vpop.f32.mrb[0].mxu0
    %6996 = vmatprep.mubr.f32.mxu0 %v6688
    %6997 = vmatmul.mubr.f32.gmra.mrb[0].mxu0 %v6559
    %v6998 = vpop.f32.mrb[0].mxu0
    %v6999 = vadd.f32 %v6606, %v6998
    %v7000 = vpop.f32.mrb[0].mxu0
    %7001 = vmatprep.mubr.f32.mxu0 %v6690
    %7002 = vmatmul.mubr.f32.gmra.mrb[0].mxu0 %v6560
    %v7003 = vpop.f32.mrb[0].mxu0
    %v7004 = vadd.f32 %v6606, %v7003
    %v7005 = vpop.f32.mrb[0].mxu0
    %7006 = vmatprep.mubr.f32.mxu0 %v6692
    %7007 = vmatmul.mubr.f32.gmra.mrb[0].mxu0 %v6561
    %v7008 = vpop.f32.mrb[0].mxu0
    %v7009 = vadd.f32 %v6606, %v7008
    %v7010 = vpop.f32.mrb[0].mxu0
    %7011 = vmatprep.mubr.f32.mxu0 %v6694
    %7012 = vmatmul.mubr.f32.gmra.mrb[0].mxu0 %v6562
    %v7013 = vpop.f32.mrb[0].mxu0
    %v7014 = vadd.f32 %v6606, %v7013
    %v7015 = vpop.f32.mrb[0].mxu0
    %7016 = vmatprep.mubr.f32.mxu0 %v6696
    %7017 = vmatmul.mubr.f32.gmra.mrb[0].mxu0 %v6563
    %v7018 = vpop.f32.mrb[0].mxu0
    %v7019 = vadd.f32 %v6606, %v7018
    %v7020 = vpop.f32.mrb[0].mxu0
    %7021 = vmatprep.mubr.f32.mxu0 %v6698
    %7022 = vmatmul.mubr.f32.gmra.mrb[0].mxu0 %v6564
    %v7023 = vpop.f32.mrb[0].mxu0
    %v7024 = vadd.f32 %v6606, %v7023
    %v7025 = vpop.f32.mrb[0].mxu0
    %7026 = vmatprep.mubr.f32.mxu0 %v6700
    %7027 = vmatmul.mubr.f32.gmra.mrb[0].mxu0 %v6565
    %v7028 = vpop.f32.mrb[0].mxu0
    %v7029 = vadd.f32 %v6606, %v7028
    %v7030 = vpop.f32.mrb[0].mxu0
    %7031 = vmatprep.mubr.f32.mxu0 %v6702
    %7032 = vmatmul.mubr.f32.gmra.mrb[0].mxu0 %v6566
    %v7033 = vpop.f32.mrb[0].mxu0
    %v7034 = vadd.f32 %v6606, %v7033
    %v7035 = vpop.f32.mrb[0].mxu0
    %7036 = vmatprep.mubr.f32.mxu0 %v6704
    %7037 = vmatmul.mubr.f32.gmra.mrb[0].mxu0 %v6567
    %v7038 = vpop.f32.mrb[0].mxu0
    %v7039 = vadd.f32 %v6606, %v7038
    %v7040 = vpop.f32.mrb[0].mxu0
    %7041 = vmatprep.mubr.f32.mxu0 %v6706
    %7042 = vmatmul.mubr.f32.gmra.mrb[0].mxu0 %v6568
    %v7043 = vpop.f32.mrb[0].mxu0
    %v7044 = vadd.f32 %v6606, %v7043
    %v7045 = vpop.f32.mrb[0].mxu0
    %7046 = vmatprep.mubr.f32.mxu0 %v6708
    %7047 = vmatmul.mubr.f32.gmra.mrb[0].mxu0 %v6569
    %v7048 = vpop.f32.mrb[0].mxu0
    %v7049 = vadd.f32 %v6606, %v7048
    %v7050 = vpop.f32.mrb[0].mxu0
    %7051 = vmatprep.mubr.f32.mxu0 %v6710
    %7052 = vmatmul.mubr.f32.gmra.mrb[0].mxu0 %v6570
    %v7053 = vpop.f32.mrb[0].mxu0
    %v7054 = vadd.f32 %v6606, %v7053
    %v7055 = vpop.f32.mrb[0].mxu0
    %7056 = vmatprep.mubr.f32.mxu0 %v6712
    %7057 = vmatmul.mubr.f32.gmra.mrb[0].mxu0 %v6571
    %v7058 = vpop.f32.mrb[0].mxu0
    %v7059 = vadd.f32 %v6606, %v7058
    %v7060 = vpop.f32.mrb[0].mxu0
    %7061 = vmatprep.mubr.f32.mxu0 %v6714
    %7062 = vmatmul.mubr.f32.gmra.mrb[0].mxu0 %v6572
    %v7063 = vpop.f32.mrb[0].mxu0
    %v7064 = vadd.f32 %v6606, %v7063
    %v7065 = vpop.f32.mrb[0].mxu0
    %7066 = vmatprep.mubr.f32.mxu0 %v6716
    %7067 = vmatmul.mubr.f32.gmra.mrb[0].mxu0 %v6573
    %v7068 = vpop.f32.mrb[0].mxu0
    %v7069 = vadd.f32 %v6606, %v7068
    %v7070 = vpop.f32.mrb[0].mxu0
    %7071 = vmatprep.mubr.f32.mxu0 %v6718
    %7072 = vmatmul.mubr.f32.gmra.mrb[0].mxu0 %v6574
    %v7073 = vpop.f32.mrb[0].mxu0
    %v7074 = vadd.f32 %v6606, %v7073
    %v7075 = vpop.f32.mrb[0].mxu0
    %7076 = vmatprep.mubr.f32.mxu0 %v6720
    %7077 = vmatmul.mubr.f32.gmra.mrb[0].mxu0 %v6575
    %v7078 = vpop.f32.mrb[0].mxu0
    %v7079 = vadd.f32 %v6606, %v7078
    %v7080 = vpop.f32.mrb[0].mxu0
    %7081 = vmatprep.mubr.f32.mxu0 %v6722
    %7082 = vmatmul.mubr.f32.gmra.mrb[0].mxu0 %v6576
    %v7083 = vpop.f32.mrb[0].mxu0
    %v7084 = vadd.f32 %v6606, %v7083
    %v7085 = vpop.f32.mrb[0].mxu0
    %7086 = vmatprep.mubr.f32.mxu0 %v6724
    %7087 = vmatmul.mubr.f32.gmra.mrb[0].mxu0 %v6577
    %v7088 = vpop.f32.mrb[0].mxu0
    %v7089 = vadd.f32 %v6606, %v7088
    %v7090 = vpop.f32.mrb[0].mxu0
    %7091 = vmatprep.mubr.f32.mxu0 %v6726
    %7092 = vmatmul.mubr.f32.gmra.mrb[0].mxu0 %v6578
    %v7093 = vpop.f32.mrb[0].mxu0
    %v7094 = vadd.f32 %v6606, %v7093
    %v7095 = vpop.f32.mrb[0].mxu0
    %7096 = vmatprep.mubr.f32.mxu0 %v6728
    %7097 = vmatmul.mubr.f32.gmra.mrb[0].mxu0 %v6579
    %v7098 = vpop.f32.mrb[0].mxu0
    %v7099 = vadd.f32 %v6606, %v7098
    %v7100 = vpop.f32.mrb[0].mxu0
    %7101 = vmatprep.mubr.f32.mxu0 %v6730
    %7102 = vmatmul.mubr.f32.gmra.mrb[0].mxu0 %v6580
    %v7103 = vpop.f32.mrb[0].mxu0
    %v7104 = vadd.f32 %v6606, %v7103
    %v7105 = vpop.f32.mrb[0].mxu0
    %7106 = vmatprep.mubr.f32.mxu0 %v6668
    %7107 = vmatmul.mubr.f32.gmra.mrb[0].mxu0 %v6581
    %v7108 = vpop.f32.mrb[0].mxu0
    %v7109 = vadd.f32 %v6606, %v7108
    %v7110 = vpop.f32.mrb[0].mxu0
    %7111 = vmatprep.mubr.f32.mxu0 %v6670
    %7112 = vmatmul.mubr.f32.gmra.mrb[0].mxu0 %v6582
    %v7113 = vpop.f32.mrb[0].mxu0
    %v7114 = vadd.f32 %v6606, %v7113
    %v7115 = vpop.f32.mrb[0].mxu0
    %7116 = vdwg.mxu0
    %v7117 = vsel %vm2530, %v6799, 0.0
    %v7118 = vsel %vm2530, %v6804, 0.0
    %v7119 = vadd.f32 %v7117, %v7118
    %v7120 = vsel %vm2530, %v6809, 0.0
    %v7121 = vadd.f32 %v7119, %v7120
    %v7122 = vsel %vm2530, %v6814, 0.0
    %v7123 = vadd.f32 %v7121, %v7122
    %v7124 = vsel %vm2530, %v6819, 0.0
    %v7125 = vadd.f32 %v7123, %v7124
    %v7126 = vsel %vm2530, %v6824, 0.0
    %v7127 = vadd.f32 %v7125, %v7126
    %v7128 = vsel %vm2530, %v6829, 0.0
    %v7129 = vadd.f32 %v7127, %v7128
    %v7130 = vsel %vm2530, %v6834, 0.0
    %v7131 = vadd.f32 %v7129, %v7130
    %v7132 = vsel %vm2530, %v6839, 0.0
    %v7133 = vadd.f32 %v7131, %v7132
    %v7134 = vsel %vm2530, %v6844, 0.0
    %v7135 = vadd.f32 %v7133, %v7134
    %v7136 = vsel %vm2530, %v6849, 0.0
    %v7137 = vadd.f32 %v7135, %v7136
    %v7138 = vsel %vm2530, %v6854, 0.0
    %v7139 = vadd.f32 %v7137, %v7138
    %v7140 = vsel %vm2530, %v6859, 0.0
    %v7141 = vadd.f32 %v7139, %v7140
    %v7142 = vsel %vm2530, %v6864, 0.0
    %v7143 = vadd.f32 %v7141, %v7142
    %v7144 = vsel %vm2530, %v6869, 0.0
    %v7145 = vadd.f32 %v7143, %v7144
    %v7146 = vsel %vm2530, %v6874, 0.0
    %v7147 = vadd.f32 %v7145, %v7146
    %v7148 = vsel %vm2530, %v6879, 0.0
    %v7149 = vadd.f32 %v7147, %v7148
    %v7150 = vsel %vm2530, %v6884, 0.0
    %v7151 = vadd.f32 %v7149, %v7150
    %v7152 = vsel %vm2530, %v6889, 0.0
    %v7153 = vadd.f32 %v7151, %v7152
    %v7154 = vsel %vm2530, %v6894, 0.0
    %v7155 = vadd.f32 %v7153, %v7154
    %v7156 = vsel %vm2530, %v6899, 0.0
    %v7157 = vadd.f32 %v7155, %v7156
    %v7158 = vsel %vm2530, %v6904, 0.0
    %v7159 = vadd.f32 %v7157, %v7158
    %v7160 = vsel %vm2530, %v6909, 0.0
    %v7161 = vadd.f32 %v7159, %v7160
    %v7162 = vsel %vm2530, %v6914, 0.0
    %v7163 = vadd.f32 %v7161, %v7162
    %v7164 = vsel %vm2530, %v6919, 0.0
    %v7165 = vadd.f32 %v7163, %v7164
    %v7166 = vsel %vm2530, %v6924, 0.0
    %v7167 = vadd.f32 %v7165, %v7166
    %v7168 = vsel %vm2530, %v6929, 0.0
    %v7169 = vadd.f32 %v7167, %v7168
    %v7170 = vsel %vm2530, %v6934, 0.0
    %v7171 = vadd.f32 %v7169, %v7170
    %v7172 = vsel %vm2530, %v6939, 0.0
    %v7173 = vadd.f32 %v7171, %v7172
    %v7174 = vsel %vm2530, %v6944, 0.0
    %v7175 = vadd.f32 %v7173, %v7174
    %v7176 = vsel %vm2530, %v6949, 0.0
    %v7177 = vadd.f32 %v7175, %v7176
    %v7178 = vsel %vm2530, %v6954, 0.0
    %v7179 = vadd.f32 %v7177, %v7178
    %v7180 = vsel %vm2530, %v6959, 0.0
    %v7181 = vadd.f32 %v7179, %v7180
    %v7182 = vsel %vm2530, %v6964, 0.0
    %v7183 = vadd.f32 %v7181, %v7182
    %v7184 = vsel %vm2530, %v6969, 0.0
    %v7185 = vadd.f32 %v7183, %v7184
    %v7186 = vsel %vm2530, %v6974, 0.0
    %v7187 = vadd.f32 %v7185, %v7186
    %v7188 = vsel %vm2530, %v6979, 0.0
    %v7189 = vadd.f32 %v7187, %v7188
    %v7190 = vsel %vm2530, %v6984, 0.0
    %v7191 = vadd.f32 %v7189, %v7190
    %v7192 = vsel %vm2530, %v6989, 0.0
    %v7193 = vadd.f32 %v7191, %v7192
    %v7194 = vsel %vm2530, %v6994, 0.0
    %v7195 = vadd.f32 %v7193, %v7194
    %v7196 = vsel %vm2530, %v6999, 0.0
    %v7197 = vadd.f32 %v7195, %v7196
    %v7198 = vsel %vm2530, %v7004, 0.0
    %v7199 = vadd.f32 %v7197, %v7198
    %v7200 = vsel %vm2530, %v7009, 0.0
    %v7201 = vadd.f32 %v7199, %v7200
    %v7202 = vsel %vm2530, %v7014, 0.0
    %v7203 = vadd.f32 %v7201, %v7202
    %v7204 = vsel %vm2530, %v7019, 0.0
    %v7205 = vadd.f32 %v7203, %v7204
    %v7206 = vsel %vm2530, %v7024, 0.0
    %v7207 = vadd.f32 %v7205, %v7206
    %v7208 = vsel %vm2530, %v7029, 0.0
    %v7209 = vadd.f32 %v7207, %v7208
    %v7210 = vsel %vm2530, %v7034, 0.0
    %v7211 = vadd.f32 %v7209, %v7210
    %v7212 = vsel %vm2530, %v7039, 0.0
    %v7213 = vadd.f32 %v7211, %v7212
    %v7214 = vsel %vm2530, %v7044, 0.0
    %v7215 = vadd.f32 %v7213, %v7214
    %v7216 = vsel %vm2530, %v7049, 0.0
    %v7217 = vadd.f32 %v7215, %v7216
    %v7218 = vsel %vm2530, %v7054, 0.0
    %v7219 = vadd.f32 %v7217, %v7218
    %v7220 = vsel %vm2530, %v7059, 0.0
    %v7221 = vadd.f32 %v7219, %v7220
    %v7222 = vsel %vm2530, %v7064, 0.0
    %v7223 = vadd.f32 %v7221, %v7222
    %v7224 = vsel %vm2530, %v7069, 0.0
    %v7225 = vadd.f32 %v7223, %v7224
    %v7226 = vsel %vm2530, %v7074, 0.0
    %v7227 = vadd.f32 %v7225, %v7226
    %v7228 = vsel %vm2530, %v7079, 0.0
    %v7229 = vadd.f32 %v7227, %v7228
    %v7230 = vsel %vm2530, %v7084, 0.0
    %v7231 = vadd.f32 %v7229, %v7230
    %v7232 = vsel %vm2530, %v7089, 0.0
    %v7233 = vadd.f32 %v7231, %v7232
    %v7234 = vsel %vm2530, %v7094, 0.0
    %v7235 = vadd.f32 %v7233, %v7234
    %v7236 = vsel %vm2530, %v7099, 0.0
    %v7237 = vadd.f32 %v7235, %v7236
    %v7238 = vsel %vm2530, %v7104, 0.0
    %v7239 = vadd.f32 %v7237, %v7238
    %v7240 = vsel %vm2530, %v7109, 0.0
    %v7241 = vadd.f32 %v7239, %v7240
    %v7242 = vsel %vm2530, %v7114, 0.0
    %v7243 = vadd.f32 %v7241, %v7242
    %v7244 = vrot.slane %v7243, 4
    %v7245 = vadd.f32 %v7243, %v7244
    %v7246 = vrot.slane %v7245, 2
    %v7247 = vadd.f32 %v7245, %v7246
    %v7248 = vrot.slane %v7247, 1
    %v7249 = vadd.f32 %v7247, %v7248
    %v7250 = vmul.f32 %v7249, %v3582
    %v7251 = vsub.f32 %v6799, %v7250
    %v7252 = vsub.f32 %v6804, %v7250
    %v7253 = vsub.f32 %v6809, %v7250
    %v7254 = vsub.f32 %v6814, %v7250
    %v7255 = vsub.f32 %v6819, %v7250
    %v7256 = vsub.f32 %v6824, %v7250
    %v7257 = vsub.f32 %v6829, %v7250
    %v7258 = vsub.f32 %v6834, %v7250
    %v7259 = vsub.f32 %v6839, %v7250
    %v7260 = vsub.f32 %v6844, %v7250
    %v7261 = vsub.f32 %v6849, %v7250
    %v7262 = vsub.f32 %v6854, %v7250
    %v7263 = vsub.f32 %v6859, %v7250
    %v7264 = vsub.f32 %v6864, %v7250
    %v7265 = vsub.f32 %v6869, %v7250
    %v7266 = vsub.f32 %v6874, %v7250
    %v7267 = vsub.f32 %v6879, %v7250
    %v7268 = vsub.f32 %v6884, %v7250
    %v7269 = vsub.f32 %v6889, %v7250
    %v7270 = vsub.f32 %v6894, %v7250
    %v7271 = vsub.f32 %v6899, %v7250
    %v7272 = vsub.f32 %v6904, %v7250
    %v7273 = vsub.f32 %v6909, %v7250
    %v7274 = vsub.f32 %v6914, %v7250
    %v7275 = vsub.f32 %v6919, %v7250
    %v7276 = vsub.f32 %v6924, %v7250
    %v7277 = vsub.f32 %v6929, %v7250
    %v7278 = vsub.f32 %v6934, %v7250
    %v7279 = vsub.f32 %v6939, %v7250
    %v7280 = vsub.f32 %v6944, %v7250
    %v7281 = vsub.f32 %v6949, %v7250
    %v7282 = vsub.f32 %v6954, %v7250
    %v7283 = vsub.f32 %v6959, %v7250
    %v7284 = vsub.f32 %v6964, %v7250
    %v7285 = vsub.f32 %v6969, %v7250
    %v7286 = vsub.f32 %v6974, %v7250
    %v7287 = vsub.f32 %v6979, %v7250
    %v7288 = vsub.f32 %v6984, %v7250
    %v7289 = vsub.f32 %v6989, %v7250
    %v7290 = vsub.f32 %v6994, %v7250
    %v7291 = vsub.f32 %v6999, %v7250
    %v7292 = vsub.f32 %v7004, %v7250
    %v7293 = vsub.f32 %v7009, %v7250
    %v7294 = vsub.f32 %v7014, %v7250
    %v7295 = vsub.f32 %v7019, %v7250
    %v7296 = vsub.f32 %v7024, %v7250
    %v7297 = vsub.f32 %v7029, %v7250
    %v7298 = vsub.f32 %v7034, %v7250
    %v7299 = vsub.f32 %v7039, %v7250
    %v7300 = vsub.f32 %v7044, %v7250
    %v7301 = vsub.f32 %v7049, %v7250
    %v7302 = vsub.f32 %v7054, %v7250
    %v7303 = vsub.f32 %v7059, %v7250
    %v7304 = vsub.f32 %v7064, %v7250
    %v7305 = vsub.f32 %v7069, %v7250
    %v7306 = vsub.f32 %v7074, %v7250
    %v7307 = vsub.f32 %v7079, %v7250
    %v7308 = vsub.f32 %v7084, %v7250
    %v7309 = vsub.f32 %v7089, %v7250
    %v7310 = vsub.f32 %v7094, %v7250
    %v7311 = vsub.f32 %v7099, %v7250
    %v7312 = vsub.f32 %v7104, %v7250
    %v7313 = vsub.f32 %v7109, %v7250
    %v7314 = vsub.f32 %v7114, %v7250
    %v7315 = vmul.f32 %v7251, %v7251
    %v7316 = vmul.f32 %v7252, %v7252
    %v7317 = vmul.f32 %v7253, %v7253
    %v7318 = vmul.f32 %v7254, %v7254
    %v7319 = vmul.f32 %v7255, %v7255
    %v7320 = vmul.f32 %v7256, %v7256
    %v7321 = vmul.f32 %v7257, %v7257
    %v7322 = vmul.f32 %v7258, %v7258
    %v7323 = vmul.f32 %v7259, %v7259
    %v7324 = vmul.f32 %v7260, %v7260
    %v7325 = vmul.f32 %v7261, %v7261
    %v7326 = vmul.f32 %v7262, %v7262
    %v7327 = vmul.f32 %v7263, %v7263
    %v7328 = vmul.f32 %v7264, %v7264
    %v7329 = vmul.f32 %v7265, %v7265
    %v7330 = vmul.f32 %v7266, %v7266
    %v7331 = vmul.f32 %v7267, %v7267
    %v7332 = vmul.f32 %v7268, %v7268
    %v7333 = vmul.f32 %v7269, %v7269
    %v7334 = vmul.f32 %v7270, %v7270
    %v7335 = vmul.f32 %v7271, %v7271
    %v7336 = vmul.f32 %v7272, %v7272
    %v7337 = vmul.f32 %v7273, %v7273
    %v7338 = vmul.f32 %v7274, %v7274
    %v7339 = vmul.f32 %v7275, %v7275
    %v7340 = vmul.f32 %v7276, %v7276
    %v7341 = vmul.f32 %v7277, %v7277
    %v7342 = vmul.f32 %v7278, %v7278
    %v7343 = vmul.f32 %v7279, %v7279
    %v7344 = vmul.f32 %v7280, %v7280
    %v7345 = vmul.f32 %v7281, %v7281
    %v7346 = vmul.f32 %v7282, %v7282
    %v7347 = vmul.f32 %v7283, %v7283
    %v7348 = vmul.f32 %v7284, %v7284
    %v7349 = vmul.f32 %v7285, %v7285
    %v7350 = vmul.f32 %v7286, %v7286
    %v7351 = vmul.f32 %v7287, %v7287
    %v7352 = vmul.f32 %v7288, %v7288
    %v7353 = vmul.f32 %v7289, %v7289
    %v7354 = vmul.f32 %v7290, %v7290
    %v7355 = vmul.f32 %v7291, %v7291
    %v7356 = vmul.f32 %v7292, %v7292
    %v7357 = vmul.f32 %v7293, %v7293
    %v7358 = vmul.f32 %v7294, %v7294
    %v7359 = vmul.f32 %v7295, %v7295
    %v7360 = vmul.f32 %v7296, %v7296
    %v7361 = vmul.f32 %v7297, %v7297
    %v7362 = vmul.f32 %v7298, %v7298
    %v7363 = vmul.f32 %v7299, %v7299
    %v7364 = vmul.f32 %v7300, %v7300
    %v7365 = vmul.f32 %v7301, %v7301
    %v7366 = vmul.f32 %v7302, %v7302
    %v7367 = vmul.f32 %v7303, %v7303
    %v7368 = vmul.f32 %v7304, %v7304
    %v7369 = vmul.f32 %v7305, %v7305
    %v7370 = vmul.f32 %v7306, %v7306
    %v7371 = vmul.f32 %v7307, %v7307
    %v7372 = vmul.f32 %v7308, %v7308
    %v7373 = vmul.f32 %v7309, %v7309
    %v7374 = vmul.f32 %v7310, %v7310
    %v7375 = vmul.f32 %v7311, %v7311
    %v7376 = vmul.f32 %v7312, %v7312
    %v7377 = vmul.f32 %v7313, %v7313
    %v7378 = vmul.f32 %v7314, %v7314
    %v7379 = vsel %vm2530, %v7315, 0.0
    %v7380 = vsel %vm2530, %v7316, 0.0
    %v7381 = vadd.f32 %v7379, %v7380
    %v7382 = vsel %vm2530, %v7317, 0.0
    %v7383 = vadd.f32 %v7381, %v7382
    %v7384 = vsel %vm2530, %v7318, 0.0
    %v7385 = vadd.f32 %v7383, %v7384
    %v7386 = vsel %vm2530, %v7319, 0.0
    %v7387 = vadd.f32 %v7385, %v7386
    %v7388 = vsel %vm2530, %v7320, 0.0
    %v7389 = vadd.f32 %v7387, %v7388
    %v7390 = vsel %vm2530, %v7321, 0.0
    %v7391 = vadd.f32 %v7389, %v7390
    %v7392 = vsel %vm2530, %v7322, 0.0
    %v7393 = vadd.f32 %v7391, %v7392
    %v7394 = vsel %vm2530, %v7323, 0.0
    %v7395 = vadd.f32 %v7393, %v7394
    %v7396 = vsel %vm2530, %v7324, 0.0
    %v7397 = vadd.f32 %v7395, %v7396
    %v7398 = vsel %vm2530, %v7325, 0.0
    %v7399 = vadd.f32 %v7397, %v7398
    %v7400 = vsel %vm2530, %v7326, 0.0
    %v7401 = vadd.f32 %v7399, %v7400
    %v7402 = vsel %vm2530, %v7327, 0.0
    %v7403 = vadd.f32 %v7401, %v7402
    %v7404 = vsel %vm2530, %v7328, 0.0
    %v7405 = vadd.f32 %v7403, %v7404
    %v7406 = vsel %vm2530, %v7329, 0.0
    %v7407 = vadd.f32 %v7405, %v7406
    %v7408 = vsel %vm2530, %v7330, 0.0
    %v7409 = vadd.f32 %v7407, %v7408
    %v7410 = vsel %vm2530, %v7331, 0.0
    %v7411 = vadd.f32 %v7409, %v7410
    %v7412 = vsel %vm2530, %v7332, 0.0
    %v7413 = vadd.f32 %v7411, %v7412
    %v7414 = vsel %vm2530, %v7333, 0.0
    %v7415 = vadd.f32 %v7413, %v7414
    %v7416 = vsel %vm2530, %v7334, 0.0
    %v7417 = vadd.f32 %v7415, %v7416
    %v7418 = vsel %vm2530, %v7335, 0.0
    %v7419 = vadd.f32 %v7417, %v7418
    %v7420 = vsel %vm2530, %v7336, 0.0
    %v7421 = vadd.f32 %v7419, %v7420
    %v7422 = vsel %vm2530, %v7337, 0.0
    %v7423 = vadd.f32 %v7421, %v7422
    %v7424 = vsel %vm2530, %v7338, 0.0
    %v7425 = vadd.f32 %v7423, %v7424
    %v7426 = vsel %vm2530, %v7339, 0.0
    %v7427 = vadd.f32 %v7425, %v7426
    %v7428 = vsel %vm2530, %v7340, 0.0
    %v7429 = vadd.f32 %v7427, %v7428
    %v7430 = vsel %vm2530, %v7341, 0.0
    %v7431 = vadd.f32 %v7429, %v7430
    %v7432 = vsel %vm2530, %v7342, 0.0
    %v7433 = vadd.f32 %v7431, %v7432
    %v7434 = vsel %vm2530, %v7343, 0.0
    %v7435 = vadd.f32 %v7433, %v7434
    %v7436 = vsel %vm2530, %v7344, 0.0
    %v7437 = vadd.f32 %v7435, %v7436
    %v7438 = vsel %vm2530, %v7345, 0.0
    %v7439 = vadd.f32 %v7437, %v7438
    %v7440 = vsel %vm2530, %v7346, 0.0
    %v7441 = vadd.f32 %v7439, %v7440
    %v7442 = vsel %vm2530, %v7347, 0.0
    %v7443 = vadd.f32 %v7441, %v7442
    %v7444 = vsel %vm2530, %v7348, 0.0
    %v7445 = vadd.f32 %v7443, %v7444
    %v7446 = vsel %vm2530, %v7349, 0.0
    %v7447 = vadd.f32 %v7445, %v7446
    %v7448 = vsel %vm2530, %v7350, 0.0
    %v7449 = vadd.f32 %v7447, %v7448
    %v7450 = vsel %vm2530, %v7351, 0.0
    %v7451 = vadd.f32 %v7449, %v7450
    %v7452 = vsel %vm2530, %v7352, 0.0
    %v7453 = vadd.f32 %v7451, %v7452
    %v7454 = vsel %vm2530, %v7353, 0.0
    %v7455 = vadd.f32 %v7453, %v7454
    %v7456 = vsel %vm2530, %v7354, 0.0
    %v7457 = vadd.f32 %v7455, %v7456
    %v7458 = vsel %vm2530, %v7355, 0.0
    %v7459 = vadd.f32 %v7457, %v7458
    %v7460 = vsel %vm2530, %v7356, 0.0
    %v7461 = vadd.f32 %v7459, %v7460
    %v7462 = vsel %vm2530, %v7357, 0.0
    %v7463 = vadd.f32 %v7461, %v7462
    %v7464 = vsel %vm2530, %v7358, 0.0
    %v7465 = vadd.f32 %v7463, %v7464
    %v7466 = vsel %vm2530, %v7359, 0.0
    %v7467 = vadd.f32 %v7465, %v7466
    %v7468 = vsel %vm2530, %v7360, 0.0
    %v7469 = vadd.f32 %v7467, %v7468
    %v7470 = vsel %vm2530, %v7361, 0.0
    %v7471 = vadd.f32 %v7469, %v7470
    %v7472 = vsel %vm2530, %v7362, 0.0
    %v7473 = vadd.f32 %v7471, %v7472
    %v7474 = vsel %vm2530, %v7363, 0.0
    %v7475 = vadd.f32 %v7473, %v7474
    %v7476 = vsel %vm2530, %v7364, 0.0
    %v7477 = vadd.f32 %v7475, %v7476
    %v7478 = vsel %vm2530, %v7365, 0.0
    %v7479 = vadd.f32 %v7477, %v7478
    %v7480 = vsel %vm2530, %v7366, 0.0
    %v7481 = vadd.f32 %v7479, %v7480
    %v7482 = vsel %vm2530, %v7367, 0.0
    %v7483 = vadd.f32 %v7481, %v7482
    %v7484 = vsel %vm2530, %v7368, 0.0
    %v7485 = vadd.f32 %v7483, %v7484
    %v7486 = vsel %vm2530, %v7369, 0.0
    %v7487 = vadd.f32 %v7485, %v7486
    %v7488 = vsel %vm2530, %v7370, 0.0
    %v7489 = vadd.f32 %v7487, %v7488
    %v7490 = vsel %vm2530, %v7371, 0.0
    %v7491 = vadd.f32 %v7489, %v7490
    %v7492 = vsel %vm2530, %v7372, 0.0
    %v7493 = vadd.f32 %v7491, %v7492
    %v7494 = vsel %vm2530, %v7373, 0.0
    %v7495 = vadd.f32 %v7493, %v7494
    %v7496 = vsel %vm2530, %v7374, 0.0
    %v7497 = vadd.f32 %v7495, %v7496
    %v7498 = vsel %vm2530, %v7375, 0.0
    %v7499 = vadd.f32 %v7497, %v7498
    %v7500 = vsel %vm2530, %v7376, 0.0
    %v7501 = vadd.f32 %v7499, %v7500
    %v7502 = vsel %vm2530, %v7377, 0.0
    %v7503 = vadd.f32 %v7501, %v7502
    %v7504 = vsel %vm2530, %v7378, 0.0
    %v7505 = vadd.f32 %v7503, %v7504
    %v7506 = vrot.slane %v7505, 4
    %v7507 = vadd.f32 %v7505, %v7506
    %v7508 = vrot.slane %v7507, 2
    %v7509 = vadd.f32 %v7507, %v7508
    %v7510 = vrot.slane %v7509, 1
    %v7511 = vadd.f32 %v7509, %v7510
    %v7512 = vmul.f32 %v7511, %v3582
    %v7513 = vadd.f32 %v7512, 1e-05
    %v7514 = vrsqrt.pop %v7513
    %v7515 = vmul.f32 %v7251, %v7514
    %v7516 = vmul.f32 %v7252, %v7514
    %v7517 = vmul.f32 %v7253, %v7514
    %v7518 = vmul.f32 %v7254, %v7514
    %v7519 = vmul.f32 %v7255, %v7514
    %v7520 = vmul.f32 %v7256, %v7514
    %v7521 = vmul.f32 %v7257, %v7514
    %v7522 = vmul.f32 %v7258, %v7514
    %v7523 = vmul.f32 %v7259, %v7514
    %v7524 = vmul.f32 %v7260, %v7514
    %v7525 = vmul.f32 %v7261, %v7514
    %v7526 = vmul.f32 %v7262, %v7514
    %v7527 = vmul.f32 %v7263, %v7514
    %v7528 = vmul.f32 %v7264, %v7514
    %v7529 = vmul.f32 %v7265, %v7514
    %v7530 = vmul.f32 %v7266, %v7514
    %v7531 = vmul.f32 %v7267, %v7514
    %v7532 = vmul.f32 %v7268, %v7514
    %v7533 = vmul.f32 %v7269, %v7514
    %v7534 = vmul.f32 %v7270, %v7514
    %v7535 = vmul.f32 %v7271, %v7514
    %v7536 = vmul.f32 %v7272, %v7514
    %v7537 = vmul.f32 %v7273, %v7514
    %v7538 = vmul.f32 %v7274, %v7514
    %v7539 = vmul.f32 %v7275, %v7514
    %v7540 = vmul.f32 %v7276, %v7514
    %v7541 = vmul.f32 %v7277, %v7514
    %v7542 = vmul.f32 %v7278, %v7514
    %v7543 = vmul.f32 %v7279, %v7514
    %v7544 = vmul.f32 %v7280, %v7514
    %v7545 = vmul.f32 %v7281, %v7514
    %v7546 = vmul.f32 %v7282, %v7514
    %v7547 = vmul.f32 %v7283, %v7514
    %v7548 = vmul.f32 %v7284, %v7514
    %v7549 = vmul.f32 %v7285, %v7514
    %v7550 = vmul.f32 %v7286, %v7514
    %v7551 = vmul.f32 %v7287, %v7514
    %v7552 = vmul.f32 %v7288, %v7514
    %v7553 = vmul.f32 %v7289, %v7514
    %v7554 = vmul.f32 %v7290, %v7514
    %v7555 = vmul.f32 %v7291, %v7514
    %v7556 = vmul.f32 %v7292, %v7514
    %v7557 = vmul.f32 %v7293, %v7514
    %v7558 = vmul.f32 %v7294, %v7514
    %v7559 = vmul.f32 %v7295, %v7514
    %v7560 = vmul.f32 %v7296, %v7514
    %v7561 = vmul.f32 %v7297, %v7514
    %v7562 = vmul.f32 %v7298, %v7514
    %v7563 = vmul.f32 %v7299, %v7514
    %v7564 = vmul.f32 %v7300, %v7514
    %v7565 = vmul.f32 %v7301, %v7514
    %v7566 = vmul.f32 %v7302, %v7514
    %v7567 = vmul.f32 %v7303, %v7514
    %v7568 = vmul.f32 %v7304, %v7514
    %v7569 = vmul.f32 %v7305, %v7514
    %v7570 = vmul.f32 %v7306, %v7514
    %v7571 = vmul.f32 %v7307, %v7514
    %v7572 = vmul.f32 %v7308, %v7514
    %v7573 = vmul.f32 %v7309, %v7514
    %v7574 = vmul.f32 %v7310, %v7514
    %v7575 = vmul.f32 %v7311, %v7514
    %v7576 = vmul.f32 %v7312, %v7514
    %v7577 = vmul.f32 %v7313, %v7514
    %v7578 = vmul.f32 %v7314, %v7514
    %v7579 = vld [vmem:[%s7] sm:$0x1]
    %v7581 = vlaneseq
    %v7582 = vshrl.u32 %v7581, 7
    %v7583 = vsub.s32 0, %v7582
    %v7584 = vrot.slane %v7579, %v7583
    %v7586 = vmul.f32 %v7515, %v7584
    %v7587 = vmul.f32 %v7516, %v7584
    %v7588 = vmul.f32 %v7517, %v7584
    %v7589 = vmul.f32 %v7518, %v7584
    %v7590 = vmul.f32 %v7519, %v7584
    %v7591 = vmul.f32 %v7520, %v7584
    %v7592 = vmul.f32 %v7521, %v7584
    %v7593 = vmul.f32 %v7522, %v7584
    %v7594 = vmul.f32 %v7523, %v7584
    %v7595 = vmul.f32 %v7524, %v7584
    %v7596 = vmul.f32 %v7525, %v7584
    %v7597 = vmul.f32 %v7526, %v7584
    %v7598 = vmul.f32 %v7527, %v7584
    %v7599 = vmul.f32 %v7528, %v7584
    %v7600 = vmul.f32 %v7529, %v7584
    %v7601 = vmul.f32 %v7530, %v7584
    %v7602 = vmul.f32 %v7531, %v7584
    %v7603 = vmul.f32 %v7532, %v7584
    %v7604 = vmul.f32 %v7533, %v7584
    %v7605 = vmul.f32 %v7534, %v7584
    %v7606 = vmul.f32 %v7535, %v7584
    %v7607 = vmul.f32 %v7536, %v7584
    %v7608 = vmul.f32 %v7537, %v7584
    %v7609 = vmul.f32 %v7538, %v7584
    %v7610 = vmul.f32 %v7539, %v7584
    %v7611 = vmul.f32 %v7540, %v7584
    %v7612 = vmul.f32 %v7541, %v7584
    %v7613 = vmul.f32 %v7542, %v7584
    %v7614 = vmul.f32 %v7543, %v7584
    %v7615 = vmul.f32 %v7544, %v7584
    %v7616 = vmul.f32 %v7545, %v7584
    %v7617 = vmul.f32 %v7546, %v7584
    %v7618 = vmul.f32 %v7547, %v7584
    %v7619 = vmul.f32 %v7548, %v7584
    %v7620 = vmul.f32 %v7549, %v7584
    %v7621 = vmul.f32 %v7550, %v7584
    %v7622 = vmul.f32 %v7551, %v7584
    %v7623 = vmul.f32 %v7552, %v7584
    %v7624 = vmul.f32 %v7553, %v7584
    %v7625 = vmul.f32 %v7554, %v7584
    %v7626 = vmul.f32 %v7555, %v7584
    %v7627 = vmul.f32 %v7556, %v7584
    %v7628 = vmul.f32 %v7557, %v7584
    %v7629 = vmul.f32 %v7558, %v7584
    %v7630 = vmul.f32 %v7559, %v7584
    %v7631 = vmul.f32 %v7560, %v7584
    %v7632 = vmul.f32 %v7561, %v7584
    %v7633 = vmul.f32 %v7562, %v7584
    %v7634 = vmul.f32 %v7563, %v7584
    %v7635 = vmul.f32 %v7564, %v7584
    %v7636 = vmul.f32 %v7565, %v7584
    %v7637 = vmul.f32 %v7566, %v7584
    %v7638 = vmul.f32 %v7567, %v7584
    %v7639 = vmul.f32 %v7568, %v7584
    %v7640 = vmul.f32 %v7569, %v7584
    %v7641 = vmul.f32 %v7570, %v7584
    %v7642 = vmul.f32 %v7571, %v7584
    %v7643 = vmul.f32 %v7572, %v7584
    %v7644 = vmul.f32 %v7573, %v7584
    %v7645 = vmul.f32 %v7574, %v7584
    %v7646 = vmul.f32 %v7575, %v7584
    %v7647 = vmul.f32 %v7576, %v7584
    %v7648 = vmul.f32 %v7577, %v7584
    %v7649 = vmul.f32 %v7578, %v7584
    %v7650 = vld [vmem:[%s8] sm:$0x1]
    %v7652 = vlaneseq
    %v7653 = vshrl.u32 %v7652, 7
    %v7654 = vsub.s32 0, %v7653
    %v7655 = vrot.slane %v7650, %v7654
    %v7657 = vadd.f32 %v7586, %v7655
    %v7658 = vadd.f32 %v7587, %v7655
    %v7659 = vadd.f32 %v7588, %v7655
    %v7660 = vadd.f32 %v7589, %v7655
    %v7661 = vadd.f32 %v7590, %v7655
    %v7662 = vadd.f32 %v7591, %v7655
    %v7663 = vadd.f32 %v7592, %v7655
    %v7664 = vadd.f32 %v7593, %v7655
    %v7665 = vadd.f32 %v7594, %v7655
    %v7666 = vadd.f32 %v7595, %v7655
    %v7667 = vadd.f32 %v7596, %v7655
    %v7668 = vadd.f32 %v7597, %v7655
    %v7669 = vadd.f32 %v7598, %v7655
    %v7670 = vadd.f32 %v7599, %v7655
    %v7671 = vadd.f32 %v7600, %v7655
    %v7672 = vadd.f32 %v7601, %v7655
    %v7673 = vadd.f32 %v7602, %v7655
    %v7674 = vadd.f32 %v7603, %v7655
    %v7675 = vadd.f32 %v7604, %v7655
    %v7676 = vadd.f32 %v7605, %v7655
    %v7677 = vadd.f32 %v7606, %v7655
    %v7678 = vadd.f32 %v7607, %v7655
    %v7679 = vadd.f32 %v7608, %v7655
    %v7680 = vadd.f32 %v7609, %v7655
    %v7681 = vadd.f32 %v7610, %v7655
    %v7682 = vadd.f32 %v7611, %v7655
    %v7683 = vadd.f32 %v7612, %v7655
    %v7684 = vadd.f32 %v7613, %v7655
    %v7685 = vadd.f32 %v7614, %v7655
    %v7686 = vadd.f32 %v7615, %v7655
    %v7687 = vadd.f32 %v7616, %v7655
    %v7688 = vadd.f32 %v7617, %v7655
    %v7689 = vadd.f32 %v7618, %v7655
    %v7690 = vadd.f32 %v7619, %v7655
    %v7691 = vadd.f32 %v7620, %v7655
    %v7692 = vadd.f32 %v7621, %v7655
    %v7693 = vadd.f32 %v7622, %v7655
    %v7694 = vadd.f32 %v7623, %v7655
    %v7695 = vadd.f32 %v7624, %v7655
    %v7696 = vadd.f32 %v7625, %v7655
    %v7697 = vadd.f32 %v7626, %v7655
    %v7698 = vadd.f32 %v7627, %v7655
    %v7699 = vadd.f32 %v7628, %v7655
    %v7700 = vadd.f32 %v7629, %v7655
    %v7701 = vadd.f32 %v7630, %v7655
    %v7702 = vadd.f32 %v7631, %v7655
    %v7703 = vadd.f32 %v7632, %v7655
    %v7704 = vadd.f32 %v7633, %v7655
    %v7705 = vadd.f32 %v7634, %v7655
    %v7706 = vadd.f32 %v7635, %v7655
    %v7707 = vadd.f32 %v7636, %v7655
    %v7708 = vadd.f32 %v7637, %v7655
    %v7709 = vadd.f32 %v7638, %v7655
    %v7710 = vadd.f32 %v7639, %v7655
    %v7711 = vadd.f32 %v7640, %v7655
    %v7712 = vadd.f32 %v7641, %v7655
    %v7713 = vadd.f32 %v7642, %v7655
    %v7714 = vadd.f32 %v7643, %v7655
    %v7715 = vadd.f32 %v7644, %v7655
    %v7716 = vadd.f32 %v7645, %v7655
    %v7717 = vadd.f32 %v7646, %v7655
    %v7718 = vadd.f32 %v7647, %v7655
    %v7719 = vadd.f32 %v7648, %v7655
    %v7720 = vadd.f32 %v7649, %v7655
    %v7721 = vmax.f32 %v7657, 0.0
    %v7722 = vmax.f32 %v7658, 0.0
    %v7723 = vmax.f32 %v7659, 0.0
    %v7724 = vmax.f32 %v7660, 0.0
    %v7725 = vmax.f32 %v7661, 0.0
    %v7726 = vmax.f32 %v7662, 0.0
    %v7727 = vmax.f32 %v7663, 0.0
    %v7728 = vmax.f32 %v7664, 0.0
    %v7729 = vmax.f32 %v7665, 0.0
    %v7730 = vmax.f32 %v7666, 0.0
    %v7731 = vmax.f32 %v7667, 0.0
    %v7732 = vmax.f32 %v7668, 0.0
    %v7733 = vmax.f32 %v7669, 0.0
    %v7734 = vmax.f32 %v7670, 0.0
    %v7735 = vmax.f32 %v7671, 0.0
    %v7736 = vmax.f32 %v7672, 0.0
    %v7737 = vmax.f32 %v7673, 0.0
    %v7738 = vmax.f32 %v7674, 0.0
    %v7739 = vmax.f32 %v7675, 0.0
    %v7740 = vmax.f32 %v7676, 0.0
    %v7741 = vmax.f32 %v7677, 0.0
    %v7742 = vmax.f32 %v7678, 0.0
    %v7743 = vmax.f32 %v7679, 0.0
    %v7744 = vmax.f32 %v7680, 0.0
    %v7745 = vmax.f32 %v7681, 0.0
    %v7746 = vmax.f32 %v7682, 0.0
    %v7747 = vmax.f32 %v7683, 0.0
    %v7748 = vmax.f32 %v7684, 0.0
    %v7749 = vmax.f32 %v7685, 0.0
    %v7750 = vmax.f32 %v7686, 0.0
    %v7751 = vmax.f32 %v7687, 0.0
    %v7752 = vmax.f32 %v7688, 0.0
    %v7753 = vmax.f32 %v7689, 0.0
    %v7754 = vmax.f32 %v7690, 0.0
    %v7755 = vmax.f32 %v7691, 0.0
    %v7756 = vmax.f32 %v7692, 0.0
    %v7757 = vmax.f32 %v7693, 0.0
    %v7758 = vmax.f32 %v7694, 0.0
    %v7759 = vmax.f32 %v7695, 0.0
    %v7760 = vmax.f32 %v7696, 0.0
    %v7761 = vmax.f32 %v7697, 0.0
    %v7762 = vmax.f32 %v7698, 0.0
    %v7763 = vmax.f32 %v7699, 0.0
    %v7764 = vmax.f32 %v7700, 0.0
    %v7765 = vmax.f32 %v7701, 0.0
    %v7766 = vmax.f32 %v7702, 0.0
    %v7767 = vmax.f32 %v7703, 0.0
    %v7768 = vmax.f32 %v7704, 0.0
    %v7769 = vmax.f32 %v7705, 0.0
    %v7770 = vmax.f32 %v7706, 0.0
    %v7771 = vmax.f32 %v7707, 0.0
    %v7772 = vmax.f32 %v7708, 0.0
    %v7773 = vmax.f32 %v7709, 0.0
    %v7774 = vmax.f32 %v7710, 0.0
    %v7775 = vmax.f32 %v7711, 0.0
    %v7776 = vmax.f32 %v7712, 0.0
    %v7777 = vmax.f32 %v7713, 0.0
    %v7778 = vmax.f32 %v7714, 0.0
    %v7779 = vmax.f32 %v7715, 0.0
    %v7780 = vmax.f32 %v7716, 0.0
    %v7781 = vmax.f32 %v7717, 0.0
    %v7782 = vmax.f32 %v7718, 0.0
    %v7783 = vmax.f32 %v7719, 0.0
    %v7784 = vmax.f32 %v7720, 0.0
    %v7849 = vrot.slane %v7721, 7
    %v7850 = vrot.slane %v7722, 7
    %v7851 = vsel %vm174, %v7849, %v7850
    %v7852 = vrot.slane %v7723, 7
    %v7853 = vrot.slane %v7724, 7
    %v7854 = vsel %vm174, %v7852, %v7853
    %v7855 = vrot.slane %v7725, 7
    %v7856 = vrot.slane %v7726, 7
    %v7857 = vsel %vm174, %v7855, %v7856
    %v7858 = vrot.slane %v7727, 7
    %v7859 = vrot.slane %v7728, 7
    %v7860 = vsel %vm174, %v7858, %v7859
    %v7861 = vrot.slane %v7729, 7
    %v7862 = vrot.slane %v7730, 7
    %v7863 = vsel %vm174, %v7861, %v7862
    %v7864 = vrot.slane %v7731, 7
    %v7865 = vrot.slane %v7732, 7
    %v7866 = vsel %vm174, %v7864, %v7865
    %v7867 = vrot.slane %v7733, 7
    %v7868 = vrot.slane %v7734, 7
    %v7869 = vsel %vm174, %v7867, %v7868
    %v7870 = vrot.slane %v7735, 7
    %v7871 = vrot.slane %v7736, 7
    %v7872 = vsel %vm174, %v7870, %v7871
    %v7873 = vrot.slane %v7737, 7
    %v7874 = vrot.slane %v7738, 7
    %v7875 = vsel %vm174, %v7873, %v7874
    %v7876 = vrot.slane %v7739, 7
    %v7877 = vrot.slane %v7740, 7
    %v7878 = vsel %vm174, %v7876, %v7877
    %v7879 = vrot.slane %v7741, 7
    %v7880 = vrot.slane %v7742, 7
    %v7881 = vsel %vm174, %v7879, %v7880
    %v7882 = vrot.slane %v7743, 7
    %v7883 = vrot.slane %v7744, 7
    %v7884 = vsel %vm174, %v7882, %v7883
    %v7885 = vrot.slane %v7745, 7
    %v7886 = vrot.slane %v7746, 7
    %v7887 = vsel %vm174, %v7885, %v7886
    %v7888 = vrot.slane %v7747, 7
    %v7889 = vrot.slane %v7748, 7
    %v7890 = vsel %vm174, %v7888, %v7889
    %v7891 = vrot.slane %v7749, 7
    %v7892 = vrot.slane %v7750, 7
    %v7893 = vsel %vm174, %v7891, %v7892
    %v7894 = vrot.slane %v7751, 7
    %v7895 = vrot.slane %v7752, 7
    %v7896 = vsel %vm174, %v7894, %v7895
    %v7897 = vrot.slane %v7753, 7
    %v7898 = vrot.slane %v7754, 7
    %v7899 = vsel %vm174, %v7897, %v7898
    %v7900 = vrot.slane %v7755, 7
    %v7901 = vrot.slane %v7756, 7
    %v7902 = vsel %vm174, %v7900, %v7901
    %v7903 = vrot.slane %v7757, 7
    %v7904 = vrot.slane %v7758, 7
    %v7905 = vsel %vm174, %v7903, %v7904
    %v7906 = vrot.slane %v7759, 7
    %v7907 = vrot.slane %v7760, 7
    %v7908 = vsel %vm174, %v7906, %v7907
    %v7909 = vrot.slane %v7761, 7
    %v7910 = vrot.slane %v7762, 7
    %v7911 = vsel %vm174, %v7909, %v7910
    %v7912 = vrot.slane %v7763, 7
    %v7913 = vrot.slane %v7764, 7
    %v7914 = vsel %vm174, %v7912, %v7913
    %v7915 = vrot.slane %v7765, 7
    %v7916 = vrot.slane %v7766, 7
    %v7917 = vsel %vm174, %v7915, %v7916
    %v7918 = vrot.slane %v7767, 7
    %v7919 = vrot.slane %v7768, 7
    %v7920 = vsel %vm174, %v7918, %v7919
    %v7921 = vrot.slane %v7769, 7
    %v7922 = vrot.slane %v7770, 7
    %v7923 = vsel %vm174, %v7921, %v7922
    %v7924 = vrot.slane %v7771, 7
    %v7925 = vrot.slane %v7772, 7
    %v7926 = vsel %vm174, %v7924, %v7925
    %v7927 = vrot.slane %v7773, 7
    %v7928 = vrot.slane %v7774, 7
    %v7929 = vsel %vm174, %v7927, %v7928
    %v7930 = vrot.slane %v7775, 7
    %v7931 = vrot.slane %v7776, 7
    %v7932 = vsel %vm174, %v7930, %v7931
    %v7933 = vrot.slane %v7777, 7
    %v7934 = vrot.slane %v7778, 7
    %v7935 = vsel %vm174, %v7933, %v7934
    %v7936 = vrot.slane %v7779, 7
    %v7937 = vrot.slane %v7780, 7
    %v7938 = vsel %vm174, %v7936, %v7937
    %v7939 = vrot.slane %v7781, 7
    %v7940 = vrot.slane %v7782, 7
    %v7941 = vsel %vm174, %v7939, %v7940
    %v7942 = vrot.slane %v7783, 7
    %v7943 = vrot.slane %v7784, 7
    %v7944 = vsel %vm174, %v7942, %v7943
    %v8039 = vsel %vm174, 0.0, %v7849
    %v8040 = vsel %vm174, 0.0, %v7852
    %v8041 = vsel %vm174, 0.0, %v7855
    %v8042 = vsel %vm174, 0.0, %v7858
    %v8043 = vsel %vm174, 0.0, %v7861
    %v8044 = vsel %vm174, 0.0, %v7864
    %v8045 = vsel %vm174, 0.0, %v7867
    %v8046 = vsel %vm174, 0.0, %v7870
    %v8047 = vsel %vm174, 0.0, %v7873
    %v8048 = vsel %vm174, 0.0, %v7876
    %v8049 = vsel %vm174, 0.0, %v7879
    %v8050 = vsel %vm174, 0.0, %v7882
    %v8051 = vsel %vm174, 0.0, %v7885
    %v8052 = vsel %vm174, 0.0, %v7888
    %v8053 = vsel %vm174, 0.0, %v7891
    %v8054 = vsel %vm174, 0.0, %v7894
    %v8055 = vsel %vm174, 0.0, %v7897
    %v8056 = vsel %vm174, 0.0, %v7900
    %v8057 = vsel %vm174, 0.0, %v7903
    %v8058 = vsel %vm174, 0.0, %v7906
    %v8059 = vsel %vm174, 0.0, %v7909
    %v8060 = vsel %vm174, 0.0, %v7912
    %v8061 = vsel %vm174, 0.0, %v7915
    %v8062 = vsel %vm174, 0.0, %v7918
    %v8063 = vsel %vm174, 0.0, %v7921
    %v8064 = vsel %vm174, 0.0, %v7924
    %v8065 = vsel %vm174, 0.0, %v7927
    %v8066 = vsel %vm174, 0.0, %v7930
    %v8067 = vsel %vm174, 0.0, %v7933
    %v8068 = vsel %vm174, 0.0, %v7936
    %v8069 = vsel %vm174, 0.0, %v7939
    %v8070 = vsel %vm174, 0.0, %v7942
    %v8071 = vsel %vm174, %v7850, 0.0
    %v8072 = vsel %vm174, %v7853, 0.0
    %v8073 = vsel %vm174, %v7856, 0.0
    %v8074 = vsel %vm174, %v7859, 0.0
    %v8075 = vsel %vm174, %v7862, 0.0
    %v8076 = vsel %vm174, %v7865, 0.0
    %v8077 = vsel %vm174, %v7868, 0.0
    %v8078 = vsel %vm174, %v7871, 0.0
    %v8079 = vsel %vm174, %v7874, 0.0
    %v8080 = vsel %vm174, %v7877, 0.0
    %v8081 = vsel %vm174, %v7880, 0.0
    %v8082 = vsel %vm174, %v7883, 0.0
    %v8083 = vsel %vm174, %v7886, 0.0
    %v8084 = vsel %vm174, %v7889, 0.0
    %v8085 = vsel %vm174, %v7892, 0.0
    %v8086 = vsel %vm174, %v7895, 0.0
    %v8087 = vsel %vm174, %v7898, 0.0
    %v8088 = vsel %vm174, %v7901, 0.0
    %v8089 = vsel %vm174, %v7904, 0.0
    %v8090 = vsel %vm174, %v7907, 0.0
    %v8091 = vsel %vm174, %v7910, 0.0
    %v8092 = vsel %vm174, %v7913, 0.0
    %v8093 = vsel %vm174, %v7916, 0.0
    %v8094 = vsel %vm174, %v7919, 0.0
    %v8095 = vsel %vm174, %v7922, 0.0
    %v8096 = vsel %vm174, %v7925, 0.0
    %v8097 = vsel %vm174, %v7928, 0.0
    %v8098 = vsel %vm174, %v7931, 0.0
    %v8099 = vsel %vm174, %v7934, 0.0
    %v8100 = vsel %vm174, %v7937, 0.0
    %v8101 = vsel %vm174, %v7940, 0.0
    %v8102 = vsel %vm174, %v7943, 0.0
    %v8163 = vrot.slane %v8039, 1
    %v8164 = vrot.slane %v7851, 1
    %v8165 = vsel %vm497, %v8163, %v8164
    %v8166 = vrot.slane %v8071, 1
    %v8167 = vsel %vm497, %v8164, %v8166
    %v8168 = vrot.slane %v8040, 1
    %v8169 = vrot.slane %v7854, 1
    %v8170 = vsel %vm497, %v8168, %v8169
    %v8171 = vrot.slane %v8072, 1
    %v8172 = vsel %vm497, %v8169, %v8171
    %v8173 = vrot.slane %v8041, 1
    %v8174 = vrot.slane %v7857, 1
    %v8175 = vsel %vm497, %v8173, %v8174
    %v8176 = vrot.slane %v8073, 1
    %v8177 = vsel %vm497, %v8174, %v8176
    %v8178 = vrot.slane %v8042, 1
    %v8179 = vrot.slane %v7860, 1
    %v8180 = vsel %vm497, %v8178, %v8179
    %v8181 = vrot.slane %v8074, 1
    %v8182 = vsel %vm497, %v8179, %v8181
    %v8183 = vrot.slane %v8043, 1
    %v8184 = vrot.slane %v7863, 1
    %v8185 = vsel %vm497, %v8183, %v8184
    %v8186 = vrot.slane %v8075, 1
    %v8187 = vsel %vm497, %v8184, %v8186
    %v8188 = vrot.slane %v8044, 1
    %v8189 = vrot.slane %v7866, 1
    %v8190 = vsel %vm497, %v8188, %v8189
    %v8191 = vrot.slane %v8076, 1
    %v8192 = vsel %vm497, %v8189, %v8191
    %v8193 = vrot.slane %v8045, 1
    %v8194 = vrot.slane %v7869, 1
    %v8195 = vsel %vm497, %v8193, %v8194
    %v8196 = vrot.slane %v8077, 1
    %v8197 = vsel %vm497, %v8194, %v8196
    %v8198 = vrot.slane %v8046, 1
    %v8199 = vrot.slane %v7872, 1
    %v8200 = vsel %vm497, %v8198, %v8199
    %v8201 = vrot.slane %v8078, 1
    %v8202 = vsel %vm497, %v8199, %v8201
    %v8203 = vrot.slane %v8047, 1
    %v8204 = vrot.slane %v7875, 1
    %v8205 = vsel %vm497, %v8203, %v8204
    %v8206 = vrot.slane %v8079, 1
    %v8207 = vsel %vm497, %v8204, %v8206
    %v8208 = vrot.slane %v8048, 1
    %v8209 = vrot.slane %v7878, 1
    %v8210 = vsel %vm497, %v8208, %v8209
    %v8211 = vrot.slane %v8080, 1
    %v8212 = vsel %vm497, %v8209, %v8211
    %v8213 = vrot.slane %v8049, 1
    %v8214 = vrot.slane %v7881, 1
    %v8215 = vsel %vm497, %v8213, %v8214
    %v8216 = vrot.slane %v8081, 1
    %v8217 = vsel %vm497, %v8214, %v8216
    %v8218 = vrot.slane %v8050, 1
    %v8219 = vrot.slane %v7884, 1
    %v8220 = vsel %vm497, %v8218, %v8219
    %v8221 = vrot.slane %v8082, 1
    %v8222 = vsel %vm497, %v8219, %v8221
    %v8223 = vrot.slane %v8051, 1
    %v8224 = vrot.slane %v7887, 1
    %v8225 = vsel %vm497, %v8223, %v8224
    %v8226 = vrot.slane %v8083, 1
    %v8227 = vsel %vm497, %v8224, %v8226
    %v8228 = vrot.slane %v8052, 1
    %v8229 = vrot.slane %v7890, 1
    %v8230 = vsel %vm497, %v8228, %v8229
    %v8231 = vrot.slane %v8084, 1
    %v8232 = vsel %vm497, %v8229, %v8231
    %v8233 = vrot.slane %v8053, 1
    %v8234 = vrot.slane %v7893, 1
    %v8235 = vsel %vm497, %v8233, %v8234
    %v8236 = vrot.slane %v8085, 1
    %v8237 = vsel %vm497, %v8234, %v8236
    %v8238 = vrot.slane %v8055, 1
    %v8239 = vrot.slane %v7899, 1
    %v8240 = vsel %vm497, %v8238, %v8239
    %v8241 = vrot.slane %v8087, 1
    %v8242 = vsel %vm497, %v8239, %v8241
    %v8243 = vrot.slane %v8056, 1
    %v8244 = vrot.slane %v7902, 1
    %v8245 = vsel %vm497, %v8243, %v8244
    %v8246 = vrot.slane %v8088, 1
    %v8247 = vsel %vm497, %v8244, %v8246
    %v8248 = vrot.slane %v8057, 1
    %v8249 = vrot.slane %v7905, 1
    %v8250 = vsel %vm497, %v8248, %v8249
    %v8251 = vrot.slane %v8089, 1
    %v8252 = vsel %vm497, %v8249, %v8251
    %v8253 = vrot.slane %v8058, 1
    %v8254 = vrot.slane %v7908, 1
    %v8255 = vsel %vm497, %v8253, %v8254
    %v8256 = vrot.slane %v8090, 1
    %v8257 = vsel %vm497, %v8254, %v8256
    %v8258 = vrot.slane %v8059, 1
    %v8259 = vrot.slane %v7911, 1
    %v8260 = vsel %vm497, %v8258, %v8259
    %v8261 = vrot.slane %v8091, 1
    %v8262 = vsel %vm497, %v8259, %v8261
    %v8263 = vrot.slane %v8060, 1
    %v8264 = vrot.slane %v7914, 1
    %v8265 = vsel %vm497, %v8263, %v8264
    %v8266 = vrot.slane %v8092, 1
    %v8267 = vsel %vm497, %v8264, %v8266
    %v8268 = vrot.slane %v8061, 1
    %v8269 = vrot.slane %v7917, 1
    %v8270 = vsel %vm497, %v8268, %v8269
    %v8271 = vrot.slane %v8093, 1
    %v8272 = vsel %vm497, %v8269, %v8271
    %v8273 = vrot.slane %v8062, 1
    %v8274 = vrot.slane %v7920, 1
    %v8275 = vsel %vm497, %v8273, %v8274
    %v8276 = vrot.slane %v8094, 1
    %v8277 = vsel %vm497, %v8274, %v8276
    %v8278 = vrot.slane %v8063, 1
    %v8279 = vrot.slane %v7923, 1
    %v8280 = vsel %vm497, %v8278, %v8279
    %v8281 = vrot.slane %v8095, 1
    %v8282 = vsel %vm497, %v8279, %v8281
    %v8283 = vrot.slane %v8064, 1
    %v8284 = vrot.slane %v7926, 1
    %v8285 = vsel %vm497, %v8283, %v8284
    %v8286 = vrot.slane %v8096, 1
    %v8287 = vsel %vm497, %v8284, %v8286
    %v8288 = vrot.slane %v8065, 1
    %v8289 = vrot.slane %v7929, 1
    %v8290 = vsel %vm497, %v8288, %v8289
    %v8291 = vrot.slane %v8097, 1
    %v8292 = vsel %vm497, %v8289, %v8291
    %v8293 = vrot.slane %v8066, 1
    %v8294 = vrot.slane %v7932, 1
    %v8295 = vsel %vm497, %v8293, %v8294
    %v8296 = vrot.slane %v8098, 1
    %v8297 = vsel %vm497, %v8294, %v8296
    %v8298 = vrot.slane %v8067, 1
    %v8299 = vrot.slane %v7935, 1
    %v8300 = vsel %vm497, %v8298, %v8299
    %v8301 = vrot.slane %v8099, 1
    %v8302 = vsel %vm497, %v8299, %v8301
    %v8303 = vrot.slane %v8068, 1
    %v8304 = vrot.slane %v7938, 1
    %v8305 = vsel %vm497, %v8303, %v8304
    %v8306 = vrot.slane %v8100, 1
    %v8307 = vsel %vm497, %v8304, %v8306
    %v8308 = vrot.slane %v8069, 1
    %v8309 = vrot.slane %v7941, 1
    %v8310 = vsel %vm497, %v8308, %v8309
    %v8311 = vrot.slane %v8101, 1
    %v8312 = vsel %vm497, %v8309, %v8311
    %8313 = vrot.lane.b32.xlu0 %v8165, 16
    %v8314 = vpop.permute.xlu0 %8313
    %8315 = vrot.lane.b32.xlu0 %v8167, 16
    %v8316 = vpop.permute.xlu0 %8315
    %8317 = vrot.lane.b32.xlu0 %v8170, 16
    %v8318 = vpop.permute.xlu0 %8317
    %8319 = vrot.lane.b32.xlu0 %v8172, 16
    %v8320 = vpop.permute.xlu0 %8319
    %8321 = vrot.lane.b32.xlu0 %v8175, 16
    %v8322 = vpop.permute.xlu0 %8321
    %8323 = vrot.lane.b32.xlu0 %v8177, 16
    %v8324 = vpop.permute.xlu0 %8323
    %8325 = vrot.lane.b32.xlu0 %v8180, 16
    %v8326 = vpop.permute.xlu0 %8325
    %8327 = vrot.lane.b32.xlu0 %v8182, 16
    %v8328 = vpop.permute.xlu0 %8327
    %8329 = vrot.lane.b32.xlu0 %v8185, 16
    %v8330 = vpop.permute.xlu0 %8329
    %8331 = vrot.lane.b32.xlu0 %v8187, 16
    %v8332 = vpop.permute.xlu0 %8331
    %8333 = vrot.lane.b32.xlu0 %v8190, 16
    %v8334 = vpop.permute.xlu0 %8333
    %8335 = vrot.lane.b32.xlu0 %v8192, 16
    %v8336 = vpop.permute.xlu0 %8335
    %8337 = vrot.lane.b32.xlu0 %v8195, 16
    %v8338 = vpop.permute.xlu0 %8337
    %8339 = vrot.lane.b32.xlu0 %v8197, 16
    %v8340 = vpop.permute.xlu0 %8339
    %8341 = vrot.lane.b32.xlu0 %v8200, 16
    %v8342 = vpop.permute.xlu0 %8341
    %8343 = vrot.lane.b32.xlu0 %v8202, 16
    %v8344 = vpop.permute.xlu0 %8343
    %8345 = vrot.lane.b32.xlu0 %v8205, 16
    %v8346 = vpop.permute.xlu0 %8345
    %8347 = vrot.lane.b32.xlu0 %v8207, 16
    %v8348 = vpop.permute.xlu0 %8347
    %8349 = vrot.lane.b32.xlu0 %v8210, 16
    %v8350 = vpop.permute.xlu0 %8349
    %8351 = vrot.lane.b32.xlu0 %v8212, 16
    %v8352 = vpop.permute.xlu0 %8351
    %8353 = vrot.lane.b32.xlu0 %v8215, 16
    %v8354 = vpop.permute.xlu0 %8353
    %8355 = vrot.lane.b32.xlu0 %v8217, 16
    %v8356 = vpop.permute.xlu0 %8355
    %8357 = vrot.lane.b32.xlu0 %v8220, 16
    %v8358 = vpop.permute.xlu0 %8357
    %8359 = vrot.lane.b32.xlu0 %v8222, 16
    %v8360 = vpop.permute.xlu0 %8359
    %8361 = vrot.lane.b32.xlu0 %v8225, 16
    %v8362 = vpop.permute.xlu0 %8361
    %8363 = vrot.lane.b32.xlu0 %v8227, 16
    %v8364 = vpop.permute.xlu0 %8363
    %8365 = vrot.lane.b32.xlu0 %v8230, 16
    %v8366 = vpop.permute.xlu0 %8365
    %8367 = vrot.lane.b32.xlu0 %v8232, 16
    %v8368 = vpop.permute.xlu0 %8367
    %8369 = vrot.lane.b32.xlu0 %v8235, 16
    %v8370 = vpop.permute.xlu0 %8369
    %8371 = vrot.lane.b32.xlu0 %v8237, 16
    %v8372 = vpop.permute.xlu0 %8371
    %8373 = vrot.lane.b32.xlu0 %v8240, 16
    %v8374 = vpop.permute.xlu0 %8373
    %8375 = vrot.lane.b32.xlu0 %v8242, 16
    %v8376 = vpop.permute.xlu0 %8375
    %8377 = vrot.lane.b32.xlu0 %v8245, 16
    %v8378 = vpop.permute.xlu0 %8377
    %8379 = vrot.lane.b32.xlu0 %v8247, 16
    %v8380 = vpop.permute.xlu0 %8379
    %8381 = vrot.lane.b32.xlu0 %v8250, 16
    %v8382 = vpop.permute.xlu0 %8381
    %8383 = vrot.lane.b32.xlu0 %v8252, 16
    %v8384 = vpop.permute.xlu0 %8383
    %8385 = vrot.lane.b32.xlu0 %v8255, 16
    %v8386 = vpop.permute.xlu0 %8385
    %8387 = vrot.lane.b32.xlu0 %v8257, 16
    %v8388 = vpop.permute.xlu0 %8387
    %8389 = vrot.lane.b32.xlu0 %v8260, 16
    %v8390 = vpop.permute.xlu0 %8389
    %8391 = vrot.lane.b32.xlu0 %v8262, 16
    %v8392 = vpop.permute.xlu0 %8391
    %8393 = vrot.lane.b32.xlu0 %v8265, 16
    %v8394 = vpop.permute.xlu0 %8393
    %8395 = vrot.lane.b32.xlu0 %v8267, 16
    %v8396 = vpop.permute.xlu0 %8395
    %8397 = vrot.lane.b32.xlu0 %v8270, 16
    %v8398 = vpop.permute.xlu0 %8397
    %8399 = vrot.lane.b32.xlu0 %v8272, 16
    %v8400 = vpop.permute.xlu0 %8399
    %8401 = vrot.lane.b32.xlu0 %v8275, 16
    %v8402 = vpop.permute.xlu0 %8401
    %8403 = vrot.lane.b32.xlu0 %v8277, 16
    %v8404 = vpop.permute.xlu0 %8403
    %8405 = vrot.lane.b32.xlu0 %v8280, 16
    %v8406 = vpop.permute.xlu0 %8405
    %8407 = vrot.lane.b32.xlu0 %v8282, 16
    %v8408 = vpop.permute.xlu0 %8407
    %8409 = vrot.lane.b32.xlu0 %v8285, 16
    %v8410 = vpop.permute.xlu0 %8409
    %8411 = vrot.lane.b32.xlu0 %v8287, 16
    %v8412 = vpop.permute.xlu0 %8411
    %8413 = vrot.lane.b32.xlu0 %v8290, 16
    %v8414 = vpop.permute.xlu0 %8413
    %8415 = vrot.lane.b32.xlu0 %v8292, 16
    %v8416 = vpop.permute.xlu0 %8415
    %8417 = vrot.lane.b32.xlu0 %v8295, 16
    %v8418 = vpop.permute.xlu0 %8417
    %8419 = vrot.lane.b32.xlu0 %v8297, 16
    %v8420 = vpop.permute.xlu0 %8419
    %8421 = vrot.lane.b32.xlu0 %v8300, 16
    %v8422 = vpop.permute.xlu0 %8421
    %8423 = vrot.lane.b32.xlu0 %v8302, 16
    %v8424 = vpop.permute.xlu0 %8423
    %8425 = vrot.lane.b32.xlu0 %v8305, 16
    %v8426 = vpop.permute.xlu0 %8425
    %8427 = vrot.lane.b32.xlu0 %v8307, 16
    %v8428 = vpop.permute.xlu0 %8427
    %8429 = vrot.lane.b32.xlu0 %v8310, 16
    %v8430 = vpop.permute.xlu0 %8429
    %8431 = vrot.lane.b32.xlu0 %v8312, 16
    %v8432 = vpop.permute.xlu0 %8431
    %v8493 = vrot.slane %v8039, 2
    %v8494 = vrot.slane %v7851, 2
    %v8495 = vsel %vm839, %v8493, %v8494
    %v8496 = vrot.slane %v8071, 2
    %v8497 = vsel %vm839, %v8494, %v8496
    %v8498 = vrot.slane %v8040, 2
    %v8499 = vrot.slane %v7854, 2
    %v8500 = vsel %vm839, %v8498, %v8499
    %v8501 = vrot.slane %v8072, 2
    %v8502 = vsel %vm839, %v8499, %v8501
    %v8503 = vrot.slane %v8041, 2
    %v8504 = vrot.slane %v7857, 2
    %v8505 = vsel %vm839, %v8503, %v8504
    %v8506 = vrot.slane %v8073, 2
    %v8507 = vsel %vm839, %v8504, %v8506
    %v8508 = vrot.slane %v8042, 2
    %v8509 = vrot.slane %v7860, 2
    %v8510 = vsel %vm839, %v8508, %v8509
    %v8511 = vrot.slane %v8074, 2
    %v8512 = vsel %vm839, %v8509, %v8511
    %v8513 = vrot.slane %v8043, 2
    %v8514 = vrot.slane %v7863, 2
    %v8515 = vsel %vm839, %v8513, %v8514
    %v8516 = vrot.slane %v8075, 2
    %v8517 = vsel %vm839, %v8514, %v8516
    %v8518 = vrot.slane %v8044, 2
    %v8519 = vrot.slane %v7866, 2
    %v8520 = vsel %vm839, %v8518, %v8519
    %v8521 = vrot.slane %v8076, 2
    %v8522 = vsel %vm839, %v8519, %v8521
    %v8523 = vrot.slane %v8045, 2
    %v8524 = vrot.slane %v7869, 2
    %v8525 = vsel %vm839, %v8523, %v8524
    %v8526 = vrot.slane %v8077, 2
    %v8527 = vsel %vm839, %v8524, %v8526
    %v8528 = vrot.slane %v8046, 2
    %v8529 = vrot.slane %v7872, 2
    %v8530 = vsel %vm839, %v8528, %v8529
    %v8531 = vrot.slane %v8078, 2
    %v8532 = vsel %vm839, %v8529, %v8531
    %v8533 = vrot.slane %v8047, 2
    %v8534 = vrot.slane %v7875, 2
    %v8535 = vsel %vm839, %v8533, %v8534
    %v8536 = vrot.slane %v8079, 2
    %v8537 = vsel %vm839, %v8534, %v8536
    %v8538 = vrot.slane %v8048, 2
    %v8539 = vrot.slane %v7878, 2
    %v8540 = vsel %vm839, %v8538, %v8539
    %v8541 = vrot.slane %v8080, 2
    %v8542 = vsel %vm839, %v8539, %v8541
    %v8543 = vrot.slane %v8049, 2
    %v8544 = vrot.slane %v7881, 2
    %v8545 = vsel %vm839, %v8543, %v8544
    %v8546 = vrot.slane %v8081, 2
    %v8547 = vsel %vm839, %v8544, %v8546
    %v8548 = vrot.slane %v8050, 2
    %v8549 = vrot.slane %v7884, 2
    %v8550 = vsel %vm839, %v8548, %v8549
    %v8551 = vrot.slane %v8082, 2
    %v8552 = vsel %vm839, %v8549, %v8551
    %v8553 = vrot.slane %v8051, 2
    %v8554 = vrot.slane %v7887, 2
    %v8555 = vsel %vm839, %v8553, %v8554
    %v8556 = vrot.slane %v8083, 2
    %v8557 = vsel %vm839, %v8554, %v8556
    %v8558 = vrot.slane %v8052, 2
    %v8559 = vrot.slane %v7890, 2
    %v8560 = vsel %vm839, %v8558, %v8559
    %v8561 = vrot.slane %v8084, 2
    %v8562 = vsel %vm839, %v8559, %v8561
    %v8563 = vrot.slane %v8053, 2
    %v8564 = vrot.slane %v7893, 2
    %v8565 = vsel %vm839, %v8563, %v8564
    %v8566 = vrot.slane %v8085, 2
    %v8567 = vsel %vm839, %v8564, %v8566
    %v8568 = vrot.slane %v8055, 2
    %v8569 = vrot.slane %v7899, 2
    %v8570 = vsel %vm839, %v8568, %v8569
    %v8571 = vrot.slane %v8087, 2
    %v8572 = vsel %vm839, %v8569, %v8571
    %v8573 = vrot.slane %v8056, 2
    %v8574 = vrot.slane %v7902, 2
    %v8575 = vsel %vm839, %v8573, %v8574
    %v8576 = vrot.slane %v8088, 2
    %v8577 = vsel %vm839, %v8574, %v8576
    %v8578 = vrot.slane %v8057, 2
    %v8579 = vrot.slane %v7905, 2
    %v8580 = vsel %vm839, %v8578, %v8579
    %v8581 = vrot.slane %v8089, 2
    %v8582 = vsel %vm839, %v8579, %v8581
    %v8583 = vrot.slane %v8058, 2
    %v8584 = vrot.slane %v7908, 2
    %v8585 = vsel %vm839, %v8583, %v8584
    %v8586 = vrot.slane %v8090, 2
    %v8587 = vsel %vm839, %v8584, %v8586
    %v8588 = vrot.slane %v8059, 2
    %v8589 = vrot.slane %v7911, 2
    %v8590 = vsel %vm839, %v8588, %v8589
    %v8591 = vrot.slane %v8091, 2
    %v8592 = vsel %vm839, %v8589, %v8591
    %v8593 = vrot.slane %v8060, 2
    %v8594 = vrot.slane %v7914, 2
    %v8595 = vsel %vm839, %v8593, %v8594
    %v8596 = vrot.slane %v8092, 2
    %v8597 = vsel %vm839, %v8594, %v8596
    %v8598 = vrot.slane %v8061, 2
    %v8599 = vrot.slane %v7917, 2
    %v8600 = vsel %vm839, %v8598, %v8599
    %v8601 = vrot.slane %v8093, 2
    %v8602 = vsel %vm839, %v8599, %v8601
    %v8603 = vrot.slane %v8062, 2
    %v8604 = vrot.slane %v7920, 2
    %v8605 = vsel %vm839, %v8603, %v8604
    %v8606 = vrot.slane %v8094, 2
    %v8607 = vsel %vm839, %v8604, %v8606
    %v8608 = vrot.slane %v8063, 2
    %v8609 = vrot.slane %v7923, 2
    %v8610 = vsel %vm839, %v8608, %v8609
    %v8611 = vrot.slane %v8095, 2
    %v8612 = vsel %vm839, %v8609, %v8611
    %v8613 = vrot.slane %v8064, 2
    %v8614 = vrot.slane %v7926, 2
    %v8615 = vsel %vm839, %v8613, %v8614
    %v8616 = vrot.slane %v8096, 2
    %v8617 = vsel %vm839, %v8614, %v8616
    %v8618 = vrot.slane %v8065, 2
    %v8619 = vrot.slane %v7929, 2
    %v8620 = vsel %vm839, %v8618, %v8619
    %v8621 = vrot.slane %v8097, 2
    %v8622 = vsel %vm839, %v8619, %v8621
    %v8623 = vrot.slane %v8066, 2
    %v8624 = vrot.slane %v7932, 2
    %v8625 = vsel %vm839, %v8623, %v8624
    %v8626 = vrot.slane %v8098, 2
    %v8627 = vsel %vm839, %v8624, %v8626
    %v8628 = vrot.slane %v8067, 2
    %v8629 = vrot.slane %v7935, 2
    %v8630 = vsel %vm839, %v8628, %v8629
    %v8631 = vrot.slane %v8099, 2
    %v8632 = vsel %vm839, %v8629, %v8631
    %v8633 = vrot.slane %v8068, 2
    %v8634 = vrot.slane %v7938, 2
    %v8635 = vsel %vm839, %v8633, %v8634
    %v8636 = vrot.slane %v8100, 2
    %v8637 = vsel %vm839, %v8634, %v8636
    %v8638 = vrot.slane %v8069, 2
    %v8639 = vrot.slane %v7941, 2
    %v8640 = vsel %vm839, %v8638, %v8639
    %v8641 = vrot.slane %v8101, 2
    %v8642 = vsel %vm839, %v8639, %v8641
    %8643 = vrot.lane.b32.xlu0 %v8495, 32
    %v8644 = vpop.permute.xlu0 %8643
    %8645 = vrot.lane.b32.xlu0 %v8497, 32
    %v8646 = vpop.permute.xlu0 %8645
    %8647 = vrot.lane.b32.xlu0 %v8500, 32
    %v8648 = vpop.permute.xlu0 %8647
    %8649 = vrot.lane.b32.xlu0 %v8502, 32
    %v8650 = vpop.permute.xlu0 %8649
    %8651 = vrot.lane.b32.xlu0 %v8505, 32
    %v8652 = vpop.permute.xlu0 %8651
    %8653 = vrot.lane.b32.xlu0 %v8507, 32
    %v8654 = vpop.permute.xlu0 %8653
    %8655 = vrot.lane.b32.xlu0 %v8510, 32
    %v8656 = vpop.permute.xlu0 %8655
    %8657 = vrot.lane.b32.xlu0 %v8512, 32
    %v8658 = vpop.permute.xlu0 %8657
    %8659 = vrot.lane.b32.xlu0 %v8515, 32
    %v8660 = vpop.permute.xlu0 %8659
    %8661 = vrot.lane.b32.xlu0 %v8517, 32
    %v8662 = vpop.permute.xlu0 %8661
    %8663 = vrot.lane.b32.xlu0 %v8520, 32
    %v8664 = vpop.permute.xlu0 %8663
    %8665 = vrot.lane.b32.xlu0 %v8522, 32
    %v8666 = vpop.permute.xlu0 %8665
    %8667 = vrot.lane.b32.xlu0 %v8525, 32
    %v8668 = vpop.permute.xlu0 %8667
    %8669 = vrot.lane.b32.xlu0 %v8527, 32
    %v8670 = vpop.permute.xlu0 %8669
    %8671 = vrot.lane.b32.xlu0 %v8530, 32
    %v8672 = vpop.permute.xlu0 %8671
    %8673 = vrot.lane.b32.xlu0 %v8532, 32
    %v8674 = vpop.permute.xlu0 %8673
    %8675 = vrot.lane.b32.xlu0 %v8535, 32
    %v8676 = vpop.permute.xlu0 %8675
    %8677 = vrot.lane.b32.xlu0 %v8537, 32
    %v8678 = vpop.permute.xlu0 %8677
    %8679 = vrot.lane.b32.xlu0 %v8540, 32
    %v8680 = vpop.permute.xlu0 %8679
    %8681 = vrot.lane.b32.xlu0 %v8542, 32
    %v8682 = vpop.permute.xlu0 %8681
    %8683 = vrot.lane.b32.xlu0 %v8545, 32
    %v8684 = vpop.permute.xlu0 %8683
    %8685 = vrot.lane.b32.xlu0 %v8547, 32
    %v8686 = vpop.permute.xlu0 %8685
    %8687 = vrot.lane.b32.xlu0 %v8550, 32
    %v8688 = vpop.permute.xlu0 %8687
    %8689 = vrot.lane.b32.xlu0 %v8552, 32
    %v8690 = vpop.permute.xlu0 %8689
    %8691 = vrot.lane.b32.xlu0 %v8555, 32
    %v8692 = vpop.permute.xlu0 %8691
    %8693 = vrot.lane.b32.xlu0 %v8557, 32
    %v8694 = vpop.permute.xlu0 %8693
    %8695 = vrot.lane.b32.xlu0 %v8560, 32
    %v8696 = vpop.permute.xlu0 %8695
    %8697 = vrot.lane.b32.xlu0 %v8562, 32
    %v8698 = vpop.permute.xlu0 %8697
    %8699 = vrot.lane.b32.xlu0 %v8565, 32
    %v8700 = vpop.permute.xlu0 %8699
    %8701 = vrot.lane.b32.xlu0 %v8567, 32
    %v8702 = vpop.permute.xlu0 %8701
    %8703 = vrot.lane.b32.xlu0 %v8570, 32
    %v8704 = vpop.permute.xlu0 %8703
    %8705 = vrot.lane.b32.xlu0 %v8572, 32
    %v8706 = vpop.permute.xlu0 %8705
    %8707 = vrot.lane.b32.xlu0 %v8575, 32
    %v8708 = vpop.permute.xlu0 %8707
    %8709 = vrot.lane.b32.xlu0 %v8577, 32
    %v8710 = vpop.permute.xlu0 %8709
    %8711 = vrot.lane.b32.xlu0 %v8580, 32
    %v8712 = vpop.permute.xlu0 %8711
    %8713 = vrot.lane.b32.xlu0 %v8582, 32
    %v8714 = vpop.permute.xlu0 %8713
    %8715 = vrot.lane.b32.xlu0 %v8585, 32
    %v8716 = vpop.permute.xlu0 %8715
    %8717 = vrot.lane.b32.xlu0 %v8587, 32
    %v8718 = vpop.permute.xlu0 %8717
    %8719 = vrot.lane.b32.xlu0 %v8590, 32
    %v8720 = vpop.permute.xlu0 %8719
    %8721 = vrot.lane.b32.xlu0 %v8592, 32
    %v8722 = vpop.permute.xlu0 %8721
    %8723 = vrot.lane.b32.xlu0 %v8595, 32
    %v8724 = vpop.permute.xlu0 %8723
    %8725 = vrot.lane.b32.xlu0 %v8597, 32
    %v8726 = vpop.permute.xlu0 %8725
    %8727 = vrot.lane.b32.xlu0 %v8600, 32
    %v8728 = vpop.permute.xlu0 %8727
    %8729 = vrot.lane.b32.xlu0 %v8602, 32
    %v8730 = vpop.permute.xlu0 %8729
    %8731 = vrot.lane.b32.xlu0 %v8605, 32
    %v8732 = vpop.permute.xlu0 %8731
    %8733 = vrot.lane.b32.xlu0 %v8607, 32
    %v8734 = vpop.permute.xlu0 %8733
    %8735 = vrot.lane.b32.xlu0 %v8610, 32
    %v8736 = vpop.permute.xlu0 %8735
    %8737 = vrot.lane.b32.xlu0 %v8612, 32
    %v8738 = vpop.permute.xlu0 %8737
    %8739 = vrot.lane.b32.xlu0 %v8615, 32
    %v8740 = vpop.permute.xlu0 %8739
    %8741 = vrot.lane.b32.xlu0 %v8617, 32
    %v8742 = vpop.permute.xlu0 %8741
    %8743 = vrot.lane.b32.xlu0 %v8620, 32
    %v8744 = vpop.permute.xlu0 %8743
    %8745 = vrot.lane.b32.xlu0 %v8622, 32
    %v8746 = vpop.permute.xlu0 %8745
    %8747 = vrot.lane.b32.xlu0 %v8625, 32
    %v8748 = vpop.permute.xlu0 %8747
    %8749 = vrot.lane.b32.xlu0 %v8627, 32
    %v8750 = vpop.permute.xlu0 %8749
    %8751 = vrot.lane.b32.xlu0 %v8630, 32
    %v8752 = vpop.permute.xlu0 %8751
    %8753 = vrot.lane.b32.xlu0 %v8632, 32
    %v8754 = vpop.permute.xlu0 %8753
    %8755 = vrot.lane.b32.xlu0 %v8635, 32
    %v8756 = vpop.permute.xlu0 %8755
    %8757 = vrot.lane.b32.xlu0 %v8637, 32
    %v8758 = vpop.permute.xlu0 %8757
    %8759 = vrot.lane.b32.xlu0 %v8640, 32
    %v8760 = vpop.permute.xlu0 %8759
    %8761 = vrot.lane.b32.xlu0 %v8642, 32
    %v8762 = vpop.permute.xlu0 %8761
    %8825 = vrot.lane.b32.xlu0 %v8039, 48
    %v8826 = vpop.permute.xlu0 %8825
    %8827 = vrot.lane.b32.xlu0 %v7851, 48
    %v8828 = vpop.permute.xlu0 %8827
    %8829 = vrot.lane.b32.xlu0 %v8040, 48
    %v8830 = vpop.permute.xlu0 %8829
    %8831 = vrot.lane.b32.xlu0 %v7854, 48
    %v8832 = vpop.permute.xlu0 %8831
    %8833 = vrot.lane.b32.xlu0 %v8041, 48
    %v8834 = vpop.permute.xlu0 %8833
    %8835 = vrot.lane.b32.xlu0 %v7857, 48
    %v8836 = vpop.permute.xlu0 %8835
    %8837 = vrot.lane.b32.xlu0 %v8042, 48
    %v8838 = vpop.permute.xlu0 %8837
    %8839 = vrot.lane.b32.xlu0 %v7860, 48
    %v8840 = vpop.permute.xlu0 %8839
    %8841 = vrot.lane.b32.xlu0 %v8043, 48
    %v8842 = vpop.permute.xlu0 %8841
    %8843 = vrot.lane.b32.xlu0 %v7863, 48
    %v8844 = vpop.permute.xlu0 %8843
    %8845 = vrot.lane.b32.xlu0 %v8044, 48
    %v8846 = vpop.permute.xlu0 %8845
    %8847 = vrot.lane.b32.xlu0 %v7866, 48
    %v8848 = vpop.permute.xlu0 %8847
    %8849 = vrot.lane.b32.xlu0 %v8045, 48
    %v8850 = vpop.permute.xlu0 %8849
    %8851 = vrot.lane.b32.xlu0 %v7869, 48
    %v8852 = vpop.permute.xlu0 %8851
    %8853 = vrot.lane.b32.xlu0 %v8046, 48
    %v8854 = vpop.permute.xlu0 %8853
    %8855 = vrot.lane.b32.xlu0 %v7872, 48
    %v8856 = vpop.permute.xlu0 %8855
    %8857 = vrot.lane.b32.xlu0 %v8047, 48
    %v8858 = vpop.permute.xlu0 %8857
    %8859 = vrot.lane.b32.xlu0 %v7875, 48
    %v8860 = vpop.permute.xlu0 %8859
    %8861 = vrot.lane.b32.xlu0 %v8048, 48
    %v8862 = vpop.permute.xlu0 %8861
    %8863 = vrot.lane.b32.xlu0 %v7878, 48
    %v8864 = vpop.permute.xlu0 %8863
    %8865 = vrot.lane.b32.xlu0 %v8049, 48
    %v8866 = vpop.permute.xlu0 %8865
    %8867 = vrot.lane.b32.xlu0 %v7881, 48
    %v8868 = vpop.permute.xlu0 %8867
    %8869 = vrot.lane.b32.xlu0 %v8050, 48
    %v8870 = vpop.permute.xlu0 %8869
    %8871 = vrot.lane.b32.xlu0 %v7884, 48
    %v8872 = vpop.permute.xlu0 %8871
    %8873 = vrot.lane.b32.xlu0 %v8051, 48
    %v8874 = vpop.permute.xlu0 %8873
    %8875 = vrot.lane.b32.xlu0 %v7887, 48
    %v8876 = vpop.permute.xlu0 %8875
    %8877 = vrot.lane.b32.xlu0 %v8052, 48
    %v8878 = vpop.permute.xlu0 %8877
    %8879 = vrot.lane.b32.xlu0 %v7890, 48
    %v8880 = vpop.permute.xlu0 %8879
    %8881 = vrot.lane.b32.xlu0 %v8053, 48
    %v8882 = vpop.permute.xlu0 %8881
    %8883 = vrot.lane.b32.xlu0 %v7893, 48
    %v8884 = vpop.permute.xlu0 %8883
    %8885 = vrot.lane.b32.xlu0 %v8054, 48
    %v8886 = vpop.permute.xlu0 %8885
    %8887 = vrot.lane.b32.xlu0 %v7896, 48
    %v8888 = vpop.permute.xlu0 %8887
    %8889 = vrot.lane.b32.xlu0 %v8055, 48
    %v8890 = vpop.permute.xlu0 %8889
    %8891 = vrot.lane.b32.xlu0 %v7899, 48
    %v8892 = vpop.permute.xlu0 %8891
    %8893 = vrot.lane.b32.xlu0 %v8056, 48
    %v8894 = vpop.permute.xlu0 %8893
    %8895 = vrot.lane.b32.xlu0 %v7902, 48
    %v8896 = vpop.permute.xlu0 %8895
    %8897 = vrot.lane.b32.xlu0 %v8057, 48
    %v8898 = vpop.permute.xlu0 %8897
    %8899 = vrot.lane.b32.xlu0 %v7905, 48
    %v8900 = vpop.permute.xlu0 %8899
    %8901 = vrot.lane.b32.xlu0 %v8058, 48
    %v8902 = vpop.permute.xlu0 %8901
    %8903 = vrot.lane.b32.xlu0 %v7908, 48
    %v8904 = vpop.permute.xlu0 %8903
    %8905 = vrot.lane.b32.xlu0 %v8059, 48
    %v8906 = vpop.permute.xlu0 %8905
    %8907 = vrot.lane.b32.xlu0 %v7911, 48
    %v8908 = vpop.permute.xlu0 %8907
    %8909 = vrot.lane.b32.xlu0 %v8060, 48
    %v8910 = vpop.permute.xlu0 %8909
    %8911 = vrot.lane.b32.xlu0 %v7914, 48
    %v8912 = vpop.permute.xlu0 %8911
    %8913 = vrot.lane.b32.xlu0 %v8061, 48
    %v8914 = vpop.permute.xlu0 %8913
    %8915 = vrot.lane.b32.xlu0 %v7917, 48
    %v8916 = vpop.permute.xlu0 %8915
    %8917 = vrot.lane.b32.xlu0 %v8062, 48
    %v8918 = vpop.permute.xlu0 %8917
    %8919 = vrot.lane.b32.xlu0 %v7920, 48
    %v8920 = vpop.permute.xlu0 %8919
    %8921 = vrot.lane.b32.xlu0 %v8063, 48
    %v8922 = vpop.permute.xlu0 %8921
    %8923 = vrot.lane.b32.xlu0 %v7923, 48
    %v8924 = vpop.permute.xlu0 %8923
    %8925 = vrot.lane.b32.xlu0 %v8064, 48
    %v8926 = vpop.permute.xlu0 %8925
    %8927 = vrot.lane.b32.xlu0 %v7926, 48
    %v8928 = vpop.permute.xlu0 %8927
    %8929 = vrot.lane.b32.xlu0 %v8065, 48
    %v8930 = vpop.permute.xlu0 %8929
    %8931 = vrot.lane.b32.xlu0 %v7929, 48
    %v8932 = vpop.permute.xlu0 %8931
    %8933 = vrot.lane.b32.xlu0 %v8066, 48
    %v8934 = vpop.permute.xlu0 %8933
    %8935 = vrot.lane.b32.xlu0 %v7932, 48
    %v8936 = vpop.permute.xlu0 %8935
    %8937 = vrot.lane.b32.xlu0 %v8067, 48
    %v8938 = vpop.permute.xlu0 %8937
    %8939 = vrot.lane.b32.xlu0 %v7935, 48
    %v8940 = vpop.permute.xlu0 %8939
    %8941 = vrot.lane.b32.xlu0 %v8068, 48
    %v8942 = vpop.permute.xlu0 %8941
    %8943 = vrot.lane.b32.xlu0 %v7938, 48
    %v8944 = vpop.permute.xlu0 %8943
    %8945 = vrot.lane.b32.xlu0 %v8069, 48
    %v8946 = vpop.permute.xlu0 %8945
    %8947 = vrot.lane.b32.xlu0 %v7941, 48
    %v8948 = vpop.permute.xlu0 %8947
    %8949 = vrot.lane.b32.xlu0 %v8070, 48
    %v8950 = vpop.permute.xlu0 %8949
    %8951 = vrot.lane.b32.xlu0 %v7944, 48
    %v8952 = vpop.permute.xlu0 %8951
    %v9019 = vrot.slane %v8054, 1
    %v9020 = vrot.slane %v7896, 1
    %v9021 = vsel %vm497, %v9019, %v9020
    %v9022 = vrot.slane %v8086, 1
    %v9023 = vsel %vm497, %v9020, %v9022
    %v9024 = vrot.slane %v8070, 1
    %v9025 = vrot.slane %v7944, 1
    %v9026 = vsel %vm497, %v9024, %v9025
    %v9027 = vrot.slane %v8102, 1
    %v9028 = vsel %vm497, %v9025, %v9027
    %9029 = vrot.lane.b32.xlu0 %v8165, 64
    %v9030 = vpop.permute.xlu0 %9029
    %9031 = vrot.lane.b32.xlu0 %v8167, 64
    %v9032 = vpop.permute.xlu0 %9031
    %9033 = vrot.lane.b32.xlu0 %v8170, 64
    %v9034 = vpop.permute.xlu0 %9033
    %9035 = vrot.lane.b32.xlu0 %v8172, 64
    %v9036 = vpop.permute.xlu0 %9035
    %9037 = vrot.lane.b32.xlu0 %v8175, 64
    %v9038 = vpop.permute.xlu0 %9037
    %9039 = vrot.lane.b32.xlu0 %v8177, 64
    %v9040 = vpop.permute.xlu0 %9039
    %9041 = vrot.lane.b32.xlu0 %v8180, 64
    %v9042 = vpop.permute.xlu0 %9041
    %9043 = vrot.lane.b32.xlu0 %v8182, 64
    %v9044 = vpop.permute.xlu0 %9043
    %9045 = vrot.lane.b32.xlu0 %v8185, 64
    %v9046 = vpop.permute.xlu0 %9045
    %9047 = vrot.lane.b32.xlu0 %v8187, 64
    %v9048 = vpop.permute.xlu0 %9047
    %9049 = vrot.lane.b32.xlu0 %v8190, 64
    %v9050 = vpop.permute.xlu0 %9049
    %9051 = vrot.lane.b32.xlu0 %v8192, 64
    %v9052 = vpop.permute.xlu0 %9051
    %9053 = vrot.lane.b32.xlu0 %v8195, 64
    %v9054 = vpop.permute.xlu0 %9053
    %9055 = vrot.lane.b32.xlu0 %v8197, 64
    %v9056 = vpop.permute.xlu0 %9055
    %9057 = vrot.lane.b32.xlu0 %v8200, 64
    %v9058 = vpop.permute.xlu0 %9057
    %9059 = vrot.lane.b32.xlu0 %v8202, 64
    %v9060 = vpop.permute.xlu0 %9059
    %9061 = vrot.lane.b32.xlu0 %v8205, 64
    %v9062 = vpop.permute.xlu0 %9061
    %9063 = vrot.lane.b32.xlu0 %v8207, 64
    %v9064 = vpop.permute.xlu0 %9063
    %9065 = vrot.lane.b32.xlu0 %v8210, 64
    %v9066 = vpop.permute.xlu0 %9065
    %9067 = vrot.lane.b32.xlu0 %v8212, 64
    %v9068 = vpop.permute.xlu0 %9067
    %9069 = vrot.lane.b32.xlu0 %v8215, 64
    %v9070 = vpop.permute.xlu0 %9069
    %9071 = vrot.lane.b32.xlu0 %v8217, 64
    %v9072 = vpop.permute.xlu0 %9071
    %9073 = vrot.lane.b32.xlu0 %v8220, 64
    %v9074 = vpop.permute.xlu0 %9073
    %9075 = vrot.lane.b32.xlu0 %v8222, 64
    %v9076 = vpop.permute.xlu0 %9075
    %9077 = vrot.lane.b32.xlu0 %v8225, 64
    %v9078 = vpop.permute.xlu0 %9077
    %9079 = vrot.lane.b32.xlu0 %v8227, 64
    %v9080 = vpop.permute.xlu0 %9079
    %9081 = vrot.lane.b32.xlu0 %v8230, 64
    %v9082 = vpop.permute.xlu0 %9081
    %9083 = vrot.lane.b32.xlu0 %v8232, 64
    %v9084 = vpop.permute.xlu0 %9083
    %9085 = vrot.lane.b32.xlu0 %v8235, 64
    %v9086 = vpop.permute.xlu0 %9085
    %9087 = vrot.lane.b32.xlu0 %v8237, 64
    %v9088 = vpop.permute.xlu0 %9087
    %9089 = vrot.lane.b32.xlu0 %v9021, 64
    %v9090 = vpop.permute.xlu0 %9089
    %9091 = vrot.lane.b32.xlu0 %v9023, 64
    %v9092 = vpop.permute.xlu0 %9091
    %9093 = vrot.lane.b32.xlu0 %v8240, 64
    %v9094 = vpop.permute.xlu0 %9093
    %9095 = vrot.lane.b32.xlu0 %v8242, 64
    %v9096 = vpop.permute.xlu0 %9095
    %9097 = vrot.lane.b32.xlu0 %v8245, 64
    %v9098 = vpop.permute.xlu0 %9097
    %9099 = vrot.lane.b32.xlu0 %v8247, 64
    %v9100 = vpop.permute.xlu0 %9099
    %9101 = vrot.lane.b32.xlu0 %v8250, 64
    %v9102 = vpop.permute.xlu0 %9101
    %9103 = vrot.lane.b32.xlu0 %v8252, 64
    %v9104 = vpop.permute.xlu0 %9103
    %9105 = vrot.lane.b32.xlu0 %v8255, 64
    %v9106 = vpop.permute.xlu0 %9105
    %9107 = vrot.lane.b32.xlu0 %v8257, 64
    %v9108 = vpop.permute.xlu0 %9107
    %9109 = vrot.lane.b32.xlu0 %v8260, 64
    %v9110 = vpop.permute.xlu0 %9109
    %9111 = vrot.lane.b32.xlu0 %v8262, 64
    %v9112 = vpop.permute.xlu0 %9111
    %9113 = vrot.lane.b32.xlu0 %v8265, 64
    %v9114 = vpop.permute.xlu0 %9113
    %9115 = vrot.lane.b32.xlu0 %v8267, 64
    %v9116 = vpop.permute.xlu0 %9115
    %9117 = vrot.lane.b32.xlu0 %v8270, 64
    %v9118 = vpop.permute.xlu0 %9117
    %9119 = vrot.lane.b32.xlu0 %v8272, 64
    %v9120 = vpop.permute.xlu0 %9119
    %9121 = vrot.lane.b32.xlu0 %v8275, 64
    %v9122 = vpop.permute.xlu0 %9121
    %9123 = vrot.lane.b32.xlu0 %v8277, 64
    %v9124 = vpop.permute.xlu0 %9123
    %9125 = vrot.lane.b32.xlu0 %v8280, 64
    %v9126 = vpop.permute.xlu0 %9125
    %9127 = vrot.lane.b32.xlu0 %v8282, 64
    %v9128 = vpop.permute.xlu0 %9127
    %9129 = vrot.lane.b32.xlu0 %v8285, 64
    %v9130 = vpop.permute.xlu0 %9129
    %9131 = vrot.lane.b32.xlu0 %v8287, 64
    %v9132 = vpop.permute.xlu0 %9131
    %9133 = vrot.lane.b32.xlu0 %v8290, 64
    %v9134 = vpop.permute.xlu0 %9133
    %9135 = vrot.lane.b32.xlu0 %v8292, 64
    %v9136 = vpop.permute.xlu0 %9135
    %9137 = vrot.lane.b32.xlu0 %v8295, 64
    %v9138 = vpop.permute.xlu0 %9137
    %9139 = vrot.lane.b32.xlu0 %v8297, 64
    %v9140 = vpop.permute.xlu0 %9139
    %9141 = vrot.lane.b32.xlu0 %v8300, 64
    %v9142 = vpop.permute.xlu0 %9141
    %9143 = vrot.lane.b32.xlu0 %v8302, 64
    %v9144 = vpop.permute.xlu0 %9143
    %9145 = vrot.lane.b32.xlu0 %v8305, 64
    %v9146 = vpop.permute.xlu0 %9145
    %9147 = vrot.lane.b32.xlu0 %v8307, 64
    %v9148 = vpop.permute.xlu0 %9147
    %9149 = vrot.lane.b32.xlu0 %v8310, 64
    %v9150 = vpop.permute.xlu0 %9149
    %9151 = vrot.lane.b32.xlu0 %v8312, 64
    %v9152 = vpop.permute.xlu0 %9151
    %9153 = vrot.lane.b32.xlu0 %v9026, 64
    %v9154 = vpop.permute.xlu0 %9153
    %9155 = vrot.lane.b32.xlu0 %v9028, 64
    %v9156 = vpop.permute.xlu0 %9155
    %v9221 = vrot.slane %v8054, 2
    %v9222 = vrot.slane %v7896, 2
    %v9223 = vsel %vm839, %v9221, %v9222
    %v9224 = vrot.slane %v8086, 2
    %v9225 = vsel %vm839, %v9222, %v9224
    %v9226 = vrot.slane %v8070, 2
    %v9227 = vrot.slane %v7944, 2
    %v9228 = vsel %vm839, %v9226, %v9227
    %v9229 = vrot.slane %v8102, 2
    %v9230 = vsel %vm839, %v9227, %v9229
    %9231 = vrot.lane.b32.xlu0 %v8495, 80
    %v9232 = vpop.permute.xlu0 %9231
    %9233 = vrot.lane.b32.xlu0 %v8497, 80
    %v9234 = vpop.permute.xlu0 %9233
    %9235 = vrot.lane.b32.xlu0 %v8500, 80
    %v9236 = vpop.permute.xlu0 %9235
    %9237 = vrot.lane.b32.xlu0 %v8502, 80
    %v9238 = vpop.permute.xlu0 %9237
    %9239 = vrot.lane.b32.xlu0 %v8505, 80
    %v9240 = vpop.permute.xlu0 %9239
    %9241 = vrot.lane.b32.xlu0 %v8507, 80
    %v9242 = vpop.permute.xlu0 %9241
    %9243 = vrot.lane.b32.xlu0 %v8510, 80
    %v9244 = vpop.permute.xlu0 %9243
    %9245 = vrot.lane.b32.xlu0 %v8512, 80
    %v9246 = vpop.permute.xlu0 %9245
    %9247 = vrot.lane.b32.xlu0 %v8515, 80
    %v9248 = vpop.permute.xlu0 %9247
    %9249 = vrot.lane.b32.xlu0 %v8517, 80
    %v9250 = vpop.permute.xlu0 %9249
    %9251 = vrot.lane.b32.xlu0 %v8520, 80
    %v9252 = vpop.permute.xlu0 %9251
    %9253 = vrot.lane.b32.xlu0 %v8522, 80
    %v9254 = vpop.permute.xlu0 %9253
    %9255 = vrot.lane.b32.xlu0 %v8525, 80
    %v9256 = vpop.permute.xlu0 %9255
    %9257 = vrot.lane.b32.xlu0 %v8527, 80
    %v9258 = vpop.permute.xlu0 %9257
    %9259 = vrot.lane.b32.xlu0 %v8530, 80
    %v9260 = vpop.permute.xlu0 %9259
    %9261 = vrot.lane.b32.xlu0 %v8532, 80
    %v9262 = vpop.permute.xlu0 %9261
    %9263 = vrot.lane.b32.xlu0 %v8535, 80
    %v9264 = vpop.permute.xlu0 %9263
    %9265 = vrot.lane.b32.xlu0 %v8537, 80
    %v9266 = vpop.permute.xlu0 %9265
    %9267 = vrot.lane.b32.xlu0 %v8540, 80
    %v9268 = vpop.permute.xlu0 %9267
    %9269 = vrot.lane.b32.xlu0 %v8542, 80
    %v9270 = vpop.permute.xlu0 %9269
    %9271 = vrot.lane.b32.xlu0 %v8545, 80
    %v9272 = vpop.permute.xlu0 %9271
    %9273 = vrot.lane.b32.xlu0 %v8547, 80
    %v9274 = vpop.permute.xlu0 %9273
    %9275 = vrot.lane.b32.xlu0 %v8550, 80
    %v9276 = vpop.permute.xlu0 %9275
    %9277 = vrot.lane.b32.xlu0 %v8552, 80
    %v9278 = vpop.permute.xlu0 %9277
    %9279 = vrot.lane.b32.xlu0 %v8555, 80
    %v9280 = vpop.permute.xlu0 %9279
    %9281 = vrot.lane.b32.xlu0 %v8557, 80
    %v9282 = vpop.permute.xlu0 %9281
    %9283 = vrot.lane.b32.xlu0 %v8560, 80
    %v9284 = vpop.permute.xlu0 %9283
    %9285 = vrot.lane.b32.xlu0 %v8562, 80
    %v9286 = vpop.permute.xlu0 %9285
    %9287 = vrot.lane.b32.xlu0 %v8565, 80
    %v9288 = vpop.permute.xlu0 %9287
    %9289 = vrot.lane.b32.xlu0 %v8567, 80
    %v9290 = vpop.permute.xlu0 %9289
    %9291 = vrot.lane.b32.xlu0 %v9223, 80
    %v9292 = vpop.permute.xlu0 %9291
    %9293 = vrot.lane.b32.xlu0 %v9225, 80
    %v9294 = vpop.permute.xlu0 %9293
    %9295 = vrot.lane.b32.xlu0 %v8570, 80
    %v9296 = vpop.permute.xlu0 %9295
    %9297 = vrot.lane.b32.xlu0 %v8572, 80
    %v9298 = vpop.permute.xlu0 %9297
    %9299 = vrot.lane.b32.xlu0 %v8575, 80
    %v9300 = vpop.permute.xlu0 %9299
    %9301 = vrot.lane.b32.xlu0 %v8577, 80
    %v9302 = vpop.permute.xlu0 %9301
    %9303 = vrot.lane.b32.xlu0 %v8580, 80
    %v9304 = vpop.permute.xlu0 %9303
    %9305 = vrot.lane.b32.xlu0 %v8582, 80
    %v9306 = vpop.permute.xlu0 %9305
    %9307 = vrot.lane.b32.xlu0 %v8585, 80
    %v9308 = vpop.permute.xlu0 %9307
    %9309 = vrot.lane.b32.xlu0 %v8587, 80
    %v9310 = vpop.permute.xlu0 %9309
    %9311 = vrot.lane.b32.xlu0 %v8590, 80
    %v9312 = vpop.permute.xlu0 %9311
    %9313 = vrot.lane.b32.xlu0 %v8592, 80
    %v9314 = vpop.permute.xlu0 %9313
    %9315 = vrot.lane.b32.xlu0 %v8595, 80
    %v9316 = vpop.permute.xlu0 %9315
    %9317 = vrot.lane.b32.xlu0 %v8597, 80
    %v9318 = vpop.permute.xlu0 %9317
    %9319 = vrot.lane.b32.xlu0 %v8600, 80
    %v9320 = vpop.permute.xlu0 %9319
    %9321 = vrot.lane.b32.xlu0 %v8602, 80
    %v9322 = vpop.permute.xlu0 %9321
    %9323 = vrot.lane.b32.xlu0 %v8605, 80
    %v9324 = vpop.permute.xlu0 %9323
    %9325 = vrot.lane.b32.xlu0 %v8607, 80
    %v9326 = vpop.permute.xlu0 %9325
    %9327 = vrot.lane.b32.xlu0 %v8610, 80
    %v9328 = vpop.permute.xlu0 %9327
    %9329 = vrot.lane.b32.xlu0 %v8612, 80
    %v9330 = vpop.permute.xlu0 %9329
    %9331 = vrot.lane.b32.xlu0 %v8615, 80
    %v9332 = vpop.permute.xlu0 %9331
    %9333 = vrot.lane.b32.xlu0 %v8617, 80
    %v9334 = vpop.permute.xlu0 %9333
    %9335 = vrot.lane.b32.xlu0 %v8620, 80
    %v9336 = vpop.permute.xlu0 %9335
    %9337 = vrot.lane.b32.xlu0 %v8622, 80
    %v9338 = vpop.permute.xlu0 %9337
    %9339 = vrot.lane.b32.xlu0 %v8625, 80
    %v9340 = vpop.permute.xlu0 %9339
    %9341 = vrot.lane.b32.xlu0 %v8627, 80
    %v9342 = vpop.permute.xlu0 %9341
    %9343 = vrot.lane.b32.xlu0 %v8630, 80
    %v9344 = vpop.permute.xlu0 %9343
    %9345 = vrot.lane.b32.xlu0 %v8632, 80
    %v9346 = vpop.permute.xlu0 %9345
    %9347 = vrot.lane.b32.xlu0 %v8635, 80
    %v9348 = vpop.permute.xlu0 %9347
    %9349 = vrot.lane.b32.xlu0 %v8637, 80
    %v9350 = vpop.permute.xlu0 %9349
    %9351 = vrot.lane.b32.xlu0 %v8640, 80
    %v9352 = vpop.permute.xlu0 %9351
    %9353 = vrot.lane.b32.xlu0 %v8642, 80
    %v9354 = vpop.permute.xlu0 %9353
    %9355 = vrot.lane.b32.xlu0 %v9228, 80
    %v9356 = vpop.permute.xlu0 %9355
    %9357 = vrot.lane.b32.xlu0 %v9230, 80
    %v9358 = vpop.permute.xlu0 %9357
    %9423 = vrot.lane.b32.xlu0 %v8040, 96
    %v9424 = vpop.permute.xlu0 %9423
    %9425 = vrot.lane.b32.xlu0 %v7854, 96
    %v9426 = vpop.permute.xlu0 %9425
    %9427 = vrot.lane.b32.xlu0 %v8041, 96
    %v9428 = vpop.permute.xlu0 %9427
    %9429 = vrot.lane.b32.xlu0 %v7857, 96
    %v9430 = vpop.permute.xlu0 %9429
    %9431 = vrot.lane.b32.xlu0 %v8042, 96
    %v9432 = vpop.permute.xlu0 %9431
    %9433 = vrot.lane.b32.xlu0 %v7860, 96
    %v9434 = vpop.permute.xlu0 %9433
    %9435 = vrot.lane.b32.xlu0 %v8043, 96
    %v9436 = vpop.permute.xlu0 %9435
    %9437 = vrot.lane.b32.xlu0 %v7863, 96
    %v9438 = vpop.permute.xlu0 %9437
    %9439 = vrot.lane.b32.xlu0 %v8044, 96
    %v9440 = vpop.permute.xlu0 %9439
    %9441 = vrot.lane.b32.xlu0 %v7866, 96
    %v9442 = vpop.permute.xlu0 %9441
    %9443 = vrot.lane.b32.xlu0 %v8045, 96
    %v9444 = vpop.permute.xlu0 %9443
    %9445 = vrot.lane.b32.xlu0 %v7869, 96
    %v9446 = vpop.permute.xlu0 %9445
    %9447 = vrot.lane.b32.xlu0 %v8046, 96
    %v9448 = vpop.permute.xlu0 %9447
    %9449 = vrot.lane.b32.xlu0 %v7872, 96
    %v9450 = vpop.permute.xlu0 %9449
    %9451 = vrot.lane.b32.xlu0 %v8047, 96
    %v9452 = vpop.permute.xlu0 %9451
    %9453 = vrot.lane.b32.xlu0 %v7875, 96
    %v9454 = vpop.permute.xlu0 %9453
    %9455 = vrot.lane.b32.xlu0 %v8048, 96
    %v9456 = vpop.permute.xlu0 %9455
    %9457 = vrot.lane.b32.xlu0 %v7878, 96
    %v9458 = vpop.permute.xlu0 %9457
    %9459 = vrot.lane.b32.xlu0 %v8049, 96
    %v9460 = vpop.permute.xlu0 %9459
    %9461 = vrot.lane.b32.xlu0 %v7881, 96
    %v9462 = vpop.permute.xlu0 %9461
    %9463 = vrot.lane.b32.xlu0 %v8050, 96
    %v9464 = vpop.permute.xlu0 %9463
    %9465 = vrot.lane.b32.xlu0 %v7884, 96
    %v9466 = vpop.permute.xlu0 %9465
    %9467 = vrot.lane.b32.xlu0 %v8051, 96
    %v9468 = vpop.permute.xlu0 %9467
    %9469 = vrot.lane.b32.xlu0 %v7887, 96
    %v9470 = vpop.permute.xlu0 %9469
    %9471 = vrot.lane.b32.xlu0 %v8052, 96
    %v9472 = vpop.permute.xlu0 %9471
    %9473 = vrot.lane.b32.xlu0 %v7890, 96
    %v9474 = vpop.permute.xlu0 %9473
    %9475 = vrot.lane.b32.xlu0 %v8053, 96
    %v9476 = vpop.permute.xlu0 %9475
    %9477 = vrot.lane.b32.xlu0 %v7893, 96
    %v9478 = vpop.permute.xlu0 %9477
    %9479 = vrot.lane.b32.xlu0 %v8054, 96
    %v9480 = vpop.permute.xlu0 %9479
    %9481 = vrot.lane.b32.xlu0 %v7896, 96
    %v9482 = vpop.permute.xlu0 %9481
    %9483 = vrot.lane.b32.xlu0 %v8056, 96
    %v9484 = vpop.permute.xlu0 %9483
    %9485 = vrot.lane.b32.xlu0 %v7902, 96
    %v9486 = vpop.permute.xlu0 %9485
    %9487 = vrot.lane.b32.xlu0 %v8057, 96
    %v9488 = vpop.permute.xlu0 %9487
    %9489 = vrot.lane.b32.xlu0 %v7905, 96
    %v9490 = vpop.permute.xlu0 %9489
    %9491 = vrot.lane.b32.xlu0 %v8058, 96
    %v9492 = vpop.permute.xlu0 %9491
    %9493 = vrot.lane.b32.xlu0 %v7908, 96
    %v9494 = vpop.permute.xlu0 %9493
    %9495 = vrot.lane.b32.xlu0 %v8059, 96
    %v9496 = vpop.permute.xlu0 %9495
    %9497 = vrot.lane.b32.xlu0 %v7911, 96
    %v9498 = vpop.permute.xlu0 %9497
    %9499 = vrot.lane.b32.xlu0 %v8060, 96
    %v9500 = vpop.permute.xlu0 %9499
    %9501 = vrot.lane.b32.xlu0 %v7914, 96
    %v9502 = vpop.permute.xlu0 %9501
    %9503 = vrot.lane.b32.xlu0 %v8061, 96
    %v9504 = vpop.permute.xlu0 %9503
    %9505 = vrot.lane.b32.xlu0 %v7917, 96
    %v9506 = vpop.permute.xlu0 %9505
    %9507 = vrot.lane.b32.xlu0 %v8062, 96
    %v9508 = vpop.permute.xlu0 %9507
    %9509 = vrot.lane.b32.xlu0 %v7920, 96
    %v9510 = vpop.permute.xlu0 %9509
    %9511 = vrot.lane.b32.xlu0 %v8063, 96
    %v9512 = vpop.permute.xlu0 %9511
    %9513 = vrot.lane.b32.xlu0 %v7923, 96
    %v9514 = vpop.permute.xlu0 %9513
    %9515 = vrot.lane.b32.xlu0 %v8064, 96
    %v9516 = vpop.permute.xlu0 %9515
    %9517 = vrot.lane.b32.xlu0 %v7926, 96
    %v9518 = vpop.permute.xlu0 %9517
    %9519 = vrot.lane.b32.xlu0 %v8065, 96
    %v9520 = vpop.permute.xlu0 %9519
    %9521 = vrot.lane.b32.xlu0 %v7929, 96
    %v9522 = vpop.permute.xlu0 %9521
    %9523 = vrot.lane.b32.xlu0 %v8066, 96
    %v9524 = vpop.permute.xlu0 %9523
    %9525 = vrot.lane.b32.xlu0 %v7932, 96
    %v9526 = vpop.permute.xlu0 %9525
    %9527 = vrot.lane.b32.xlu0 %v8067, 96
    %v9528 = vpop.permute.xlu0 %9527
    %9529 = vrot.lane.b32.xlu0 %v7935, 96
    %v9530 = vpop.permute.xlu0 %9529
    %9531 = vrot.lane.b32.xlu0 %v8068, 96
    %v9532 = vpop.permute.xlu0 %9531
    %9533 = vrot.lane.b32.xlu0 %v7938, 96
    %v9534 = vpop.permute.xlu0 %9533
    %9535 = vrot.lane.b32.xlu0 %v8069, 96
    %v9536 = vpop.permute.xlu0 %9535
    %9537 = vrot.lane.b32.xlu0 %v7941, 96
    %v9538 = vpop.permute.xlu0 %9537
    %9539 = vrot.lane.b32.xlu0 %v8070, 96
    %v9540 = vpop.permute.xlu0 %9539
    %9541 = vrot.lane.b32.xlu0 %v7944, 96
    %v9542 = vpop.permute.xlu0 %9541
    %9603 = vrot.lane.b32.xlu0 %v8170, 112
    %v9604 = vpop.permute.xlu0 %9603
    %9605 = vrot.lane.b32.xlu0 %v8172, 112
    %v9606 = vpop.permute.xlu0 %9605
    %9607 = vrot.lane.b32.xlu0 %v8175, 112
    %v9608 = vpop.permute.xlu0 %9607
    %9609 = vrot.lane.b32.xlu0 %v8177, 112
    %v9610 = vpop.permute.xlu0 %9609
    %9611 = vrot.lane.b32.xlu0 %v8180, 112
    %v9612 = vpop.permute.xlu0 %9611
    %9613 = vrot.lane.b32.xlu0 %v8182, 112
    %v9614 = vpop.permute.xlu0 %9613
    %9615 = vrot.lane.b32.xlu0 %v8185, 112
    %v9616 = vpop.permute.xlu0 %9615
    %9617 = vrot.lane.b32.xlu0 %v8187, 112
    %v9618 = vpop.permute.xlu0 %9617
    %9619 = vrot.lane.b32.xlu0 %v8190, 112
    %v9620 = vpop.permute.xlu0 %9619
    %9621 = vrot.lane.b32.xlu0 %v8192, 112
    %v9622 = vpop.permute.xlu0 %9621
    %9623 = vrot.lane.b32.xlu0 %v8195, 112
    %v9624 = vpop.permute.xlu0 %9623
    %9625 = vrot.lane.b32.xlu0 %v8197, 112
    %v9626 = vpop.permute.xlu0 %9625
    %9627 = vrot.lane.b32.xlu0 %v8200, 112
    %v9628 = vpop.permute.xlu0 %9627
    %9629 = vrot.lane.b32.xlu0 %v8202, 112
    %v9630 = vpop.permute.xlu0 %9629
    %9631 = vrot.lane.b32.xlu0 %v8205, 112
    %v9632 = vpop.permute.xlu0 %9631
    %9633 = vrot.lane.b32.xlu0 %v8207, 112
    %v9634 = vpop.permute.xlu0 %9633
    %9635 = vrot.lane.b32.xlu0 %v8210, 112
    %v9636 = vpop.permute.xlu0 %9635
    %9637 = vrot.lane.b32.xlu0 %v8212, 112
    %v9638 = vpop.permute.xlu0 %9637
    %9639 = vrot.lane.b32.xlu0 %v8215, 112
    %v9640 = vpop.permute.xlu0 %9639
    %9641 = vrot.lane.b32.xlu0 %v8217, 112
    %v9642 = vpop.permute.xlu0 %9641
    %9643 = vrot.lane.b32.xlu0 %v8220, 112
    %v9644 = vpop.permute.xlu0 %9643
    %9645 = vrot.lane.b32.xlu0 %v8222, 112
    %v9646 = vpop.permute.xlu0 %9645
    %9647 = vrot.lane.b32.xlu0 %v8225, 112
    %v9648 = vpop.permute.xlu0 %9647
    %9649 = vrot.lane.b32.xlu0 %v8227, 112
    %v9650 = vpop.permute.xlu0 %9649
    %9651 = vrot.lane.b32.xlu0 %v8230, 112
    %v9652 = vpop.permute.xlu0 %9651
    %9653 = vrot.lane.b32.xlu0 %v8232, 112
    %v9654 = vpop.permute.xlu0 %9653
    %9655 = vrot.lane.b32.xlu0 %v8235, 112
    %v9656 = vpop.permute.xlu0 %9655
    %9657 = vrot.lane.b32.xlu0 %v8237, 112
    %v9658 = vpop.permute.xlu0 %9657
    %9659 = vrot.lane.b32.xlu0 %v9021, 112
    %v9660 = vpop.permute.xlu0 %9659
    %9661 = vrot.lane.b32.xlu0 %v9023, 112
    %v9662 = vpop.permute.xlu0 %9661
    %9663 = vrot.lane.b32.xlu0 %v8245, 112
    %v9664 = vpop.permute.xlu0 %9663
    %9665 = vrot.lane.b32.xlu0 %v8247, 112
    %v9666 = vpop.permute.xlu0 %9665
    %9667 = vrot.lane.b32.xlu0 %v8250, 112
    %v9668 = vpop.permute.xlu0 %9667
    %9669 = vrot.lane.b32.xlu0 %v8252, 112
    %v9670 = vpop.permute.xlu0 %9669
    %9671 = vrot.lane.b32.xlu0 %v8255, 112
    %v9672 = vpop.permute.xlu0 %9671
    %9673 = vrot.lane.b32.xlu0 %v8257, 112
    %v9674 = vpop.permute.xlu0 %9673
    %9675 = vrot.lane.b32.xlu0 %v8260, 112
    %v9676 = vpop.permute.xlu0 %9675
    %9677 = vrot.lane.b32.xlu0 %v8262, 112
    %v9678 = vpop.permute.xlu0 %9677
    %9679 = vrot.lane.b32.xlu0 %v8265, 112
    %v9680 = vpop.permute.xlu0 %9679
    %9681 = vrot.lane.b32.xlu0 %v8267, 112
    %v9682 = vpop.permute.xlu0 %9681
    %9683 = vrot.lane.b32.xlu0 %v8270, 112
    %v9684 = vpop.permute.xlu0 %9683
    %9685 = vrot.lane.b32.xlu0 %v8272, 112
    %v9686 = vpop.permute.xlu0 %9685
    %9687 = vrot.lane.b32.xlu0 %v8275, 112
    %v9688 = vpop.permute.xlu0 %9687
    %9689 = vrot.lane.b32.xlu0 %v8277, 112
    %v9690 = vpop.permute.xlu0 %9689
    %9691 = vrot.lane.b32.xlu0 %v8280, 112
    %v9692 = vpop.permute.xlu0 %9691
    %9693 = vrot.lane.b32.xlu0 %v8282, 112
    %v9694 = vpop.permute.xlu0 %9693
    %9695 = vrot.lane.b32.xlu0 %v8285, 112
    %v9696 = vpop.permute.xlu0 %9695
    %9697 = vrot.lane.b32.xlu0 %v8287, 112
    %v9698 = vpop.permute.xlu0 %9697
    %9699 = vrot.lane.b32.xlu0 %v8290, 112
    %v9700 = vpop.permute.xlu0 %9699
    %9701 = vrot.lane.b32.xlu0 %v8292, 112
    %v9702 = vpop.permute.xlu0 %9701
    %9703 = vrot.lane.b32.xlu0 %v8295, 112
    %v9704 = vpop.permute.xlu0 %9703
    %9705 = vrot.lane.b32.xlu0 %v8297, 112
    %v9706 = vpop.permute.xlu0 %9705
    %9707 = vrot.lane.b32.xlu0 %v8300, 112
    %v9708 = vpop.permute.xlu0 %9707
    %9709 = vrot.lane.b32.xlu0 %v8302, 112
    %v9710 = vpop.permute.xlu0 %9709
    %9711 = vrot.lane.b32.xlu0 %v8305, 112
    %v9712 = vpop.permute.xlu0 %9711
    %9713 = vrot.lane.b32.xlu0 %v8307, 112
    %v9714 = vpop.permute.xlu0 %9713
    %9715 = vrot.lane.b32.xlu0 %v8310, 112
    %v9716 = vpop.permute.xlu0 %9715
    %9717 = vrot.lane.b32.xlu0 %v8312, 112
    %v9718 = vpop.permute.xlu0 %9717
    %9719 = vrot.lane.b32.xlu0 %v9026, 112
    %v9720 = vpop.permute.xlu0 %9719
    %9721 = vrot.lane.b32.xlu0 %v9028, 112
    %v9722 = vpop.permute.xlu0 %9721
    %v9783 = vsel %vm2530, %v8039, %v8314
    %v9784 = vsel %vm2530, %v7851, %v8316
    %v9785 = vsel %vm2530, %v8040, %v8318
    %v9786 = vsel %vm2530, %v7854, %v8320
    %v9787 = vsel %vm2530, %v8041, %v8322
    %v9788 = vsel %vm2530, %v7857, %v8324
    %v9789 = vsel %vm2530, %v8042, %v8326
    %v9790 = vsel %vm2530, %v7860, %v8328
    %v9791 = vsel %vm2530, %v8043, %v8330
    %v9792 = vsel %vm2530, %v7863, %v8332
    %v9793 = vsel %vm2530, %v8044, %v8334
    %v9794 = vsel %vm2530, %v7866, %v8336
    %v9795 = vsel %vm2530, %v8045, %v8338
    %v9796 = vsel %vm2530, %v7869, %v8340
    %v9797 = vsel %vm2530, %v8046, %v8342
    %v9798 = vsel %vm2530, %v7872, %v8344
    %v9799 = vsel %vm2530, %v8047, %v8346
    %v9800 = vsel %vm2530, %v7875, %v8348
    %v9801 = vsel %vm2530, %v8048, %v8350
    %v9802 = vsel %vm2530, %v7878, %v8352
    %v9803 = vsel %vm2530, %v8049, %v8354
    %v9804 = vsel %vm2530, %v7881, %v8356
    %v9805 = vsel %vm2530, %v8050, %v8358
    %v9806 = vsel %vm2530, %v7884, %v8360
    %v9807 = vsel %vm2530, %v8051, %v8362
    %v9808 = vsel %vm2530, %v7887, %v8364
    %v9809 = vsel %vm2530, %v8052, %v8366
    %v9810 = vsel %vm2530, %v7890, %v8368
    %v9811 = vsel %vm2530, %v8053, %v8370
    %v9812 = vsel %vm2530, %v7893, %v8372
    %v9813 = vsel %vm2530, %v8055, %v8374
    %v9814 = vsel %vm2530, %v7899, %v8376
    %v9815 = vsel %vm2530, %v8056, %v8378
    %v9816 = vsel %vm2530, %v7902, %v8380
    %v9817 = vsel %vm2530, %v8057, %v8382
    %v9818 = vsel %vm2530, %v7905, %v8384
    %v9819 = vsel %vm2530, %v8058, %v8386
    %v9820 = vsel %vm2530, %v7908, %v8388
    %v9821 = vsel %vm2530, %v8059, %v8390
    %v9822 = vsel %vm2530, %v7911, %v8392
    %v9823 = vsel %vm2530, %v8060, %v8394
    %v9824 = vsel %vm2530, %v7914, %v8396
    %v9825 = vsel %vm2530, %v8061, %v8398
    %v9826 = vsel %vm2530, %v7917, %v8400
    %v9827 = vsel %vm2530, %v8062, %v8402
    %v9828 = vsel %vm2530, %v7920, %v8404
    %v9829 = vsel %vm2530, %v8063, %v8406
    %v9830 = vsel %vm2530, %v7923, %v8408
    %v9831 = vsel %vm2530, %v8064, %v8410
    %v9832 = vsel %vm2530, %v7926, %v8412
    %v9833 = vsel %vm2530, %v8065, %v8414
    %v9834 = vsel %vm2530, %v7929, %v8416
    %v9835 = vsel %vm2530, %v8066, %v8418
    %v9836 = vsel %vm2530, %v7932, %v8420
    %v9837 = vsel %vm2530, %v8067, %v8422
    %v9838 = vsel %vm2530, %v7935, %v8424
    %v9839 = vsel %vm2530, %v8068, %v8426
    %v9840 = vsel %vm2530, %v7938, %v8428
    %v9841 = vsel %vm2530, %v8069, %v8430
    %v9842 = vsel %vm2530, %v7941, %v8432
    %v9843 = vsel %vm2790, %v9783, %v8644
    %v9844 = vsel %vm2790, %v9784, %v8646
    %v9845 = vsel %vm2790, %v9785, %v8648
    %v9846 = vsel %vm2790, %v9786, %v8650
    %v9847 = vsel %vm2790, %v9787, %v8652
    %v9848 = vsel %vm2790, %v9788, %v8654
    %v9849 = vsel %vm2790, %v9789, %v8656
    %v9850 = vsel %vm2790, %v9790, %v8658
    %v9851 = vsel %vm2790, %v9791, %v8660
    %v9852 = vsel %vm2790, %v9792, %v8662
    %v9853 = vsel %vm2790, %v9793, %v8664
    %v9854 = vsel %vm2790, %v9794, %v8666
    %v9855 = vsel %vm2790, %v9795, %v8668
    %v9856 = vsel %vm2790, %v9796, %v8670
    %v9857 = vsel %vm2790, %v9797, %v8672
    %v9858 = vsel %vm2790, %v9798, %v8674
    %v9859 = vsel %vm2790, %v9799, %v8676
    %v9860 = vsel %vm2790, %v9800, %v8678
    %v9861 = vsel %vm2790, %v9801, %v8680
    %v9862 = vsel %vm2790, %v9802, %v8682
    %v9863 = vsel %vm2790, %v9803, %v8684
    %v9864 = vsel %vm2790, %v9804, %v8686
    %v9865 = vsel %vm2790, %v9805, %v8688
    %v9866 = vsel %vm2790, %v9806, %v8690
    %v9867 = vsel %vm2790, %v9807, %v8692
    %v9868 = vsel %vm2790, %v9808, %v8694
    %v9869 = vsel %vm2790, %v9809, %v8696
    %v9870 = vsel %vm2790, %v9810, %v8698
    %v9871 = vsel %vm2790, %v9811, %v8700
    %v9872 = vsel %vm2790, %v9812, %v8702
    %v9873 = vsel %vm2790, %v9813, %v8704
    %v9874 = vsel %vm2790, %v9814, %v8706
    %v9875 = vsel %vm2790, %v9815, %v8708
    %v9876 = vsel %vm2790, %v9816, %v8710
    %v9877 = vsel %vm2790, %v9817, %v8712
    %v9878 = vsel %vm2790, %v9818, %v8714
    %v9879 = vsel %vm2790, %v9819, %v8716
    %v9880 = vsel %vm2790, %v9820, %v8718
    %v9881 = vsel %vm2790, %v9821, %v8720
    %v9882 = vsel %vm2790, %v9822, %v8722
    %v9883 = vsel %vm2790, %v9823, %v8724
    %v9884 = vsel %vm2790, %v9824, %v8726
    %v9885 = vsel %vm2790, %v9825, %v8728
    %v9886 = vsel %vm2790, %v9826, %v8730
    %v9887 = vsel %vm2790, %v9827, %v8732
    %v9888 = vsel %vm2790, %v9828, %v8734
    %v9889 = vsel %vm2790, %v9829, %v8736
    %v9890 = vsel %vm2790, %v9830, %v8738
    %v9891 = vsel %vm2790, %v9831, %v8740
    %v9892 = vsel %vm2790, %v9832, %v8742
    %v9893 = vsel %vm2790, %v9833, %v8744
    %v9894 = vsel %vm2790, %v9834, %v8746
    %v9895 = vsel %vm2790, %v9835, %v8748
    %v9896 = vsel %vm2790, %v9836, %v8750
    %v9897 = vsel %vm2790, %v9837, %v8752
    %v9898 = vsel %vm2790, %v9838, %v8754
    %v9899 = vsel %vm2790, %v9839, %v8756
    %v9900 = vsel %vm2790, %v9840, %v8758
    %v9901 = vsel %vm2790, %v9841, %v8760
    %v9902 = vsel %vm2790, %v9842, %v8762
    %v9903 = vsel %vm6258, %v6196, %v8826
    %v9904 = vsel %vm6258, %v6197, %v8828
    %v9905 = vsel %vm6258, %v9843, %v8830
    %v9906 = vsel %vm6258, %v9844, %v8832
    %v9907 = vsel %vm6258, %v9845, %v8834
    %v9908 = vsel %vm6258, %v9846, %v8836
    %v9909 = vsel %vm6258, %v9847, %v8838
    %v9910 = vsel %vm6258, %v9848, %v8840
    %v9911 = vsel %vm6258, %v9849, %v8842
    %v9912 = vsel %vm6258, %v9850, %v8844
    %v9913 = vsel %vm6258, %v9851, %v8846
    %v9914 = vsel %vm6258, %v9852, %v8848
    %v9915 = vsel %vm6258, %v9853, %v8850
    %v9916 = vsel %vm6258, %v9854, %v8852
    %v9917 = vsel %vm6258, %v9855, %v8854
    %v9918 = vsel %vm6258, %v9856, %v8856
    %v9919 = vsel %vm6258, %v9857, %v8858
    %v9920 = vsel %vm6258, %v9858, %v8860
    %v9921 = vsel %vm6258, %v9859, %v8862
    %v9922 = vsel %vm6258, %v9860, %v8864
    %v9923 = vsel %vm6258, %v9861, %v8866
    %v9924 = vsel %vm6258, %v9862, %v8868
    %v9925 = vsel %vm6258, %v9863, %v8870
    %v9926 = vsel %vm6258, %v9864, %v8872
    %v9927 = vsel %vm6258, %v9865, %v8874
    %v9928 = vsel %vm6258, %v9866, %v8876
    %v9929 = vsel %vm6258, %v9867, %v8878
    %v9930 = vsel %vm6258, %v9868, %v8880
    %v9931 = vsel %vm6258, %v9869, %v8882
    %v9932 = vsel %vm6258, %v9870, %v8884
    %v9933 = vsel %vm6258, %v9871, %v8886
    %v9934 = vsel %vm6258, %v9872, %v8888
    %v9935 = vsel %vm6258, %v6196, %v8890
    %v9936 = vsel %vm6258, %v6197, %v8892
    %v9937 = vsel %vm6258, %v9873, %v8894
    %v9938 = vsel %vm6258, %v9874, %v8896
    %v9939 = vsel %vm6258, %v9875, %v8898
    %v9940 = vsel %vm6258, %v9876, %v8900
    %v9941 = vsel %vm6258, %v9877, %v8902
    %v9942 = vsel %vm6258, %v9878, %v8904
    %v9943 = vsel %vm6258, %v9879, %v8906
    %v9944 = vsel %vm6258, %v9880, %v8908
    %v9945 = vsel %vm6258, %v9881, %v8910
    %v9946 = vsel %vm6258, %v9882, %v8912
    %v9947 = vsel %vm6258, %v9883, %v8914
    %v9948 = vsel %vm6258, %v9884, %v8916
    %v9949 = vsel %vm6258, %v9885, %v8918
    %v9950 = vsel %vm6258, %v9886, %v8920
    %v9951 = vsel %vm6258, %v9887, %v8922
    %v9952 = vsel %vm6258, %v9888, %v8924
    %v9953 = vsel %vm6258, %v9889, %v8926
    %v9954 = vsel %vm6258, %v9890, %v8928
    %v9955 = vsel %vm6258, %v9891, %v8930
    %v9956 = vsel %vm6258, %v9892, %v8932
    %v9957 = vsel %vm6258, %v9893, %v8934
    %v9958 = vsel %vm6258, %v9894, %v8936
    %v9959 = vsel %vm6258, %v9895, %v8938
    %v9960 = vsel %vm6258, %v9896, %v8940
    %v9961 = vsel %vm6258, %v9897, %v8942
    %v9962 = vsel %vm6258, %v9898, %v8944
    %v9963 = vsel %vm6258, %v9899, %v8946
    %v9964 = vsel %vm6258, %v9900, %v8948
    %v9965 = vsel %vm6258, %v9901, %v8950
    %v9966 = vsel %vm6258, %v9902, %v8952
    %v9967 = vsel %vm6323, %v9903, %v9030
    %v9968 = vsel %vm6323, %v9904, %v9032
    %v9969 = vsel %vm6323, %v9905, %v9034
    %v9970 = vsel %vm6323, %v9906, %v9036
    %v9971 = vsel %vm6323, %v9907, %v9038
    %v9972 = vsel %vm6323, %v9908, %v9040
    %v9973 = vsel %vm6323, %v9909, %v9042
    %v9974 = vsel %vm6323, %v9910, %v9044
    %v9975 = vsel %vm6323, %v9911, %v9046
    %v9976 = vsel %vm6323, %v9912, %v9048
    %v9977 = vsel %vm6323, %v9913, %v9050
    %v9978 = vsel %vm6323, %v9914, %v9052
    %v9979 = vsel %vm6323, %v9915, %v9054
    %v9980 = vsel %vm6323, %v9916, %v9056
    %v9981 = vsel %vm6323, %v9917, %v9058
    %v9982 = vsel %vm6323, %v9918, %v9060
    %v9983 = vsel %vm6323, %v9919, %v9062
    %v9984 = vsel %vm6323, %v9920, %v9064
    %v9985 = vsel %vm6323, %v9921, %v9066
    %v9986 = vsel %vm6323, %v9922, %v9068
    %v9987 = vsel %vm6323, %v9923, %v9070
    %v9988 = vsel %vm6323, %v9924, %v9072
    %v9989 = vsel %vm6323, %v9925, %v9074
    %v9990 = vsel %vm6323, %v9926, %v9076
    %v9991 = vsel %vm6323, %v9927, %v9078
    %v9992 = vsel %vm6323, %v9928, %v9080
    %v9993 = vsel %vm6323, %v9929, %v9082
    %v9994 = vsel %vm6323, %v9930, %v9084
    %v9995 = vsel %vm6323, %v9931, %v9086
    %v9996 = vsel %vm6323, %v9932, %v9088
    %v9997 = vsel %vm6323, %v9933, %v9090
    %v9998 = vsel %vm6323, %v9934, %v9092
    %v9999 = vsel %vm6323, %v9935, %v9094
    %v10000 = vsel %vm6323, %v9936, %v9096
    %v10001 = vsel %vm6323, %v9937, %v9098
    %v10002 = vsel %vm6323, %v9938, %v9100
    %v10003 = vsel %vm6323, %v9939, %v9102
    %v10004 = vsel %vm6323, %v9940, %v9104
    %v10005 = vsel %vm6323, %v9941, %v9106
    %v10006 = vsel %vm6323, %v9942, %v9108
    %v10007 = vsel %vm6323, %v9943, %v9110
    %v10008 = vsel %vm6323, %v9944, %v9112
    %v10009 = vsel %vm6323, %v9945, %v9114
    %v10010 = vsel %vm6323, %v9946, %v9116
    %v10011 = vsel %vm6323, %v9947, %v9118
    %v10012 = vsel %vm6323, %v9948, %v9120
    %v10013 = vsel %vm6323, %v9949, %v9122
    %v10014 = vsel %vm6323, %v9950, %v9124
    %v10015 = vsel %vm6323, %v9951, %v9126
    %v10016 = vsel %vm6323, %v9952, %v9128
    %v10017 = vsel %vm6323, %v9953, %v9130
    %v10018 = vsel %vm6323, %v9954, %v9132
    %v10019 = vsel %vm6323, %v9955, %v9134
    %v10020 = vsel %vm6323, %v9956, %v9136
    %v10021 = vsel %vm6323, %v9957, %v9138
    %v10022 = vsel %vm6323, %v9958, %v9140
    %v10023 = vsel %vm6323, %v9959, %v9142
    %v10024 = vsel %vm6323, %v9960, %v9144
    %v10025 = vsel %vm6323, %v9961, %v9146
    %v10026 = vsel %vm6323, %v9962, %v9148
    %v10027 = vsel %vm6323, %v9963, %v9150
    %v10028 = vsel %vm6323, %v9964, %v9152
    %v10029 = vsel %vm6323, %v9965, %v9154
    %v10030 = vsel %vm6323, %v9966, %v9156
    %v10031 = vsel %vm6388, %v9967, %v9232
    %v10032 = vsel %vm6388, %v9968, %v9234
    %v10033 = vsel %vm6388, %v9969, %v9236
    %v10034 = vsel %vm6388, %v9970, %v9238
    %v10035 = vsel %vm6388, %v9971, %v9240
    %v10036 = vsel %vm6388, %v9972, %v9242
    %v10037 = vsel %vm6388, %v9973, %v9244
    %v10038 = vsel %vm6388, %v9974, %v9246
    %v10039 = vsel %vm6388, %v9975, %v9248
    %v10040 = vsel %vm6388, %v9976, %v9250
    %v10041 = vsel %vm6388, %v9977, %v9252
    %v10042 = vsel %vm6388, %v9978, %v9254
    %v10043 = vsel %vm6388, %v9979, %v9256
    %v10044 = vsel %vm6388, %v9980, %v9258
    %v10045 = vsel %vm6388, %v9981, %v9260
    %v10046 = vsel %vm6388, %v9982, %v9262
    %v10047 = vsel %vm6388, %v9983, %v9264
    %v10048 = vsel %vm6388, %v9984, %v9266
    %v10049 = vsel %vm6388, %v9985, %v9268
    %v10050 = vsel %vm6388, %v9986, %v9270
    %v10051 = vsel %vm6388, %v9987, %v9272
    %v10052 = vsel %vm6388, %v9988, %v9274
    %v10053 = vsel %vm6388, %v9989, %v9276
    %v10054 = vsel %vm6388, %v9990, %v9278
    %v10055 = vsel %vm6388, %v9991, %v9280
    %v10056 = vsel %vm6388, %v9992, %v9282
    %v10057 = vsel %vm6388, %v9993, %v9284
    %v10058 = vsel %vm6388, %v9994, %v9286
    %v10059 = vsel %vm6388, %v9995, %v9288
    %v10060 = vsel %vm6388, %v9996, %v9290
    %v10061 = vsel %vm6388, %v9997, %v9292
    %v10062 = vsel %vm6388, %v9998, %v9294
    %v10063 = vsel %vm6388, %v9999, %v9296
    %v10064 = vsel %vm6388, %v10000, %v9298
    %v10065 = vsel %vm6388, %v10001, %v9300
    %v10066 = vsel %vm6388, %v10002, %v9302
    %v10067 = vsel %vm6388, %v10003, %v9304
    %v10068 = vsel %vm6388, %v10004, %v9306
    %v10069 = vsel %vm6388, %v10005, %v9308
    %v10070 = vsel %vm6388, %v10006, %v9310
    %v10071 = vsel %vm6388, %v10007, %v9312
    %v10072 = vsel %vm6388, %v10008, %v9314
    %v10073 = vsel %vm6388, %v10009, %v9316
    %v10074 = vsel %vm6388, %v10010, %v9318
    %v10075 = vsel %vm6388, %v10011, %v9320
    %v10076 = vsel %vm6388, %v10012, %v9322
    %v10077 = vsel %vm6388, %v10013, %v9324
    %v10078 = vsel %vm6388, %v10014, %v9326
    %v10079 = vsel %vm6388, %v10015, %v9328
    %v10080 = vsel %vm6388, %v10016, %v9330
    %v10081 = vsel %vm6388, %v10017, %v9332
    %v10082 = vsel %vm6388, %v10018, %v9334
    %v10083 = vsel %vm6388, %v10019, %v9336
    %v10084 = vsel %vm6388, %v10020, %v9338
    %v10085 = vsel %vm6388, %v10021, %v9340
    %v10086 = vsel %vm6388, %v10022, %v9342
    %v10087 = vsel %vm6388, %v10023, %v9344
    %v10088 = vsel %vm6388, %v10024, %v9346
    %v10089 = vsel %vm6388, %v10025, %v9348
    %v10090 = vsel %vm6388, %v10026, %v9350
    %v10091 = vsel %vm6388, %v10027, %v9352
    %v10092 = vsel %vm6388, %v10028, %v9354
    %v10093 = vsel %vm6388, %v10029, %v9356
    %v10094 = vsel %vm6388, %v10030, %v9358
    %v10095 = vsel %vm6453, %v10031, %v9424
    %v10096 = vsel %vm6453, %v10032, %v9426
    %v10097 = vsel %vm6453, %v10033, %v9428
    %v10098 = vsel %vm6453, %v10034, %v9430
    %v10099 = vsel %vm6453, %v10035, %v9432
    %v10100 = vsel %vm6453, %v10036, %v9434
    %v10101 = vsel %vm6453, %v10037, %v9436
    %v10102 = vsel %vm6453, %v10038, %v9438
    %v10103 = vsel %vm6453, %v10039, %v9440
    %v10104 = vsel %vm6453, %v10040, %v9442
    %v10105 = vsel %vm6453, %v10041, %v9444
    %v10106 = vsel %vm6453, %v10042, %v9446
    %v10107 = vsel %vm6453, %v10043, %v9448
    %v10108 = vsel %vm6453, %v10044, %v9450
    %v10109 = vsel %vm6453, %v10045, %v9452
    %v10110 = vsel %vm6453, %v10046, %v9454
    %v10111 = vsel %vm6453, %v10047, %v9456
    %v10112 = vsel %vm6453, %v10048, %v9458
    %v10113 = vsel %vm6453, %v10049, %v9460
    %v10114 = vsel %vm6453, %v10050, %v9462
    %v10115 = vsel %vm6453, %v10051, %v9464
    %v10116 = vsel %vm6453, %v10052, %v9466
    %v10117 = vsel %vm6453, %v10053, %v9468
    %v10118 = vsel %vm6453, %v10054, %v9470
    %v10119 = vsel %vm6453, %v10055, %v9472
    %v10120 = vsel %vm6453, %v10056, %v9474
    %v10121 = vsel %vm6453, %v10057, %v9476
    %v10122 = vsel %vm6453, %v10058, %v9478
    %v10123 = vsel %vm6453, %v10059, %v9480
    %v10124 = vsel %vm6453, %v10060, %v9482
    %v10125 = vsel %vm6453, %v10061, %v5823
    %v10126 = vsel %vm6453, %v10062, %v5825
    %v10127 = vsel %vm6453, %v10063, %v9484
    %v10128 = vsel %vm6453, %v10064, %v9486
    %v10129 = vsel %vm6453, %v10065, %v9488
    %v10130 = vsel %vm6453, %v10066, %v9490
    %v10131 = vsel %vm6453, %v10067, %v9492
    %v10132 = vsel %vm6453, %v10068, %v9494
    %v10133 = vsel %vm6453, %v10069, %v9496
    %v10134 = vsel %vm6453, %v10070, %v9498
    %v10135 = vsel %vm6453, %v10071, %v9500
    %v10136 = vsel %vm6453, %v10072, %v9502
    %v10137 = vsel %vm6453, %v10073, %v9504
    %v10138 = vsel %vm6453, %v10074, %v9506
    %v10139 = vsel %vm6453, %v10075, %v9508
    %v10140 = vsel %vm6453, %v10076, %v9510
    %v10141 = vsel %vm6453, %v10077, %v9512
    %v10142 = vsel %vm6453, %v10078, %v9514
    %v10143 = vsel %vm6453, %v10079, %v9516
    %v10144 = vsel %vm6453, %v10080, %v9518
    %v10145 = vsel %vm6453, %v10081, %v9520
    %v10146 = vsel %vm6453, %v10082, %v9522
    %v10147 = vsel %vm6453, %v10083, %v9524
    %v10148 = vsel %vm6453, %v10084, %v9526
    %v10149 = vsel %vm6453, %v10085, %v9528
    %v10150 = vsel %vm6453, %v10086, %v9530
    %v10151 = vsel %vm6453, %v10087, %v9532
    %v10152 = vsel %vm6453, %v10088, %v9534
    %v10153 = vsel %vm6453, %v10089, %v9536
    %v10154 = vsel %vm6453, %v10090, %v9538
    %v10155 = vsel %vm6453, %v10091, %v9540
    %v10156 = vsel %vm6453, %v10092, %v9542
    %v10157 = vsel %vm6453, %v10093, %v5823
    %v10158 = vsel %vm6453, %v10094, %v5825
    %v10159 = vsel %vm6518, %v10095, %v9604
    %v10160 = vsel %vm6518, %v10096, %v9606
    %v10161 = vsel %vm6518, %v10097, %v9608
    %v10162 = vsel %vm6518, %v10098, %v9610
    %v10163 = vsel %vm6518, %v10099, %v9612
    %v10164 = vsel %vm6518, %v10100, %v9614
    %v10165 = vsel %vm6518, %v10101, %v9616
    %v10166 = vsel %vm6518, %v10102, %v9618
    %v10167 = vsel %vm6518, %v10103, %v9620
    %v10168 = vsel %vm6518, %v10104, %v9622
    %v10169 = vsel %vm6518, %v10105, %v9624
    %v10170 = vsel %vm6518, %v10106, %v9626
    %v10171 = vsel %vm6518, %v10107, %v9628
    %v10172 = vsel %vm6518, %v10108, %v9630
    %v10173 = vsel %vm6518, %v10109, %v9632
    %v10174 = vsel %vm6518, %v10110, %v9634
    %v10175 = vsel %vm6518, %v10111, %v9636
    %v10176 = vsel %vm6518, %v10112, %v9638
    %v10177 = vsel %vm6518, %v10113, %v9640
    %v10178 = vsel %vm6518, %v10114, %v9642
    %v10179 = vsel %vm6518, %v10115, %v9644
    %v10180 = vsel %vm6518, %v10116, %v9646
    %v10181 = vsel %vm6518, %v10117, %v9648
    %v10182 = vsel %vm6518, %v10118, %v9650
    %v10183 = vsel %vm6518, %v10119, %v9652
    %v10184 = vsel %vm6518, %v10120, %v9654
    %v10185 = vsel %vm6518, %v10121, %v9656
    %v10186 = vsel %vm6518, %v10122, %v9658
    %v10187 = vsel %vm6518, %v10123, %v9660
    %v10188 = vsel %vm6518, %v10124, %v9662
    %v10189 = vsel %vm6518, %v10125, %v6009
    %v10190 = vsel %vm6518, %v10126, %v6011
    %v10191 = vsel %vm6518, %v10127, %v9664
    %v10192 = vsel %vm6518, %v10128, %v9666
    %v10193 = vsel %vm6518, %v10129, %v9668
    %v10194 = vsel %vm6518, %v10130, %v9670
    %v10195 = vsel %vm6518, %v10131, %v9672
    %v10196 = vsel %vm6518, %v10132, %v9674
    %v10197 = vsel %vm6518, %v10133, %v9676
    %v10198 = vsel %vm6518, %v10134, %v9678
    %v10199 = vsel %vm6518, %v10135, %v9680
    %v10200 = vsel %vm6518, %v10136, %v9682
    %v10201 = vsel %vm6518, %v10137, %v9684
    %v10202 = vsel %vm6518, %v10138, %v9686
    %v10203 = vsel %vm6518, %v10139, %v9688
    %v10204 = vsel %vm6518, %v10140, %v9690
    %v10205 = vsel %vm6518, %v10141, %v9692
    %v10206 = vsel %vm6518, %v10142, %v9694
    %v10207 = vsel %vm6518, %v10143, %v9696
    %v10208 = vsel %vm6518, %v10144, %v9698
    %v10209 = vsel %vm6518, %v10145, %v9700
    %v10210 = vsel %vm6518, %v10146, %v9702
    %v10211 = vsel %vm6518, %v10147, %v9704
    %v10212 = vsel %vm6518, %v10148, %v9706
    %v10213 = vsel %vm6518, %v10149, %v9708
    %v10214 = vsel %vm6518, %v10150, %v9710
    %v10215 = vsel %vm6518, %v10151, %v9712
    %v10216 = vsel %vm6518, %v10152, %v9714
    %v10217 = vsel %vm6518, %v10153, %v9716
    %v10218 = vsel %vm6518, %v10154, %v9718
    %v10219 = vsel %vm6518, %v10155, %v9720
    %v10220 = vsel %vm6518, %v10156, %v9722
    %v10221 = vsel %vm6518, %v10157, %v6009
    %v10222 = vsel %vm6518, %v10158, %v6011
    %v10223 = vld [vmem:[%s9] sm:$0xff]
    %v10224 = vld [vmem:[%s9 + $0x8] sm:$0xff]
    %v10225 = vld [vmem:[%s9 + $0x10] sm:$0xff]
    %v10226 = vld [vmem:[%s9 + $0x18] sm:$0xff]
    %v10227 = vld [vmem:[%s9 + $0x20] sm:$0xff]
    %v10228 = vld [vmem:[%s9 + $0x28] sm:$0xff]
    %v10229 = vld [vmem:[%s9 + $0x30] sm:$0xff]
    %v10230 = vld [vmem:[%s9 + $0x38] sm:$0xff]
    %v10231 = vld [vmem:[%s9 + $0x40] sm:$0xff]
    %v10232 = vld [vmem:[%s9 + $0x48] sm:$0xff]
    %v10233 = vld [vmem:[%s9 + $0x50] sm:$0xff]
    %v10234 = vld [vmem:[%s9 + $0x58] sm:$0xff]
    %v10235 = vld [vmem:[%s9 + $0x60] sm:$0xff]
    %v10236 = vld [vmem:[%s9 + $0x68] sm:$0xff]
    %v10237 = vld [vmem:[%s9 + $0x70] sm:$0xff]
    %v10238 = vld [vmem:[%s9 + $0x78] sm:$0xff]
    %v10239 = vld [vmem:[%s9 + $0x80] sm:$0xff]
    %v10240 = vld [vmem:[%s9 + $0x88] sm:$0xff]
    %v10241 = vld [vmem:[%s10] sm:$0x1]
    %v10243 = vlaneseq
    %v10244 = vshrl.u32 %v10243, 7
    %v10245 = vsub.s32 0, %v10244
    %v10246 = vrot.slane %v10241, %v10245
    %v10248 = vsel %vm2530, %v8500, 0
    %v10250 = vsel %vm2530, %v8502, 0
    %v10252 = vsel %vm2530, %v8505, 0
    %v10254 = vsel %vm2530, %v8507, 0
    %v10256 = vsel %vm2530, %v8510, 0
    %v10258 = vsel %vm2530, %v8512, 0
    %v10260 = vsel %vm2530, %v8515, 0
    %v10262 = vsel %vm2530, %v8517, 0
    %v10264 = vsel %vm2530, %v8520, 0
    %v10266 = vsel %vm2530, %v8522, 0
    %v10268 = vsel %vm2530, %v8525, 0
    %v10270 = vsel %vm2530, %v8527, 0
    %v10272 = vsel %vm2530, %v8530, 0
    %v10274 = vsel %vm2530, %v8532, 0
    %v10276 = vsel %vm2530, %v8535, 0
    %v10278 = vsel %vm2530, %v8537, 0
    %v10280 = vsel %vm2530, %v8540, 0
    %v10282 = vsel %vm2530, %v8542, 0
    %v10284 = vsel %vm2530, %v8545, 0
    %v10286 = vsel %vm2530, %v8547, 0
    %v10288 = vsel %vm2530, %v8550, 0
    %v10290 = vsel %vm2530, %v8552, 0
    %v10292 = vsel %vm2530, %v8555, 0
    %v10294 = vsel %vm2530, %v8557, 0
    %v10296 = vsel %vm2530, %v8560, 0
    %v10298 = vsel %vm2530, %v8562, 0
    %v10300 = vsel %vm2530, %v8565, 0
    %v10302 = vsel %vm2530, %v8567, 0
    %v10304 = vsel %vm2530, %v9223, 0
    %v10306 = vsel %vm2530, %v9225, 0
    %v10308 = vsel %vm2530, %v8575, 0
    %v10310 = vsel %vm2530, %v8577, 0
    %v10312 = vsel %vm2530, %v8580, 0
    %v10314 = vsel %vm2530, %v8582, 0
    %v10316 = vsel %vm2530, %v8585, 0
    %v10318 = vsel %vm2530, %v8587, 0
    %v10320 = vsel %vm2530, %v8590, 0
    %v10322 = vsel %vm2530, %v8592, 0
    %v10324 = vsel %vm2530, %v8595, 0
    %v10326 = vsel %vm2530, %v8597, 0
    %v10328 = vsel %vm2530, %v8600, 0
    %v10330 = vsel %vm2530, %v8602, 0
    %v10332 = vsel %vm2530, %v8605, 0
    %v10334 = vsel %vm2530, %v8607, 0
    %v10336 = vsel %vm2530, %v8610, 0
    %v10338 = vsel %vm2530, %v8612, 0
    %v10340 = vsel %vm2530, %v8615, 0
    %v10342 = vsel %vm2530, %v8617, 0
    %v10344 = vsel %vm2530, %v8620, 0
    %v10346 = vsel %vm2530, %v8622, 0
    %v10348 = vsel %vm2530, %v8625, 0
    %v10350 = vsel %vm2530, %v8627, 0
    %v10352 = vsel %vm2530, %v8630, 0
    %v10354 = vsel %vm2530, %v8632, 0
    %v10356 = vsel %vm2530, %v8635, 0
    %v10358 = vsel %vm2530, %v8637, 0
    %v10360 = vsel %vm2530, %v8640, 0
    %v10362 = vsel %vm2530, %v8642, 0
    %v10364 = vsel %vm2530, %v9228, 0
    %v10366 = vsel %vm2530, %v9230, 0
    %10368 = vmatprep.subr.mxu0 0.0
    %10369 = vmatpush1.msra.mxu0 %v10223
    %10370 = vmatprep.subr.mxu0 0.0
    %10371 = vmatpush1.msra.mxu0 %v10224
    %10372 = vmatprep.subr.mxu0 0.0
    %10373 = vmatpush1.msra.mxu0 %v10225
    %10374 = vmatprep.subr.mxu0 0.0
    %10375 = vmatpush1.msra.mxu0 %v10226
    %10376 = vmatprep.subr.mxu0 0.0
    %10377 = vmatpush1.msra.mxu0 %v10227
    %10378 = vmatprep.subr.mxu0 0.0
    %10379 = vmatpush1.msra.mxu0 %v10228
    %10380 = vmatprep.subr.mxu0 0.0
    %10381 = vmatpush1.msra.mxu0 %v10229
    %10382 = vmatprep.subr.mxu0 0.0
    %10383 = vmatpush1.msra.mxu0 %v10230
    %10384 = vmatprep.subr.mxu0 0.0
    %10385 = vmatpush1.msra.mxu0 %v10231
    %10386 = vmatprep.subr.mxu0 0.0
    %10387 = vmatpush1.msra.mxu0 %v10232
    %10388 = vmatprep.subr.mxu0 0.0
    %10389 = vmatpush1.msra.mxu0 %v10233
    %10390 = vmatprep.subr.mxu0 0.0
    %10391 = vmatpush1.msra.mxu0 %v10234
    %10392 = vmatprep.subr.mxu0 0.0
    %10393 = vmatpush1.msra.mxu0 %v10235
    %10394 = vmatprep.subr.mxu0 0.0
    %10395 = vmatpush1.msra.mxu0 %v10236
    %10396 = vmatprep.subr.mxu0 0.0
    %10397 = vmatpush1.msra.mxu0 %v10237
    %10398 = vmatprep.subr.mxu0 0.0
    %10399 = vmatpush1.msra.mxu0 %v10238
    %10400 = vmatprep.subr.mxu0 0.0
    %10401 = vmatpush1.msra.mxu0 %v10239
    %10402 = vmatprep.subr.mxu0 0.0
    %10403 = vmatpush1.msra.mxu0 %v10240
    %10404 = vmatprep.subr.mxu0 0.0
    %10405 = vmatpush1.msra.mxu0 0.0
    %10406 = vmatprep.subr.mxu0 0.0
    %10407 = vmatpush1.msra.mxu0 0.0
    %10408 = vmatprep.subr.mxu0 0.0
    %10409 = vmatpush1.msra.mxu0 0.0
    %10410 = vmatprep.subr.mxu0 0.0
    %10411 = vmatpush1.msra.mxu0 0.0
    %10412 = vmatprep.subr.mxu0 0.0
    %10413 = vmatpush1.msra.mxu0 0.0
    %10414 = vmatprep.subr.mxu0 0.0
    %10415 = vmatpush1.msra.mxu0 0.0
    %10416 = vmatprep.subr.mxu0 0.0
    %10417 = vmatpush1.msra.mxu0 0.0
    %10418 = vmatprep.subr.mxu0 0.0
    %10419 = vmatpush1.msra.mxu0 0.0
    %10420 = vmatprep.subr.mxu0 0.0
    %10421 = vmatpush1.msra.mxu0 0.0
    %10422 = vmatprep.subr.mxu0 0.0
    %10423 = vmatpush1.msra.mxu0 0.0
    %10424 = vmatprep.subr.mxu0 0.0
    %10425 = vmatpush1.msra.mxu0 0.0
    %10426 = vmatprep.subr.mxu0 0.0
    %10427 = vmatpush1.msra.mxu0 0.0
    %10428 = vmatprep.subr.mxu0 0.0
    %10429 = vmatpush1.msra.mxu0 0.0
    %10430 = vmatprep.subr.mxu0 0.0
    %10431 = vmatpush1.msra.mxu0 0.0
    %10432 = vmatprep.mubr.f32.mxu0 %v10248
    %10433 = vmatmul.mubr.f32.gmra.mrb[0].mxu0 %v10159
    %v10434 = vpop.f32.mrb[0].mxu0
    %v10435 = vadd.f32 %v10246, %v10434
    %v10436 = vpop.f32.mrb[0].mxu0
    %10437 = vmatprep.mubr.f32.mxu0 %v10250
    %10438 = vmatmul.mubr.f32.gmra.mrb[0].mxu0 %v10160
    %v10439 = vpop.f32.mrb[0].mxu0
    %v10440 = vadd.f32 %v10246, %v10439
    %v10441 = vpop.f32.mrb[0].mxu0
    %10442 = vmatprep.mubr.f32.mxu0 %v10252
    %10443 = vmatmul.mubr.f32.gmra.mrb[0].mxu0 %v10161
    %v10444 = vpop.f32.mrb[0].mxu0
    %v10445 = vadd.f32 %v10246, %v10444
    %v10446 = vpop.f32.mrb[0].mxu0
    %10447 = vmatprep.mubr.f32.mxu0 %v10254
    %10448 = vmatmul.mubr.f32.gmra.mrb[0].mxu0 %v10162
    %v10449 = vpop.f32.mrb[0].mxu0
    %v10450 = vadd.f32 %v10246, %v10449
    %v10451 = vpop.f32.mrb[0].mxu0
    %10452 = vmatprep.mubr.f32.mxu0 %v10256
    %10453 = vmatmul.mubr.f32.gmra.mrb[0].mxu0 %v10163
    %v10454 = vpop.f32.mrb[0].mxu0
    %v10455 = vadd.f32 %v10246, %v10454
    %v10456 = vpop.f32.mrb[0].mxu0
    %10457 = vmatprep.mubr.f32.mxu0 %v10258
    %10458 = vmatmul.mubr.f32.gmra.mrb[0].mxu0 %v10164
    %v10459 = vpop.f32.mrb[0].mxu0
    %v10460 = vadd.f32 %v10246, %v10459
    %v10461 = vpop.f32.mrb[0].mxu0
    %10462 = vmatprep.mubr.f32.mxu0 %v10260
    %10463 = vmatmul.mubr.f32.gmra.mrb[0].mxu0 %v10165
    %v10464 = vpop.f32.mrb[0].mxu0
    %v10465 = vadd.f32 %v10246, %v10464
    %v10466 = vpop.f32.mrb[0].mxu0
    %10467 = vmatprep.mubr.f32.mxu0 %v10262
    %10468 = vmatmul.mubr.f32.gmra.mrb[0].mxu0 %v10166
    %v10469 = vpop.f32.mrb[0].mxu0
    %v10470 = vadd.f32 %v10246, %v10469
    %v10471 = vpop.f32.mrb[0].mxu0
    %10472 = vmatprep.mubr.f32.mxu0 %v10264
    %10473 = vmatmul.mubr.f32.gmra.mrb[0].mxu0 %v10167
    %v10474 = vpop.f32.mrb[0].mxu0
    %v10475 = vadd.f32 %v10246, %v10474
    %v10476 = vpop.f32.mrb[0].mxu0
    %10477 = vmatprep.mubr.f32.mxu0 %v10266
    %10478 = vmatmul.mubr.f32.gmra.mrb[0].mxu0 %v10168
    %v10479 = vpop.f32.mrb[0].mxu0
    %v10480 = vadd.f32 %v10246, %v10479
    %v10481 = vpop.f32.mrb[0].mxu0
    %10482 = vmatprep.mubr.f32.mxu0 %v10268
    %10483 = vmatmul.mubr.f32.gmra.mrb[0].mxu0 %v10169
    %v10484 = vpop.f32.mrb[0].mxu0
    %v10485 = vadd.f32 %v10246, %v10484
    %v10486 = vpop.f32.mrb[0].mxu0
    %10487 = vmatprep.mubr.f32.mxu0 %v10270
    %10488 = vmatmul.mubr.f32.gmra.mrb[0].mxu0 %v10170
    %v10489 = vpop.f32.mrb[0].mxu0
    %v10490 = vadd.f32 %v10246, %v10489
    %v10491 = vpop.f32.mrb[0].mxu0
    %10492 = vmatprep.mubr.f32.mxu0 %v10272
    %10493 = vmatmul.mubr.f32.gmra.mrb[0].mxu0 %v10171
    %v10494 = vpop.f32.mrb[0].mxu0
    %v10495 = vadd.f32 %v10246, %v10494
    %v10496 = vpop.f32.mrb[0].mxu0
    %10497 = vmatprep.mubr.f32.mxu0 %v10274
    %10498 = vmatmul.mubr.f32.gmra.mrb[0].mxu0 %v10172
    %v10499 = vpop.f32.mrb[0].mxu0
    %v10500 = vadd.f32 %v10246, %v10499
    %v10501 = vpop.f32.mrb[0].mxu0
    %10502 = vmatprep.mubr.f32.mxu0 %v10276
    %10503 = vmatmul.mubr.f32.gmra.mrb[0].mxu0 %v10173
    %v10504 = vpop.f32.mrb[0].mxu0
    %v10505 = vadd.f32 %v10246, %v10504
    %v10506 = vpop.f32.mrb[0].mxu0
    %10507 = vmatprep.mubr.f32.mxu0 %v10278
    %10508 = vmatmul.mubr.f32.gmra.mrb[0].mxu0 %v10174
    %v10509 = vpop.f32.mrb[0].mxu0
    %v10510 = vadd.f32 %v10246, %v10509
    %v10511 = vpop.f32.mrb[0].mxu0
    %10512 = vmatprep.mubr.f32.mxu0 %v10280
    %10513 = vmatmul.mubr.f32.gmra.mrb[0].mxu0 %v10175
    %v10514 = vpop.f32.mrb[0].mxu0
    %v10515 = vadd.f32 %v10246, %v10514
    %v10516 = vpop.f32.mrb[0].mxu0
    %10517 = vmatprep.mubr.f32.mxu0 %v10282
    %10518 = vmatmul.mubr.f32.gmra.mrb[0].mxu0 %v10176
    %v10519 = vpop.f32.mrb[0].mxu0
    %v10520 = vadd.f32 %v10246, %v10519
    %v10521 = vpop.f32.mrb[0].mxu0
    %10522 = vmatprep.mubr.f32.mxu0 %v10284
    %10523 = vmatmul.mubr.f32.gmra.mrb[0].mxu0 %v10177
    %v10524 = vpop.f32.mrb[0].mxu0
    %v10525 = vadd.f32 %v10246, %v10524
    %v10526 = vpop.f32.mrb[0].mxu0
    %10527 = vmatprep.mubr.f32.mxu0 %v10286
    %10528 = vmatmul.mubr.f32.gmra.mrb[0].mxu0 %v10178
    %v10529 = vpop.f32.mrb[0].mxu0
    %v10530 = vadd.f32 %v10246, %v10529
    %v10531 = vpop.f32.mrb[0].mxu0
    %10532 = vmatprep.mubr.f32.mxu0 %v10288
    %10533 = vmatmul.mubr.f32.gmra.mrb[0].mxu0 %v10179
    %v10534 = vpop.f32.mrb[0].mxu0
    %v10535 = vadd.f32 %v10246, %v10534
    %v10536 = vpop.f32.mrb[0].mxu0
    %10537 = vmatprep.mubr.f32.mxu0 %v10290
    %10538 = vmatmul.mubr.f32.gmra.mrb[0].mxu0 %v10180
    %v10539 = vpop.f32.mrb[0].mxu0
    %v10540 = vadd.f32 %v10246, %v10539
    %v10541 = vpop.f32.mrb[0].mxu0
    %10542 = vmatprep.mubr.f32.mxu0 %v10292
    %10543 = vmatmul.mubr.f32.gmra.mrb[0].mxu0 %v10181
    %v10544 = vpop.f32.mrb[0].mxu0
    %v10545 = vadd.f32 %v10246, %v10544
    %v10546 = vpop.f32.mrb[0].mxu0
    %10547 = vmatprep.mubr.f32.mxu0 %v10294
    %10548 = vmatmul.mubr.f32.gmra.mrb[0].mxu0 %v10182
    %v10549 = vpop.f32.mrb[0].mxu0
    %v10550 = vadd.f32 %v10246, %v10549
    %v10551 = vpop.f32.mrb[0].mxu0
    %10552 = vmatprep.mubr.f32.mxu0 %v10296
    %10553 = vmatmul.mubr.f32.gmra.mrb[0].mxu0 %v10183
    %v10554 = vpop.f32.mrb[0].mxu0
    %v10555 = vadd.f32 %v10246, %v10554
    %v10556 = vpop.f32.mrb[0].mxu0
    %10557 = vmatprep.mubr.f32.mxu0 %v10298
    %10558 = vmatmul.mubr.f32.gmra.mrb[0].mxu0 %v10184
    %v10559 = vpop.f32.mrb[0].mxu0
    %v10560 = vadd.f32 %v10246, %v10559
    %v10561 = vpop.f32.mrb[0].mxu0
    %10562 = vmatprep.mubr.f32.mxu0 %v10300
    %10563 = vmatmul.mubr.f32.gmra.mrb[0].mxu0 %v10185
    %v10564 = vpop.f32.mrb[0].mxu0
    %v10565 = vadd.f32 %v10246, %v10564
    %v10566 = vpop.f32.mrb[0].mxu0
    %10567 = vmatprep.mubr.f32.mxu0 %v10302
    %10568 = vmatmul.mubr.f32.gmra.mrb[0].mxu0 %v10186
    %v10569 = vpop.f32.mrb[0].mxu0
    %v10570 = vadd.f32 %v10246, %v10569
    %v10571 = vpop.f32.mrb[0].mxu0
    %10572 = vmatprep.mubr.f32.mxu0 %v10304
    %10573 = vmatmul.mubr.f32.gmra.mrb[0].mxu0 %v10187
    %v10574 = vpop.f32.mrb[0].mxu0
    %v10575 = vadd.f32 %v10246, %v10574
    %v10576 = vpop.f32.mrb[0].mxu0
    %10577 = vmatprep.mubr.f32.mxu0 %v10306
    %10578 = vmatmul.mubr.f32.gmra.mrb[0].mxu0 %v10188
    %v10579 = vpop.f32.mrb[0].mxu0
    %v10580 = vadd.f32 %v10246, %v10579
    %v10581 = vpop.f32.mrb[0].mxu0
    %10582 = vmatprep.mubr.f32.mxu0 %v6668
    %10583 = vmatmul.mubr.f32.gmra.mrb[0].mxu0 %v10189
    %v10584 = vpop.f32.mrb[0].mxu0
    %v10585 = vadd.f32 %v10246, %v10584
    %v10586 = vpop.f32.mrb[0].mxu0
    %10587 = vmatprep.mubr.f32.mxu0 %v6670
    %10588 = vmatmul.mubr.f32.gmra.mrb[0].mxu0 %v10190
    %v10589 = vpop.f32.mrb[0].mxu0
    %v10590 = vadd.f32 %v10246, %v10589
    %v10591 = vpop.f32.mrb[0].mxu0
    %10592 = vmatprep.mubr.f32.mxu0 %v10308
    %10593 = vmatmul.mubr.f32.gmra.mrb[0].mxu0 %v10191
    %v10594 = vpop.f32.mrb[0].mxu0
    %v10595 = vadd.f32 %v10246, %v10594
    %v10596 = vpop.f32.mrb[0].mxu0
    %10597 = vmatprep.mubr.f32.mxu0 %v10310
    %10598 = vmatmul.mubr.f32.gmra.mrb[0].mxu0 %v10192
    %v10599 = vpop.f32.mrb[0].mxu0
    %v10600 = vadd.f32 %v10246, %v10599
    %v10601 = vpop.f32.mrb[0].mxu0
    %10602 = vmatprep.mubr.f32.mxu0 %v10312
    %10603 = vmatmul.mubr.f32.gmra.mrb[0].mxu0 %v10193
    %v10604 = vpop.f32.mrb[0].mxu0
    %v10605 = vadd.f32 %v10246, %v10604
    %v10606 = vpop.f32.mrb[0].mxu0
    %10607 = vmatprep.mubr.f32.mxu0 %v10314
    %10608 = vmatmul.mubr.f32.gmra.mrb[0].mxu0 %v10194
    %v10609 = vpop.f32.mrb[0].mxu0
    %v10610 = vadd.f32 %v10246, %v10609
    %v10611 = vpop.f32.mrb[0].mxu0
    %10612 = vmatprep.mubr.f32.mxu0 %v10316
    %10613 = vmatmul.mubr.f32.gmra.mrb[0].mxu0 %v10195
    %v10614 = vpop.f32.mrb[0].mxu0
    %v10615 = vadd.f32 %v10246, %v10614
    %v10616 = vpop.f32.mrb[0].mxu0
    %10617 = vmatprep.mubr.f32.mxu0 %v10318
    %10618 = vmatmul.mubr.f32.gmra.mrb[0].mxu0 %v10196
    %v10619 = vpop.f32.mrb[0].mxu0
    %v10620 = vadd.f32 %v10246, %v10619
    %v10621 = vpop.f32.mrb[0].mxu0
    %10622 = vmatprep.mubr.f32.mxu0 %v10320
    %10623 = vmatmul.mubr.f32.gmra.mrb[0].mxu0 %v10197
    %v10624 = vpop.f32.mrb[0].mxu0
    %v10625 = vadd.f32 %v10246, %v10624
    %v10626 = vpop.f32.mrb[0].mxu0
    %10627 = vmatprep.mubr.f32.mxu0 %v10322
    %10628 = vmatmul.mubr.f32.gmra.mrb[0].mxu0 %v10198
    %v10629 = vpop.f32.mrb[0].mxu0
    %v10630 = vadd.f32 %v10246, %v10629
    %v10631 = vpop.f32.mrb[0].mxu0
    %10632 = vmatprep.mubr.f32.mxu0 %v10324
    %10633 = vmatmul.mubr.f32.gmra.mrb[0].mxu0 %v10199
    %v10634 = vpop.f32.mrb[0].mxu0
    %v10635 = vadd.f32 %v10246, %v10634
    %v10636 = vpop.f32.mrb[0].mxu0
    %10637 = vmatprep.mubr.f32.mxu0 %v10326
    %10638 = vmatmul.mubr.f32.gmra.mrb[0].mxu0 %v10200
    %v10639 = vpop.f32.mrb[0].mxu0
    %v10640 = vadd.f32 %v10246, %v10639
    %v10641 = vpop.f32.mrb[0].mxu0
    %10642 = vmatprep.mubr.f32.mxu0 %v10328
    %10643 = vmatmul.mubr.f32.gmra.mrb[0].mxu0 %v10201
    %v10644 = vpop.f32.mrb[0].mxu0
    %v10645 = vadd.f32 %v10246, %v10644
    %v10646 = vpop.f32.mrb[0].mxu0
    %10647 = vmatprep.mubr.f32.mxu0 %v10330
    %10648 = vmatmul.mubr.f32.gmra.mrb[0].mxu0 %v10202
    %v10649 = vpop.f32.mrb[0].mxu0
    %v10650 = vadd.f32 %v10246, %v10649
    %v10651 = vpop.f32.mrb[0].mxu0
    %10652 = vmatprep.mubr.f32.mxu0 %v10332
    %10653 = vmatmul.mubr.f32.gmra.mrb[0].mxu0 %v10203
    %v10654 = vpop.f32.mrb[0].mxu0
    %v10655 = vadd.f32 %v10246, %v10654
    %v10656 = vpop.f32.mrb[0].mxu0
    %10657 = vmatprep.mubr.f32.mxu0 %v10334
    %10658 = vmatmul.mubr.f32.gmra.mrb[0].mxu0 %v10204
    %v10659 = vpop.f32.mrb[0].mxu0
    %v10660 = vadd.f32 %v10246, %v10659
    %v10661 = vpop.f32.mrb[0].mxu0
    %10662 = vmatprep.mubr.f32.mxu0 %v10336
    %10663 = vmatmul.mubr.f32.gmra.mrb[0].mxu0 %v10205
    %v10664 = vpop.f32.mrb[0].mxu0
    %v10665 = vadd.f32 %v10246, %v10664
    %v10666 = vpop.f32.mrb[0].mxu0
    %10667 = vmatprep.mubr.f32.mxu0 %v10338
    %10668 = vmatmul.mubr.f32.gmra.mrb[0].mxu0 %v10206
    %v10669 = vpop.f32.mrb[0].mxu0
    %v10670 = vadd.f32 %v10246, %v10669
    %v10671 = vpop.f32.mrb[0].mxu0
    %10672 = vmatprep.mubr.f32.mxu0 %v10340
    %10673 = vmatmul.mubr.f32.gmra.mrb[0].mxu0 %v10207
    %v10674 = vpop.f32.mrb[0].mxu0
    %v10675 = vadd.f32 %v10246, %v10674
    %v10676 = vpop.f32.mrb[0].mxu0
    %10677 = vmatprep.mubr.f32.mxu0 %v10342
    %10678 = vmatmul.mubr.f32.gmra.mrb[0].mxu0 %v10208
    %v10679 = vpop.f32.mrb[0].mxu0
    %v10680 = vadd.f32 %v10246, %v10679
    %v10681 = vpop.f32.mrb[0].mxu0
    %10682 = vmatprep.mubr.f32.mxu0 %v10344
    %10683 = vmatmul.mubr.f32.gmra.mrb[0].mxu0 %v10209
    %v10684 = vpop.f32.mrb[0].mxu0
    %v10685 = vadd.f32 %v10246, %v10684
    %v10686 = vpop.f32.mrb[0].mxu0
    %10687 = vmatprep.mubr.f32.mxu0 %v10346
    %10688 = vmatmul.mubr.f32.gmra.mrb[0].mxu0 %v10210
    %v10689 = vpop.f32.mrb[0].mxu0
    %v10690 = vadd.f32 %v10246, %v10689
    %v10691 = vpop.f32.mrb[0].mxu0
    %10692 = vmatprep.mubr.f32.mxu0 %v10348
    %10693 = vmatmul.mubr.f32.gmra.mrb[0].mxu0 %v10211
    %v10694 = vpop.f32.mrb[0].mxu0
    %v10695 = vadd.f32 %v10246, %v10694
    %v10696 = vpop.f32.mrb[0].mxu0
    %10697 = vmatprep.mubr.f32.mxu0 %v10350
    %10698 = vmatmul.mubr.f32.gmra.mrb[0].mxu0 %v10212
    %v10699 = vpop.f32.mrb[0].mxu0
    %v10700 = vadd.f32 %v10246, %v10699
    %v10701 = vpop.f32.mrb[0].mxu0
    %10702 = vmatprep.mubr.f32.mxu0 %v10352
    %10703 = vmatmul.mubr.f32.gmra.mrb[0].mxu0 %v10213
    %v10704 = vpop.f32.mrb[0].mxu0
    %v10705 = vadd.f32 %v10246, %v10704
    %v10706 = vpop.f32.mrb[0].mxu0
    %10707 = vmatprep.mubr.f32.mxu0 %v10354
    %10708 = vmatmul.mubr.f32.gmra.mrb[0].mxu0 %v10214
    %v10709 = vpop.f32.mrb[0].mxu0
    %v10710 = vadd.f32 %v10246, %v10709
    %v10711 = vpop.f32.mrb[0].mxu0
    %10712 = vmatprep.mubr.f32.mxu0 %v10356
    %10713 = vmatmul.mubr.f32.gmra.mrb[0].mxu0 %v10215
    %v10714 = vpop.f32.mrb[0].mxu0
    %v10715 = vadd.f32 %v10246, %v10714
    %v10716 = vpop.f32.mrb[0].mxu0
    %10717 = vmatprep.mubr.f32.mxu0 %v10358
    %10718 = vmatmul.mubr.f32.gmra.mrb[0].mxu0 %v10216
    %v10719 = vpop.f32.mrb[0].mxu0
    %v10720 = vadd.f32 %v10246, %v10719
    %v10721 = vpop.f32.mrb[0].mxu0
    %10722 = vmatprep.mubr.f32.mxu0 %v10360
    %10723 = vmatmul.mubr.f32.gmra.mrb[0].mxu0 %v10217
    %v10724 = vpop.f32.mrb[0].mxu0
    %v10725 = vadd.f32 %v10246, %v10724
    %v10726 = vpop.f32.mrb[0].mxu0
    %10727 = vmatprep.mubr.f32.mxu0 %v10362
    %10728 = vmatmul.mubr.f32.gmra.mrb[0].mxu0 %v10218
    %v10729 = vpop.f32.mrb[0].mxu0
    %v10730 = vadd.f32 %v10246, %v10729
    %v10731 = vpop.f32.mrb[0].mxu0
    %10732 = vmatprep.mubr.f32.mxu0 %v10364
    %10733 = vmatmul.mubr.f32.gmra.mrb[0].mxu0 %v10219
    %v10734 = vpop.f32.mrb[0].mxu0
    %v10735 = vadd.f32 %v10246, %v10734
    %v10736 = vpop.f32.mrb[0].mxu0
    %10737 = vmatprep.mubr.f32.mxu0 %v10366
    %10738 = vmatmul.mubr.f32.gmra.mrb[0].mxu0 %v10220
    %v10739 = vpop.f32.mrb[0].mxu0
    %v10740 = vadd.f32 %v10246, %v10739
    %v10741 = vpop.f32.mrb[0].mxu0
    %10742 = vmatprep.mubr.f32.mxu0 %v6668
    %10743 = vmatmul.mubr.f32.gmra.mrb[0].mxu0 %v10221
    %v10744 = vpop.f32.mrb[0].mxu0
    %v10745 = vadd.f32 %v10246, %v10744
    %v10746 = vpop.f32.mrb[0].mxu0
    %10747 = vmatprep.mubr.f32.mxu0 %v6670
    %10748 = vmatmul.mubr.f32.gmra.mrb[0].mxu0 %v10222
    %v10749 = vpop.f32.mrb[0].mxu0
    %v10750 = vadd.f32 %v10246, %v10749
    %v10751 = vpop.f32.mrb[0].mxu0
    %10752 = vdwg.mxu0
    %v10753 = vsel %vm2530, %v10435, 0.0
    %v10754 = vsel %vm2530, %v10440, 0.0
    %v10755 = vadd.f32 %v10753, %v10754
    %v10756 = vsel %vm2530, %v10445, 0.0
    %v10757 = vadd.f32 %v10755, %v10756
    %v10758 = vsel %vm2530, %v10450, 0.0
    %v10759 = vadd.f32 %v10757, %v10758
    %v10760 = vsel %vm2530, %v10455, 0.0
    %v10761 = vadd.f32 %v10759, %v10760
    %v10762 = vsel %vm2530, %v10460, 0.0
    %v10763 = vadd.f32 %v10761, %v10762
    %v10764 = vsel %vm2530, %v10465, 0.0
    %v10765 = vadd.f32 %v10763, %v10764
    %v10766 = vsel %vm2530, %v10470, 0.0
    %v10767 = vadd.f32 %v10765, %v10766
    %v10768 = vsel %vm2530, %v10475, 0.0
    %v10769 = vadd.f32 %v10767, %v10768
    %v10770 = vsel %vm2530, %v10480, 0.0
    %v10771 = vadd.f32 %v10769, %v10770
    %v10772 = vsel %vm2530, %v10485, 0.0
    %v10773 = vadd.f32 %v10771, %v10772
    %v10774 = vsel %vm2530, %v10490, 0.0
    %v10775 = vadd.f32 %v10773, %v10774
    %v10776 = vsel %vm2530, %v10495, 0.0
    %v10777 = vadd.f32 %v10775, %v10776
    %v10778 = vsel %vm2530, %v10500, 0.0
    %v10779 = vadd.f32 %v10777, %v10778
    %v10780 = vsel %vm2530, %v10505, 0.0
    %v10781 = vadd.f32 %v10779, %v10780
    %v10782 = vsel %vm2530, %v10510, 0.0
    %v10783 = vadd.f32 %v10781, %v10782
    %v10784 = vsel %vm2530, %v10515, 0.0
    %v10785 = vadd.f32 %v10783, %v10784
    %v10786 = vsel %vm2530, %v10520, 0.0
    %v10787 = vadd.f32 %v10785, %v10786
    %v10788 = vsel %vm2530, %v10525, 0.0
    %v10789 = vadd.f32 %v10787, %v10788
    %v10790 = vsel %vm2530, %v10530, 0.0
    %v10791 = vadd.f32 %v10789, %v10790
    %v10792 = vsel %vm2530, %v10535, 0.0
    %v10793 = vadd.f32 %v10791, %v10792
    %v10794 = vsel %vm2530, %v10540, 0.0
    %v10795 = vadd.f32 %v10793, %v10794
    %v10796 = vsel %vm2530, %v10545, 0.0
    %v10797 = vadd.f32 %v10795, %v10796
    %v10798 = vsel %vm2530, %v10550, 0.0
    %v10799 = vadd.f32 %v10797, %v10798
    %v10800 = vsel %vm2530, %v10555, 0.0
    %v10801 = vadd.f32 %v10799, %v10800
    %v10802 = vsel %vm2530, %v10560, 0.0
    %v10803 = vadd.f32 %v10801, %v10802
    %v10804 = vsel %vm2530, %v10565, 0.0
    %v10805 = vadd.f32 %v10803, %v10804
    %v10806 = vsel %vm2530, %v10570, 0.0
    %v10807 = vadd.f32 %v10805, %v10806
    %v10808 = vsel %vm2530, %v10575, 0.0
    %v10809 = vadd.f32 %v10807, %v10808
    %v10810 = vsel %vm2530, %v10580, 0.0
    %v10811 = vadd.f32 %v10809, %v10810
    %v10812 = vsel %vm2530, %v10585, 0.0
    %v10813 = vadd.f32 %v10811, %v10812
    %v10814 = vsel %vm2530, %v10590, 0.0
    %v10815 = vadd.f32 %v10813, %v10814
    %v10816 = vsel %vm2530, %v10595, 0.0
    %v10817 = vadd.f32 %v10815, %v10816
    %v10818 = vsel %vm2530, %v10600, 0.0
    %v10819 = vadd.f32 %v10817, %v10818
    %v10820 = vsel %vm2530, %v10605, 0.0
    %v10821 = vadd.f32 %v10819, %v10820
    %v10822 = vsel %vm2530, %v10610, 0.0
    %v10823 = vadd.f32 %v10821, %v10822
    %v10824 = vsel %vm2530, %v10615, 0.0
    %v10825 = vadd.f32 %v10823, %v10824
    %v10826 = vsel %vm2530, %v10620, 0.0
    %v10827 = vadd.f32 %v10825, %v10826
    %v10828 = vsel %vm2530, %v10625, 0.0
    %v10829 = vadd.f32 %v10827, %v10828
    %v10830 = vsel %vm2530, %v10630, 0.0
    %v10831 = vadd.f32 %v10829, %v10830
    %v10832 = vsel %vm2530, %v10635, 0.0
    %v10833 = vadd.f32 %v10831, %v10832
    %v10834 = vsel %vm2530, %v10640, 0.0
    %v10835 = vadd.f32 %v10833, %v10834
    %v10836 = vsel %vm2530, %v10645, 0.0
    %v10837 = vadd.f32 %v10835, %v10836
    %v10838 = vsel %vm2530, %v10650, 0.0
    %v10839 = vadd.f32 %v10837, %v10838
    %v10840 = vsel %vm2530, %v10655, 0.0
    %v10841 = vadd.f32 %v10839, %v10840
    %v10842 = vsel %vm2530, %v10660, 0.0
    %v10843 = vadd.f32 %v10841, %v10842
    %v10844 = vsel %vm2530, %v10665, 0.0
    %v10845 = vadd.f32 %v10843, %v10844
    %v10846 = vsel %vm2530, %v10670, 0.0
    %v10847 = vadd.f32 %v10845, %v10846
    %v10848 = vsel %vm2530, %v10675, 0.0
    %v10849 = vadd.f32 %v10847, %v10848
    %v10850 = vsel %vm2530, %v10680, 0.0
    %v10851 = vadd.f32 %v10849, %v10850
    %v10852 = vsel %vm2530, %v10685, 0.0
    %v10853 = vadd.f32 %v10851, %v10852
    %v10854 = vsel %vm2530, %v10690, 0.0
    %v10855 = vadd.f32 %v10853, %v10854
    %v10856 = vsel %vm2530, %v10695, 0.0
    %v10857 = vadd.f32 %v10855, %v10856
    %v10858 = vsel %vm2530, %v10700, 0.0
    %v10859 = vadd.f32 %v10857, %v10858
    %v10860 = vsel %vm2530, %v10705, 0.0
    %v10861 = vadd.f32 %v10859, %v10860
    %v10862 = vsel %vm2530, %v10710, 0.0
    %v10863 = vadd.f32 %v10861, %v10862
    %v10864 = vsel %vm2530, %v10715, 0.0
    %v10865 = vadd.f32 %v10863, %v10864
    %v10866 = vsel %vm2530, %v10720, 0.0
    %v10867 = vadd.f32 %v10865, %v10866
    %v10868 = vsel %vm2530, %v10725, 0.0
    %v10869 = vadd.f32 %v10867, %v10868
    %v10870 = vsel %vm2530, %v10730, 0.0
    %v10871 = vadd.f32 %v10869, %v10870
    %v10872 = vsel %vm2530, %v10735, 0.0
    %v10873 = vadd.f32 %v10871, %v10872
    %v10874 = vsel %vm2530, %v10740, 0.0
    %v10875 = vadd.f32 %v10873, %v10874
    %v10876 = vsel %vm2530, %v10745, 0.0
    %v10877 = vadd.f32 %v10875, %v10876
    %v10878 = vsel %vm2530, %v10750, 0.0
    %v10879 = vadd.f32 %v10877, %v10878
    %v10880 = vrot.slane %v10879, 4
    %v10881 = vadd.f32 %v10879, %v10880
    %v10882 = vrot.slane %v10881, 2
    %v10883 = vadd.f32 %v10881, %v10882
    %v10884 = vrot.slane %v10883, 1
    %v10885 = vadd.f32 %v10883, %v10884
    %v10886 = vmul.f32 %v10885, %v3582
    %v10887 = vsub.f32 %v10435, %v10886
    %v10888 = vsub.f32 %v10440, %v10886
    %v10889 = vsub.f32 %v10445, %v10886
    %v10890 = vsub.f32 %v10450, %v10886
    %v10891 = vsub.f32 %v10455, %v10886
    %v10892 = vsub.f32 %v10460, %v10886
    %v10893 = vsub.f32 %v10465, %v10886
    %v10894 = vsub.f32 %v10470, %v10886
    %v10895 = vsub.f32 %v10475, %v10886
    %v10896 = vsub.f32 %v10480, %v10886
    %v10897 = vsub.f32 %v10485, %v10886
    %v10898 = vsub.f32 %v10490, %v10886
    %v10899 = vsub.f32 %v10495, %v10886
    %v10900 = vsub.f32 %v10500, %v10886
    %v10901 = vsub.f32 %v10505, %v10886
    %v10902 = vsub.f32 %v10510, %v10886
    %v10903 = vsub.f32 %v10515, %v10886
    %v10904 = vsub.f32 %v10520, %v10886
    %v10905 = vsub.f32 %v10525, %v10886
    %v10906 = vsub.f32 %v10530, %v10886
    %v10907 = vsub.f32 %v10535, %v10886
    %v10908 = vsub.f32 %v10540, %v10886
    %v10909 = vsub.f32 %v10545, %v10886
    %v10910 = vsub.f32 %v10550, %v10886
    %v10911 = vsub.f32 %v10555, %v10886
    %v10912 = vsub.f32 %v10560, %v10886
    %v10913 = vsub.f32 %v10565, %v10886
    %v10914 = vsub.f32 %v10570, %v10886
    %v10915 = vsub.f32 %v10575, %v10886
    %v10916 = vsub.f32 %v10580, %v10886
    %v10917 = vsub.f32 %v10585, %v10886
    %v10918 = vsub.f32 %v10590, %v10886
    %v10919 = vsub.f32 %v10595, %v10886
    %v10920 = vsub.f32 %v10600, %v10886
    %v10921 = vsub.f32 %v10605, %v10886
    %v10922 = vsub.f32 %v10610, %v10886
    %v10923 = vsub.f32 %v10615, %v10886
    %v10924 = vsub.f32 %v10620, %v10886
    %v10925 = vsub.f32 %v10625, %v10886
    %v10926 = vsub.f32 %v10630, %v10886
    %v10927 = vsub.f32 %v10635, %v10886
    %v10928 = vsub.f32 %v10640, %v10886
    %v10929 = vsub.f32 %v10645, %v10886
    %v10930 = vsub.f32 %v10650, %v10886
    %v10931 = vsub.f32 %v10655, %v10886
    %v10932 = vsub.f32 %v10660, %v10886
    %v10933 = vsub.f32 %v10665, %v10886
    %v10934 = vsub.f32 %v10670, %v10886
    %v10935 = vsub.f32 %v10675, %v10886
    %v10936 = vsub.f32 %v10680, %v10886
    %v10937 = vsub.f32 %v10685, %v10886
    %v10938 = vsub.f32 %v10690, %v10886
    %v10939 = vsub.f32 %v10695, %v10886
    %v10940 = vsub.f32 %v10700, %v10886
    %v10941 = vsub.f32 %v10705, %v10886
    %v10942 = vsub.f32 %v10710, %v10886
    %v10943 = vsub.f32 %v10715, %v10886
    %v10944 = vsub.f32 %v10720, %v10886
    %v10945 = vsub.f32 %v10725, %v10886
    %v10946 = vsub.f32 %v10730, %v10886
    %v10947 = vsub.f32 %v10735, %v10886
    %v10948 = vsub.f32 %v10740, %v10886
    %v10949 = vsub.f32 %v10745, %v10886
    %v10950 = vsub.f32 %v10750, %v10886
    %v10951 = vmul.f32 %v10887, %v10887
    %v10952 = vmul.f32 %v10888, %v10888
    %v10953 = vmul.f32 %v10889, %v10889
    %v10954 = vmul.f32 %v10890, %v10890
    %v10955 = vmul.f32 %v10891, %v10891
    %v10956 = vmul.f32 %v10892, %v10892
    %v10957 = vmul.f32 %v10893, %v10893
    %v10958 = vmul.f32 %v10894, %v10894
    %v10959 = vmul.f32 %v10895, %v10895
    %v10960 = vmul.f32 %v10896, %v10896
    %v10961 = vmul.f32 %v10897, %v10897
    %v10962 = vmul.f32 %v10898, %v10898
    %v10963 = vmul.f32 %v10899, %v10899
    %v10964 = vmul.f32 %v10900, %v10900
    %v10965 = vmul.f32 %v10901, %v10901
    %v10966 = vmul.f32 %v10902, %v10902
    %v10967 = vmul.f32 %v10903, %v10903
    %v10968 = vmul.f32 %v10904, %v10904
    %v10969 = vmul.f32 %v10905, %v10905
    %v10970 = vmul.f32 %v10906, %v10906
    %v10971 = vmul.f32 %v10907, %v10907
    %v10972 = vmul.f32 %v10908, %v10908
    %v10973 = vmul.f32 %v10909, %v10909
    %v10974 = vmul.f32 %v10910, %v10910
    %v10975 = vmul.f32 %v10911, %v10911
    %v10976 = vmul.f32 %v10912, %v10912
    %v10977 = vmul.f32 %v10913, %v10913
    %v10978 = vmul.f32 %v10914, %v10914
    %v10979 = vmul.f32 %v10915, %v10915
    %v10980 = vmul.f32 %v10916, %v10916
    %v10981 = vmul.f32 %v10917, %v10917
    %v10982 = vmul.f32 %v10918, %v10918
    %v10983 = vmul.f32 %v10919, %v10919
    %v10984 = vmul.f32 %v10920, %v10920
    %v10985 = vmul.f32 %v10921, %v10921
    %v10986 = vmul.f32 %v10922, %v10922
    %v10987 = vmul.f32 %v10923, %v10923
    %v10988 = vmul.f32 %v10924, %v10924
    %v10989 = vmul.f32 %v10925, %v10925
    %v10990 = vmul.f32 %v10926, %v10926
    %v10991 = vmul.f32 %v10927, %v10927
    %v10992 = vmul.f32 %v10928, %v10928
    %v10993 = vmul.f32 %v10929, %v10929
    %v10994 = vmul.f32 %v10930, %v10930
    %v10995 = vmul.f32 %v10931, %v10931
    %v10996 = vmul.f32 %v10932, %v10932
    %v10997 = vmul.f32 %v10933, %v10933
    %v10998 = vmul.f32 %v10934, %v10934
    %v10999 = vmul.f32 %v10935, %v10935
    %v11000 = vmul.f32 %v10936, %v10936
    %v11001 = vmul.f32 %v10937, %v10937
    %v11002 = vmul.f32 %v10938, %v10938
    %v11003 = vmul.f32 %v10939, %v10939
    %v11004 = vmul.f32 %v10940, %v10940
    %v11005 = vmul.f32 %v10941, %v10941
    %v11006 = vmul.f32 %v10942, %v10942
    %v11007 = vmul.f32 %v10943, %v10943
    %v11008 = vmul.f32 %v10944, %v10944
    %v11009 = vmul.f32 %v10945, %v10945
    %v11010 = vmul.f32 %v10946, %v10946
    %v11011 = vmul.f32 %v10947, %v10947
    %v11012 = vmul.f32 %v10948, %v10948
    %v11013 = vmul.f32 %v10949, %v10949
    %v11014 = vmul.f32 %v10950, %v10950
    %v11015 = vsel %vm2530, %v10951, 0.0
    %v11016 = vsel %vm2530, %v10952, 0.0
    %v11017 = vadd.f32 %v11015, %v11016
    %v11018 = vsel %vm2530, %v10953, 0.0
    %v11019 = vadd.f32 %v11017, %v11018
    %v11020 = vsel %vm2530, %v10954, 0.0
    %v11021 = vadd.f32 %v11019, %v11020
    %v11022 = vsel %vm2530, %v10955, 0.0
    %v11023 = vadd.f32 %v11021, %v11022
    %v11024 = vsel %vm2530, %v10956, 0.0
    %v11025 = vadd.f32 %v11023, %v11024
    %v11026 = vsel %vm2530, %v10957, 0.0
    %v11027 = vadd.f32 %v11025, %v11026
    %v11028 = vsel %vm2530, %v10958, 0.0
    %v11029 = vadd.f32 %v11027, %v11028
    %v11030 = vsel %vm2530, %v10959, 0.0
    %v11031 = vadd.f32 %v11029, %v11030
    %v11032 = vsel %vm2530, %v10960, 0.0
    %v11033 = vadd.f32 %v11031, %v11032
    %v11034 = vsel %vm2530, %v10961, 0.0
    %v11035 = vadd.f32 %v11033, %v11034
    %v11036 = vsel %vm2530, %v10962, 0.0
    %v11037 = vadd.f32 %v11035, %v11036
    %v11038 = vsel %vm2530, %v10963, 0.0
    %v11039 = vadd.f32 %v11037, %v11038
    %v11040 = vsel %vm2530, %v10964, 0.0
    %v11041 = vadd.f32 %v11039, %v11040
    %v11042 = vsel %vm2530, %v10965, 0.0
    %v11043 = vadd.f32 %v11041, %v11042
    %v11044 = vsel %vm2530, %v10966, 0.0
    %v11045 = vadd.f32 %v11043, %v11044
    %v11046 = vsel %vm2530, %v10967, 0.0
    %v11047 = vadd.f32 %v11045, %v11046
    %v11048 = vsel %vm2530, %v10968, 0.0
    %v11049 = vadd.f32 %v11047, %v11048
    %v11050 = vsel %vm2530, %v10969, 0.0
    %v11051 = vadd.f32 %v11049, %v11050
    %v11052 = vsel %vm2530, %v10970, 0.0
    %v11053 = vadd.f32 %v11051, %v11052
    %v11054 = vsel %vm2530, %v10971, 0.0
    %v11055 = vadd.f32 %v11053, %v11054
    %v11056 = vsel %vm2530, %v10972, 0.0
    %v11057 = vadd.f32 %v11055, %v11056
    %v11058 = vsel %vm2530, %v10973, 0.0
    %v11059 = vadd.f32 %v11057, %v11058
    %v11060 = vsel %vm2530, %v10974, 0.0
    %v11061 = vadd.f32 %v11059, %v11060
    %v11062 = vsel %vm2530, %v10975, 0.0
    %v11063 = vadd.f32 %v11061, %v11062
    %v11064 = vsel %vm2530, %v10976, 0.0
    %v11065 = vadd.f32 %v11063, %v11064
    %v11066 = vsel %vm2530, %v10977, 0.0
    %v11067 = vadd.f32 %v11065, %v11066
    %v11068 = vsel %vm2530, %v10978, 0.0
    %v11069 = vadd.f32 %v11067, %v11068
    %v11070 = vsel %vm2530, %v10979, 0.0
    %v11071 = vadd.f32 %v11069, %v11070
    %v11072 = vsel %vm2530, %v10980, 0.0
    %v11073 = vadd.f32 %v11071, %v11072
    %v11074 = vsel %vm2530, %v10981, 0.0
    %v11075 = vadd.f32 %v11073, %v11074
    %v11076 = vsel %vm2530, %v10982, 0.0
    %v11077 = vadd.f32 %v11075, %v11076
    %v11078 = vsel %vm2530, %v10983, 0.0
    %v11079 = vadd.f32 %v11077, %v11078
    %v11080 = vsel %vm2530, %v10984, 0.0
    %v11081 = vadd.f32 %v11079, %v11080
    %v11082 = vsel %vm2530, %v10985, 0.0
    %v11083 = vadd.f32 %v11081, %v11082
    %v11084 = vsel %vm2530, %v10986, 0.0
    %v11085 = vadd.f32 %v11083, %v11084
    %v11086 = vsel %vm2530, %v10987, 0.0
    %v11087 = vadd.f32 %v11085, %v11086
    %v11088 = vsel %vm2530, %v10988, 0.0
    %v11089 = vadd.f32 %v11087, %v11088
    %v11090 = vsel %vm2530, %v10989, 0.0
    %v11091 = vadd.f32 %v11089, %v11090
    %v11092 = vsel %vm2530, %v10990, 0.0
    %v11093 = vadd.f32 %v11091, %v11092
    %v11094 = vsel %vm2530, %v10991, 0.0
    %v11095 = vadd.f32 %v11093, %v11094
    %v11096 = vsel %vm2530, %v10992, 0.0
    %v11097 = vadd.f32 %v11095, %v11096
    %v11098 = vsel %vm2530, %v10993, 0.0
    %v11099 = vadd.f32 %v11097, %v11098
    %v11100 = vsel %vm2530, %v10994, 0.0
    %v11101 = vadd.f32 %v11099, %v11100
    %v11102 = vsel %vm2530, %v10995, 0.0
    %v11103 = vadd.f32 %v11101, %v11102
    %v11104 = vsel %vm2530, %v10996, 0.0
    %v11105 = vadd.f32 %v11103, %v11104
    %v11106 = vsel %vm2530, %v10997, 0.0
    %v11107 = vadd.f32 %v11105, %v11106
    %v11108 = vsel %vm2530, %v10998, 0.0
    %v11109 = vadd.f32 %v11107, %v11108
    %v11110 = vsel %vm2530, %v10999, 0.0
    %v11111 = vadd.f32 %v11109, %v11110
    %v11112 = vsel %vm2530, %v11000, 0.0
    %v11113 = vadd.f32 %v11111, %v11112
    %v11114 = vsel %vm2530, %v11001, 0.0
    %v11115 = vadd.f32 %v11113, %v11114
    %v11116 = vsel %vm2530, %v11002, 0.0
    %v11117 = vadd.f32 %v11115, %v11116
    %v11118 = vsel %vm2530, %v11003, 0.0
    %v11119 = vadd.f32 %v11117, %v11118
    %v11120 = vsel %vm2530, %v11004, 0.0
    %v11121 = vadd.f32 %v11119, %v11120
    %v11122 = vsel %vm2530, %v11005, 0.0
    %v11123 = vadd.f32 %v11121, %v11122
    %v11124 = vsel %vm2530, %v11006, 0.0
    %v11125 = vadd.f32 %v11123, %v11124
    %v11126 = vsel %vm2530, %v11007, 0.0
    %v11127 = vadd.f32 %v11125, %v11126
    %v11128 = vsel %vm2530, %v11008, 0.0
    %v11129 = vadd.f32 %v11127, %v11128
    %v11130 = vsel %vm2530, %v11009, 0.0
    %v11131 = vadd.f32 %v11129, %v11130
    %v11132 = vsel %vm2530, %v11010, 0.0
    %v11133 = vadd.f32 %v11131, %v11132
    %v11134 = vsel %vm2530, %v11011, 0.0
    %v11135 = vadd.f32 %v11133, %v11134
    %v11136 = vsel %vm2530, %v11012, 0.0
    %v11137 = vadd.f32 %v11135, %v11136
    %v11138 = vsel %vm2530, %v11013, 0.0
    %v11139 = vadd.f32 %v11137, %v11138
    %v11140 = vsel %vm2530, %v11014, 0.0
    %v11141 = vadd.f32 %v11139, %v11140
    %v11142 = vrot.slane %v11141, 4
    %v11143 = vadd.f32 %v11141, %v11142
    %v11144 = vrot.slane %v11143, 2
    %v11145 = vadd.f32 %v11143, %v11144
    %v11146 = vrot.slane %v11145, 1
    %v11147 = vadd.f32 %v11145, %v11146
    %v11148 = vmul.f32 %v11147, %v3582
    %v11149 = vadd.f32 %v11148, 1e-05
    %v11150 = vrsqrt.pop %v11149
    %v11151 = vmul.f32 %v10887, %v11150
    %v11152 = vmul.f32 %v10888, %v11150
    %v11153 = vmul.f32 %v10889, %v11150
    %v11154 = vmul.f32 %v10890, %v11150
    %v11155 = vmul.f32 %v10891, %v11150
    %v11156 = vmul.f32 %v10892, %v11150
    %v11157 = vmul.f32 %v10893, %v11150
    %v11158 = vmul.f32 %v10894, %v11150
    %v11159 = vmul.f32 %v10895, %v11150
    %v11160 = vmul.f32 %v10896, %v11150
    %v11161 = vmul.f32 %v10897, %v11150
    %v11162 = vmul.f32 %v10898, %v11150
    %v11163 = vmul.f32 %v10899, %v11150
    %v11164 = vmul.f32 %v10900, %v11150
    %v11165 = vmul.f32 %v10901, %v11150
    %v11166 = vmul.f32 %v10902, %v11150
    %v11167 = vmul.f32 %v10903, %v11150
    %v11168 = vmul.f32 %v10904, %v11150
    %v11169 = vmul.f32 %v10905, %v11150
    %v11170 = vmul.f32 %v10906, %v11150
    %v11171 = vmul.f32 %v10907, %v11150
    %v11172 = vmul.f32 %v10908, %v11150
    %v11173 = vmul.f32 %v10909, %v11150
    %v11174 = vmul.f32 %v10910, %v11150
    %v11175 = vmul.f32 %v10911, %v11150
    %v11176 = vmul.f32 %v10912, %v11150
    %v11177 = vmul.f32 %v10913, %v11150
    %v11178 = vmul.f32 %v10914, %v11150
    %v11179 = vmul.f32 %v10915, %v11150
    %v11180 = vmul.f32 %v10916, %v11150
    %v11181 = vmul.f32 %v10917, %v11150
    %v11182 = vmul.f32 %v10918, %v11150
    %v11183 = vmul.f32 %v10919, %v11150
    %v11184 = vmul.f32 %v10920, %v11150
    %v11185 = vmul.f32 %v10921, %v11150
    %v11186 = vmul.f32 %v10922, %v11150
    %v11187 = vmul.f32 %v10923, %v11150
    %v11188 = vmul.f32 %v10924, %v11150
    %v11189 = vmul.f32 %v10925, %v11150
    %v11190 = vmul.f32 %v10926, %v11150
    %v11191 = vmul.f32 %v10927, %v11150
    %v11192 = vmul.f32 %v10928, %v11150
    %v11193 = vmul.f32 %v10929, %v11150
    %v11194 = vmul.f32 %v10930, %v11150
    %v11195 = vmul.f32 %v10931, %v11150
    %v11196 = vmul.f32 %v10932, %v11150
    %v11197 = vmul.f32 %v10933, %v11150
    %v11198 = vmul.f32 %v10934, %v11150
    %v11199 = vmul.f32 %v10935, %v11150
    %v11200 = vmul.f32 %v10936, %v11150
    %v11201 = vmul.f32 %v10937, %v11150
    %v11202 = vmul.f32 %v10938, %v11150
    %v11203 = vmul.f32 %v10939, %v11150
    %v11204 = vmul.f32 %v10940, %v11150
    %v11205 = vmul.f32 %v10941, %v11150
    %v11206 = vmul.f32 %v10942, %v11150
    %v11207 = vmul.f32 %v10943, %v11150
    %v11208 = vmul.f32 %v10944, %v11150
    %v11209 = vmul.f32 %v10945, %v11150
    %v11210 = vmul.f32 %v10946, %v11150
    %v11211 = vmul.f32 %v10947, %v11150
    %v11212 = vmul.f32 %v10948, %v11150
    %v11213 = vmul.f32 %v10949, %v11150
    %v11214 = vmul.f32 %v10950, %v11150
    %v11215 = vld [vmem:[%s11] sm:$0x1]
    %v11217 = vlaneseq
    %v11218 = vshrl.u32 %v11217, 7
    %v11219 = vsub.s32 0, %v11218
    %v11220 = vrot.slane %v11215, %v11219
    %v11222 = vmul.f32 %v11151, %v11220
    %v11223 = vmul.f32 %v11152, %v11220
    %v11224 = vmul.f32 %v11153, %v11220
    %v11225 = vmul.f32 %v11154, %v11220
    %v11226 = vmul.f32 %v11155, %v11220
    %v11227 = vmul.f32 %v11156, %v11220
    %v11228 = vmul.f32 %v11157, %v11220
    %v11229 = vmul.f32 %v11158, %v11220
    %v11230 = vmul.f32 %v11159, %v11220
    %v11231 = vmul.f32 %v11160, %v11220
    %v11232 = vmul.f32 %v11161, %v11220
    %v11233 = vmul.f32 %v11162, %v11220
    %v11234 = vmul.f32 %v11163, %v11220
    %v11235 = vmul.f32 %v11164, %v11220
    %v11236 = vmul.f32 %v11165, %v11220
    %v11237 = vmul.f32 %v11166, %v11220
    %v11238 = vmul.f32 %v11167, %v11220
    %v11239 = vmul.f32 %v11168, %v11220
    %v11240 = vmul.f32 %v11169, %v11220
    %v11241 = vmul.f32 %v11170, %v11220
    %v11242 = vmul.f32 %v11171, %v11220
    %v11243 = vmul.f32 %v11172, %v11220
    %v11244 = vmul.f32 %v11173, %v11220
    %v11245 = vmul.f32 %v11174, %v11220
    %v11246 = vmul.f32 %v11175, %v11220
    %v11247 = vmul.f32 %v11176, %v11220
    %v11248 = vmul.f32 %v11177, %v11220
    %v11249 = vmul.f32 %v11178, %v11220
    %v11250 = vmul.f32 %v11179, %v11220
    %v11251 = vmul.f32 %v11180, %v11220
    %v11252 = vmul.f32 %v11181, %v11220
    %v11253 = vmul.f32 %v11182, %v11220
    %v11254 = vmul.f32 %v11183, %v11220
    %v11255 = vmul.f32 %v11184, %v11220
    %v11256 = vmul.f32 %v11185, %v11220
    %v11257 = vmul.f32 %v11186, %v11220
    %v11258 = vmul.f32 %v11187, %v11220
    %v11259 = vmul.f32 %v11188, %v11220
    %v11260 = vmul.f32 %v11189, %v11220
    %v11261 = vmul.f32 %v11190, %v11220
    %v11262 = vmul.f32 %v11191, %v11220
    %v11263 = vmul.f32 %v11192, %v11220
    %v11264 = vmul.f32 %v11193, %v11220
    %v11265 = vmul.f32 %v11194, %v11220
    %v11266 = vmul.f32 %v11195, %v11220
    %v11267 = vmul.f32 %v11196, %v11220
    %v11268 = vmul.f32 %v11197, %v11220
    %v11269 = vmul.f32 %v11198, %v11220
    %v11270 = vmul.f32 %v11199, %v11220
    %v11271 = vmul.f32 %v11200, %v11220
    %v11272 = vmul.f32 %v11201, %v11220
    %v11273 = vmul.f32 %v11202, %v11220
    %v11274 = vmul.f32 %v11203, %v11220
    %v11275 = vmul.f32 %v11204, %v11220
    %v11276 = vmul.f32 %v11205, %v11220
    %v11277 = vmul.f32 %v11206, %v11220
    %v11278 = vmul.f32 %v11207, %v11220
    %v11279 = vmul.f32 %v11208, %v11220
    %v11280 = vmul.f32 %v11209, %v11220
    %v11281 = vmul.f32 %v11210, %v11220
    %v11282 = vmul.f32 %v11211, %v11220
    %v11283 = vmul.f32 %v11212, %v11220
    %v11284 = vmul.f32 %v11213, %v11220
    %v11285 = vmul.f32 %v11214, %v11220
    %v11286 = vld [vmem:[%s12] sm:$0x1]
    %v11288 = vlaneseq
    %v11289 = vshrl.u32 %v11288, 7
    %v11290 = vsub.s32 0, %v11289
    %v11291 = vrot.slane %v11286, %v11290
    %v11293 = vadd.f32 %v11222, %v11291
    %v11294 = vadd.f32 %v11223, %v11291
    %v11295 = vadd.f32 %v11224, %v11291
    %v11296 = vadd.f32 %v11225, %v11291
    %v11297 = vadd.f32 %v11226, %v11291
    %v11298 = vadd.f32 %v11227, %v11291
    %v11299 = vadd.f32 %v11228, %v11291
    %v11300 = vadd.f32 %v11229, %v11291
    %v11301 = vadd.f32 %v11230, %v11291
    %v11302 = vadd.f32 %v11231, %v11291
    %v11303 = vadd.f32 %v11232, %v11291
    %v11304 = vadd.f32 %v11233, %v11291
    %v11305 = vadd.f32 %v11234, %v11291
    %v11306 = vadd.f32 %v11235, %v11291
    %v11307 = vadd.f32 %v11236, %v11291
    %v11308 = vadd.f32 %v11237, %v11291
    %v11309 = vadd.f32 %v11238, %v11291
    %v11310 = vadd.f32 %v11239, %v11291
    %v11311 = vadd.f32 %v11240, %v11291
    %v11312 = vadd.f32 %v11241, %v11291
    %v11313 = vadd.f32 %v11242, %v11291
    %v11314 = vadd.f32 %v11243, %v11291
    %v11315 = vadd.f32 %v11244, %v11291
    %v11316 = vadd.f32 %v11245, %v11291
    %v11317 = vadd.f32 %v11246, %v11291
    %v11318 = vadd.f32 %v11247, %v11291
    %v11319 = vadd.f32 %v11248, %v11291
    %v11320 = vadd.f32 %v11249, %v11291
    %v11321 = vadd.f32 %v11250, %v11291
    %v11322 = vadd.f32 %v11251, %v11291
    %v11323 = vadd.f32 %v11252, %v11291
    %v11324 = vadd.f32 %v11253, %v11291
    %v11325 = vadd.f32 %v11254, %v11291
    %v11326 = vadd.f32 %v11255, %v11291
    %v11327 = vadd.f32 %v11256, %v11291
    %v11328 = vadd.f32 %v11257, %v11291
    %v11329 = vadd.f32 %v11258, %v11291
    %v11330 = vadd.f32 %v11259, %v11291
    %v11331 = vadd.f32 %v11260, %v11291
    %v11332 = vadd.f32 %v11261, %v11291
    %v11333 = vadd.f32 %v11262, %v11291
    %v11334 = vadd.f32 %v11263, %v11291
    %v11335 = vadd.f32 %v11264, %v11291
    %v11336 = vadd.f32 %v11265, %v11291
    %v11337 = vadd.f32 %v11266, %v11291
    %v11338 = vadd.f32 %v11267, %v11291
    %v11339 = vadd.f32 %v11268, %v11291
    %v11340 = vadd.f32 %v11269, %v11291
    %v11341 = vadd.f32 %v11270, %v11291
    %v11342 = vadd.f32 %v11271, %v11291
    %v11343 = vadd.f32 %v11272, %v11291
    %v11344 = vadd.f32 %v11273, %v11291
    %v11345 = vadd.f32 %v11274, %v11291
    %v11346 = vadd.f32 %v11275, %v11291
    %v11347 = vadd.f32 %v11276, %v11291
    %v11348 = vadd.f32 %v11277, %v11291
    %v11349 = vadd.f32 %v11278, %v11291
    %v11350 = vadd.f32 %v11279, %v11291
    %v11351 = vadd.f32 %v11280, %v11291
    %v11352 = vadd.f32 %v11281, %v11291
    %v11353 = vadd.f32 %v11282, %v11291
    %v11354 = vadd.f32 %v11283, %v11291
    %v11355 = vadd.f32 %v11284, %v11291
    %v11356 = vadd.f32 %v11285, %v11291
    %v11357 = vmax.f32 %v11293, 0.0
    %v11358 = vmax.f32 %v11294, 0.0
    %v11359 = vmax.f32 %v11295, 0.0
    %v11360 = vmax.f32 %v11296, 0.0
    %v11361 = vmax.f32 %v11297, 0.0
    %v11362 = vmax.f32 %v11298, 0.0
    %v11363 = vmax.f32 %v11299, 0.0
    %v11364 = vmax.f32 %v11300, 0.0
    %v11365 = vmax.f32 %v11301, 0.0
    %v11366 = vmax.f32 %v11302, 0.0
    %v11367 = vmax.f32 %v11303, 0.0
    %v11368 = vmax.f32 %v11304, 0.0
    %v11369 = vmax.f32 %v11305, 0.0
    %v11370 = vmax.f32 %v11306, 0.0
    %v11371 = vmax.f32 %v11307, 0.0
    %v11372 = vmax.f32 %v11308, 0.0
    %v11373 = vmax.f32 %v11309, 0.0
    %v11374 = vmax.f32 %v11310, 0.0
    %v11375 = vmax.f32 %v11311, 0.0
    %v11376 = vmax.f32 %v11312, 0.0
    %v11377 = vmax.f32 %v11313, 0.0
    %v11378 = vmax.f32 %v11314, 0.0
    %v11379 = vmax.f32 %v11315, 0.0
    %v11380 = vmax.f32 %v11316, 0.0
    %v11381 = vmax.f32 %v11317, 0.0
    %v11382 = vmax.f32 %v11318, 0.0
    %v11383 = vmax.f32 %v11319, 0.0
    %v11384 = vmax.f32 %v11320, 0.0
    %v11385 = vmax.f32 %v11321, 0.0
    %v11386 = vmax.f32 %v11322, 0.0
    %v11387 = vmax.f32 %v11323, 0.0
    %v11388 = vmax.f32 %v11324, 0.0
    %v11389 = vmax.f32 %v11325, 0.0
    %v11390 = vmax.f32 %v11326, 0.0
    %v11391 = vmax.f32 %v11327, 0.0
    %v11392 = vmax.f32 %v11328, 0.0
    %v11393 = vmax.f32 %v11329, 0.0
    %v11394 = vmax.f32 %v11330, 0.0
    %v11395 = vmax.f32 %v11331, 0.0
    %v11396 = vmax.f32 %v11332, 0.0
    %v11397 = vmax.f32 %v11333, 0.0
    %v11398 = vmax.f32 %v11334, 0.0
    %v11399 = vmax.f32 %v11335, 0.0
    %v11400 = vmax.f32 %v11336, 0.0
    %v11401 = vmax.f32 %v11337, 0.0
    %v11402 = vmax.f32 %v11338, 0.0
    %v11403 = vmax.f32 %v11339, 0.0
    %v11404 = vmax.f32 %v11340, 0.0
    %v11405 = vmax.f32 %v11341, 0.0
    %v11406 = vmax.f32 %v11342, 0.0
    %v11407 = vmax.f32 %v11343, 0.0
    %v11408 = vmax.f32 %v11344, 0.0
    %v11409 = vmax.f32 %v11345, 0.0
    %v11410 = vmax.f32 %v11346, 0.0
    %v11411 = vmax.f32 %v11347, 0.0
    %v11412 = vmax.f32 %v11348, 0.0
    %v11413 = vmax.f32 %v11349, 0.0
    %v11414 = vmax.f32 %v11350, 0.0
    %v11415 = vmax.f32 %v11351, 0.0
    %v11416 = vmax.f32 %v11352, 0.0
    %v11417 = vmax.f32 %v11353, 0.0
    %v11418 = vmax.f32 %v11354, 0.0
    %v11419 = vmax.f32 %v11355, 0.0
    %v11420 = vmax.f32 %v11356, 0.0
    %11421 = vst.msk [vmem:[#allocation2] sm:$0xff] %vm2530, %v11357
    %11422 = vst.msk [vmem:[#allocation2 + $0x8] sm:$0xff] %vm2530, %v11358
    %11423 = vst.msk [vmem:[#allocation2 + $0x10] sm:$0xff] %vm2530, %v11359
    %11424 = vst.msk [vmem:[#allocation2 + $0x18] sm:$0xff] %vm2530, %v11360
    %11425 = vst.msk [vmem:[#allocation2 + $0x20] sm:$0xff] %vm2530, %v11361
    %11426 = vst.msk [vmem:[#allocation2 + $0x28] sm:$0xff] %vm2530, %v11362
    %11427 = vst.msk [vmem:[#allocation2 + $0x30] sm:$0xff] %vm2530, %v11363
    %11428 = vst.msk [vmem:[#allocation2 + $0x38] sm:$0xff] %vm2530, %v11364
    %11429 = vst.msk [vmem:[#allocation2 + $0x40] sm:$0xff] %vm2530, %v11365
    %11430 = vst.msk [vmem:[#allocation2 + $0x48] sm:$0xff] %vm2530, %v11366
    %11431 = vst.msk [vmem:[#allocation2 + $0x50] sm:$0xff] %vm2530, %v11367
    %11432 = vst.msk [vmem:[#allocation2 + $0x58] sm:$0xff] %vm2530, %v11368
    %11433 = vst.msk [vmem:[#allocation2 + $0x60] sm:$0xff] %vm2530, %v11369
    %11434 = vst.msk [vmem:[#allocation2 + $0x68] sm:$0xff] %vm2530, %v11370
    %11435 = vst.msk [vmem:[#allocation2 + $0x70] sm:$0xff] %vm2530, %v11371
    %11436 = vst.msk [vmem:[#allocation2 + $0x78] sm:$0xff] %vm2530, %v11372
    %11437 = vst.msk [vmem:[#allocation2 + $0x80] sm:$0xff] %vm2530, %v11373
    %11438 = vst.msk [vmem:[#allocation2 + $0x88] sm:$0xff] %vm2530, %v11374
    %11439 = vst.msk [vmem:[#allocation2 + $0x90] sm:$0xff] %vm2530, %v11375
    %11440 = vst.msk [vmem:[#allocation2 + $0x98] sm:$0xff] %vm2530, %v11376
    %11441 = vst.msk [vmem:[#allocation2 + $0xa0] sm:$0xff] %vm2530, %v11377
    %11442 = vst.msk [vmem:[#allocation2 + $0xa8] sm:$0xff] %vm2530, %v11378
    %11443 = vst.msk [vmem:[#allocation2 + $0xb0] sm:$0xff] %vm2530, %v11379
    %11444 = vst.msk [vmem:[#allocation2 + $0xb8] sm:$0xff] %vm2530, %v11380
    %11445 = vst.msk [vmem:[#allocation2 + $0xc0] sm:$0xff] %vm2530, %v11381
    %11446 = vst.msk [vmem:[#allocation2 + $0xc8] sm:$0xff] %vm2530, %v11382
    %11447 = vst.msk [vmem:[#allocation2 + $0xd0] sm:$0xff] %vm2530, %v11383
    %11448 = vst.msk [vmem:[#allocation2 + $0xd8] sm:$0xff] %vm2530, %v11384
    %11449 = vst.msk [vmem:[#allocation2 + $0xe0] sm:$0xff] %vm2530, %v11385
    %11450 = vst.msk [vmem:[#allocation2 + $0xe8] sm:$0xff] %vm2530, %v11386
    %11451 = vst.msk [vmem:[#allocation2 + $0xf0] sm:$0xff] %vm2530, %v11387
    %11452 = vst.msk [vmem:[#allocation2 + $0xf8] sm:$0xff] %vm2530, %v11388
    %11453 = vst.msk [vmem:[#allocation2 + $0x100] sm:$0xff] %vm2530, %v11389
    %11454 = vst.msk [vmem:[#allocation2 + $0x108] sm:$0xff] %vm2530, %v11390
    %11455 = vst.msk [vmem:[#allocation2 + $0x110] sm:$0xff] %vm2530, %v11391
    %11456 = vst.msk [vmem:[#allocation2 + $0x118] sm:$0xff] %vm2530, %v11392
    %11457 = vst.msk [vmem:[#allocation2 + $0x120] sm:$0xff] %vm2530, %v11393
    %11458 = vst.msk [vmem:[#allocation2 + $0x128] sm:$0xff] %vm2530, %v11394
    %11459 = vst.msk [vmem:[#allocation2 + $0x130] sm:$0xff] %vm2530, %v11395
    %11460 = vst.msk [vmem:[#allocation2 + $0x138] sm:$0xff] %vm2530, %v11396
    %11461 = vst.msk [vmem:[#allocation2 + $0x140] sm:$0xff] %vm2530, %v11397
    %11462 = vst.msk [vmem:[#allocation2 + $0x148] sm:$0xff] %vm2530, %v11398
    %11463 = vst.msk [vmem:[#allocation2 + $0x150] sm:$0xff] %vm2530, %v11399
    %11464 = vst.msk [vmem:[#allocation2 + $0x158] sm:$0xff] %vm2530, %v11400
    %11465 = vst.msk [vmem:[#allocation2 + $0x160] sm:$0xff] %vm2530, %v11401
    %11466 = vst.msk [vmem:[#allocation2 + $0x168] sm:$0xff] %vm2530, %v11402
    %11467 = vst.msk [vmem:[#allocation2 + $0x170] sm:$0xff] %vm2530, %v11403
    %11468 = vst.msk [vmem:[#allocation2 + $0x178] sm:$0xff] %vm2530, %v11404
    %11469 = vst.msk [vmem:[#allocation2 + $0x180] sm:$0xff] %vm2530, %v11405
    %11470 = vst.msk [vmem:[#allocation2 + $0x188] sm:$0xff] %vm2530, %v11406
    %11471 = vst.msk [vmem:[#allocation2 + $0x190] sm:$0xff] %vm2530, %v11407
    %11472 = vst.msk [vmem:[#allocation2 + $0x198] sm:$0xff] %vm2530, %v11408
    %11473 = vst.msk [vmem:[#allocation2 + $0x1a0] sm:$0xff] %vm2530, %v11409
    %11474 = vst.msk [vmem:[#allocation2 + $0x1a8] sm:$0xff] %vm2530, %v11410
    %11475 = vst.msk [vmem:[#allocation2 + $0x1b0] sm:$0xff] %vm2530, %v11411
    %11476 = vst.msk [vmem:[#allocation2 + $0x1b8] sm:$0xff] %vm2530, %v11412
    %11477 = vst.msk [vmem:[#allocation2 + $0x1c0] sm:$0xff] %vm2530, %v11413
    %11478 = vst.msk [vmem:[#allocation2 + $0x1c8] sm:$0xff] %vm2530, %v11414
    %11479 = vst.msk [vmem:[#allocation2 + $0x1d0] sm:$0xff] %vm2530, %v11415
    %11480 = vst.msk [vmem:[#allocation2 + $0x1d8] sm:$0xff] %vm2530, %v11416
    %11481 = vst.msk [vmem:[#allocation2 + $0x1e0] sm:$0xff] %vm2530, %v11417
    %11482 = vst.msk [vmem:[#allocation2 + $0x1e8] sm:$0xff] %vm2530, %v11418
    %11483 = vst.msk [vmem:[#allocation2 + $0x1f0] sm:$0xff] %vm2530, %v11419
    %11484 = vst.msk [vmem:[#allocation2 + $0x1f8] sm:$0xff] %vm2530, %v11420
    // Predicated region
    $region54: #{tpu_custom_call.1} parent=1 // pred_check
      _
    $region55: #{tpu_custom_call.1} parent=1 // pred_check_branch
      %11486 = sbr.rel (0) target = $region57
    $region56: #{tpu_custom_call.1} parent=1 // pred_region
      %s11488 = ssub.s32 8192, 8192
      %11489 = vsyncadd [#allocation3], %s11488
      %s11490 = sshll.u32 [#allocation2], 4
      %s11491 = int_to_ptr.vmem [resolvable:$true] %s11490
      %11496 = dma.vmem_to_hbm [thread:$0]  %s11491, 8192, %s13, [#allocation3], 128, 128, 8
    $region57: #{tpu_custom_call.1} parent=1 // pred_fallthru
      _
    // Predicated region
    $region58: #{tpu_custom_call.1} parent=1 // pred_check
      _
    $region59: #{tpu_custom_call.1} parent=1 // pred_check_branch
      %11498 = sbr.rel (0) target = $region61
    $region60: #{tpu_custom_call.1} parent=1 // pred_region
      %11499 = dma.done [#allocation3], 8192
    $region61: #{tpu_custom_call.1} parent=1 // pred_fallthru
      _
    %11500 = vsyncpa [#allocation3], 1

</llo_original>
